<compile_context>
chip_gen: v6e
topology: v6e:2x2x1
jax: 0.10.0
libtpu: 0.0.40
codegen_flags: <defaults>
</compile_context>

<pallas_src>
import functools

import jax
import jax.numpy as jnp
from jax import lax
from jax.experimental import pallas as pl
from jax.experimental.pallas import tpu as pltpu

NUM_GROUPS = 32
EPS = 1e-6


# --------------------------------------------------------------------------------------
# Kernel
# --------------------------------------------------------------------------------------
def _resnet_block_kernel(*refs, use_nin, gsize_in, gsize_out):
    if use_nin:
        (x_ref, g1_ref, be1_ref, w1_ref, b1_ref,
         g2_ref, be2_ref, w2_ref, b2_ref,
         mgi_ref, mgo_ref, wn_ref, bn_ref,
         o_ref, cols1, cols2) = refs
    else:
        (x_ref, g1_ref, be1_ref, w1_ref, b1_ref,
         g2_ref, be2_ref, w2_ref, b2_ref,
         mgi_ref, mgo_ref,
         o_ref, cols1, cols2) = refs
        wn_ref = bn_ref = None

    B, H, W, Cin = x_ref.shape
    Cout = o_ref.shape[3]
    HW = H * W
    M = B * HW

    def group_norm(h4, mask_ref, gamma_ref, beta_ref, c, gsize):
        # Per-sample GroupNorm over (C//G, H, W).  Statistics stay f32 end-to-end.
        cnt = float(gsize * HW)
        h3 = h4.reshape(B, HW, c)
        s = jnp.sum(h3, axis=1)                                  # (B, C) f32
        ss = jnp.sum(h3 * h3, axis=1)                            # (B, C) f32
        if gsize == 1:
            gs, gss = s, ss                                      # group mask is the identity
        else:
            # Exact f32 group reduction on the VPU/XLU (mask is a 0/1 same-group indicator);
            # avoids MXU default-precision truncation of the stats feeding rsqrt.
            m = mask_ref[...]                                    # (C, C) f32
            gs = jnp.sum(s[:, None, :] * m[None, :, :], axis=-1)
            gss = jnp.sum(ss[:, None, :] * m[None, :, :], axis=-1)
        mean = gs / cnt
        var = jnp.maximum(gss / cnt - mean * mean, 0.0)          # one-pass var can dip < 0
        inv = lax.rsqrt(var + EPS)
        scale = inv * gamma_ref[...]                             # (B, C)
        shift = beta_ref[...] - mean * scale                     # (B, C)
        return h4 * scale[:, None, None, :] + shift[:, None, None, :]

    def swish(h):
        return h * jax.nn.sigmoid(h)

    def conv3x3(h4, c_in, c_out, cols_ref, w_ref, b_ref):
        # Scatter the 9 shifted taps of the activation straight into the bf16 im2col scratch
        # (lane block t*c_in .. (t+1)*c_in for tap t = 3*dy + dx), then one big matmul.
        hb = h4.astype(jnp.bfloat16)
        zrow = jnp.zeros((B, 1, W, c_in), jnp.bfloat16)
        zcol = jnp.zeros((B, H, 1, c_in), jnp.bfloat16)
        for t in range(9):
            oy, ox = t // 3 - 1, t % 3 - 1                       # offsets in {-1, 0, 1}
            lo = t * c_in
            h0, hv = max(0, -oy), H - abs(oy)
            w0, wv = max(0, -ox), W - abs(ox)
            # Zero only the thin border strips that have no valid source (every step).
            if oy != 0:
                zr = 0 if oy < 0 else H - 1
                cols_ref[:, zr:zr + 1, :, lo:lo + c_in] = zrow
            if ox != 0:
                zc = 0 if ox < 0 else W - 1
                cols_ref[:, :, zc:zc + 1, lo:lo + c_in] = zcol
            cols_ref[:, h0:h0 + hv, w0:w0 + wv, lo:lo + c_in] = (
                hb[:, h0 + oy:h0 + oy + hv, w0 + ox:w0 + ox + wv, :])
        cols = cols_ref[...].reshape(M, 9 * c_in)                # bf16 (M, 9*c_in)
        acc = jnp.dot(cols, w_ref[...], preferred_element_type=jnp.float32)
        return (acc + b_ref[...]).reshape(B, H, W, c_out)        # bias added once at the end

    x4 = x_ref[...].astype(jnp.float32)                          # (B, H, W, Cin)

    # h = conv1(swish(norm1(x)))
    h = group_norm(x4, mgi_ref, g1_ref, be1_ref, Cin, gsize_in)
    h = swish(h)
    h = conv3x3(h, Cin, Cout, cols1, w1_ref, b1_ref)

    # temb is None (temb_channels == 0) -> no temb_proj term.
    # h = conv2(dropout(swish(norm2(h)))); dropout is identity in eval mode.
    h = group_norm(h, mgo_ref, g2_ref, be2_ref, Cout, gsize_out)
    h = swish(h)
    h = conv3x3(h, Cout, Cout, cols2, w2_ref, b2_ref)

    # Shortcut: 1x1 conv (channel matmul) when Cin != Cout, identity otherwise.
    if use_nin:
        xs = jnp.dot(x4.reshape(M, Cin).astype(jnp.bfloat16), wn_ref[...],
                     preferred_element_type=jnp.float32) + bn_ref[...]
        xs = xs.reshape(B, H, W, Cout)
    else:
        xs = x4

    o_ref[...] = (xs + h).astype(o_ref.dtype)


# --------------------------------------------------------------------------------------
# Planning helpers
# --------------------------------------------------------------------------------------
def _group_mask(c):
    ids = jnp.arange(c) // (c // NUM_GROUPS)
    return (ids[:, None] == ids[None, :]).astype(jnp.float32)


def _phys_bytes(shape, itemsize):
    """VMEM footprint including lane(128)/sublane padding on the trailing two dims."""
    shape = tuple(int(d) for d in shape)
    if len(shape) < 2:
        shape = (1,) * (2 - len(shape)) + shape
    sub = max(8, 32 // itemsize)                  # 8 rows for f32, 16 for bf16
    lead = 1
    for d in shape[:-2]:
        lead *= d
    rows = -(-shape[-2] // sub) * sub
    lanes = -(-shape[-1] // 128) * 128
    return lead * rows * lanes * itemsize


def _vmem_capacity_bytes():
    try:
        info = pltpu.get_tpu_info()
        return int(getattr(info, "vmem_capacity_bytes", 128 * 2**20))
    except Exception:
        return 128 * 2**20


def _plan(n, h, w, cin, cout, io_itemsize, b_tile=None):
    cap = _vmem_capacity_bytes()
    # Working-set budget per grid step: conservative on 64 MiB (v7x) parts, roomier on
    # 128 MiB (v5e/v6e) parts.
    budget = 14 * 2**20 if cap <= 80 * 2**20 else 48 * 2**20
    cmax = max(cin, cout)

    def footprint(bt):
        m = bt * h * w
        fp = 0
        fp += 2 * _phys_bytes((bt, h, w, cin), io_itemsize)      # input block, double-buffered
        fp += 2 * _phys_bytes((bt, h, w, cout), io_itemsize)     # output block, double-buffered
        fp += _phys_bytes((bt, h, w, 9 * cin), 2)                # im2col scratch conv1 (bf16)
        fp += _phys_bytes((bt, h, w, 9 * cout), 2)               # im2col scratch conv2 (bf16)
        fp += 4 * _phys_bytes((m, cmax), 4)                      # live f32 intermediates
        fp += _phys_bytes((bt, cmax, cmax), 4)                   # GN masked-reduce temp
        fp += 2 * (_phys_bytes((9 * cin, cout), 2)               # bf16 weights, double-buffered
                   + _phys_bytes((9 * cout, cout), 2)
                   + _phys_bytes((cin, cout), 2))
        fp += _phys_bytes((cin, cin), 4) + _phys_bytes((cout, cout), 4)   # group masks
        return fp

    if b_tile is None:
        # Keep >= 2 grid steps so both v7x TensorCores get work and DMAs overlap compute.
        cap_bt = max(1, n // 2)
        b_tile = 1
        for cand in range(1, cap_bt + 1):
            if n % cand == 0 and footprint(cand) <= budget:
                b_tile = cand
    fp = footprint(b_tile)
    vmem_limit = int(min(max(2 * fp + (16 << 20), 32 << 20), (5 * cap) // 8))
    return b_tile, vmem_limit


# --------------------------------------------------------------------------------------
# Wrappers
# --------------------------------------------------------------------------------------
def resnet_block_nhwc(x, params, *, b_tile=None):
    """Fused ResnetBlock forward. x: (N, H, W, Cin) -> (N, H, W, Cout), dtype follows x."""
    N, H, W, Cin = x.shape
    Cout = params["w1"].shape[-1]
    assert Cin % NUM_GROUPS == 0 and Cout % NUM_GROUPS == 0, "GroupNorm needs C % 32 == 0"
    use_nin = Cin != Cout
    io_dtype = x.dtype

    b_tile, vmem_limit = _plan(N, H, W, Cin, Cout, jnp.dtype(io_dtype).itemsize, b_tile)
    assert N % b_tile == 0

    # Conv kernels flattened to im2col layout (9*Cin, Cout); matmul operands in bf16.
    w1r = params["w1"].reshape(9 * Cin, Cout).astype(jnp.bfloat16)
    w2r = params["w2"].reshape(9 * Cout, Cout).astype(jnp.bfloat16)
    g1 = params["g1"].reshape(1, Cin).astype(jnp.float32)
    be1 = params["b1n"].reshape(1, Cin).astype(jnp.float32)
    b1 = params["b1"].reshape(1, Cout).astype(jnp.float32)
    g2 = params["g2"].reshape(1, Cout).astype(jnp.float32)
    be2 = params["b2n"].reshape(1, Cout).astype(jnp.float32)
    b2 = params["b2"].reshape(1, Cout).astype(jnp.float32)
    mgi = _group_mask(Cin)
    mgo = _group_mask(Cout)

    inputs = [x, g1, be1, w1r, b1, g2, be2, w2r, b2, mgi, mgo]
    in_specs = [
        pl.BlockSpec((b_tile, H, W, Cin), lambda n: (n, 0, 0, 0)),
        pl.BlockSpec((1, Cin), lambda n: (0, 0)),
        pl.BlockSpec((1, Cin), lambda n: (0, 0)),
        pl.BlockSpec((9 * Cin, Cout), lambda n: (0, 0)),
        pl.BlockSpec((1, Cout), lambda n: (0, 0)),
        pl.BlockSpec((1, Cout), lambda n: (0, 0)),
        pl.BlockSpec((1, Cout), lambda n: (0, 0)),
        pl.BlockSpec((9 * Cout, Cout), lambda n: (0, 0)),
        pl.BlockSpec((1, Cout), lambda n: (0, 0)),
        pl.BlockSpec((Cin, Cin), lambda n: (0, 0)),
        pl.BlockSpec((Cout, Cout), lambda n: (0, 0)),
    ]
    if use_nin:
        inputs += [params["wn"].reshape(Cin, Cout).astype(jnp.bfloat16),
                   params["bn"].reshape(1, Cout).astype(jnp.float32)]
        in_specs += [pl.BlockSpec((Cin, Cout), lambda n: (0, 0)),
                     pl.BlockSpec((1, Cout), lambda n: (0, 0))]

    kernel = functools.partial(_resnet_block_kernel, use_nin=use_nin,
                               gsize_in=Cin // NUM_GROUPS, gsize_out=Cout // NUM_GROUPS)
    return pl.pallas_call(
        kernel,
        out_shape=jax.ShapeDtypeStruct((N, H, W, Cout), io_dtype),
        grid_spec=pltpu.PrefetchScalarGridSpec(
            num_scalar_prefetch=0,
            grid=(N // b_tile,),
            in_specs=in_specs,
            out_specs=pl.BlockSpec((b_tile, H, W, Cout), lambda n: (n, 0, 0, 0)),
            scratch_shapes=[
                pltpu.VMEM((b_tile, H, W, 9 * Cin), jnp.bfloat16),   # im2col scratch, conv1
                pltpu.VMEM((b_tile, H, W, 9 * Cout), jnp.bfloat16),  # im2col scratch, conv2
            ],
        ),
        compiler_params=pltpu.CompilerParams(
            dimension_semantics=("parallel",),
            vmem_limit_bytes=vmem_limit,
        ),
    )(*inputs)


def resnet_block(x_nchw, params, **kwargs):
    """NCHW wrapper matching the PyTorch module.  Prefer resnet_block_nhwc inside an NHWC
    model (each transpose here is a full HBM round-trip outside the kernel)."""
    y = resnet_block_nhwc(jnp.transpose(x_nchw, (0, 2, 3, 1)), params, **kwargs)
    return jnp.transpose(y, (0, 3, 1, 2))


# ----- pure-JAX reference (conv precision matched to the kernel: bf16 operands, f32 accum) -----
def _ref_forward(x_nchw, params):
    x = jnp.transpose(x_nchw, (0, 2, 3, 1)).astype(jnp.float32)
    cin, cout = x.shape[-1], params["w1"].shape[-1]

    def gn(h, gamma, beta):
        n, hh, ww, c = h.shape
        hg = h.reshape(n, hh, ww, NUM_GROUPS, c // NUM_GROUPS)
        mean = hg.mean(axis=(1, 2, 4), keepdims=True)
        var = jnp.mean((hg - mean) ** 2, axis=(1, 2, 4), keepdims=True)
        hn = (hg - mean) * lax.rsqrt(var + EPS)
        return hn.reshape(n, hh, ww, c) * gamma + beta

    def conv(h, w, b, p):
        y = lax.conv_general_dilated(
            h.astype(jnp.bfloat16), w.astype(jnp.bfloat16), (1, 1), ((p, p), (p, p)),
            dimension_numbers=("NHWC", "HWIO", "NHWC"),
            preferred_element_type=jnp.float32)
        return y + b

    sw = lambda t: t * jax.nn.sigmoid(t)
    h = conv(sw(gn(x, params["g1"], params["b1n"])), params["w1"], params["b1"], 1)
    h = conv(sw(gn(h, params["g2"], params["b2n"])), params["w2"], params["b2"], 1)
    xs = conv(x, params["wn"], params["bn"], 0) if cin != cout else x
    return jnp.transpose(xs + h, (0, 3, 1, 2))


if __name__ == "__main__":
    def make_params(key, cin, cout):
        ks = jax.random.split(key, 10)
        p = {
            "g1": 1.0 + 0.1 * jax.random.normal(ks[0], (cin,), jnp.float32),
            "b1n": 0.1 * jax.random.normal(ks[1], (cin,), jnp.float32),
            "w1": 0.05 * jax.random.normal(ks[2], (3, 3, cin, cout), jnp.float32),   # HWIO
            "b1": 0.05 * jax.random.normal(ks[3], (cout,), jnp.float32),
            "g2": 1.0 + 0.1 * jax.random.normal(ks[4], (cout,), jnp.float32),
            "b2n": 0.1 * jax.random.normal(ks[5], (cout,), jnp.float32),
            "w2": 0.05 * jax.random.normal(ks[6], (3, 3, cout, cout), jnp.float32),  # HWIO
            "b2": 0.05 * jax.random.normal(ks[7], (cout,), jnp.float32),
        }
        if cin != cout:
            p["wn"] = 0.05 * jax.random.normal(ks[8], (1, 1, cin, cout), jnp.float32)
            p["bn"] = 0.05 * jax.random.normal(ks[9], (cout,), jnp.float32)
        return p

    key = jax.random.PRNGKey(0)
    # (32, 64): nin-shortcut path + identity group mask; (64, 64): identity-shortcut path.
    for cin, cout in [(32, 64), (64, 64)]:
        kp, kx, key = jax.random.split(key, 3)
        params = make_params(kp, cin, cout)
        x = jax.random.normal(kx, (2, cin, 16, 16), jnp.float32)   # NCHW like PyTorch
        out = jax.block_until_ready(resnet_block(x, params))
        ref = jax.block_until_ready(_ref_forward(x, params))
        assert out.shape == (2, cout, 16, 16), out.shape
        err = float(jnp.max(jnp.abs(out - ref)))
        assert err < 2e-2, f"cin={cin} cout={cout}: max abs err vs reference {err}"
    print("KERNEL_OK")
</pallas_src>

<mosaic_0001>
module attributes {stable_mosaic.version = 11 : i64} {
  func.func @_resnet_block_kernel(%arg0: i32, %arg1: memref<1x16x16x32xf32, #tpu.memory_space<vmem>>, %arg2: memref<1x32xf32, #tpu.memory_space<vmem>>, %arg3: memref<1x32xf32, #tpu.memory_space<vmem>>, %arg4: memref<288x64xbf16, #tpu.memory_space<vmem>>, %arg5: memref<1x64xf32, #tpu.memory_space<vmem>>, %arg6: memref<1x64xf32, #tpu.memory_space<vmem>>, %arg7: memref<1x64xf32, #tpu.memory_space<vmem>>, %arg8: memref<576x64xbf16, #tpu.memory_space<vmem>>, %arg9: memref<1x64xf32, #tpu.memory_space<vmem>>, %arg10: memref<32x32xf32, #tpu.memory_space<vmem>>, %arg11: memref<64x64xf32, #tpu.memory_space<vmem>>, %arg12: memref<32x64xbf16, #tpu.memory_space<vmem>>, %arg13: memref<1x64xf32, #tpu.memory_space<vmem>>, %arg14: memref<1x16x16x64xf32, #tpu.memory_space<vmem>>, %arg15: memref<1x16x16x288xbf16, #tpu.memory_space<vmem>>, %arg16: memref<1x16x16x576xbf16, #tpu.memory_space<vmem>>) attributes {dimension_semantics = [#tpu.dimension_semantics<parallel>], iteration_bounds = array<i64: 2>, scalar_prefetch = 0 : i64, scratch_operands = 2 : i64, tpu.core_type = #tpu.core_type<tc>, window_params = [{transform_indices = @transform_0, window_bounds = array<i64: 1, 16, 16, 32>}, {pipeline_mode = #tpu.pipeline_mode<synchronous>, transform_indices = @transform_1, window_bounds = array<i64: 1, 32>}, {pipeline_mode = #tpu.pipeline_mode<synchronous>, transform_indices = @transform_2, window_bounds = array<i64: 1, 32>}, {pipeline_mode = #tpu.pipeline_mode<synchronous>, transform_indices = @transform_3, window_bounds = array<i64: 288, 64>}, {pipeline_mode = #tpu.pipeline_mode<synchronous>, transform_indices = @transform_4, window_bounds = array<i64: 1, 64>}, {pipeline_mode = #tpu.pipeline_mode<synchronous>, transform_indices = @transform_5, window_bounds = array<i64: 1, 64>}, {pipeline_mode = #tpu.pipeline_mode<synchronous>, transform_indices = @transform_6, window_bounds = array<i64: 1, 64>}, {pipeline_mode = #tpu.pipeline_mode<synchronous>, transform_indices = @transform_7, window_bounds = array<i64: 576, 64>}, {pipeline_mode = #tpu.pipeline_mode<synchronous>, transform_indices = @transform_8, window_bounds = array<i64: 1, 64>}, {pipeline_mode = #tpu.pipeline_mode<synchronous>, transform_indices = @transform_9, window_bounds = array<i64: 32, 32>}, {pipeline_mode = #tpu.pipeline_mode<synchronous>, transform_indices = @transform_10, window_bounds = array<i64: 64, 64>}, {pipeline_mode = #tpu.pipeline_mode<synchronous>, transform_indices = @transform_11, window_bounds = array<i64: 32, 64>}, {pipeline_mode = #tpu.pipeline_mode<synchronous>, transform_indices = @transform_12, window_bounds = array<i64: 1, 64>}, {transform_indices = @transform_13, window_bounds = array<i64: 1, 16, 16, 64>}]} {
    %c0 = arith.constant 0 : index
    %c0_0 = arith.constant 0 : index
    %c0_1 = arith.constant 0 : index
    %c0_2 = arith.constant 0 : index
    %0 = vector.load %arg1[%c0, %c0_0, %c0_1, %c0_2] : memref<1x16x16x32xf32, #tpu.memory_space<vmem>>, vector<1x16x16x32xf32>
    %1 = vector.shape_cast %0 : vector<1x16x16x32xf32> to vector<1x256x32xf32>
    %cst = arith.constant dense<0.000000e+00> : vector<1x32xf32>
    %2 = vector.multi_reduction <add>, %1, %cst [1] : vector<1x256x32xf32> to vector<1x32xf32>
    %3 = arith.mulf %1, %1 : vector<1x256x32xf32>
    %cst_3 = arith.constant dense<0.000000e+00> : vector<1x32xf32>
    %4 = vector.multi_reduction <add>, %3, %cst_3 [1] : vector<1x256x32xf32> to vector<1x32xf32>
    %cst_4 = arith.constant 2.560000e+02 : f32
    %5 = vector.broadcast %cst_4 : f32 to vector<1x32xf32>
    %6 = arith.divf %2, %5 : vector<1x32xf32>
    %cst_5 = arith.constant 2.560000e+02 : f32
    %7 = vector.broadcast %cst_5 : f32 to vector<1x32xf32>
    %8 = arith.divf %4, %7 : vector<1x32xf32>
    %9 = arith.mulf %6, %6 : vector<1x32xf32>
    %10 = arith.subf %8, %9 : vector<1x32xf32>
    %cst_6 = arith.constant 0.000000e+00 : f32
    %11 = vector.broadcast %cst_6 : f32 to vector<1x32xf32>
    %12 = arith.maximumf %10, %11 : vector<1x32xf32>
    %cst_7 = arith.constant 9.99999997E-7 : f32
    %13 = vector.broadcast %cst_7 : f32 to vector<1x32xf32>
    %14 = arith.addf %12, %13 : vector<1x32xf32>
    %15 = math.rsqrt %14 : vector<1x32xf32>
    %c0_8 = arith.constant 0 : index
    %c0_9 = arith.constant 0 : index
    %16 = vector.load %arg2[%c0_8, %c0_9] : memref<1x32xf32, #tpu.memory_space<vmem>>, vector<1x32xf32>
    %17 = arith.mulf %15, %16 : vector<1x32xf32>
    %c0_10 = arith.constant 0 : index
    %c0_11 = arith.constant 0 : index
    %18 = vector.load %arg3[%c0_10, %c0_11] : memref<1x32xf32, #tpu.memory_space<vmem>>, vector<1x32xf32>
    %19 = arith.mulf %6, %17 : vector<1x32xf32>
    %20 = arith.subf %18, %19 : vector<1x32xf32>
    %21 = vector.shape_cast %17 : vector<1x32xf32> to vector<1x1x1x32xf32>
    %22 = vector.broadcast %21 : vector<1x1x1x32xf32> to vector<1x16x16x32xf32>
    %23 = arith.mulf %0, %22 : vector<1x16x16x32xf32>
    %24 = vector.shape_cast %20 : vector<1x32xf32> to vector<1x1x1x32xf32>
    %25 = vector.broadcast %24 : vector<1x1x1x32xf32> to vector<1x16x16x32xf32>
    %26 = arith.addf %23, %25 : vector<1x16x16x32xf32>
    %27 = arith.negf %26 : vector<1x16x16x32xf32>
    %28 = math.exp %27 : vector<1x16x16x32xf32>
    %cst_12 = arith.constant 1.000000e+00 : f32
    %29 = vector.broadcast %cst_12 : f32 to vector<1x16x16x32xf32>
    %30 = arith.addf %29, %28 : vector<1x16x16x32xf32>
    %31 = arith.divf %29, %30 : vector<1x16x16x32xf32>
    %32 = arith.mulf %26, %31 : vector<1x16x16x32xf32>
    %33 = arith.truncf %32 : vector<1x16x16x32xf32> to vector<1x16x16x32xbf16>
    %cst_13 = arith.constant 0.000000e+00 : bf16
    %34 = vector.broadcast %cst_13 : bf16 to vector<1x1x16x32xbf16>
    %cst_14 = arith.constant 0.000000e+00 : bf16
    %35 = vector.broadcast %cst_14 : bf16 to vector<1x16x1x32xbf16>
    %c0_15 = arith.constant 0 : index
    %c0_16 = arith.constant 0 : index
    %c0_17 = arith.constant 0 : index
    %c0_18 = arith.constant 0 : index
    %36 = vector.load %arg15[%c0_15, %c0_16, %c0_17, %c0_18] : memref<1x16x16x288xbf16, #tpu.memory_space<vmem>>, vector<1x1x16x32xbf16>
    tpu.vector_store %arg15[%c0_15, %c0_16, %c0_17, %c0_18], %34 {strides = array<i32>} : memref<1x16x16x288xbf16, #tpu.memory_space<vmem>>, vector<1x1x16x32xbf16>,
    %c0_19 = arith.constant 0 : index
    %c0_20 = arith.constant 0 : index
    %c0_21 = arith.constant 0 : index
    %c0_22 = arith.constant 0 : index
    %37 = vector.load %arg15[%c0_19, %c0_20, %c0_21, %c0_22] : memref<1x16x16x288xbf16, #tpu.memory_space<vmem>>, vector<1x16x1x32xbf16>
    tpu.vector_store %arg15[%c0_19, %c0_20, %c0_21, %c0_22], %35 {strides = array<i32>} : memref<1x16x16x288xbf16, #tpu.memory_space<vmem>>, vector<1x16x1x32xbf16>,
    %38 = vector.extract_strided_slice %33 {offsets = [0, 0, 0, 0], sizes = [1, 15, 15, 32], strides = [1, 1, 1, 1]} : vector<1x16x16x32xbf16> to vector<1x15x15x32xbf16>
    %c0_23 = arith.constant 0 : index
    %c1 = arith.constant 1 : index
    %c1_24 = arith.constant 1 : index
    %c0_25 = arith.constant 0 : index
    %39 = vector.load %arg15[%c0_23, %c1, %c1_24, %c0_25] : memref<1x16x16x288xbf16, #tpu.memory_space<vmem>>, vector<1x15x15x32xbf16>
    tpu.vector_store %arg15[%c0_23, %c1, %c1_24, %c0_25], %38 {strides = array<i32>} : memref<1x16x16x288xbf16, #tpu.memory_space<vmem>>, vector<1x15x15x32xbf16>,
    %c0_26 = arith.constant 0 : index
    %c0_27 = arith.constant 0 : index
    %c0_28 = arith.constant 0 : index
    %c32 = arith.constant 32 : index
    %40 = vector.load %arg15[%c0_26, %c0_27, %c0_28, %c32] : memref<1x16x16x288xbf16, #tpu.memory_space<vmem>>, vector<1x1x16x32xbf16>
    tpu.vector_store %arg15[%c0_26, %c0_27, %c0_28, %c32], %34 {strides = array<i32>} : memref<1x16x16x288xbf16, #tpu.memory_space<vmem>>, vector<1x1x16x32xbf16>,
    %41 = vector.extract_strided_slice %33 {offsets = [0, 0, 0, 0], sizes = [1, 15, 16, 32], strides = [1, 1, 1, 1]} : vector<1x16x16x32xbf16> to vector<1x15x16x32xbf16>
    %c0_29 = arith.constant 0 : index
    %c1_30 = arith.constant 1 : index
    %c0_31 = arith.constant 0 : index
    %c32_32 = arith.constant 32 : index
    %42 = vector.load %arg15[%c0_29, %c1_30, %c0_31, %c32_32] : memref<1x16x16x288xbf16, #tpu.memory_space<vmem>>, vector<1x15x16x32xbf16>
    tpu.vector_store %arg15[%c0_29, %c1_30, %c0_31, %c32_32], %41 {strides = array<i32>} : memref<1x16x16x288xbf16, #tpu.memory_space<vmem>>, vector<1x15x16x32xbf16>,
    %c0_33 = arith.constant 0 : index
    %c0_34 = arith.constant 0 : index
    %c0_35 = arith.constant 0 : index
    %c64 = arith.constant 64 : index
    %43 = vector.load %arg15[%c0_33, %c0_34, %c0_35, %c64] : memref<1x16x16x288xbf16, #tpu.memory_space<vmem>>, vector<1x1x16x32xbf16>
    tpu.vector_store %arg15[%c0_33, %c0_34, %c0_35, %c64], %34 {strides = array<i32>} : memref<1x16x16x288xbf16, #tpu.memory_space<vmem>>, vector<1x1x16x32xbf16>,
    %c0_36 = arith.constant 0 : index
    %c0_37 = arith.constant 0 : index
    %c15 = arith.constant 15 : index
    %c64_38 = arith.constant 64 : index
    %44 = vector.load %arg15[%c0_36, %c0_37, %c15, %c64_38] : memref<1x16x16x288xbf16, #tpu.memory_space<vmem>>, vector<1x16x1x32xbf16>
    tpu.vector_store %arg15[%c0_36, %c0_37, %c15, %c64_38], %35 {strides = array<i32>} : memref<1x16x16x288xbf16, #tpu.memory_space<vmem>>, vector<1x16x1x32xbf16>,
    %45 = vector.extract_strided_slice %33 {offsets = [0, 0, 1, 0], sizes = [1, 15, 15, 32], strides = [1, 1, 1, 1]} : vector<1x16x16x32xbf16> to vector<1x15x15x32xbf16>
    %c0_39 = arith.constant 0 : index
    %c1_40 = arith.constant 1 : index
    %c0_41 = arith.constant 0 : index
    %c64_42 = arith.constant 64 : index
    %46 = vector.load %arg15[%c0_39, %c1_40, %c0_41, %c64_42] : memref<1x16x16x288xbf16, #tpu.memory_space<vmem>>, vector<1x15x15x32xbf16>
    tpu.vector_store %arg15[%c0_39, %c1_40, %c0_41, %c64_42], %45 {strides = array<i32>} : memref<1x16x16x288xbf16, #tpu.memory_space<vmem>>, vector<1x15x15x32xbf16>,
    %c0_43 = arith.constant 0 : index
    %c0_44 = arith.constant 0 : index
    %c0_45 = arith.constant 0 : index
    %c96 = arith.constant 96 : index
    %47 = vector.load %arg15[%c0_43, %c0_44, %c0_45, %c96] : memref<1x16x16x288xbf16, #tpu.memory_space<vmem>>, vector<1x16x1x32xbf16>
    tpu.vector_store %arg15[%c0_43, %c0_44, %c0_45, %c96], %35 {strides = array<i32>} : memref<1x16x16x288xbf16, #tpu.memory_space<vmem>>, vector<1x16x1x32xbf16>,
    %48 = vector.extract_strided_slice %33 {offsets = [0, 0, 0, 0], sizes = [1, 16, 15, 32], strides = [1, 1, 1, 1]} : vector<1x16x16x32xbf16> to vector<1x16x15x32xbf16>
    %c0_46 = arith.constant 0 : index
    %c0_47 = arith.constant 0 : index
    %c1_48 = arith.constant 1 : index
    %c96_49 = arith.constant 96 : index
    %49 = vector.load %arg15[%c0_46, %c0_47, %c1_48, %c96_49] : memref<1x16x16x288xbf16, #tpu.memory_space<vmem>>, vector<1x16x15x32xbf16>
    tpu.vector_store %arg15[%c0_46, %c0_47, %c1_48, %c96_49], %48 {strides = array<i32>} : memref<1x16x16x288xbf16, #tpu.memory_space<vmem>>, vector<1x16x15x32xbf16>,
    %c0_50 = arith.constant 0 : index
    %c0_51 = arith.constant 0 : index
    %c0_52 = arith.constant 0 : index
    %c128 = arith.constant 128 : index
    %50 = vector.load %arg15[%c0_50, %c0_51, %c0_52, %c128] : memref<1x16x16x288xbf16, #tpu.memory_space<vmem>>, vector<1x16x16x32xbf16>
    tpu.vector_store %arg15[%c0_50, %c0_51, %c0_52, %c128], %33 {strides = array<i32>} : memref<1x16x16x288xbf16, #tpu.memory_space<vmem>>, vector<1x16x16x32xbf16>,
    %c0_53 = arith.constant 0 : index
    %c0_54 = arith.constant 0 : index
    %c15_55 = arith.constant 15 : index
    %c160 = arith.constant 160 : index
    %51 = vector.load %arg15[%c0_53, %c0_54, %c15_55, %c160] : memref<1x16x16x288xbf16, #tpu.memory_space<vmem>>, vector<1x16x1x32xbf16>
    tpu.vector_store %arg15[%c0_53, %c0_54, %c15_55, %c160], %35 {strides = array<i32>} : memref<1x16x16x288xbf16, #tpu.memory_space<vmem>>, vector<1x16x1x32xbf16>,
    %52 = vector.extract_strided_slice %33 {offsets = [0, 0, 1, 0], sizes = [1, 16, 15, 32], strides = [1, 1, 1, 1]} : vector<1x16x16x32xbf16> to vector<1x16x15x32xbf16>
    %c0_56 = arith.constant 0 : index
    %c0_57 = arith.constant 0 : index
    %c0_58 = arith.constant 0 : index
    %c160_59 = arith.constant 160 : index
    %53 = vector.load %arg15[%c0_56, %c0_57, %c0_58, %c160_59] : memref<1x16x16x288xbf16, #tpu.memory_space<vmem>>, vector<1x16x15x32xbf16>
    tpu.vector_store %arg15[%c0_56, %c0_57, %c0_58, %c160_59], %52 {strides = array<i32>} : memref<1x16x16x288xbf16, #tpu.memory_space<vmem>>, vector<1x16x15x32xbf16>,
    %c0_60 = arith.constant 0 : index
    %c15_61 = arith.constant 15 : index
    %c0_62 = arith.constant 0 : index
    %c192 = arith.constant 192 : index
    %54 = vector.load %arg15[%c0_60, %c15_61, %c0_62, %c192] : memref<1x16x16x288xbf16, #tpu.memory_space<vmem>>, vector<1x1x16x32xbf16>
    tpu.vector_store %arg15[%c0_60, %c15_61, %c0_62, %c192], %34 {strides = array<i32>} : memref<1x16x16x288xbf16, #tpu.memory_space<vmem>>, vector<1x1x16x32xbf16>,
    %c0_63 = arith.constant 0 : index
    %c0_64 = arith.constant 0 : index
    %c0_65 = arith.constant 0 : index
    %c192_66 = arith.constant 192 : index
    %55 = vector.load %arg15[%c0_63, %c0_64, %c0_65, %c192_66] : memref<1x16x16x288xbf16, #tpu.memory_space<vmem>>, vector<1x16x1x32xbf16>
    tpu.vector_store %arg15[%c0_63, %c0_64, %c0_65, %c192_66], %35 {strides = array<i32>} : memref<1x16x16x288xbf16, #tpu.memory_space<vmem>>, vector<1x16x1x32xbf16>,
    %56 = vector.extract_strided_slice %33 {offsets = [0, 1, 0, 0], sizes = [1, 15, 15, 32], strides = [1, 1, 1, 1]} : vector<1x16x16x32xbf16> to vector<1x15x15x32xbf16>
    %c0_67 = arith.constant 0 : index
    %c0_68 = arith.constant 0 : index
    %c1_69 = arith.constant 1 : index
    %c192_70 = arith.constant 192 : index
    %57 = vector.load %arg15[%c0_67, %c0_68, %c1_69, %c192_70] : memref<1x16x16x288xbf16, #tpu.memory_space<vmem>>, vector<1x15x15x32xbf16>
    tpu.vector_store %arg15[%c0_67, %c0_68, %c1_69, %c192_70], %56 {strides = array<i32>} : memref<1x16x16x288xbf16, #tpu.memory_space<vmem>>, vector<1x15x15x32xbf16>,
    %c0_71 = arith.constant 0 : index
    %c15_72 = arith.constant 15 : index
    %c0_73 = arith.constant 0 : index
    %c224 = arith.constant 224 : index
    %58 = vector.load %arg15[%c0_71, %c15_72, %c0_73, %c224] : memref<1x16x16x288xbf16, #tpu.memory_space<vmem>>, vector<1x1x16x32xbf16>
    tpu.vector_store %arg15[%c0_71, %c15_72, %c0_73, %c224], %34 {strides = array<i32>} : memref<1x16x16x288xbf16, #tpu.memory_space<vmem>>, vector<1x1x16x32xbf16>,
    %59 = vector.extract_strided_slice %33 {offsets = [0, 1, 0, 0], sizes = [1, 15, 16, 32], strides = [1, 1, 1, 1]} : vector<1x16x16x32xbf16> to vector<1x15x16x32xbf16>
    %c0_74 = arith.constant 0 : index
    %c0_75 = arith.constant 0 : index
    %c0_76 = arith.constant 0 : index
    %c224_77 = arith.constant 224 : index
    %60 = vector.load %arg15[%c0_74, %c0_75, %c0_76, %c224_77] : memref<1x16x16x288xbf16, #tpu.memory_space<vmem>>, vector<1x15x16x32xbf16>
    tpu.vector_store %arg15[%c0_74, %c0_75, %c0_76, %c224_77], %59 {strides = array<i32>} : memref<1x16x16x288xbf16, #tpu.memory_space<vmem>>, vector<1x15x16x32xbf16>,
    %c0_78 = arith.constant 0 : index
    %c15_79 = arith.constant 15 : index
    %c0_80 = arith.constant 0 : index
    %c256 = arith.constant 256 : index
    %61 = vector.load %arg15[%c0_78, %c15_79, %c0_80, %c256] : memref<1x16x16x288xbf16, #tpu.memory_space<vmem>>, vector<1x1x16x32xbf16>
    tpu.vector_store %arg15[%c0_78, %c15_79, %c0_80, %c256], %34 {strides = array<i32>} : memref<1x16x16x288xbf16, #tpu.memory_space<vmem>>, vector<1x1x16x32xbf16>,
    %c0_81 = arith.constant 0 : index
    %c0_82 = arith.constant 0 : index
    %c15_83 = arith.constant 15 : index
    %c256_84 = arith.constant 256 : index
    %62 = vector.load %arg15[%c0_81, %c0_82, %c15_83, %c256_84] : memref<1x16x16x288xbf16, #tpu.memory_space<vmem>>, vector<1x16x1x32xbf16>
    tpu.vector_store %arg15[%c0_81, %c0_82, %c15_83, %c256_84], %35 {strides = array<i32>} : memref<1x16x16x288xbf16, #tpu.memory_space<vmem>>, vector<1x16x1x32xbf16>,
    %63 = vector.extract_strided_slice %33 {offsets = [0, 1, 1, 0], sizes = [1, 15, 15, 32], strides = [1, 1, 1, 1]} : vector<1x16x16x32xbf16> to vector<1x15x15x32xbf16>
    %c0_85 = arith.constant 0 : index
    %c0_86 = arith.constant 0 : index
    %c0_87 = arith.constant 0 : index
    %c256_88 = arith.constant 256 : index
    %64 = vector.load %arg15[%c0_85, %c0_86, %c0_87, %c256_88] : memref<1x16x16x288xbf16, #tpu.memory_space<vmem>>, vector<1x15x15x32xbf16>
    tpu.vector_store %arg15[%c0_85, %c0_86, %c0_87, %c256_88], %63 {strides = array<i32>} : memref<1x16x16x288xbf16, #tpu.memory_space<vmem>>, vector<1x15x15x32xbf16>,
    %c0_89 = arith.constant 0 : index
    %c0_90 = arith.constant 0 : index
    %c0_91 = arith.constant 0 : index
    %c0_92 = arith.constant 0 : index
    %65 = vector.load %arg15[%c0_89, %c0_90, %c0_91, %c0_92] : memref<1x16x16x288xbf16, #tpu.memory_space<vmem>>, vector<1x16x16x288xbf16>
    %66 = vector.shape_cast %65 : vector<1x16x16x288xbf16> to vector<256x288xbf16>
    %c0_93 = arith.constant 0 : index
    %c0_94 = arith.constant 0 : index
    %67 = vector.load %arg4[%c0_93, %c0_94] : memref<288x64xbf16, #tpu.memory_space<vmem>>, vector<288x64xbf16>
    %cst_95 = arith.constant dense<0.000000e+00> : vector<256x64xf32>
    %68 = tpu.matmul %66, %67, %cst_95 {dimension_numbers = #tpu.dot_dimension_numbers<[1], [0], [0], [1], [0, 0, 1, 1], [], []>} : vector<256x288xbf16>, vector<288x64xbf16>, vector<256x64xf32> -> vector<256x64xf32>
    %c0_96 = arith.constant 0 : index
    %c0_97 = arith.constant 0 : index
    %69 = vector.load %arg5[%c0_96, %c0_97] : memref<1x64xf32, #tpu.memory_space<vmem>>, vector<1x64xf32>
    %70 = vector.broadcast %69 : vector<1x64xf32> to vector<256x64xf32>
    %71 = arith.addf %68, %70 : vector<256x64xf32>
    %72 = vector.shape_cast %71 : vector<256x64xf32> to vector<1x16x16x64xf32>
    %73 = vector.shape_cast %72 : vector<1x16x16x64xf32> to vector<1x256x64xf32>
    %cst_98 = arith.constant dense<0.000000e+00> : vector<1x64xf32>
    %74 = vector.multi_reduction <add>, %73, %cst_98 [1] : vector<1x256x64xf32> to vector<1x64xf32>
    %75 = arith.mulf %73, %73 : vector<1x256x64xf32>
    %cst_99 = arith.constant dense<0.000000e+00> : vector<1x64xf32>
    %76 = vector.multi_reduction <add>, %75, %cst_99 [1] : vector<1x256x64xf32> to vector<1x64xf32>
    %c0_100 = arith.constant 0 : index
    %c0_101 = arith.constant 0 : index
    %77 = vector.load %arg11[%c0_100, %c0_101] : memref<64x64xf32, #tpu.memory_space<vmem>>, vector<64x64xf32>
    %78 = vector.shape_cast %74 : vector<1x64xf32> to vector<1x1x64xf32>
    %79 = vector.shape_cast %77 : vector<64x64xf32> to vector<1x64x64xf32>
    %80 = vector.broadcast %78 : vector<1x1x64xf32> to vector<1x64x64xf32>
    %81 = arith.mulf %80, %79 : vector<1x64x64xf32>
    %cst_102 = arith.constant dense<0.000000e+00> : vector<1x64xf32>
    %82 = vector.multi_reduction <add>, %81, %cst_102 [2] : vector<1x64x64xf32> to vector<1x64xf32>
    %83 = vector.shape_cast %76 : vector<1x64xf32> to vector<1x1x64xf32>
    %84 = vector.shape_cast %77 : vector<64x64xf32> to vector<1x64x64xf32>
    %85 = vector.broadcast %83 : vector<1x1x64xf32> to vector<1x64x64xf32>
    %86 = arith.mulf %85, %84 : vector<1x64x64xf32>
    %cst_103 = arith.constant dense<0.000000e+00> : vector<1x64xf32>
    %87 = vector.multi_reduction <add>, %86, %cst_103 [2] : vector<1x64x64xf32> to vector<1x64xf32>
    %cst_104 = arith.constant 5.120000e+02 : f32
    %88 = vector.broadcast %cst_104 : f32 to vector<1x64xf32>
    %89 = arith.divf %82, %88 : vector<1x64xf32>
    %cst_105 = arith.constant 5.120000e+02 : f32
    %90 = vector.broadcast %cst_105 : f32 to vector<1x64xf32>
    %91 = arith.divf %87, %90 : vector<1x64xf32>
    %92 = arith.mulf %89, %89 : vector<1x64xf32>
    %93 = arith.subf %91, %92 : vector<1x64xf32>
    %cst_106 = arith.constant 0.000000e+00 : f32
    %94 = vector.broadcast %cst_106 : f32 to vector<1x64xf32>
    %95 = arith.maximumf %93, %94 : vector<1x64xf32>
    %cst_107 = arith.constant 9.99999997E-7 : f32
    %96 = vector.broadcast %cst_107 : f32 to vector<1x64xf32>
    %97 = arith.addf %95, %96 : vector<1x64xf32>
    %98 = math.rsqrt %97 : vector<1x64xf32>
    %c0_108 = arith.constant 0 : index
    %c0_109 = arith.constant 0 : index
    %99 = vector.load %arg6[%c0_108, %c0_109] : memref<1x64xf32, #tpu.memory_space<vmem>>, vector<1x64xf32>
    %100 = arith.mulf %98, %99 : vector<1x64xf32>
    %c0_110 = arith.constant 0 : index
    %c0_111 = arith.constant 0 : index
    %101 = vector.load %arg7[%c0_110, %c0_111] : memref<1x64xf32, #tpu.memory_space<vmem>>, vector<1x64xf32>
    %102 = arith.mulf %89, %100 : vector<1x64xf32>
    %103 = arith.subf %101, %102 : vector<1x64xf32>
    %104 = vector.shape_cast %100 : vector<1x64xf32> to vector<1x1x1x64xf32>
    %105 = vector.broadcast %104 : vector<1x1x1x64xf32> to vector<1x16x16x64xf32>
    %106 = arith.mulf %72, %105 : vector<1x16x16x64xf32>
    %107 = vector.shape_cast %103 : vector<1x64xf32> to vector<1x1x1x64xf32>
    %108 = vector.broadcast %107 : vector<1x1x1x64xf32> to vector<1x16x16x64xf32>
    %109 = arith.addf %106, %108 : vector<1x16x16x64xf32>
    %110 = arith.negf %109 : vector<1x16x16x64xf32>
    %111 = math.exp %110 : vector<1x16x16x64xf32>
    %cst_112 = arith.constant 1.000000e+00 : f32
    %112 = vector.broadcast %cst_112 : f32 to vector<1x16x16x64xf32>
    %113 = arith.addf %112, %111 : vector<1x16x16x64xf32>
    %114 = arith.divf %112, %113 : vector<1x16x16x64xf32>
    %115 = arith.mulf %109, %114 : vector<1x16x16x64xf32>
    %116 = arith.truncf %115 : vector<1x16x16x64xf32> to vector<1x16x16x64xbf16>
    %cst_113 = arith.constant 0.000000e+00 : bf16
    %117 = vector.broadcast %cst_113 : bf16 to vector<1x1x16x64xbf16>
    %cst_114 = arith.constant 0.000000e+00 : bf16
    %118 = vector.broadcast %cst_114 : bf16 to vector<1x16x1x64xbf16>
    %c0_115 = arith.constant 0 : index
    %c0_116 = arith.constant 0 : index
    %c0_117 = arith.constant 0 : index
    %c0_118 = arith.constant 0 : index
    %119 = vector.load %arg16[%c0_115, %c0_116, %c0_117, %c0_118] : memref<1x16x16x576xbf16, #tpu.memory_space<vmem>>, vector<1x1x16x64xbf16>
    tpu.vector_store %arg16[%c0_115, %c0_116, %c0_117, %c0_118], %117 {strides = array<i32>} : memref<1x16x16x576xbf16, #tpu.memory_space<vmem>>, vector<1x1x16x64xbf16>,
    %c0_119 = arith.constant 0 : index
    %c0_120 = arith.constant 0 : index
    %c0_121 = arith.constant 0 : index
    %c0_122 = arith.constant 0 : index
    %120 = vector.load %arg16[%c0_119, %c0_120, %c0_121, %c0_122] : memref<1x16x16x576xbf16, #tpu.memory_space<vmem>>, vector<1x16x1x64xbf16>
    tpu.vector_store %arg16[%c0_119, %c0_120, %c0_121, %c0_122], %118 {strides = array<i32>} : memref<1x16x16x576xbf16, #tpu.memory_space<vmem>>, vector<1x16x1x64xbf16>,
    %121 = vector.extract_strided_slice %116 {offsets = [0, 0, 0, 0], sizes = [1, 15, 15, 64], strides = [1, 1, 1, 1]} : vector<1x16x16x64xbf16> to vector<1x15x15x64xbf16>
    %c0_123 = arith.constant 0 : index
    %c1_124 = arith.constant 1 : index
    %c1_125 = arith.constant 1 : index
    %c0_126 = arith.constant 0 : index
    %122 = vector.load %arg16[%c0_123, %c1_124, %c1_125, %c0_126] : memref<1x16x16x576xbf16, #tpu.memory_space<vmem>>, vector<1x15x15x64xbf16>
    tpu.vector_store %arg16[%c0_123, %c1_124, %c1_125, %c0_126], %121 {strides = array<i32>} : memref<1x16x16x576xbf16, #tpu.memory_space<vmem>>, vector<1x15x15x64xbf16>,
    %c0_127 = arith.constant 0 : index
    %c0_128 = arith.constant 0 : index
    %c0_129 = arith.constant 0 : index
    %c64_130 = arith.constant 64 : index
    %123 = vector.load %arg16[%c0_127, %c0_128, %c0_129, %c64_130] : memref<1x16x16x576xbf16, #tpu.memory_space<vmem>>, vector<1x1x16x64xbf16>
    tpu.vector_store %arg16[%c0_127, %c0_128, %c0_129, %c64_130], %117 {strides = array<i32>} : memref<1x16x16x576xbf16, #tpu.memory_space<vmem>>, vector<1x1x16x64xbf16>,
    %124 = vector.extract_strided_slice %116 {offsets = [0, 0, 0, 0], sizes = [1, 15, 16, 64], strides = [1, 1, 1, 1]} : vector<1x16x16x64xbf16> to vector<1x15x16x64xbf16>
    %c0_131 = arith.constant 0 : index
    %c1_132 = arith.constant 1 : index
    %c0_133 = arith.constant 0 : index
    %c64_134 = arith.constant 64 : index
    %125 = vector.load %arg16[%c0_131, %c1_132, %c0_133, %c64_134] : memref<1x16x16x576xbf16, #tpu.memory_space<vmem>>, vector<1x15x16x64xbf16>
    tpu.vector_store %arg16[%c0_131, %c1_132, %c0_133, %c64_134], %124 {strides = array<i32>} : memref<1x16x16x576xbf16, #tpu.memory_space<vmem>>, vector<1x15x16x64xbf16>,
    %c0_135 = arith.constant 0 : index
    %c0_136 = arith.constant 0 : index
    %c0_137 = arith.constant 0 : index
    %c128_138 = arith.constant 128 : index
    %126 = vector.load %arg16[%c0_135, %c0_136, %c0_137, %c128_138] : memref<1x16x16x576xbf16, #tpu.memory_space<vmem>>, vector<1x1x16x64xbf16>
    tpu.vector_store %arg16[%c0_135, %c0_136, %c0_137, %c128_138], %117 {strides = array<i32>} : memref<1x16x16x576xbf16, #tpu.memory_space<vmem>>, vector<1x1x16x64xbf16>,
    %c0_139 = arith.constant 0 : index
    %c0_140 = arith.constant 0 : index
    %c15_141 = arith.constant 15 : index
    %c128_142 = arith.constant 128 : index
    %127 = vector.load %arg16[%c0_139, %c0_140, %c15_141, %c128_142] : memref<1x16x16x576xbf16, #tpu.memory_space<vmem>>, vector<1x16x1x64xbf16>
    tpu.vector_store %arg16[%c0_139, %c0_140, %c15_141, %c128_142], %118 {strides = array<i32>} : memref<1x16x16x576xbf16, #tpu.memory_space<vmem>>, vector<1x16x1x64xbf16>,
    %128 = vector.extract_strided_slice %116 {offsets = [0, 0, 1, 0], sizes = [1, 15, 15, 64], strides = [1, 1, 1, 1]} : vector<1x16x16x64xbf16> to vector<1x15x15x64xbf16>
    %c0_143 = arith.constant 0 : index
    %c1_144 = arith.constant 1 : index
    %c0_145 = arith.constant 0 : index
    %c128_146 = arith.constant 128 : index
    %129 = vector.load %arg16[%c0_143, %c1_144, %c0_145, %c128_146] : memref<1x16x16x576xbf16, #tpu.memory_space<vmem>>, vector<1x15x15x64xbf16>
    tpu.vector_store %arg16[%c0_143, %c1_144, %c0_145, %c128_146], %128 {strides = array<i32>} : memref<1x16x16x576xbf16, #tpu.memory_space<vmem>>, vector<1x15x15x64xbf16>,
    %c0_147 = arith.constant 0 : index
    %c0_148 = arith.constant 0 : index
    %c0_149 = arith.constant 0 : index
    %c192_150 = arith.constant 192 : index
    %130 = vector.load %arg16[%c0_147, %c0_148, %c0_149, %c192_150] : memref<1x16x16x576xbf16, #tpu.memory_space<vmem>>, vector<1x16x1x64xbf16>
    tpu.vector_store %arg16[%c0_147, %c0_148, %c0_149, %c192_150], %118 {strides = array<i32>} : memref<1x16x16x576xbf16, #tpu.memory_space<vmem>>, vector<1x16x1x64xbf16>,
    %131 = vector.extract_strided_slice %116 {offsets = [0, 0, 0, 0], sizes = [1, 16, 15, 64], strides = [1, 1, 1, 1]} : vector<1x16x16x64xbf16> to vector<1x16x15x64xbf16>
    %c0_151 = arith.constant 0 : index
    %c0_152 = arith.constant 0 : index
    %c1_153 = arith.constant 1 : index
    %c192_154 = arith.constant 192 : index
    %132 = vector.load %arg16[%c0_151, %c0_152, %c1_153, %c192_154] : memref<1x16x16x576xbf16, #tpu.memory_space<vmem>>, vector<1x16x15x64xbf16>
    tpu.vector_store %arg16[%c0_151, %c0_152, %c1_153, %c192_154], %131 {strides = array<i32>} : memref<1x16x16x576xbf16, #tpu.memory_space<vmem>>, vector<1x16x15x64xbf16>,
    %c0_155 = arith.constant 0 : index
    %c0_156 = arith.constant 0 : index
    %c0_157 = arith.constant 0 : index
    %c256_158 = arith.constant 256 : index
    %133 = vector.load %arg16[%c0_155, %c0_156, %c0_157, %c256_158] : memref<1x16x16x576xbf16, #tpu.memory_space<vmem>>, vector<1x16x16x64xbf16>
    tpu.vector_store %arg16[%c0_155, %c0_156, %c0_157, %c256_158], %116 {strides = array<i32>} : memref<1x16x16x576xbf16, #tpu.memory_space<vmem>>, vector<1x16x16x64xbf16>,
    %c0_159 = arith.constant 0 : index
    %c0_160 = arith.constant 0 : index
    %c15_161 = arith.constant 15 : index
    %c320 = arith.constant 320 : index
    %134 = vector.load %arg16[%c0_159, %c0_160, %c15_161, %c320] : memref<1x16x16x576xbf16, #tpu.memory_space<vmem>>, vector<1x16x1x64xbf16>
    tpu.vector_store %arg16[%c0_159, %c0_160, %c15_161, %c320], %118 {strides = array<i32>} : memref<1x16x16x576xbf16, #tpu.memory_space<vmem>>, vector<1x16x1x64xbf16>,
    %135 = vector.extract_strided_slice %116 {offsets = [0, 0, 1, 0], sizes = [1, 16, 15, 64], strides = [1, 1, 1, 1]} : vector<1x16x16x64xbf16> to vector<1x16x15x64xbf16>
    %c0_162 = arith.constant 0 : index
    %c0_163 = arith.constant 0 : index
    %c0_164 = arith.constant 0 : index
    %c320_165 = arith.constant 320 : index
    %136 = vector.load %arg16[%c0_162, %c0_163, %c0_164, %c320_165] : memref<1x16x16x576xbf16, #tpu.memory_space<vmem>>, vector<1x16x15x64xbf16>
    tpu.vector_store %arg16[%c0_162, %c0_163, %c0_164, %c320_165], %135 {strides = array<i32>} : memref<1x16x16x576xbf16, #tpu.memory_space<vmem>>, vector<1x16x15x64xbf16>,
    %c0_166 = arith.constant 0 : index
    %c15_167 = arith.constant 15 : index
    %c0_168 = arith.constant 0 : index
    %c384 = arith.constant 384 : index
    %137 = vector.load %arg16[%c0_166, %c15_167, %c0_168, %c384] : memref<1x16x16x576xbf16, #tpu.memory_space<vmem>>, vector<1x1x16x64xbf16>
    tpu.vector_store %arg16[%c0_166, %c15_167, %c0_168, %c384], %117 {strides = array<i32>} : memref<1x16x16x576xbf16, #tpu.memory_space<vmem>>, vector<1x1x16x64xbf16>,
    %c0_169 = arith.constant 0 : index
    %c0_170 = arith.constant 0 : index
    %c0_171 = arith.constant 0 : index
    %c384_172 = arith.constant 384 : index
    %138 = vector.load %arg16[%c0_169, %c0_170, %c0_171, %c384_172] : memref<1x16x16x576xbf16, #tpu.memory_space<vmem>>, vector<1x16x1x64xbf16>
    tpu.vector_store %arg16[%c0_169, %c0_170, %c0_171, %c384_172], %118 {strides = array<i32>} : memref<1x16x16x576xbf16, #tpu.memory_space<vmem>>, vector<1x16x1x64xbf16>,
    %139 = vector.extract_strided_slice %116 {offsets = [0, 1, 0, 0], sizes = [1, 15, 15, 64], strides = [1, 1, 1, 1]} : vector<1x16x16x64xbf16> to vector<1x15x15x64xbf16>
    %c0_173 = arith.constant 0 : index
    %c0_174 = arith.constant 0 : index
    %c1_175 = arith.constant 1 : index
    %c384_176 = arith.constant 384 : index
    %140 = vector.load %arg16[%c0_173, %c0_174, %c1_175, %c384_176] : memref<1x16x16x576xbf16, #tpu.memory_space<vmem>>, vector<1x15x15x64xbf16>
    tpu.vector_store %arg16[%c0_173, %c0_174, %c1_175, %c384_176], %139 {strides = array<i32>} : memref<1x16x16x576xbf16, #tpu.memory_space<vmem>>, vector<1x15x15x64xbf16>,
    %c0_177 = arith.constant 0 : index
    %c15_178 = arith.constant 15 : index
    %c0_179 = arith.constant 0 : index
    %c448 = arith.constant 448 : index
    %141 = vector.load %arg16[%c0_177, %c15_178, %c0_179, %c448] : memref<1x16x16x576xbf16, #tpu.memory_space<vmem>>, vector<1x1x16x64xbf16>
    tpu.vector_store %arg16[%c0_177, %c15_178, %c0_179, %c448], %117 {strides = array<i32>} : memref<1x16x16x576xbf16, #tpu.memory_space<vmem>>, vector<1x1x16x64xbf16>,
    %142 = vector.extract_strided_slice %116 {offsets = [0, 1, 0, 0], sizes = [1, 15, 16, 64], strides = [1, 1, 1, 1]} : vector<1x16x16x64xbf16> to vector<1x15x16x64xbf16>
    %c0_180 = arith.constant 0 : index
    %c0_181 = arith.constant 0 : index
    %c0_182 = arith.constant 0 : index
    %c448_183 = arith.constant 448 : index
    %143 = vector.load %arg16[%c0_180, %c0_181, %c0_182, %c448_183] : memref<1x16x16x576xbf16, #tpu.memory_space<vmem>>, vector<1x15x16x64xbf16>
    tpu.vector_store %arg16[%c0_180, %c0_181, %c0_182, %c448_183], %142 {strides = array<i32>} : memref<1x16x16x576xbf16, #tpu.memory_space<vmem>>, vector<1x15x16x64xbf16>,
    %c0_184 = arith.constant 0 : index
    %c15_185 = arith.constant 15 : index
    %c0_186 = arith.constant 0 : index
    %c512 = arith.constant 512 : index
    %144 = vector.load %arg16[%c0_184, %c15_185, %c0_186, %c512] : memref<1x16x16x576xbf16, #tpu.memory_space<vmem>>, vector<1x1x16x64xbf16>
    tpu.vector_store %arg16[%c0_184, %c15_185, %c0_186, %c512], %117 {strides = array<i32>} : memref<1x16x16x576xbf16, #tpu.memory_space<vmem>>, vector<1x1x16x64xbf16>,
    %c0_187 = arith.constant 0 : index
    %c0_188 = arith.constant 0 : index
    %c15_189 = arith.constant 15 : index
    %c512_190 = arith.constant 512 : index
    %145 = vector.load %arg16[%c0_187, %c0_188, %c15_189, %c512_190] : memref<1x16x16x576xbf16, #tpu.memory_space<vmem>>, vector<1x16x1x64xbf16>
    tpu.vector_store %arg16[%c0_187, %c0_188, %c15_189, %c512_190], %118 {strides = array<i32>} : memref<1x16x16x576xbf16, #tpu.memory_space<vmem>>, vector<1x16x1x64xbf16>,
    %146 = vector.extract_strided_slice %116 {offsets = [0, 1, 1, 0], sizes = [1, 15, 15, 64], strides = [1, 1, 1, 1]} : vector<1x16x16x64xbf16> to vector<1x15x15x64xbf16>
    %c0_191 = arith.constant 0 : index
    %c0_192 = arith.constant 0 : index
    %c0_193 = arith.constant 0 : index
    %c512_194 = arith.constant 512 : index
    %147 = vector.load %arg16[%c0_191, %c0_192, %c0_193, %c512_194] : memref<1x16x16x576xbf16, #tpu.memory_space<vmem>>, vector<1x15x15x64xbf16>
    tpu.vector_store %arg16[%c0_191, %c0_192, %c0_193, %c512_194], %146 {strides = array<i32>} : memref<1x16x16x576xbf16, #tpu.memory_space<vmem>>, vector<1x15x15x64xbf16>,
    %c0_195 = arith.constant 0 : index
    %c0_196 = arith.constant 0 : index
    %c0_197 = arith.constant 0 : index
    %c0_198 = arith.constant 0 : index
    %148 = vector.load %arg16[%c0_195, %c0_196, %c0_197, %c0_198] : memref<1x16x16x576xbf16, #tpu.memory_space<vmem>>, vector<1x16x16x576xbf16>
    %149 = vector.shape_cast %148 : vector<1x16x16x576xbf16> to vector<256x576xbf16>
    %c0_199 = arith.constant 0 : index
    %c0_200 = arith.constant 0 : index
    %150 = vector.load %arg8[%c0_199, %c0_200] : memref<576x64xbf16, #tpu.memory_space<vmem>>, vector<576x64xbf16>
    %cst_201 = arith.constant dense<0.000000e+00> : vector<256x64xf32>
    %151 = tpu.matmul %149, %150, %cst_201 {dimension_numbers = #tpu.dot_dimension_numbers<[1], [0], [0], [1], [0, 0, 1, 1], [], []>} : vector<256x576xbf16>, vector<576x64xbf16>, vector<256x64xf32> -> vector<256x64xf32>
    %c0_202 = arith.constant 0 : index
    %c0_203 = arith.constant 0 : index
    %152 = vector.load %arg9[%c0_202, %c0_203] : memref<1x64xf32, #tpu.memory_space<vmem>>, vector<1x64xf32>
    %153 = vector.broadcast %152 : vector<1x64xf32> to vector<256x64xf32>
    %154 = arith.addf %151, %153 : vector<256x64xf32>
    %155 = vector.shape_cast %154 : vector<256x64xf32> to vector<1x16x16x64xf32>
    %156 = vector.shape_cast %0 : vector<1x16x16x32xf32> to vector<256x32xf32>
    %157 = arith.truncf %156 : vector<256x32xf32> to vector<256x32xbf16>
    %c0_204 = arith.constant 0 : index
    %c0_205 = arith.constant 0 : index
    %158 = vector.load %arg12[%c0_204, %c0_205] : memref<32x64xbf16, #tpu.memory_space<vmem>>, vector<32x64xbf16>
    %cst_206 = arith.constant dense<0.000000e+00> : vector<256x64xf32>
    %159 = tpu.matmul %157, %158, %cst_206 {dimension_numbers = #tpu.dot_dimension_numbers<[1], [0], [0], [1], [0, 0, 1, 1], [], []>} : vector<256x32xbf16>, vector<32x64xbf16>, vector<256x64xf32> -> vector<256x64xf32>
    %c0_207 = arith.constant 0 : index
    %c0_208 = arith.constant 0 : index
    %160 = vector.load %arg13[%c0_207, %c0_208] : memref<1x64xf32, #tpu.memory_space<vmem>>, vector<1x64xf32>
    %161 = vector.broadcast %160 : vector<1x64xf32> to vector<256x64xf32>
    %162 = arith.addf %159, %161 : vector<256x64xf32>
    %163 = vector.shape_cast %162 : vector<256x64xf32> to vector<1x16x16x64xf32>
    %164 = arith.addf %163, %155 : vector<1x16x16x64xf32>
    %c0_209 = arith.constant 0 : index
    %c0_210 = arith.constant 0 : index
    %c0_211 = arith.constant 0 : index
    %c0_212 = arith.constant 0 : index
    %165 = vector.load %arg14[%c0_209, %c0_210, %c0_211, %c0_212] : memref<1x16x16x64xf32, #tpu.memory_space<vmem>>, vector<1x16x16x64xf32>
    tpu.vector_store %arg14[%c0_209, %c0_210, %c0_211, %c0_212], %164 {strides = array<i32>} : memref<1x16x16x64xf32, #tpu.memory_space<vmem>>, vector<1x16x16x64xf32>,
    return
  }
  func.func @transform_0(%arg0: i32) -> (i32, i32, i32, i32) {
    %c0_i32 = arith.constant 0 : i32
    %c0_i32_0 = arith.constant 0 : i32
    %c0_i32_1 = arith.constant 0 : i32
    %c0_i32_2 = arith.constant 0 : i32
    return %arg0, %c0_i32, %c0_i32_0, %c0_i32_1 : i32, i32, i32, i32
  }
  func.func @transform_1(%arg0: i32) -> (i32, i32) {
    %c0_i32 = arith.constant 0 : i32
    %c0_i32_0 = arith.constant 0 : i32
    %c0_i32_1 = arith.constant 0 : i32
    return %c0_i32, %c0_i32_0 : i32, i32
  }
  func.func @transform_2(%arg0: i32) -> (i32, i32) {
    %c0_i32 = arith.constant 0 : i32
    %c0_i32_0 = arith.constant 0 : i32
    %c0_i32_1 = arith.constant 0 : i32
    return %c0_i32, %c0_i32_0 : i32, i32
  }
  func.func @transform_3(%arg0: i32) -> (i32, i32) {
    %c0_i32 = arith.constant 0 : i32
    %c0_i32_0 = arith.constant 0 : i32
    %c0_i32_1 = arith.constant 0 : i32
    return %c0_i32, %c0_i32_0 : i32, i32
  }
  func.func @transform_4(%arg0: i32) -> (i32, i32) {
    %c0_i32 = arith.constant 0 : i32
    %c0_i32_0 = arith.constant 0 : i32
    %c0_i32_1 = arith.constant 0 : i32
    return %c0_i32, %c0_i32_0 : i32, i32
  }
  func.func @transform_5(%arg0: i32) -> (i32, i32) {
    %c0_i32 = arith.constant 0 : i32
    %c0_i32_0 = arith.constant 0 : i32
    %c0_i32_1 = arith.constant 0 : i32
    return %c0_i32, %c0_i32_0 : i32, i32
  }
  func.func @transform_6(%arg0: i32) -> (i32, i32) {
    %c0_i32 = arith.constant 0 : i32
    %c0_i32_0 = arith.constant 0 : i32
    %c0_i32_1 = arith.constant 0 : i32
    return %c0_i32, %c0_i32_0 : i32, i32
  }
  func.func @transform_7(%arg0: i32) -> (i32, i32) {
    %c0_i32 = arith.constant 0 : i32
    %c0_i32_0 = arith.constant 0 : i32
    %c0_i32_1 = arith.constant 0 : i32
    return %c0_i32, %c0_i32_0 : i32, i32
  }
  func.func @transform_8(%arg0: i32) -> (i32, i32) {
    %c0_i32 = arith.constant 0 : i32
    %c0_i32_0 = arith.constant 0 : i32
    %c0_i32_1 = arith.constant 0 : i32
    return %c0_i32, %c0_i32_0 : i32, i32
  }
  func.func @transform_9(%arg0: i32) -> (i32, i32) {
    %c0_i32 = arith.constant 0 : i32
    %c0_i32_0 = arith.constant 0 : i32
    %c0_i32_1 = arith.constant 0 : i32
    return %c0_i32, %c0_i32_0 : i32, i32
  }
  func.func @transform_10(%arg0: i32) -> (i32, i32) {
    %c0_i32 = arith.constant 0 : i32
    %c0_i32_0 = arith.constant 0 : i32
    %c0_i32_1 = arith.constant 0 : i32
    return %c0_i32, %c0_i32_0 : i32, i32
  }
  func.func @transform_11(%arg0: i32) -> (i32, i32) {
    %c0_i32 = arith.constant 0 : i32
    %c0_i32_0 = arith.constant 0 : i32
    %c0_i32_1 = arith.constant 0 : i32
    return %c0_i32, %c0_i32_0 : i32, i32
  }
  func.func @transform_12(%arg0: i32) -> (i32, i32) {
    %c0_i32 = arith.constant 0 : i32
    %c0_i32_0 = arith.constant 0 : i32
    %c0_i32_1 = arith.constant 0 : i32
    return %c0_i32, %c0_i32_0 : i32, i32
  }
  func.func @transform_13(%arg0: i32) -> (i32, i32, i32, i32) {
    %c0_i32 = arith.constant 0 : i32
    %c0_i32_0 = arith.constant 0 : i32
    %c0_i32_1 = arith.constant 0 : i32
    %c0_i32_2 = arith.constant 0 : i32
    return %arg0, %c0_i32, %c0_i32_0, %c0_i32_1 : i32, i32, i32, i32
  }
}

</mosaic_0001>

<llo_original>
// kernel: tpu_custom_call.1
$region0: #{tpu_custom_call.1}
  #allocation0 [shape = 'u32[]', space=smem, size = 0x4, offset = 0x4, fixed_abs, tag = 'smem constant byte address 0x4 - core index']
  #allocation1 [shape = 'u32[144,128]{1,0:T(1,128)}', space=vmem, size = 0x12000, scoped, tag = 'internal scratch']
  #allocation2 [shape = 'bf16[1,16,16,288]{3,2,1,0:T(8,128)(2,1)}', space=vmem, size = 0x30000, scoped, tag = 'scratch operand']
  #allocation3 [shape = 'bf16[1,16,16,576]{3,2,1,0:T(8,128)(2,1)}', space=vmem, size = 0x50000, scoped, tag = 'scratch operand']
  %s0 = inlined_call_operand.vmem [shape: f32[2,16,16,32], index: 0, kind: input, shape index: {}]
  %s1 = inlined_call_operand.vmem [shape: f32[1,32], index: 1, kind: input, shape index: {}]
  %s2 = inlined_call_operand.vmem [shape: f32[1,32], index: 2, kind: input, shape index: {}]
  %s3 = inlined_call_operand.vmem [shape: bf16[288,64], index: 3, kind: input, shape index: {}]
  %s4 = inlined_call_operand.vmem [shape: f32[1,64], index: 4, kind: input, shape index: {}]
  %s5 = inlined_call_operand.vmem [shape: f32[1,64], index: 5, kind: input, shape index: {}]
  %s6 = inlined_call_operand.vmem [shape: f32[1,64], index: 6, kind: input, shape index: {}]
  %s7 = inlined_call_operand.vmem [shape: bf16[576,64], index: 7, kind: input, shape index: {}]
  %s8 = inlined_call_operand.vmem [shape: f32[1,64], index: 8, kind: input, shape index: {}]
  %s9 = inlined_call_operand.hbm [shape: f32[32,32], index: 9, kind: input, shape index: {}]
  %s10 = inlined_call_operand.hbm [shape: f32[64,64], index: 10, kind: input, shape index: {}]
  %s11 = inlined_call_operand.vmem [shape: bf16[32,64], index: 11, kind: input, shape index: {}]
  %s12 = inlined_call_operand.vmem [shape: f32[1,64], index: 12, kind: input, shape index: {}]
  %s13 = inlined_call_operand.hbm [shape: f32[2,16,16,64], index: 13, kind: output, shape index: {}]
  %s14 = sld [smem:[#allocation0]]
  $region93: #{tpu_custom_call.1} parent=0
    _
  %s16 = ssub.s32 1, %s14
  %s17 = scalar_select 0, %s16, %s14
  $region1: #{tpu_custom_call.1} parent=0
    #allocation4 [shape = 'u8[16384]{0}', space=vmem, size = 0x4000, scoped, tag = 'input window, operand 9, single buffered']
    #allocation5 [shape = 's32[2]{0}', space=sflag, size = 0x8, scoped, tag = 'scoped memory for tpu_custom_call.1']
    #allocation6 [shape = 's32[2]{0}', space=sflag, size = 0x8, scoped, tag = 'scoped memory for tpu_custom_call.1']
    #allocation7 [shape = 'u8[32768]{0}', space=vmem, size = 0x8000, scoped, tag = 'input window, operand 10, single buffered']
    #allocation8 [shape = 's32[1]{0}', space=sflag, size = 0x4, scoped, tag = 'scoped memory for tpu_custom_call.1']
    #allocation9 [shape = 'u8[262144]{0}', space=vmem, size = 0x40000, scoped, tag = 'output window, operand 0']
    %18 = vsyncpa [#allocation5], 0
    %19 = vsyncpa [#allocation8], 0
    %20 = vsyncpa [#allocation6], 0
    %s21 = scalar_lea.sflag [#allocation6], 1
    %22 = vsyncpa %s21, 0
    loop: start=0, step=1, limit=4
    $region2: #{tpu_custom_call.1} parent=1 // loop_pre_header
      _
    $region3: #{tpu_custom_call.1} parent=1 // loop_header
      %s24 = sphi 0, %s28
      %p25 = scmp.ge.s32.totalorder %s24, 4
      %s34 = sphi 0, %s36
      %s37 = sphi 0, %s34
      %s38 = sphi 0, %s37
      %s54 = sphi 0, %s38
      %s58 = sphi 0, %s58
      %s60 = sphi 0, %s58
      %s61 = sphi 0, %s60
      %s75 = sphi 0, %s61
      %s79 = sphi 0, %s79
      %s81 = sphi 0, %s79
      %s82 = sphi 0, %s81
      %s96 = sphi 0, %s82
      %s100 = sphi 0, %s100
      %s102 = sphi 0, %s100
      %s103 = sphi 0, %s102
      %s117 = sphi 0, %s103
      %s121 = sphi 0, %s121
      %s123 = sphi 0, %s121
      %s124 = sphi 0, %s123
      %s138 = sphi 0, %s124
      %s142 = sphi 0, %s142
      %s144 = sphi 0, %s142
      %s145 = sphi 0, %s144
      %s159 = sphi 0, %s145
      %s163 = sphi 0, %s163
      %s165 = sphi 0, %s163
      %s166 = sphi 0, %s165
      %s180 = sphi 0, %s166
      %s184 = sphi 0, %s184
      %s186 = sphi 0, %s184
      %s187 = sphi 0, %s186
      %s201 = sphi 0, %s187
      %s205 = sphi 0, %s205
      %s207 = sphi 0, %s205
      %s208 = sphi 0, %s207
      %s222 = sphi 0, %s208
      %s226 = sphi 0, %s226
      %s228 = sphi 0, %s226
      %s229 = sphi 0, %s228
      %s243 = sphi 0, %s229
      %s247 = sphi 0, %s247
      %s249 = sphi 0, %s247
      %s250 = sphi 0, %s249
      %s264 = sphi 0, %s250
      %s268 = sphi 0, %s268
      %s270 = sphi 0, %s268
      %s271 = sphi 0, %s270
      %s285 = sphi 0, %s271
      %s289 = sphi 0, %s289
      %s291 = sphi 0, %s289
      %s292 = sphi 0, %s291
      %s306 = sphi 0, %s292
      %s312 = sphi 0, %s314
      %s315 = sphi 0, %s312
      %s316 = sphi 0, %s315
      %s332 = sphi 0, %s316
    $region4: #{tpu_custom_call.1} parent=1 // loop_header_branch
      %27 = sbr.rel (%p25) target = $region8
    $region5: #{tpu_custom_call.1} parent=1 // loop_body
      %s29 = ssub.s32 %s24, 1
      %s30 = ssub.s32 %s24, 2
      %s31 = sadd.s32 %s24, 1
      %s32 = ssub.s32 %s24, %s31
      %p33 = scmp.eq.s32.totalorder %s32, 0
      %s35 = sadd.s32 %s34, 1
      %s36 = scalar_select %p33, %s34, %s35
      %p39 = pneg %p33
      %p40 = scmp.eq.s32.totalorder %s24, 1
      %p41 = por %p39, %p40
      %p42 = scmp.ne.s32.totalorder %s34, %s37
      %p43 = scmp.eq.s32.totalorder %s24, 0
      %p44 = por %p42, %p43
      %p45 = scmp.ne.s32.totalorder %s34, %s37
      %p46 = scmp.eq.s32.totalorder %s29, 1
      %p47 = por %p45, %p46
      %p48 = scmp.ne.s32.totalorder %s37, %s38
      %p49 = scmp.eq.s32.totalorder %s29, 0
      %p50 = por %p48, %p49
      %p51 = scmp.ne.s32.totalorder %s37, %s38
      %p52 = scmp.eq.s32.totalorder %s30, 1
      %p53 = por %p51, %p52
      %p55 = scmp.ne.s32.totalorder %s38, %s54
      %p56 = scmp.eq.s32.totalorder %s30, 0
      %p57 = por %p55, %p56
      %s59 = sadd.s32 %s58, 1
      %p62 = scmp.eq.s32.totalorder %s24, 1
      %p63 = scmp.ne.s32.totalorder %s58, %s60
      %p64 = scmp.eq.s32.totalorder %s24, 0
      %p65 = por %p63, %p64
      %p66 = scmp.ne.s32.totalorder %s58, %s60
      %p67 = scmp.eq.s32.totalorder %s29, 1
      %p68 = por %p66, %p67
      %p69 = scmp.ne.s32.totalorder %s60, %s61
      %p70 = scmp.eq.s32.totalorder %s29, 0
      %p71 = por %p69, %p70
      %p72 = scmp.ne.s32.totalorder %s60, %s61
      %p73 = scmp.eq.s32.totalorder %s30, 1
      %p74 = por %p72, %p73
      %p76 = scmp.ne.s32.totalorder %s61, %s75
      %p77 = scmp.eq.s32.totalorder %s30, 0
      %p78 = por %p76, %p77
      %s80 = sadd.s32 %s79, 1
      %p83 = scmp.eq.s32.totalorder %s24, 1
      %p84 = scmp.ne.s32.totalorder %s79, %s81
      %p85 = scmp.eq.s32.totalorder %s24, 0
      %p86 = por %p84, %p85
      %p87 = scmp.ne.s32.totalorder %s79, %s81
      %p88 = scmp.eq.s32.totalorder %s29, 1
      %p89 = por %p87, %p88
      %p90 = scmp.ne.s32.totalorder %s81, %s82
      %p91 = scmp.eq.s32.totalorder %s29, 0
      %p92 = por %p90, %p91
      %p93 = scmp.ne.s32.totalorder %s81, %s82
      %p94 = scmp.eq.s32.totalorder %s30, 1
      %p95 = por %p93, %p94
      %p97 = scmp.ne.s32.totalorder %s82, %s96
      %p98 = scmp.eq.s32.totalorder %s30, 0
      %p99 = por %p97, %p98
      %s101 = sadd.s32 %s100, 1
      %p104 = scmp.eq.s32.totalorder %s24, 1
      %p105 = scmp.ne.s32.totalorder %s100, %s102
      %p106 = scmp.eq.s32.totalorder %s24, 0
      %p107 = por %p105, %p106
      %p108 = scmp.ne.s32.totalorder %s100, %s102
      %p109 = scmp.eq.s32.totalorder %s29, 1
      %p110 = por %p108, %p109
      %p111 = scmp.ne.s32.totalorder %s102, %s103
      %p112 = scmp.eq.s32.totalorder %s29, 0
      %p113 = por %p111, %p112
      %p114 = scmp.ne.s32.totalorder %s102, %s103
      %p115 = scmp.eq.s32.totalorder %s30, 1
      %p116 = por %p114, %p115
      %p118 = scmp.ne.s32.totalorder %s103, %s117
      %p119 = scmp.eq.s32.totalorder %s30, 0
      %p120 = por %p118, %p119
      %s122 = sadd.s32 %s121, 1
      %p125 = scmp.eq.s32.totalorder %s24, 1
      %p126 = scmp.ne.s32.totalorder %s121, %s123
      %p127 = scmp.eq.s32.totalorder %s24, 0
      %p128 = por %p126, %p127
      %p129 = scmp.ne.s32.totalorder %s121, %s123
      %p130 = scmp.eq.s32.totalorder %s29, 1
      %p131 = por %p129, %p130
      %p132 = scmp.ne.s32.totalorder %s123, %s124
      %p133 = scmp.eq.s32.totalorder %s29, 0
      %p134 = por %p132, %p133
      %p135 = scmp.ne.s32.totalorder %s123, %s124
      %p136 = scmp.eq.s32.totalorder %s30, 1
      %p137 = por %p135, %p136
      %p139 = scmp.ne.s32.totalorder %s124, %s138
      %p140 = scmp.eq.s32.totalorder %s30, 0
      %p141 = por %p139, %p140
      %s143 = sadd.s32 %s142, 1
      %p146 = scmp.eq.s32.totalorder %s24, 1
      %p147 = scmp.ne.s32.totalorder %s142, %s144
      %p148 = scmp.eq.s32.totalorder %s24, 0
      %p149 = por %p147, %p148
      %p150 = scmp.ne.s32.totalorder %s142, %s144
      %p151 = scmp.eq.s32.totalorder %s29, 1
      %p152 = por %p150, %p151
      %p153 = scmp.ne.s32.totalorder %s144, %s145
      %p154 = scmp.eq.s32.totalorder %s29, 0
      %p155 = por %p153, %p154
      %p156 = scmp.ne.s32.totalorder %s144, %s145
      %p157 = scmp.eq.s32.totalorder %s30, 1
      %p158 = por %p156, %p157
      %p160 = scmp.ne.s32.totalorder %s145, %s159
      %p161 = scmp.eq.s32.totalorder %s30, 0
      %p162 = por %p160, %p161
      %s164 = sadd.s32 %s163, 1
      %p167 = scmp.eq.s32.totalorder %s24, 1
      %p168 = scmp.ne.s32.totalorder %s163, %s165
      %p169 = scmp.eq.s32.totalorder %s24, 0
      %p170 = por %p168, %p169
      %p171 = scmp.ne.s32.totalorder %s163, %s165
      %p172 = scmp.eq.s32.totalorder %s29, 1
      %p173 = por %p171, %p172
      %p174 = scmp.ne.s32.totalorder %s165, %s166
      %p175 = scmp.eq.s32.totalorder %s29, 0
      %p176 = por %p174, %p175
      %p177 = scmp.ne.s32.totalorder %s165, %s166
      %p178 = scmp.eq.s32.totalorder %s30, 1
      %p179 = por %p177, %p178
      %p181 = scmp.ne.s32.totalorder %s166, %s180
      %p182 = scmp.eq.s32.totalorder %s30, 0
      %p183 = por %p181, %p182
      %s185 = sadd.s32 %s184, 1
      %p188 = scmp.eq.s32.totalorder %s24, 1
      %p189 = scmp.ne.s32.totalorder %s184, %s186
      %p190 = scmp.eq.s32.totalorder %s24, 0
      %p191 = por %p189, %p190
      %p192 = scmp.ne.s32.totalorder %s184, %s186
      %p193 = scmp.eq.s32.totalorder %s29, 1
      %p194 = por %p192, %p193
      %p195 = scmp.ne.s32.totalorder %s186, %s187
      %p196 = scmp.eq.s32.totalorder %s29, 0
      %p197 = por %p195, %p196
      %p198 = scmp.ne.s32.totalorder %s186, %s187
      %p199 = scmp.eq.s32.totalorder %s30, 1
      %p200 = por %p198, %p199
      %p202 = scmp.ne.s32.totalorder %s187, %s201
      %p203 = scmp.eq.s32.totalorder %s30, 0
      %p204 = por %p202, %p203
      %s206 = sadd.s32 %s205, 1
      %p209 = scmp.eq.s32.totalorder %s24, 1
      %p210 = scmp.ne.s32.totalorder %s205, %s207
      %p211 = scmp.eq.s32.totalorder %s24, 0
      %p212 = por %p210, %p211
      %p213 = scmp.ne.s32.totalorder %s205, %s207
      %p214 = scmp.eq.s32.totalorder %s29, 1
      %p215 = por %p213, %p214
      %p216 = scmp.ne.s32.totalorder %s207, %s208
      %p217 = scmp.eq.s32.totalorder %s29, 0
      %p218 = por %p216, %p217
      %p219 = scmp.ne.s32.totalorder %s207, %s208
      %p220 = scmp.eq.s32.totalorder %s30, 1
      %p221 = por %p219, %p220
      %p223 = scmp.ne.s32.totalorder %s208, %s222
      %p224 = scmp.eq.s32.totalorder %s30, 0
      %p225 = por %p223, %p224
      %s227 = sadd.s32 %s226, 1
      %p230 = scmp.eq.s32.totalorder %s24, 1
      %p231 = scmp.ne.s32.totalorder %s226, %s228
      %p232 = scmp.eq.s32.totalorder %s24, 0
      %p233 = por %p231, %p232
      %p234 = scmp.ne.s32.totalorder %s226, %s228
      %p235 = scmp.eq.s32.totalorder %s29, 1
      %p236 = por %p234, %p235
      %p237 = scmp.ne.s32.totalorder %s228, %s229
      %p238 = scmp.eq.s32.totalorder %s29, 0
      %p239 = por %p237, %p238
      %p240 = scmp.ne.s32.totalorder %s228, %s229
      %p241 = scmp.eq.s32.totalorder %s30, 1
      %p242 = por %p240, %p241
      %p244 = scmp.ne.s32.totalorder %s229, %s243
      %p245 = scmp.eq.s32.totalorder %s30, 0
      %p246 = por %p244, %p245
      %s248 = sadd.s32 %s247, 1
      %p251 = scmp.eq.s32.totalorder %s24, 1
      %p252 = scmp.ne.s32.totalorder %s247, %s249
      %p253 = scmp.eq.s32.totalorder %s24, 0
      %p254 = por %p252, %p253
      %p255 = scmp.ne.s32.totalorder %s247, %s249
      %p256 = scmp.eq.s32.totalorder %s29, 1
      %p257 = por %p255, %p256
      %p258 = scmp.ne.s32.totalorder %s249, %s250
      %p259 = scmp.eq.s32.totalorder %s29, 0
      %p260 = por %p258, %p259
      %p261 = scmp.ne.s32.totalorder %s249, %s250
      %p262 = scmp.eq.s32.totalorder %s30, 1
      %p263 = por %p261, %p262
      %p265 = scmp.ne.s32.totalorder %s250, %s264
      %p266 = scmp.eq.s32.totalorder %s30, 0
      %p267 = por %p265, %p266
      %s269 = sadd.s32 %s268, 1
      %p272 = scmp.eq.s32.totalorder %s24, 1
      %p273 = scmp.ne.s32.totalorder %s268, %s270
      %p274 = scmp.eq.s32.totalorder %s24, 0
      %p275 = por %p273, %p274
      %p276 = scmp.ne.s32.totalorder %s268, %s270
      %p277 = scmp.eq.s32.totalorder %s29, 1
      %p278 = por %p276, %p277
      %p279 = scmp.ne.s32.totalorder %s270, %s271
      %p280 = scmp.eq.s32.totalorder %s29, 0
      %p281 = por %p279, %p280
      %p282 = scmp.ne.s32.totalorder %s270, %s271
      %p283 = scmp.eq.s32.totalorder %s30, 1
      %p284 = por %p282, %p283
      %p286 = scmp.ne.s32.totalorder %s271, %s285
      %p287 = scmp.eq.s32.totalorder %s30, 0
      %p288 = por %p286, %p287
      %s290 = sadd.s32 %s289, 1
      %p293 = scmp.eq.s32.totalorder %s24, 1
      %p294 = scmp.ne.s32.totalorder %s289, %s291
      %p295 = scmp.eq.s32.totalorder %s24, 0
      %p296 = por %p294, %p295
      %p297 = scmp.ne.s32.totalorder %s289, %s291
      %p298 = scmp.eq.s32.totalorder %s29, 1
      %p299 = por %p297, %p298
      %p300 = scmp.ne.s32.totalorder %s291, %s292
      %p301 = scmp.eq.s32.totalorder %s29, 0
      %p302 = por %p300, %p301
      %p303 = scmp.ne.s32.totalorder %s291, %s292
      %p304 = scmp.eq.s32.totalorder %s30, 1
      %p305 = por %p303, %p304
      %p307 = scmp.ne.s32.totalorder %s292, %s306
      %p308 = scmp.eq.s32.totalorder %s30, 0
      %p309 = por %p307, %p308
      %s310 = ssub.s32 %s24, %s31
      %p311 = scmp.eq.s32.totalorder %s310, 0
      %s313 = sadd.s32 %s312, 1
      %s314 = scalar_select %p311, %s312, %s313
      %p317 = pneg %p311
      %p318 = scmp.eq.s32.totalorder %s24, 1
      %p319 = por %p317, %p318
      %p320 = scmp.ne.s32.totalorder %s312, %s315
      %p321 = scmp.eq.s32.totalorder %s24, 0
      %p322 = por %p320, %p321
      %p323 = scmp.ne.s32.totalorder %s312, %s315
      %p324 = scmp.eq.s32.totalorder %s29, 1
      %p325 = por %p323, %p324
      %p326 = scmp.ne.s32.totalorder %s315, %s316
      %p327 = scmp.eq.s32.totalorder %s29, 0
      %p328 = por %p326, %p327
      %p329 = scmp.ne.s32.totalorder %s315, %s316
      %p330 = scmp.eq.s32.totalorder %s30, 1
      %p331 = por %p329, %p330
      %p333 = scmp.ne.s32.totalorder %s316, %s332
      %p334 = scmp.eq.s32.totalorder %s30, 0
      %p335 = por %p333, %p334
      %p336 = scmp.le.s32.totalorder 1, %s24
      %p337 = scmp.lt.s32.totalorder %s24, 3
      %p338 = pnand %p336, %p337
      %p339 = pneg %p338
      // Predicated region
      $region9: #{tpu_custom_call.1} parent=5 // pred_check
        _
      $region10: #{tpu_custom_call.1} parent=5 // pred_check_branch
        %341 = sbr.rel (%p338) target = $region12
      $region11: #{tpu_custom_call.1} parent=5 // pred_region
        %s342 = ssub.s32 %s24, 1
        // Predicated region
        $region13: #{tpu_custom_call.1} parent=11 // pred_check
          %p343 = pneg %p71
        $region14: #{tpu_custom_call.1} parent=11 // pred_check_branch
          %345 = sbr.rel (%p343) target = $region16
        $region15: #{tpu_custom_call.1} parent=11 // pred_region
          _
        $region16: #{tpu_custom_call.1} parent=11 // pred_fallthru
          _
        // Predicated region
        $region17: #{tpu_custom_call.1} parent=11 // pred_check
          %p346 = pneg %p92
        $region18: #{tpu_custom_call.1} parent=11 // pred_check_branch
          %348 = sbr.rel (%p346) target = $region20
        $region19: #{tpu_custom_call.1} parent=11 // pred_region
          _
        $region20: #{tpu_custom_call.1} parent=11 // pred_fallthru
          _
        // Predicated region
        $region21: #{tpu_custom_call.1} parent=11 // pred_check
          %p349 = pneg %p113
        $region22: #{tpu_custom_call.1} parent=11 // pred_check_branch
          %351 = sbr.rel (%p349) target = $region24
        $region23: #{tpu_custom_call.1} parent=11 // pred_region
          _
        $region24: #{tpu_custom_call.1} parent=11 // pred_fallthru
          _
        // Predicated region
        $region25: #{tpu_custom_call.1} parent=11 // pred_check
          %p352 = pneg %p134
        $region26: #{tpu_custom_call.1} parent=11 // pred_check_branch
          %354 = sbr.rel (%p352) target = $region28
        $region27: #{tpu_custom_call.1} parent=11 // pred_region
          _
        $region28: #{tpu_custom_call.1} parent=11 // pred_fallthru
          _
        // Predicated region
        $region29: #{tpu_custom_call.1} parent=11 // pred_check
          %p355 = pneg %p155
        $region30: #{tpu_custom_call.1} parent=11 // pred_check_branch
          %357 = sbr.rel (%p355) target = $region32
        $region31: #{tpu_custom_call.1} parent=11 // pred_region
          _
        $region32: #{tpu_custom_call.1} parent=11 // pred_fallthru
          _
        // Predicated region
        $region33: #{tpu_custom_call.1} parent=11 // pred_check
          %p358 = pneg %p176
        $region34: #{tpu_custom_call.1} parent=11 // pred_check_branch
          %360 = sbr.rel (%p358) target = $region36
        $region35: #{tpu_custom_call.1} parent=11 // pred_region
          _
        $region36: #{tpu_custom_call.1} parent=11 // pred_fallthru
          _
        // Predicated region
        $region37: #{tpu_custom_call.1} parent=11 // pred_check
          %p361 = pneg %p197
        $region38: #{tpu_custom_call.1} parent=11 // pred_check_branch
          %363 = sbr.rel (%p361) target = $region40
        $region39: #{tpu_custom_call.1} parent=11 // pred_region
          _
        $region40: #{tpu_custom_call.1} parent=11 // pred_fallthru
          _
        // Predicated region
        $region41: #{tpu_custom_call.1} parent=11 // pred_check
          %p364 = pneg %p218
        $region42: #{tpu_custom_call.1} parent=11 // pred_check_branch
          %366 = sbr.rel (%p364) target = $region44
        $region43: #{tpu_custom_call.1} parent=11 // pred_region
          _
        $region44: #{tpu_custom_call.1} parent=11 // pred_fallthru
          _
        // Predicated region
        $region45: #{tpu_custom_call.1} parent=11 // pred_check
          %p367 = pneg %p239
        $region46: #{tpu_custom_call.1} parent=11 // pred_check_branch
          %369 = sbr.rel (%p367) target = $region48
        $region47: #{tpu_custom_call.1} parent=11 // pred_region
          %s371 = ssub.s32 512, 512
          %372 = vsyncadd [#allocation5], %s371
          %s373 = sshll.u32 [#allocation4], 4
          %s374 = int_to_ptr.vmem [resolvable:$true] %s373
          %379 = dma.hbm_to_vmem [thread:$0]  %s9, 512, %s374, [#allocation5], 128, 128, 8
        $region48: #{tpu_custom_call.1} parent=11 // pred_fallthru
          _
        // Predicated region
        $region49: #{tpu_custom_call.1} parent=11 // pred_check
          %p380 = pneg %p260
        $region50: #{tpu_custom_call.1} parent=11 // pred_check_branch
          %382 = sbr.rel (%p380) target = $region52
        $region51: #{tpu_custom_call.1} parent=11 // pred_region
          %s384 = ssub.s32 1024, 1024
          %385 = vsyncadd [#allocation8], %s384
          %s386 = sshll.u32 [#allocation7], 4
          %s387 = int_to_ptr.vmem [resolvable:$true] %s386
          %392 = dma.hbm_to_vmem [thread:$0]  %s10, 1024, %s387, [#allocation8], 128, 128, 8
        $region52: #{tpu_custom_call.1} parent=11 // pred_fallthru
          _
        // Predicated region
        $region53: #{tpu_custom_call.1} parent=11 // pred_check
          %p393 = pneg %p281
        $region54: #{tpu_custom_call.1} parent=11 // pred_check_branch
          %395 = sbr.rel (%p393) target = $region56
        $region55: #{tpu_custom_call.1} parent=11 // pred_region
          _
        $region56: #{tpu_custom_call.1} parent=11 // pred_fallthru
          _
        // Predicated region
        $region57: #{tpu_custom_call.1} parent=11 // pred_check
          %p396 = pneg %p302
        $region58: #{tpu_custom_call.1} parent=11 // pred_check_branch
          %398 = sbr.rel (%p396) target = $region60
        $region59: #{tpu_custom_call.1} parent=11 // pred_region
          _
        $region60: #{tpu_custom_call.1} parent=11 // pred_fallthru
          _
      $region12: #{tpu_custom_call.1} parent=5 // pred_fallthru
        _
      %p399 = scmp.lt.s32.totalorder %s24, 2
      // Predicated region
      $region61: #{tpu_custom_call.1} parent=5 // pred_check
        %p400 = pneg %p399
      $region62: #{tpu_custom_call.1} parent=5 // pred_check_branch
        %402 = sbr.rel (%p400) target = $region64
      $region63: #{tpu_custom_call.1} parent=5 // pred_region
        // Predicated region
        $region65: #{tpu_custom_call.1} parent=63 // pred_check
          %p403 = pneg %p44
        $region66: #{tpu_custom_call.1} parent=63 // pred_check_branch
          %405 = sbr.rel (%p403) target = $region68
        $region67: #{tpu_custom_call.1} parent=63 // pred_region
          %p406 = scmp.lt.s32.totalorder %s24, 1
          %s407 = scalar_select %p406, %s24, 1
          %s408 = smul.addr %s407, 32
          %s409 = smul.addr %s408, 8
          %s410 = scalar_lea.vmem %s0, %s409
        $region68: #{tpu_custom_call.1} parent=63 // pred_fallthru
          _
      $region64: #{tpu_custom_call.1} parent=5 // pred_fallthru
        _
      %p411 = scmp.le.s32.totalorder 1, %s24
      %p412 = scmp.lt.s32.totalorder %s24, 3
      %p413 = pnand %p411, %p412
      %p414 = pneg %p413
      // Predicated region
      $region69: #{tpu_custom_call.1} parent=5 // pred_check
        _
      $region70: #{tpu_custom_call.1} parent=5 // pred_check_branch
        %416 = sbr.rel (%p413) target = $region72
      $region71: #{tpu_custom_call.1} parent=5 // pred_region
        %s417 = ssub.s32 %s24, 1
        // Predicated region
        $region73: #{tpu_custom_call.1} parent=71 // pred_check
          %p418 = pneg %p239
        $region74: #{tpu_custom_call.1} parent=71 // pred_check_branch
          %420 = sbr.rel (%p418) target = $region76
        $region75: #{tpu_custom_call.1} parent=71 // pred_region
          %421 = dma.done [#allocation5], 512
        $region76: #{tpu_custom_call.1} parent=71 // pred_fallthru
          _
        // Predicated region
        $region77: #{tpu_custom_call.1} parent=71 // pred_check
          %p422 = pneg %p260
        $region78: #{tpu_custom_call.1} parent=71 // pred_check_branch
          %424 = sbr.rel (%p422) target = $region80
        $region79: #{tpu_custom_call.1} parent=71 // pred_region
          %425 = dma.done [#allocation8], 1024
        $region80: #{tpu_custom_call.1} parent=71 // pred_fallthru
          _
        %p426 = scmp.lt.s32.totalorder %s29, 1
        %s427 = scalar_select %p426, %s29, 1
        %s428 = smul.addr %s427, 32
        %s429 = smul.addr %s428, 8
        %s430 = scalar_lea.vmem %s0, %s429
        %p431 = pneg %p50
        %p432 = pneg %p47
        %p433 = pneg %p71
        %p434 = pneg %p68
        %p435 = pneg %p92
        %p436 = pneg %p89
        %p437 = pneg %p113
        %p438 = pneg %p110
        %p439 = pneg %p134
        %p440 = pneg %p131
        %p441 = pneg %p155
        %p442 = pneg %p152
        %p443 = pneg %p176
        %p444 = pneg %p173
        %p445 = pneg %p197
        %p446 = pneg %p194
        %p447 = pneg %p218
        %p448 = pneg %p215
        %p449 = pneg %p239
        %p450 = pneg %p236
        %p451 = pneg %p260
        %p452 = pneg %p257
        %p453 = pneg %p281
        %p454 = pneg %p278
        %p455 = pneg %p302
        %p456 = pneg %p299
        %p457 = pneg %p328
        %p458 = pneg %p325
        %s459 = sand.u32 %s315, 1
        %s460 = scalar_lea.sflag [#allocation6], %s459
        %s461 = sand.u32 %s315, 1
        %s462 = smul.addr %s461, 256
        %s463 = scalar_lea.vmem [#allocation9], %s462
        %p464 = scmp.lt.s32.totalorder %s29, 1
        %s465 = scalar_select %p464, %s29, 1
        %s466 = smul.addr %s465, 32
        %s467 = smul.addr %s466, 8
        %s468 = scalar_lea.vmem %s0, %s467
        %v470 = vld [vmem:[%s468] sm:$0xff]
        %v471 = vld [vmem:[%s468 + $0x8] sm:$0xff]
        %v472 = vld [vmem:[%s468 + $0x10] sm:$0xff]
        %v473 = vld [vmem:[%s468 + $0x18] sm:$0xff]
        %v474 = vld [vmem:[%s468 + $0x20] sm:$0xff]
        %v475 = vld [vmem:[%s468 + $0x28] sm:$0xff]
        %v476 = vld [vmem:[%s468 + $0x30] sm:$0xff]
        %v477 = vld [vmem:[%s468 + $0x38] sm:$0xff]
        %v478 = vld [vmem:[%s468 + $0x40] sm:$0xff]
        %v479 = vld [vmem:[%s468 + $0x48] sm:$0xff]
        %v480 = vld [vmem:[%s468 + $0x50] sm:$0xff]
        %v481 = vld [vmem:[%s468 + $0x58] sm:$0xff]
        %v482 = vld [vmem:[%s468 + $0x60] sm:$0xff]
        %v483 = vld [vmem:[%s468 + $0x68] sm:$0xff]
        %v484 = vld [vmem:[%s468 + $0x70] sm:$0xff]
        %v485 = vld [vmem:[%s468 + $0x78] sm:$0xff]
        %v486 = vld [vmem:[%s468 + $0x80] sm:$0xff]
        %v487 = vld [vmem:[%s468 + $0x88] sm:$0xff]
        %v488 = vld [vmem:[%s468 + $0x90] sm:$0xff]
        %v489 = vld [vmem:[%s468 + $0x98] sm:$0xff]
        %v490 = vld [vmem:[%s468 + $0xa0] sm:$0xff]
        %v491 = vld [vmem:[%s468 + $0xa8] sm:$0xff]
        %v492 = vld [vmem:[%s468 + $0xb0] sm:$0xff]
        %v493 = vld [vmem:[%s468 + $0xb8] sm:$0xff]
        %v494 = vld [vmem:[%s468 + $0xc0] sm:$0xff]
        %v495 = vld [vmem:[%s468 + $0xc8] sm:$0xff]
        %v496 = vld [vmem:[%s468 + $0xd0] sm:$0xff]
        %v497 = vld [vmem:[%s468 + $0xd8] sm:$0xff]
        %v498 = vld [vmem:[%s468 + $0xe0] sm:$0xff]
        %v499 = vld [vmem:[%s468 + $0xe8] sm:$0xff]
        %v500 = vld [vmem:[%s468 + $0xf0] sm:$0xff]
        %v501 = vld [vmem:[%s468 + $0xf8] sm:$0xff]
        %vm502 = vcmask 261120
        %v503 = vsel %vm502, %v470, 0.0
        %v504 = vsel %vm502, %v471, 0.0
        %v505 = vadd.f32 %v503, %v504
        %v506 = vsel %vm502, %v472, 0.0
        %v507 = vadd.f32 %v505, %v506
        %v508 = vsel %vm502, %v473, 0.0
        %v509 = vadd.f32 %v507, %v508
        %v510 = vsel %vm502, %v474, 0.0
        %v511 = vadd.f32 %v509, %v510
        %v512 = vsel %vm502, %v475, 0.0
        %v513 = vadd.f32 %v511, %v512
        %v514 = vsel %vm502, %v476, 0.0
        %v515 = vadd.f32 %v513, %v514
        %v516 = vsel %vm502, %v477, 0.0
        %v517 = vadd.f32 %v515, %v516
        %v518 = vsel %vm502, %v478, 0.0
        %v519 = vadd.f32 %v517, %v518
        %v520 = vsel %vm502, %v479, 0.0
        %v521 = vadd.f32 %v519, %v520
        %v522 = vsel %vm502, %v480, 0.0
        %v523 = vadd.f32 %v521, %v522
        %v524 = vsel %vm502, %v481, 0.0
        %v525 = vadd.f32 %v523, %v524
        %v526 = vsel %vm502, %v482, 0.0
        %v527 = vadd.f32 %v525, %v526
        %v528 = vsel %vm502, %v483, 0.0
        %v529 = vadd.f32 %v527, %v528
        %v530 = vsel %vm502, %v484, 0.0
        %v531 = vadd.f32 %v529, %v530
        %v532 = vsel %vm502, %v485, 0.0
        %v533 = vadd.f32 %v531, %v532
        %v534 = vsel %vm502, %v486, 0.0
        %v535 = vadd.f32 %v533, %v534
        %v536 = vsel %vm502, %v487, 0.0
        %v537 = vadd.f32 %v535, %v536
        %v538 = vsel %vm502, %v488, 0.0
        %v539 = vadd.f32 %v537, %v538
        %v540 = vsel %vm502, %v489, 0.0
        %v541 = vadd.f32 %v539, %v540
        %v542 = vsel %vm502, %v490, 0.0
        %v543 = vadd.f32 %v541, %v542
        %v544 = vsel %vm502, %v491, 0.0
        %v545 = vadd.f32 %v543, %v544
        %v546 = vsel %vm502, %v492, 0.0
        %v547 = vadd.f32 %v545, %v546
        %v548 = vsel %vm502, %v493, 0.0
        %v549 = vadd.f32 %v547, %v548
        %v550 = vsel %vm502, %v494, 0.0
        %v551 = vadd.f32 %v549, %v550
        %v552 = vsel %vm502, %v495, 0.0
        %v553 = vadd.f32 %v551, %v552
        %v554 = vsel %vm502, %v496, 0.0
        %v555 = vadd.f32 %v553, %v554
        %v556 = vsel %vm502, %v497, 0.0
        %v557 = vadd.f32 %v555, %v556
        %v558 = vsel %vm502, %v498, 0.0
        %v559 = vadd.f32 %v557, %v558
        %v560 = vsel %vm502, %v499, 0.0
        %v561 = vadd.f32 %v559, %v560
        %v562 = vsel %vm502, %v500, 0.0
        %v563 = vadd.f32 %v561, %v562
        %v564 = vsel %vm502, %v501, 0.0
        %v565 = vadd.f32 %v563, %v564
        %v566 = vrot.slane %v565, 4
        %v567 = vadd.f32 %v565, %v566
        %v568 = vrot.slane %v567, 2
        %v569 = vadd.f32 %v567, %v568
        %v570 = vrot.slane %v569, 1
        %v571 = vadd.f32 %v569, %v570
        %v572 = vmul.f32 %v470, %v470
        %v573 = vmul.f32 %v471, %v471
        %v574 = vmul.f32 %v472, %v472
        %v575 = vmul.f32 %v473, %v473
        %v576 = vmul.f32 %v474, %v474
        %v577 = vmul.f32 %v475, %v475
        %v578 = vmul.f32 %v476, %v476
        %v579 = vmul.f32 %v477, %v477
        %v580 = vmul.f32 %v478, %v478
        %v581 = vmul.f32 %v479, %v479
        %v582 = vmul.f32 %v480, %v480
        %v583 = vmul.f32 %v481, %v481
        %v584 = vmul.f32 %v482, %v482
        %v585 = vmul.f32 %v483, %v483
        %v586 = vmul.f32 %v484, %v484
        %v587 = vmul.f32 %v485, %v485
        %v588 = vmul.f32 %v486, %v486
        %v589 = vmul.f32 %v487, %v487
        %v590 = vmul.f32 %v488, %v488
        %v591 = vmul.f32 %v489, %v489
        %v592 = vmul.f32 %v490, %v490
        %v593 = vmul.f32 %v491, %v491
        %v594 = vmul.f32 %v492, %v492
        %v595 = vmul.f32 %v493, %v493
        %v596 = vmul.f32 %v494, %v494
        %v597 = vmul.f32 %v495, %v495
        %v598 = vmul.f32 %v496, %v496
        %v599 = vmul.f32 %v497, %v497
        %v600 = vmul.f32 %v498, %v498
        %v601 = vmul.f32 %v499, %v499
        %v602 = vmul.f32 %v500, %v500
        %v603 = vmul.f32 %v501, %v501
        %v604 = vsel %vm502, %v572, 0.0
        %v605 = vsel %vm502, %v573, 0.0
        %v606 = vadd.f32 %v604, %v605
        %v607 = vsel %vm502, %v574, 0.0
        %v608 = vadd.f32 %v606, %v607
        %v609 = vsel %vm502, %v575, 0.0
        %v610 = vadd.f32 %v608, %v609
        %v611 = vsel %vm502, %v576, 0.0
        %v612 = vadd.f32 %v610, %v611
        %v613 = vsel %vm502, %v577, 0.0
        %v614 = vadd.f32 %v612, %v613
        %v615 = vsel %vm502, %v578, 0.0
        %v616 = vadd.f32 %v614, %v615
        %v617 = vsel %vm502, %v579, 0.0
        %v618 = vadd.f32 %v616, %v617
        %v619 = vsel %vm502, %v580, 0.0
        %v620 = vadd.f32 %v618, %v619
        %v621 = vsel %vm502, %v581, 0.0
        %v622 = vadd.f32 %v620, %v621
        %v623 = vsel %vm502, %v582, 0.0
        %v624 = vadd.f32 %v622, %v623
        %v625 = vsel %vm502, %v583, 0.0
        %v626 = vadd.f32 %v624, %v625
        %v627 = vsel %vm502, %v584, 0.0
        %v628 = vadd.f32 %v626, %v627
        %v629 = vsel %vm502, %v585, 0.0
        %v630 = vadd.f32 %v628, %v629
        %v631 = vsel %vm502, %v586, 0.0
        %v632 = vadd.f32 %v630, %v631
        %v633 = vsel %vm502, %v587, 0.0
        %v634 = vadd.f32 %v632, %v633
        %v635 = vsel %vm502, %v588, 0.0
        %v636 = vadd.f32 %v634, %v635
        %v637 = vsel %vm502, %v589, 0.0
        %v638 = vadd.f32 %v636, %v637
        %v639 = vsel %vm502, %v590, 0.0
        %v640 = vadd.f32 %v638, %v639
        %v641 = vsel %vm502, %v591, 0.0
        %v642 = vadd.f32 %v640, %v641
        %v643 = vsel %vm502, %v592, 0.0
        %v644 = vadd.f32 %v642, %v643
        %v645 = vsel %vm502, %v593, 0.0
        %v646 = vadd.f32 %v644, %v645
        %v647 = vsel %vm502, %v594, 0.0
        %v648 = vadd.f32 %v646, %v647
        %v649 = vsel %vm502, %v595, 0.0
        %v650 = vadd.f32 %v648, %v649
        %v651 = vsel %vm502, %v596, 0.0
        %v652 = vadd.f32 %v650, %v651
        %v653 = vsel %vm502, %v597, 0.0
        %v654 = vadd.f32 %v652, %v653
        %v655 = vsel %vm502, %v598, 0.0
        %v656 = vadd.f32 %v654, %v655
        %v657 = vsel %vm502, %v599, 0.0
        %v658 = vadd.f32 %v656, %v657
        %v659 = vsel %vm502, %v600, 0.0
        %v660 = vadd.f32 %v658, %v659
        %v661 = vsel %vm502, %v601, 0.0
        %v662 = vadd.f32 %v660, %v661
        %v663 = vsel %vm502, %v602, 0.0
        %v664 = vadd.f32 %v662, %v663
        %v665 = vsel %vm502, %v603, 0.0
        %v666 = vadd.f32 %v664, %v665
        %v667 = vrot.slane %v666, 4
        %v668 = vadd.f32 %v666, %v667
        %v669 = vrot.slane %v668, 2
        %v670 = vadd.f32 %v668, %v669
        %v671 = vrot.slane %v670, 1
        %v672 = vadd.f32 %v670, %v671
        %v673 = vrcp.pop 256.0
        %v674 = vmul.f32 %v571, %v673
        %v675 = vmul.f32 %v672, %v673
        %v676 = vmul.f32 %v674, %v674
        %v677 = vsub.f32 %v675, %v676
        %v678 = vmax.f32 %v677, 0.0
        %v679 = vadd.f32 %v678, 1e-06
        %v680 = vrsqrt.pop %v679
        %v681 = vld [vmem:[%s1] sm:$0x1]
        %v682 = vmul.f32 %v680, %v681
        %v683 = vld [vmem:[%s2] sm:$0x1]
        %v684 = vmul.f32 %v674, %v682
        %v685 = vsub.f32 %v683, %v684
        %v686 = vlaneseq
        %v687 = vshrl.u32 %v686, 7
        %v688 = vsub.s32 0, %v687
        %v689 = vrot.slane %v682, %v688
        %v690 = vmul.f32 %v470, %v689
        %v691 = vmul.f32 %v471, %v689
        %v692 = vmul.f32 %v472, %v689
        %v693 = vmul.f32 %v473, %v689
        %v694 = vmul.f32 %v474, %v689
        %v695 = vmul.f32 %v475, %v689
        %v696 = vmul.f32 %v476, %v689
        %v697 = vmul.f32 %v477, %v689
        %v698 = vmul.f32 %v478, %v689
        %v699 = vmul.f32 %v479, %v689
        %v700 = vmul.f32 %v480, %v689
        %v701 = vmul.f32 %v481, %v689
        %v702 = vmul.f32 %v482, %v689
        %v703 = vmul.f32 %v483, %v689
        %v704 = vmul.f32 %v484, %v689
        %v705 = vmul.f32 %v485, %v689
        %v706 = vmul.f32 %v486, %v689
        %v707 = vmul.f32 %v487, %v689
        %v708 = vmul.f32 %v488, %v689
        %v709 = vmul.f32 %v489, %v689
        %v710 = vmul.f32 %v490, %v689
        %v711 = vmul.f32 %v491, %v689
        %v712 = vmul.f32 %v492, %v689
        %v713 = vmul.f32 %v493, %v689
        %v714 = vmul.f32 %v494, %v689
        %v715 = vmul.f32 %v495, %v689
        %v716 = vmul.f32 %v496, %v689
        %v717 = vmul.f32 %v497, %v689
        %v718 = vmul.f32 %v498, %v689
        %v719 = vmul.f32 %v499, %v689
        %v720 = vmul.f32 %v500, %v689
        %v721 = vmul.f32 %v501, %v689
        %v723 = vlaneseq
        %v724 = vshrl.u32 %v723, 7
        %v725 = vsub.s32 0, %v724
        %v726 = vrot.slane %v685, %v725
        %v728 = vadd.f32 %v690, %v726
        %v729 = vadd.f32 %v691, %v726
        %v730 = vadd.f32 %v692, %v726
        %v731 = vadd.f32 %v693, %v726
        %v732 = vadd.f32 %v694, %v726
        %v733 = vadd.f32 %v695, %v726
        %v734 = vadd.f32 %v696, %v726
        %v735 = vadd.f32 %v697, %v726
        %v736 = vadd.f32 %v698, %v726
        %v737 = vadd.f32 %v699, %v726
        %v738 = vadd.f32 %v700, %v726
        %v739 = vadd.f32 %v701, %v726
        %v740 = vadd.f32 %v702, %v726
        %v741 = vadd.f32 %v703, %v726
        %v742 = vadd.f32 %v704, %v726
        %v743 = vadd.f32 %v705, %v726
        %v744 = vadd.f32 %v706, %v726
        %v745 = vadd.f32 %v707, %v726
        %v746 = vadd.f32 %v708, %v726
        %v747 = vadd.f32 %v709, %v726
        %v748 = vadd.f32 %v710, %v726
        %v749 = vadd.f32 %v711, %v726
        %v750 = vadd.f32 %v712, %v726
        %v751 = vadd.f32 %v713, %v726
        %v752 = vadd.f32 %v714, %v726
        %v753 = vadd.f32 %v715, %v726
        %v754 = vadd.f32 %v716, %v726
        %v755 = vadd.f32 %v717, %v726
        %v756 = vadd.f32 %v718, %v726
        %v757 = vadd.f32 %v719, %v726
        %v758 = vadd.f32 %v720, %v726
        %v759 = vadd.f32 %v721, %v726
        %v760 = vxor.u32 %v728, 2147483648
        %v761 = vxor.u32 %v729, 2147483648
        %v762 = vxor.u32 %v730, 2147483648
        %v763 = vxor.u32 %v731, 2147483648
        %v764 = vxor.u32 %v732, 2147483648
        %v765 = vxor.u32 %v733, 2147483648
        %v766 = vxor.u32 %v734, 2147483648
        %v767 = vxor.u32 %v735, 2147483648
        %v768 = vxor.u32 %v736, 2147483648
        %v769 = vxor.u32 %v737, 2147483648
        %v770 = vxor.u32 %v738, 2147483648
        %v771 = vxor.u32 %v739, 2147483648
        %v772 = vxor.u32 %v740, 2147483648
        %v773 = vxor.u32 %v741, 2147483648
        %v774 = vxor.u32 %v742, 2147483648
        %v775 = vxor.u32 %v743, 2147483648
        %v776 = vxor.u32 %v744, 2147483648
        %v777 = vxor.u32 %v745, 2147483648
        %v778 = vxor.u32 %v746, 2147483648
        %v779 = vxor.u32 %v747, 2147483648
        %v780 = vxor.u32 %v748, 2147483648
        %v781 = vxor.u32 %v749, 2147483648
        %v782 = vxor.u32 %v750, 2147483648
        %v783 = vxor.u32 %v751, 2147483648
        %v784 = vxor.u32 %v752, 2147483648
        %v785 = vxor.u32 %v753, 2147483648
        %v786 = vxor.u32 %v754, 2147483648
        %v787 = vxor.u32 %v755, 2147483648
        %v788 = vxor.u32 %v756, 2147483648
        %v789 = vxor.u32 %v757, 2147483648
        %v790 = vxor.u32 %v758, 2147483648
        %v791 = vxor.u32 %v759, 2147483648
        %v792 = vmul.f32 %v760, 1.442695
        %v793 = vpow.pop %v792
        %v794 = vmul.f32 %v761, 1.442695
        %v795 = vpow.pop %v794
        %v796 = vmul.f32 %v762, 1.442695
        %v797 = vpow.pop %v796
        %v798 = vmul.f32 %v763, 1.442695
        %v799 = vpow.pop %v798
        %v800 = vmul.f32 %v764, 1.442695
        %v801 = vpow.pop %v800
        %v802 = vmul.f32 %v765, 1.442695
        %v803 = vpow.pop %v802
        %v804 = vmul.f32 %v766, 1.442695
        %v805 = vpow.pop %v804
        %v806 = vmul.f32 %v767, 1.442695
        %v807 = vpow.pop %v806
        %v808 = vmul.f32 %v768, 1.442695
        %v809 = vpow.pop %v808
        %v810 = vmul.f32 %v769, 1.442695
        %v811 = vpow.pop %v810
        %v812 = vmul.f32 %v770, 1.442695
        %v813 = vpow.pop %v812
        %v814 = vmul.f32 %v771, 1.442695
        %v815 = vpow.pop %v814
        %v816 = vmul.f32 %v772, 1.442695
        %v817 = vpow.pop %v816
        %v818 = vmul.f32 %v773, 1.442695
        %v819 = vpow.pop %v818
        %v820 = vmul.f32 %v774, 1.442695
        %v821 = vpow.pop %v820
        %v822 = vmul.f32 %v775, 1.442695
        %v823 = vpow.pop %v822
        %v824 = vmul.f32 %v776, 1.442695
        %v825 = vpow.pop %v824
        %v826 = vmul.f32 %v777, 1.442695
        %v827 = vpow.pop %v826
        %v828 = vmul.f32 %v778, 1.442695
        %v829 = vpow.pop %v828
        %v830 = vmul.f32 %v779, 1.442695
        %v831 = vpow.pop %v830
        %v832 = vmul.f32 %v780, 1.442695
        %v833 = vpow.pop %v832
        %v834 = vmul.f32 %v781, 1.442695
        %v835 = vpow.pop %v834
        %v836 = vmul.f32 %v782, 1.442695
        %v837 = vpow.pop %v836
        %v838 = vmul.f32 %v783, 1.442695
        %v839 = vpow.pop %v838
        %v840 = vmul.f32 %v784, 1.442695
        %v841 = vpow.pop %v840
        %v842 = vmul.f32 %v785, 1.442695
        %v843 = vpow.pop %v842
        %v844 = vmul.f32 %v786, 1.442695
        %v845 = vpow.pop %v844
        %v846 = vmul.f32 %v787, 1.442695
        %v847 = vpow.pop %v846
        %v848 = vmul.f32 %v788, 1.442695
        %v849 = vpow.pop %v848
        %v850 = vmul.f32 %v789, 1.442695
        %v851 = vpow.pop %v850
        %v852 = vmul.f32 %v790, 1.442695
        %v853 = vpow.pop %v852
        %v854 = vmul.f32 %v791, 1.442695
        %v855 = vpow.pop %v854
        %v856 = vadd.f32 %v793, 1.0
        %v857 = vadd.f32 %v795, 1.0
        %v858 = vadd.f32 %v797, 1.0
        %v859 = vadd.f32 %v799, 1.0
        %v860 = vadd.f32 %v801, 1.0
        %v861 = vadd.f32 %v803, 1.0
        %v862 = vadd.f32 %v805, 1.0
        %v863 = vadd.f32 %v807, 1.0
        %v864 = vadd.f32 %v809, 1.0
        %v865 = vadd.f32 %v811, 1.0
        %v866 = vadd.f32 %v813, 1.0
        %v867 = vadd.f32 %v815, 1.0
        %v868 = vadd.f32 %v817, 1.0
        %v869 = vadd.f32 %v819, 1.0
        %v870 = vadd.f32 %v821, 1.0
        %v871 = vadd.f32 %v823, 1.0
        %v872 = vadd.f32 %v825, 1.0
        %v873 = vadd.f32 %v827, 1.0
        %v874 = vadd.f32 %v829, 1.0
        %v875 = vadd.f32 %v831, 1.0
        %v876 = vadd.f32 %v833, 1.0
        %v877 = vadd.f32 %v835, 1.0
        %v878 = vadd.f32 %v837, 1.0
        %v879 = vadd.f32 %v839, 1.0
        %v880 = vadd.f32 %v841, 1.0
        %v881 = vadd.f32 %v843, 1.0
        %v882 = vadd.f32 %v845, 1.0
        %v883 = vadd.f32 %v847, 1.0
        %v884 = vadd.f32 %v849, 1.0
        %v885 = vadd.f32 %v851, 1.0
        %v886 = vadd.f32 %v853, 1.0
        %v887 = vadd.f32 %v855, 1.0
        %v888 = vrcp.pop %v856
        %v889 = vmul.f32 1.0, %v888
        %v890 = vrcp.pop %v857
        %v891 = vmul.f32 1.0, %v890
        %v892 = vrcp.pop %v858
        %v893 = vmul.f32 1.0, %v892
        %v894 = vrcp.pop %v859
        %v895 = vmul.f32 1.0, %v894
        %v896 = vrcp.pop %v860
        %v897 = vmul.f32 1.0, %v896
        %v898 = vrcp.pop %v861
        %v899 = vmul.f32 1.0, %v898
        %v900 = vrcp.pop %v862
        %v901 = vmul.f32 1.0, %v900
        %v902 = vrcp.pop %v863
        %v903 = vmul.f32 1.0, %v902
        %v904 = vrcp.pop %v864
        %v905 = vmul.f32 1.0, %v904
        %v906 = vrcp.pop %v865
        %v907 = vmul.f32 1.0, %v906
        %v908 = vrcp.pop %v866
        %v909 = vmul.f32 1.0, %v908
        %v910 = vrcp.pop %v867
        %v911 = vmul.f32 1.0, %v910
        %v912 = vrcp.pop %v868
        %v913 = vmul.f32 1.0, %v912
        %v914 = vrcp.pop %v869
        %v915 = vmul.f32 1.0, %v914
        %v916 = vrcp.pop %v870
        %v917 = vmul.f32 1.0, %v916
        %v918 = vrcp.pop %v871
        %v919 = vmul.f32 1.0, %v918
        %v920 = vrcp.pop %v872
        %v921 = vmul.f32 1.0, %v920
        %v922 = vrcp.pop %v873
        %v923 = vmul.f32 1.0, %v922
        %v924 = vrcp.pop %v874
        %v925 = vmul.f32 1.0, %v924
        %v926 = vrcp.pop %v875
        %v927 = vmul.f32 1.0, %v926
        %v928 = vrcp.pop %v876
        %v929 = vmul.f32 1.0, %v928
        %v930 = vrcp.pop %v877
        %v931 = vmul.f32 1.0, %v930
        %v932 = vrcp.pop %v878
        %v933 = vmul.f32 1.0, %v932
        %v934 = vrcp.pop %v879
        %v935 = vmul.f32 1.0, %v934
        %v936 = vrcp.pop %v880
        %v937 = vmul.f32 1.0, %v936
        %v938 = vrcp.pop %v881
        %v939 = vmul.f32 1.0, %v938
        %v940 = vrcp.pop %v882
        %v941 = vmul.f32 1.0, %v940
        %v942 = vrcp.pop %v883
        %v943 = vmul.f32 1.0, %v942
        %v944 = vrcp.pop %v884
        %v945 = vmul.f32 1.0, %v944
        %v946 = vrcp.pop %v885
        %v947 = vmul.f32 1.0, %v946
        %v948 = vrcp.pop %v886
        %v949 = vmul.f32 1.0, %v948
        %v950 = vrcp.pop %v887
        %v951 = vmul.f32 1.0, %v950
        %v952 = vmul.f32 %v728, %v889
        %v953 = vmul.f32 %v729, %v891
        %v954 = vmul.f32 %v730, %v893
        %v955 = vmul.f32 %v731, %v895
        %v956 = vmul.f32 %v732, %v897
        %v957 = vmul.f32 %v733, %v899
        %v958 = vmul.f32 %v734, %v901
        %v959 = vmul.f32 %v735, %v903
        %v960 = vmul.f32 %v736, %v905
        %v961 = vmul.f32 %v737, %v907
        %v962 = vmul.f32 %v738, %v909
        %v963 = vmul.f32 %v739, %v911
        %v964 = vmul.f32 %v740, %v913
        %v965 = vmul.f32 %v741, %v915
        %v966 = vmul.f32 %v742, %v917
        %v967 = vmul.f32 %v743, %v919
        %v968 = vmul.f32 %v744, %v921
        %v969 = vmul.f32 %v745, %v923
        %v970 = vmul.f32 %v746, %v925
        %v971 = vmul.f32 %v747, %v927
        %v972 = vmul.f32 %v748, %v929
        %v973 = vmul.f32 %v749, %v931
        %v974 = vmul.f32 %v750, %v933
        %v975 = vmul.f32 %v751, %v935
        %v976 = vmul.f32 %v752, %v937
        %v977 = vmul.f32 %v753, %v939
        %v978 = vmul.f32 %v754, %v941
        %v979 = vmul.f32 %v755, %v943
        %v980 = vmul.f32 %v756, %v945
        %v981 = vmul.f32 %v757, %v947
        %v982 = vmul.f32 %v758, %v949
        %v983 = vmul.f32 %v759, %v951
        %v984 = vpack.c.bf16 %v953, %v952
        %v985 = vpack.c.bf16 %v955, %v954
        %v986 = vpack.c.bf16 %v957, %v956
        %v987 = vpack.c.bf16 %v959, %v958
        %v988 = vpack.c.bf16 %v961, %v960
        %v989 = vpack.c.bf16 %v963, %v962
        %v990 = vpack.c.bf16 %v965, %v964
        %v991 = vpack.c.bf16 %v967, %v966
        %v992 = vpack.c.bf16 %v969, %v968
        %v993 = vpack.c.bf16 %v971, %v970
        %v994 = vpack.c.bf16 %v973, %v972
        %v995 = vpack.c.bf16 %v975, %v974
        %v996 = vpack.c.bf16 %v977, %v976
        %v997 = vpack.c.bf16 %v979, %v978
        %v998 = vpack.c.bf16 %v981, %v980
        %v999 = vpack.c.bf16 %v983, %v982
        %vm1000 = vcmask 257024
        %1001 = vst.msk [vmem:[#allocation2] sm:$0xf] %vm1000, 0
        %1002 = vst.msk [vmem:[#allocation2 + $0xc] sm:$0xf] %vm1000, 0
        %vm1003 = vcmask 253952
        %vm1004 = vsmask.f32 256
        %vm1005 = vmand %vm1003, %vm1004
        %v1006 = vld [vmem:[#allocation2] sm:$0x1]
        %v1007 = vsel %vm1005, 0, %v1006
        %1008 = vst [vmem:[#allocation2] sm:$0x1] %v1007
        %v1009 = vld [vmem:[#allocation2 + $0x18] sm:$0x1]
        %v1010 = vsel %vm1005, 0, %v1009
        %1011 = vst [vmem:[#allocation2 + $0x18] sm:$0x1] %v1010
        %v1012 = vld [vmem:[#allocation2 + $0x30] sm:$0x1]
        %v1013 = vsel %vm1005, 0, %v1012
        %1014 = vst [vmem:[#allocation2 + $0x30] sm:$0x1] %v1013
        %v1015 = vld [vmem:[#allocation2 + $0x48] sm:$0x1]
        %v1016 = vsel %vm1005, 0, %v1015
        %1017 = vst [vmem:[#allocation2 + $0x48] sm:$0x1] %v1016
        %v1018 = vld [vmem:[#allocation2 + $0x60] sm:$0x1]
        %v1019 = vsel %vm1005, 0, %v1018
        %1020 = vst [vmem:[#allocation2 + $0x60] sm:$0x1] %v1019
        %v1021 = vld [vmem:[#allocation2 + $0x78] sm:$0x1]
        %v1022 = vsel %vm1005, 0, %v1021
        %1023 = vst [vmem:[#allocation2 + $0x78] sm:$0x1] %v1022
        %v1024 = vld [vmem:[#allocation2 + $0x90] sm:$0x1]
        %v1025 = vsel %vm1005, 0, %v1024
        %1026 = vst [vmem:[#allocation2 + $0x90] sm:$0x1] %v1025
        %v1027 = vld [vmem:[#allocation2 + $0xa8] sm:$0x1]
        %v1028 = vsel %vm1005, 0, %v1027
        %1029 = vst [vmem:[#allocation2 + $0xa8] sm:$0x1] %v1028
        %v1030 = vld [vmem:[#allocation2 + $0xc0] sm:$0x1]
        %v1031 = vsel %vm1005, 0, %v1030
        %1032 = vst [vmem:[#allocation2 + $0xc0] sm:$0x1] %v1031
        %v1033 = vld [vmem:[#allocation2 + $0xd8] sm:$0x1]
        %v1034 = vsel %vm1005, 0, %v1033
        %1035 = vst [vmem:[#allocation2 + $0xd8] sm:$0x1] %v1034
        %v1036 = vld [vmem:[#allocation2 + $0xf0] sm:$0x1]
        %v1037 = vsel %vm1005, 0, %v1036
        %1038 = vst [vmem:[#allocation2 + $0xf0] sm:$0x1] %v1037
        %v1039 = vld [vmem:[#allocation2 + $0x108] sm:$0x1]
        %v1040 = vsel %vm1005, 0, %v1039
        %1041 = vst [vmem:[#allocation2 + $0x108] sm:$0x1] %v1040
        %v1042 = vld [vmem:[#allocation2 + $0x120] sm:$0x1]
        %v1043 = vsel %vm1005, 0, %v1042
        %1044 = vst [vmem:[#allocation2 + $0x120] sm:$0x1] %v1043
        %v1045 = vld [vmem:[#allocation2 + $0x138] sm:$0x1]
        %v1046 = vsel %vm1005, 0, %v1045
        %1047 = vst [vmem:[#allocation2 + $0x138] sm:$0x1] %v1046
        %v1048 = vld [vmem:[#allocation2 + $0x150] sm:$0x1]
        %v1049 = vsel %vm1005, 0, %v1048
        %1050 = vst [vmem:[#allocation2 + $0x150] sm:$0x1] %v1049
        %v1051 = vld [vmem:[#allocation2 + $0x168] sm:$0x1]
        %v1052 = vsel %vm1005, 0, %v1051
        %1053 = vst [vmem:[#allocation2 + $0x168] sm:$0x1] %v1052
        %v1069 = vunpack.c.l.b16 %v984
        %v1070 = vunpack.c.h.b16 %v984
        %v1071 = vunpack.c.l.b16 %v985
        %v1072 = vunpack.c.h.b16 %v985
        %v1073 = vunpack.c.l.b16 %v986
        %v1074 = vunpack.c.h.b16 %v986
        %v1075 = vunpack.c.l.b16 %v987
        %v1076 = vunpack.c.h.b16 %v987
        %v1077 = vunpack.c.l.b16 %v988
        %v1078 = vunpack.c.h.b16 %v988
        %v1079 = vunpack.c.l.b16 %v989
        %v1080 = vunpack.c.h.b16 %v989
        %v1081 = vunpack.c.l.b16 %v990
        %v1082 = vunpack.c.h.b16 %v990
        %v1083 = vunpack.c.l.b16 %v991
        %v1084 = vunpack.c.h.b16 %v991
        %v1085 = vunpack.c.l.b16 %v992
        %v1086 = vunpack.c.h.b16 %v992
        %v1087 = vunpack.c.l.b16 %v993
        %v1088 = vunpack.c.h.b16 %v993
        %v1089 = vunpack.c.l.b16 %v994
        %v1090 = vunpack.c.h.b16 %v994
        %v1091 = vunpack.c.l.b16 %v995
        %v1092 = vunpack.c.h.b16 %v995
        %v1093 = vunpack.c.l.b16 %v996
        %v1094 = vunpack.c.h.b16 %v996
        %v1095 = vunpack.c.l.b16 %v997
        %v1096 = vunpack.c.h.b16 %v997
        %v1097 = vunpack.c.l.b16 %v998
        %v1098 = vunpack.c.h.b16 %v998
        %v1099 = vpack.c.b16 %v1069, %v1069
        %v1100 = vpack.c.b16 %v1070, %v1070
        %v1101 = vpack.c.b16 %v1071, %v1071
        %v1102 = vpack.c.b16 %v1072, %v1072
        %v1103 = vpack.c.b16 %v1073, %v1073
        %v1104 = vpack.c.b16 %v1074, %v1074
        %v1105 = vpack.c.b16 %v1075, %v1075
        %v1106 = vpack.c.b16 %v1076, %v1076
        %v1107 = vpack.c.b16 %v1077, %v1077
        %v1108 = vpack.c.b16 %v1078, %v1078
        %v1109 = vpack.c.b16 %v1079, %v1079
        %v1110 = vpack.c.b16 %v1080, %v1080
        %v1111 = vpack.c.b16 %v1081, %v1081
        %v1112 = vpack.c.b16 %v1082, %v1082
        %v1113 = vpack.c.b16 %v1083, %v1083
        %v1114 = vpack.c.b16 %v1084, %v1084
        %v1115 = vpack.c.b16 %v1085, %v1085
        %v1116 = vpack.c.b16 %v1086, %v1086
        %v1117 = vpack.c.b16 %v1087, %v1087
        %v1118 = vpack.c.b16 %v1088, %v1088
        %v1119 = vpack.c.b16 %v1089, %v1089
        %v1120 = vpack.c.b16 %v1090, %v1090
        %v1121 = vpack.c.b16 %v1091, %v1091
        %v1122 = vpack.c.b16 %v1092, %v1092
        %v1123 = vpack.c.b16 %v1093, %v1093
        %v1124 = vpack.c.b16 %v1094, %v1094
        %v1125 = vpack.c.b16 %v1095, %v1095
        %v1126 = vpack.c.b16 %v1096, %v1096
        %v1127 = vpack.c.b16 %v1097, %v1097
        %v1128 = vpack.c.b16 %v1098, %v1098
        %vm1129 = vsmask.f32 4368
        %vm1130 = vmor %vm1004, %vm1129
        %v1132 = vshrl.u32 %v1099, 16
        %v1134 = vrot.slane %v1132, 7
        %v1135 = vshll.u32 %v1099, 16
        %v1137 = vor.u32 %v1134, %v1135
        %v1138 = vrot.slane %v1134, 4
        %v1140 = vshrl.u32 %v1100, 16
        %v1142 = vrot.slane %v1140, 7
        %v1143 = vshll.u32 %v1100, 16
        %v1145 = vor.u32 %v1142, %v1143
        %v1146 = vsel %vm1130, %v1138, %v1145
        %v1148 = vshrl.u32 %v1101, 16
        %v1150 = vrot.slane %v1148, 7
        %v1151 = vshll.u32 %v1101, 16
        %v1153 = vor.u32 %v1150, %v1151
        %v1154 = vrot.slane %v1150, 4
        %v1156 = vshrl.u32 %v1102, 16
        %v1158 = vrot.slane %v1156, 7
        %v1159 = vshll.u32 %v1102, 16
        %v1161 = vor.u32 %v1158, %v1159
        %v1162 = vsel %vm1130, %v1154, %v1161
        %v1164 = vshrl.u32 %v1103, 16
        %v1166 = vrot.slane %v1164, 7
        %v1167 = vshll.u32 %v1103, 16
        %v1169 = vor.u32 %v1166, %v1167
        %v1170 = vrot.slane %v1166, 4
        %v1172 = vshrl.u32 %v1104, 16
        %v1174 = vrot.slane %v1172, 7
        %v1175 = vshll.u32 %v1104, 16
        %v1177 = vor.u32 %v1174, %v1175
        %v1178 = vsel %vm1130, %v1170, %v1177
        %v1180 = vshrl.u32 %v1105, 16
        %v1182 = vrot.slane %v1180, 7
        %v1183 = vshll.u32 %v1105, 16
        %v1185 = vor.u32 %v1182, %v1183
        %v1186 = vrot.slane %v1182, 4
        %v1188 = vshrl.u32 %v1106, 16
        %v1190 = vrot.slane %v1188, 7
        %v1191 = vshll.u32 %v1106, 16
        %v1193 = vor.u32 %v1190, %v1191
        %v1194 = vsel %vm1130, %v1186, %v1193
        %v1196 = vshrl.u32 %v1107, 16
        %v1198 = vrot.slane %v1196, 7
        %v1199 = vshll.u32 %v1107, 16
        %v1201 = vor.u32 %v1198, %v1199
        %v1202 = vrot.slane %v1198, 4
        %v1204 = vshrl.u32 %v1108, 16
        %v1206 = vrot.slane %v1204, 7
        %v1207 = vshll.u32 %v1108, 16
        %v1209 = vor.u32 %v1206, %v1207
        %v1210 = vsel %vm1130, %v1202, %v1209
        %v1212 = vshrl.u32 %v1109, 16
        %v1214 = vrot.slane %v1212, 7
        %v1215 = vshll.u32 %v1109, 16
        %v1217 = vor.u32 %v1214, %v1215
        %v1218 = vrot.slane %v1214, 4
        %v1220 = vshrl.u32 %v1110, 16
        %v1222 = vrot.slane %v1220, 7
        %v1223 = vshll.u32 %v1110, 16
        %v1225 = vor.u32 %v1222, %v1223
        %v1226 = vsel %vm1130, %v1218, %v1225
        %v1228 = vshrl.u32 %v1111, 16
        %v1230 = vrot.slane %v1228, 7
        %v1231 = vshll.u32 %v1111, 16
        %v1233 = vor.u32 %v1230, %v1231
        %v1234 = vrot.slane %v1230, 4
        %v1236 = vshrl.u32 %v1112, 16
        %v1238 = vrot.slane %v1236, 7
        %v1239 = vshll.u32 %v1112, 16
        %v1241 = vor.u32 %v1238, %v1239
        %v1242 = vsel %vm1130, %v1234, %v1241
        %v1244 = vshrl.u32 %v1113, 16
        %v1246 = vrot.slane %v1244, 7
        %v1247 = vshll.u32 %v1113, 16
        %v1249 = vor.u32 %v1246, %v1247
        %v1250 = vrot.slane %v1246, 4
        %v1252 = vshrl.u32 %v1114, 16
        %v1254 = vrot.slane %v1252, 7
        %v1255 = vshll.u32 %v1114, 16
        %v1257 = vor.u32 %v1254, %v1255
        %v1258 = vsel %vm1130, %v1250, %v1257
        %v1260 = vshrl.u32 %v1115, 16
        %v1262 = vrot.slane %v1260, 7
        %v1263 = vshll.u32 %v1115, 16
        %v1265 = vor.u32 %v1262, %v1263
        %v1266 = vrot.slane %v1262, 4
        %v1268 = vshrl.u32 %v1116, 16
        %v1270 = vrot.slane %v1268, 7
        %v1271 = vshll.u32 %v1116, 16
        %v1273 = vor.u32 %v1270, %v1271
        %v1274 = vsel %vm1130, %v1266, %v1273
        %v1276 = vshrl.u32 %v1117, 16
        %v1278 = vrot.slane %v1276, 7
        %v1279 = vshll.u32 %v1117, 16
        %v1281 = vor.u32 %v1278, %v1279
        %v1282 = vrot.slane %v1278, 4
        %v1284 = vshrl.u32 %v1118, 16
        %v1286 = vrot.slane %v1284, 7
        %v1287 = vshll.u32 %v1118, 16
        %v1289 = vor.u32 %v1286, %v1287
        %v1290 = vsel %vm1130, %v1282, %v1289
        %v1292 = vshrl.u32 %v1119, 16
        %v1294 = vrot.slane %v1292, 7
        %v1295 = vshll.u32 %v1119, 16
        %v1297 = vor.u32 %v1294, %v1295
        %v1298 = vrot.slane %v1294, 4
        %v1300 = vshrl.u32 %v1120, 16
        %v1302 = vrot.slane %v1300, 7
        %v1303 = vshll.u32 %v1120, 16
        %v1305 = vor.u32 %v1302, %v1303
        %v1306 = vsel %vm1130, %v1298, %v1305
        %v1308 = vshrl.u32 %v1121, 16
        %v1310 = vrot.slane %v1308, 7
        %v1311 = vshll.u32 %v1121, 16
        %v1313 = vor.u32 %v1310, %v1311
        %v1314 = vrot.slane %v1310, 4
        %v1316 = vshrl.u32 %v1122, 16
        %v1318 = vrot.slane %v1316, 7
        %v1319 = vshll.u32 %v1122, 16
        %v1321 = vor.u32 %v1318, %v1319
        %v1322 = vsel %vm1130, %v1314, %v1321
        %v1324 = vshrl.u32 %v1123, 16
        %v1326 = vrot.slane %v1324, 7
        %v1327 = vshll.u32 %v1123, 16
        %v1329 = vor.u32 %v1326, %v1327
        %v1330 = vrot.slane %v1326, 4
        %v1332 = vshrl.u32 %v1124, 16
        %v1334 = vrot.slane %v1332, 7
        %v1335 = vshll.u32 %v1124, 16
        %v1337 = vor.u32 %v1334, %v1335
        %v1338 = vsel %vm1130, %v1330, %v1337
        %v1340 = vshrl.u32 %v1125, 16
        %v1342 = vrot.slane %v1340, 7
        %v1343 = vshll.u32 %v1125, 16
        %v1345 = vor.u32 %v1342, %v1343
        %v1346 = vrot.slane %v1342, 4
        %v1348 = vshrl.u32 %v1126, 16
        %v1350 = vrot.slane %v1348, 7
        %v1351 = vshll.u32 %v1126, 16
        %v1353 = vor.u32 %v1350, %v1351
        %v1354 = vsel %vm1130, %v1346, %v1353
        %v1356 = vshrl.u32 %v1127, 16
        %v1358 = vrot.slane %v1356, 7
        %v1359 = vshll.u32 %v1127, 16
        %v1361 = vor.u32 %v1358, %v1359
        %v1362 = vrot.slane %v1358, 4
        %v1364 = vshrl.u32 %v1128, 16
        %v1366 = vrot.slane %v1364, 7
        %v1367 = vshll.u32 %v1128, 16
        %v1369 = vor.u32 %v1366, %v1367
        %v1370 = vsel %vm1130, %v1362, %v1369
        %s1401 = scalar_lea.vmem [#allocation2], 24
        %vm1402 = vcmask 257024
        %vm1403 = vsmask.f32 7938
        %vm1404 = vmand %vm1402, %vm1403
        %v1405 = vld [vmem:[%s1401] sm:$0xf]
        %v1406 = vsel %vm1404, %v1137, %v1405
        %1407 = vst [vmem:[%s1401] sm:$0xf] %v1406
        %1408 = vst.msk [vmem:[%s1401 + $0xc] sm:$0xf] %vm1000, %v1146
        %v1409 = vld [vmem:[%s1401 + $0x18] sm:$0xf]
        %v1410 = vsel %vm1404, %v1153, %v1409
        %1411 = vst [vmem:[%s1401 + $0x18] sm:$0xf] %v1410
        %1412 = vst.msk [vmem:[%s1401 + $0x24] sm:$0xf] %vm1000, %v1162
        %v1413 = vld [vmem:[%s1401 + $0x30] sm:$0xf]
        %v1414 = vsel %vm1404, %v1169, %v1413
        %1415 = vst [vmem:[%s1401 + $0x30] sm:$0xf] %v1414
        %1416 = vst.msk [vmem:[%s1401 + $0x3c] sm:$0xf] %vm1000, %v1178
        %v1417 = vld [vmem:[%s1401 + $0x48] sm:$0xf]
        %v1418 = vsel %vm1404, %v1185, %v1417
        %1419 = vst [vmem:[%s1401 + $0x48] sm:$0xf] %v1418
        %1420 = vst.msk [vmem:[%s1401 + $0x54] sm:$0xf] %vm1000, %v1194
        %v1421 = vld [vmem:[%s1401 + $0x60] sm:$0xf]
        %v1422 = vsel %vm1404, %v1201, %v1421
        %1423 = vst [vmem:[%s1401 + $0x60] sm:$0xf] %v1422
        %1424 = vst.msk [vmem:[%s1401 + $0x6c] sm:$0xf] %vm1000, %v1210
        %v1425 = vld [vmem:[%s1401 + $0x78] sm:$0xf]
        %v1426 = vsel %vm1404, %v1217, %v1425
        %1427 = vst [vmem:[%s1401 + $0x78] sm:$0xf] %v1426
        %1428 = vst.msk [vmem:[%s1401 + $0x84] sm:$0xf] %vm1000, %v1226
        %v1429 = vld [vmem:[%s1401 + $0x90] sm:$0xf]
        %v1430 = vsel %vm1404, %v1233, %v1429
        %1431 = vst [vmem:[%s1401 + $0x90] sm:$0xf] %v1430
        %1432 = vst.msk [vmem:[%s1401 + $0x9c] sm:$0xf] %vm1000, %v1242
        %v1433 = vld [vmem:[%s1401 + $0xa8] sm:$0xf]
        %v1434 = vsel %vm1404, %v1249, %v1433
        %1435 = vst [vmem:[%s1401 + $0xa8] sm:$0xf] %v1434
        %1436 = vst.msk [vmem:[%s1401 + $0xb4] sm:$0xf] %vm1000, %v1258
        %v1437 = vld [vmem:[%s1401 + $0xc0] sm:$0xf]
        %v1438 = vsel %vm1404, %v1265, %v1437
        %1439 = vst [vmem:[%s1401 + $0xc0] sm:$0xf] %v1438
        %1440 = vst.msk [vmem:[%s1401 + $0xcc] sm:$0xf] %vm1000, %v1274
        %v1441 = vld [vmem:[%s1401 + $0xd8] sm:$0xf]
        %v1442 = vsel %vm1404, %v1281, %v1441
        %1443 = vst [vmem:[%s1401 + $0xd8] sm:$0xf] %v1442
        %1444 = vst.msk [vmem:[%s1401 + $0xe4] sm:$0xf] %vm1000, %v1290
        %v1445 = vld [vmem:[%s1401 + $0xf0] sm:$0xf]
        %v1446 = vsel %vm1404, %v1297, %v1445
        %1447 = vst [vmem:[%s1401 + $0xf0] sm:$0xf] %v1446
        %1448 = vst.msk [vmem:[%s1401 + $0xfc] sm:$0xf] %vm1000, %v1306
        %v1449 = vld [vmem:[%s1401 + $0x108] sm:$0xf]
        %v1450 = vsel %vm1404, %v1313, %v1449
        %1451 = vst [vmem:[%s1401 + $0x108] sm:$0xf] %v1450
        %1452 = vst.msk [vmem:[%s1401 + $0x114] sm:$0xf] %vm1000, %v1322
        %v1453 = vld [vmem:[%s1401 + $0x120] sm:$0xf]
        %v1454 = vsel %vm1404, %v1329, %v1453
        %1455 = vst [vmem:[%s1401 + $0x120] sm:$0xf] %v1454
        %1456 = vst.msk [vmem:[%s1401 + $0x12c] sm:$0xf] %vm1000, %v1338
        %v1457 = vld [vmem:[%s1401 + $0x138] sm:$0xf]
        %v1458 = vsel %vm1404, %v1345, %v1457
        %1459 = vst [vmem:[%s1401 + $0x138] sm:$0xf] %v1458
        %1460 = vst.msk [vmem:[%s1401 + $0x144] sm:$0xf] %vm1000, %v1354
        %v1461 = vld [vmem:[%s1401 + $0x150] sm:$0xf]
        %v1462 = vsel %vm1404, %v1361, %v1461
        %1463 = vst [vmem:[%s1401 + $0x150] sm:$0xf] %v1462
        %1464 = vst.msk [vmem:[%s1401 + $0x15c] sm:$0xf] %vm1000, %v1370
        %vm1465 = vcmask 519424
        %1466 = vst.msk [vmem:[#allocation2] sm:$0xf] %vm1465, 0
        %1467 = vst.msk [vmem:[#allocation2 + $0xc] sm:$0xf] %vm1465, 0
        %1468 = vrot.lane.b32.xlu0 %v1099, 32
        %v1469 = vpop.permute.xlu0 %1468
        %1470 = vrot.lane.b32.xlu0 %v1100, 32
        %v1471 = vpop.permute.xlu0 %1470
        %1472 = vrot.lane.b32.xlu0 %v1101, 32
        %v1473 = vpop.permute.xlu0 %1472
        %1474 = vrot.lane.b32.xlu0 %v1102, 32
        %v1475 = vpop.permute.xlu0 %1474
        %1476 = vrot.lane.b32.xlu0 %v1103, 32
        %v1477 = vpop.permute.xlu0 %1476
        %1478 = vrot.lane.b32.xlu0 %v1104, 32
        %v1479 = vpop.permute.xlu0 %1478
        %1480 = vrot.lane.b32.xlu0 %v1105, 32
        %v1481 = vpop.permute.xlu0 %1480
        %1482 = vrot.lane.b32.xlu0 %v1106, 32
        %v1483 = vpop.permute.xlu0 %1482
        %1484 = vrot.lane.b32.xlu0 %v1107, 32
        %v1485 = vpop.permute.xlu0 %1484
        %1486 = vrot.lane.b32.xlu0 %v1108, 32
        %v1487 = vpop.permute.xlu0 %1486
        %1488 = vrot.lane.b32.xlu0 %v1109, 32
        %v1489 = vpop.permute.xlu0 %1488
        %1490 = vrot.lane.b32.xlu0 %v1110, 32
        %v1491 = vpop.permute.xlu0 %1490
        %1492 = vrot.lane.b32.xlu0 %v1111, 32
        %v1493 = vpop.permute.xlu0 %1492
        %1494 = vrot.lane.b32.xlu0 %v1112, 32
        %v1495 = vpop.permute.xlu0 %1494
        %1496 = vrot.lane.b32.xlu0 %v1113, 32
        %v1497 = vpop.permute.xlu0 %1496
        %1498 = vrot.lane.b32.xlu0 %v1114, 32
        %v1499 = vpop.permute.xlu0 %1498
        %1500 = vrot.lane.b32.xlu0 %v1115, 32
        %v1501 = vpop.permute.xlu0 %1500
        %1502 = vrot.lane.b32.xlu0 %v1116, 32
        %v1503 = vpop.permute.xlu0 %1502
        %1504 = vrot.lane.b32.xlu0 %v1117, 32
        %v1505 = vpop.permute.xlu0 %1504
        %1506 = vrot.lane.b32.xlu0 %v1118, 32
        %v1507 = vpop.permute.xlu0 %1506
        %1508 = vrot.lane.b32.xlu0 %v1119, 32
        %v1509 = vpop.permute.xlu0 %1508
        %1510 = vrot.lane.b32.xlu0 %v1120, 32
        %v1511 = vpop.permute.xlu0 %1510
        %1512 = vrot.lane.b32.xlu0 %v1121, 32
        %v1513 = vpop.permute.xlu0 %1512
        %1514 = vrot.lane.b32.xlu0 %v1122, 32
        %v1515 = vpop.permute.xlu0 %1514
        %1516 = vrot.lane.b32.xlu0 %v1123, 32
        %v1517 = vpop.permute.xlu0 %1516
        %1518 = vrot.lane.b32.xlu0 %v1124, 32
        %v1519 = vpop.permute.xlu0 %1518
        %1520 = vrot.lane.b32.xlu0 %v1125, 32
        %v1521 = vpop.permute.xlu0 %1520
        %1522 = vrot.lane.b32.xlu0 %v1126, 32
        %v1523 = vpop.permute.xlu0 %1522
        %1524 = vrot.lane.b32.xlu0 %v1127, 32
        %v1525 = vpop.permute.xlu0 %1524
        %1526 = vrot.lane.b32.xlu0 %v1128, 32
        %v1527 = vpop.permute.xlu0 %1526
        %1558 = vst.msk [vmem:[%s1401] sm:$0xf] %vm1465, %v1469
        %1559 = vst.msk [vmem:[%s1401 + $0xc] sm:$0xf] %vm1465, %v1471
        %1560 = vst.msk [vmem:[%s1401 + $0x18] sm:$0xf] %vm1465, %v1473
        %1561 = vst.msk [vmem:[%s1401 + $0x24] sm:$0xf] %vm1465, %v1475
        %1562 = vst.msk [vmem:[%s1401 + $0x30] sm:$0xf] %vm1465, %v1477
        %1563 = vst.msk [vmem:[%s1401 + $0x3c] sm:$0xf] %vm1465, %v1479
        %1564 = vst.msk [vmem:[%s1401 + $0x48] sm:$0xf] %vm1465, %v1481
        %1565 = vst.msk [vmem:[%s1401 + $0x54] sm:$0xf] %vm1465, %v1483
        %1566 = vst.msk [vmem:[%s1401 + $0x60] sm:$0xf] %vm1465, %v1485
        %1567 = vst.msk [vmem:[%s1401 + $0x6c] sm:$0xf] %vm1465, %v1487
        %1568 = vst.msk [vmem:[%s1401 + $0x78] sm:$0xf] %vm1465, %v1489
        %1569 = vst.msk [vmem:[%s1401 + $0x84] sm:$0xf] %vm1465, %v1491
        %1570 = vst.msk [vmem:[%s1401 + $0x90] sm:$0xf] %vm1465, %v1493
        %1571 = vst.msk [vmem:[%s1401 + $0x9c] sm:$0xf] %vm1465, %v1495
        %1572 = vst.msk [vmem:[%s1401 + $0xa8] sm:$0xf] %vm1465, %v1497
        %1573 = vst.msk [vmem:[%s1401 + $0xb4] sm:$0xf] %vm1465, %v1499
        %1574 = vst.msk [vmem:[%s1401 + $0xc0] sm:$0xf] %vm1465, %v1501
        %1575 = vst.msk [vmem:[%s1401 + $0xcc] sm:$0xf] %vm1465, %v1503
        %1576 = vst.msk [vmem:[%s1401 + $0xd8] sm:$0xf] %vm1465, %v1505
        %1577 = vst.msk [vmem:[%s1401 + $0xe4] sm:$0xf] %vm1465, %v1507
        %1578 = vst.msk [vmem:[%s1401 + $0xf0] sm:$0xf] %vm1465, %v1509
        %1579 = vst.msk [vmem:[%s1401 + $0xfc] sm:$0xf] %vm1465, %v1511
        %1580 = vst.msk [vmem:[%s1401 + $0x108] sm:$0xf] %vm1465, %v1513
        %1581 = vst.msk [vmem:[%s1401 + $0x114] sm:$0xf] %vm1465, %v1515
        %1582 = vst.msk [vmem:[%s1401 + $0x120] sm:$0xf] %vm1465, %v1517
        %1583 = vst.msk [vmem:[%s1401 + $0x12c] sm:$0xf] %vm1465, %v1519
        %1584 = vst.msk [vmem:[%s1401 + $0x138] sm:$0xf] %vm1465, %v1521
        %1585 = vst.msk [vmem:[%s1401 + $0x144] sm:$0xf] %vm1465, %v1523
        %1586 = vst.msk [vmem:[%s1401 + $0x150] sm:$0xf] %vm1465, %v1525
        %1587 = vst.msk [vmem:[%s1401 + $0x15c] sm:$0xf] %vm1465, %v1527
        %vm1588 = vcmask 781824
        %1589 = vst.msk [vmem:[#allocation2] sm:$0xf] %vm1588, 0
        %1590 = vst.msk [vmem:[#allocation2 + $0xc] sm:$0xf] %vm1588, 0
        %vm1591 = vcmask 781827
        %vm1592 = vsmask.f32 7950
        %vm1593 = vmand %vm1591, %vm1592
        %v1594 = vld [vmem:[#allocation2 + $0xc] sm:$0x8]
        %v1595 = vsel %vm1593, 0, %v1594
        %1596 = vst [vmem:[#allocation2 + $0xc] sm:$0x8] %v1595
        %v1597 = vld [vmem:[#allocation2 + $0x24] sm:$0x8]
        %v1598 = vsel %vm1593, 0, %v1597
        %1599 = vst [vmem:[#allocation2 + $0x24] sm:$0x8] %v1598
        %v1600 = vld [vmem:[#allocation2 + $0x3c] sm:$0x8]
        %v1601 = vsel %vm1593, 0, %v1600
        %1602 = vst [vmem:[#allocation2 + $0x3c] sm:$0x8] %v1601
        %v1603 = vld [vmem:[#allocation2 + $0x54] sm:$0x8]
        %v1604 = vsel %vm1593, 0, %v1603
        %1605 = vst [vmem:[#allocation2 + $0x54] sm:$0x8] %v1604
        %v1606 = vld [vmem:[#allocation2 + $0x6c] sm:$0x8]
        %v1607 = vsel %vm1593, 0, %v1606
        %1608 = vst [vmem:[#allocation2 + $0x6c] sm:$0x8] %v1607
        %v1609 = vld [vmem:[#allocation2 + $0x84] sm:$0x8]
        %v1610 = vsel %vm1593, 0, %v1609
        %1611 = vst [vmem:[#allocation2 + $0x84] sm:$0x8] %v1610
        %v1612 = vld [vmem:[#allocation2 + $0x9c] sm:$0x8]
        %v1613 = vsel %vm1593, 0, %v1612
        %1614 = vst [vmem:[#allocation2 + $0x9c] sm:$0x8] %v1613
        %v1615 = vld [vmem:[#allocation2 + $0xb4] sm:$0x8]
        %v1616 = vsel %vm1593, 0, %v1615
        %1617 = vst [vmem:[#allocation2 + $0xb4] sm:$0x8] %v1616
        %v1618 = vld [vmem:[#allocation2 + $0xcc] sm:$0x8]
        %v1619 = vsel %vm1593, 0, %v1618
        %1620 = vst [vmem:[#allocation2 + $0xcc] sm:$0x8] %v1619
        %v1621 = vld [vmem:[#allocation2 + $0xe4] sm:$0x8]
        %v1622 = vsel %vm1593, 0, %v1621
        %1623 = vst [vmem:[#allocation2 + $0xe4] sm:$0x8] %v1622
        %v1624 = vld [vmem:[#allocation2 + $0xfc] sm:$0x8]
        %v1625 = vsel %vm1593, 0, %v1624
        %1626 = vst [vmem:[#allocation2 + $0xfc] sm:$0x8] %v1625
        %v1627 = vld [vmem:[#allocation2 + $0x114] sm:$0x8]
        %v1628 = vsel %vm1593, 0, %v1627
        %1629 = vst [vmem:[#allocation2 + $0x114] sm:$0x8] %v1628
        %v1630 = vld [vmem:[#allocation2 + $0x12c] sm:$0x8]
        %v1631 = vsel %vm1593, 0, %v1630
        %1632 = vst [vmem:[#allocation2 + $0x12c] sm:$0x8] %v1631
        %v1633 = vld [vmem:[#allocation2 + $0x144] sm:$0x8]
        %v1634 = vsel %vm1593, 0, %v1633
        %1635 = vst [vmem:[#allocation2 + $0x144] sm:$0x8] %v1634
        %v1636 = vld [vmem:[#allocation2 + $0x15c] sm:$0x8]
        %v1637 = vsel %vm1593, 0, %v1636
        %1638 = vst [vmem:[#allocation2 + $0x15c] sm:$0x8] %v1637
        %v1639 = vld [vmem:[#allocation2 + $0x174] sm:$0x8]
        %v1640 = vsel %vm1593, 0, %v1639
        %1641 = vst [vmem:[#allocation2 + $0x174] sm:$0x8] %v1640
        %vm1642 = vsmask.f32 3328
        %vm1643 = vsmask.f32 7440
        %vm1644 = vmor %vm1642, %vm1643
        %v1645 = vrot.slane %v1132, 4
        %v1646 = vrot.slane %v1135, 5
        %v1647 = vor.u32 %v1645, %v1646
        %v1648 = vrot.slane %v1647, 4
        %v1649 = vrot.slane %v1143, 5
        %v1650 = vsel %vm1644, %v1648, %v1649
        %v1651 = vrot.slane %v1140, 4
        %v1652 = vor.u32 %v1651, %v1649
        %v1653 = vrot.slane %v1652, 4
        %v1654 = vrot.slane %v1148, 4
        %v1655 = vrot.slane %v1151, 5
        %v1656 = vor.u32 %v1654, %v1655
        %v1657 = vrot.slane %v1656, 4
        %v1658 = vrot.slane %v1159, 5
        %v1659 = vsel %vm1644, %v1657, %v1658
        %v1660 = vrot.slane %v1156, 4
        %v1661 = vor.u32 %v1660, %v1658
        %v1662 = vrot.slane %v1661, 4
        %v1663 = vrot.slane %v1164, 4
        %v1664 = vrot.slane %v1167, 5
        %v1665 = vor.u32 %v1663, %v1664
        %v1666 = vrot.slane %v1665, 4
        %v1667 = vrot.slane %v1175, 5
        %v1668 = vsel %vm1644, %v1666, %v1667
        %v1669 = vrot.slane %v1172, 4
        %v1670 = vor.u32 %v1669, %v1667
        %v1671 = vrot.slane %v1670, 4
        %v1672 = vrot.slane %v1180, 4
        %v1673 = vrot.slane %v1183, 5
        %v1674 = vor.u32 %v1672, %v1673
        %v1675 = vrot.slane %v1674, 4
        %v1676 = vrot.slane %v1191, 5
        %v1677 = vsel %vm1644, %v1675, %v1676
        %v1678 = vrot.slane %v1188, 4
        %v1679 = vor.u32 %v1678, %v1676
        %v1680 = vrot.slane %v1679, 4
        %v1681 = vrot.slane %v1196, 4
        %v1682 = vrot.slane %v1199, 5
        %v1683 = vor.u32 %v1681, %v1682
        %v1684 = vrot.slane %v1683, 4
        %v1685 = vrot.slane %v1207, 5
        %v1686 = vsel %vm1644, %v1684, %v1685
        %v1687 = vrot.slane %v1204, 4
        %v1688 = vor.u32 %v1687, %v1685
        %v1689 = vrot.slane %v1688, 4
        %v1690 = vrot.slane %v1212, 4
        %v1691 = vrot.slane %v1215, 5
        %v1692 = vor.u32 %v1690, %v1691
        %v1693 = vrot.slane %v1692, 4
        %v1694 = vrot.slane %v1223, 5
        %v1695 = vsel %vm1644, %v1693, %v1694
        %v1696 = vrot.slane %v1220, 4
        %v1697 = vor.u32 %v1696, %v1694
        %v1698 = vrot.slane %v1697, 4
        %v1699 = vrot.slane %v1228, 4
        %v1700 = vrot.slane %v1231, 5
        %v1701 = vor.u32 %v1699, %v1700
        %v1702 = vrot.slane %v1701, 4
        %v1703 = vrot.slane %v1239, 5
        %v1704 = vsel %vm1644, %v1702, %v1703
        %v1705 = vrot.slane %v1236, 4
        %v1706 = vor.u32 %v1705, %v1703
        %v1707 = vrot.slane %v1706, 4
        %v1708 = vrot.slane %v1244, 4
        %v1709 = vrot.slane %v1247, 5
        %v1710 = vor.u32 %v1708, %v1709
        %v1711 = vrot.slane %v1710, 4
        %v1712 = vrot.slane %v1255, 5
        %v1713 = vsel %vm1644, %v1711, %v1712
        %v1714 = vrot.slane %v1252, 4
        %v1715 = vor.u32 %v1714, %v1712
        %v1716 = vrot.slane %v1715, 4
        %v1717 = vrot.slane %v1260, 4
        %v1718 = vrot.slane %v1263, 5
        %v1719 = vor.u32 %v1717, %v1718
        %v1720 = vrot.slane %v1719, 4
        %v1721 = vrot.slane %v1271, 5
        %v1722 = vsel %vm1644, %v1720, %v1721
        %v1723 = vrot.slane %v1268, 4
        %v1724 = vor.u32 %v1723, %v1721
        %v1725 = vrot.slane %v1724, 4
        %v1726 = vrot.slane %v1276, 4
        %v1727 = vrot.slane %v1279, 5
        %v1728 = vor.u32 %v1726, %v1727
        %v1729 = vrot.slane %v1728, 4
        %v1730 = vrot.slane %v1287, 5
        %v1731 = vsel %vm1644, %v1729, %v1730
        %v1732 = vrot.slane %v1284, 4
        %v1733 = vor.u32 %v1732, %v1730
        %v1734 = vrot.slane %v1733, 4
        %v1735 = vrot.slane %v1292, 4
        %v1736 = vrot.slane %v1295, 5
        %v1737 = vor.u32 %v1735, %v1736
        %v1738 = vrot.slane %v1737, 4
        %v1739 = vrot.slane %v1303, 5
        %v1740 = vsel %vm1644, %v1738, %v1739
        %v1741 = vrot.slane %v1300, 4
        %v1742 = vor.u32 %v1741, %v1739
        %v1743 = vrot.slane %v1742, 4
        %v1744 = vrot.slane %v1308, 4
        %v1745 = vrot.slane %v1311, 5
        %v1746 = vor.u32 %v1744, %v1745
        %v1747 = vrot.slane %v1746, 4
        %v1748 = vrot.slane %v1319, 5
        %v1749 = vsel %vm1644, %v1747, %v1748
        %v1750 = vrot.slane %v1316, 4
        %v1751 = vor.u32 %v1750, %v1748
        %v1752 = vrot.slane %v1751, 4
        %v1753 = vrot.slane %v1324, 4
        %v1754 = vrot.slane %v1327, 5
        %v1755 = vor.u32 %v1753, %v1754
        %v1756 = vrot.slane %v1755, 4
        %v1757 = vrot.slane %v1335, 5
        %v1758 = vsel %vm1644, %v1756, %v1757
        %v1759 = vrot.slane %v1332, 4
        %v1760 = vor.u32 %v1759, %v1757
        %v1761 = vrot.slane %v1760, 4
        %v1762 = vrot.slane %v1340, 4
        %v1763 = vrot.slane %v1343, 5
        %v1764 = vor.u32 %v1762, %v1763
        %v1765 = vrot.slane %v1764, 4
        %v1766 = vrot.slane %v1351, 5
        %v1767 = vsel %vm1644, %v1765, %v1766
        %v1768 = vrot.slane %v1348, 4
        %v1769 = vor.u32 %v1768, %v1766
        %v1770 = vrot.slane %v1769, 4
        %v1771 = vrot.slane %v1356, 4
        %v1772 = vrot.slane %v1359, 5
        %v1773 = vor.u32 %v1771, %v1772
        %v1774 = vrot.slane %v1773, 4
        %v1775 = vrot.slane %v1367, 5
        %v1776 = vsel %vm1644, %v1774, %v1775
        %v1777 = vrot.slane %v1364, 4
        %v1778 = vor.u32 %v1777, %v1775
        %v1779 = vrot.slane %v1778, 4
        %1780 = vrot.lane.b32.xlu0 %v1650, 64
        %v1781 = vpop.permute.xlu0 %1780
        %1782 = vrot.lane.b32.xlu0 %v1653, 64
        %v1783 = vpop.permute.xlu0 %1782
        %1784 = vrot.lane.b32.xlu0 %v1659, 64
        %v1785 = vpop.permute.xlu0 %1784
        %1786 = vrot.lane.b32.xlu0 %v1662, 64
        %v1787 = vpop.permute.xlu0 %1786
        %1788 = vrot.lane.b32.xlu0 %v1668, 64
        %v1789 = vpop.permute.xlu0 %1788
        %1790 = vrot.lane.b32.xlu0 %v1671, 64
        %v1791 = vpop.permute.xlu0 %1790
        %1792 = vrot.lane.b32.xlu0 %v1677, 64
        %v1793 = vpop.permute.xlu0 %1792
        %1794 = vrot.lane.b32.xlu0 %v1680, 64
        %v1795 = vpop.permute.xlu0 %1794
        %1796 = vrot.lane.b32.xlu0 %v1686, 64
        %v1797 = vpop.permute.xlu0 %1796
        %1798 = vrot.lane.b32.xlu0 %v1689, 64
        %v1799 = vpop.permute.xlu0 %1798
        %1800 = vrot.lane.b32.xlu0 %v1695, 64
        %v1801 = vpop.permute.xlu0 %1800
        %1802 = vrot.lane.b32.xlu0 %v1698, 64
        %v1803 = vpop.permute.xlu0 %1802
        %1804 = vrot.lane.b32.xlu0 %v1704, 64
        %v1805 = vpop.permute.xlu0 %1804
        %1806 = vrot.lane.b32.xlu0 %v1707, 64
        %v1807 = vpop.permute.xlu0 %1806
        %1808 = vrot.lane.b32.xlu0 %v1713, 64
        %v1809 = vpop.permute.xlu0 %1808
        %1810 = vrot.lane.b32.xlu0 %v1716, 64
        %v1811 = vpop.permute.xlu0 %1810
        %1812 = vrot.lane.b32.xlu0 %v1722, 64
        %v1813 = vpop.permute.xlu0 %1812
        %1814 = vrot.lane.b32.xlu0 %v1725, 64
        %v1815 = vpop.permute.xlu0 %1814
        %1816 = vrot.lane.b32.xlu0 %v1731, 64
        %v1817 = vpop.permute.xlu0 %1816
        %1818 = vrot.lane.b32.xlu0 %v1734, 64
        %v1819 = vpop.permute.xlu0 %1818
        %1820 = vrot.lane.b32.xlu0 %v1740, 64
        %v1821 = vpop.permute.xlu0 %1820
        %1822 = vrot.lane.b32.xlu0 %v1743, 64
        %v1823 = vpop.permute.xlu0 %1822
        %1824 = vrot.lane.b32.xlu0 %v1749, 64
        %v1825 = vpop.permute.xlu0 %1824
        %1826 = vrot.lane.b32.xlu0 %v1752, 64
        %v1827 = vpop.permute.xlu0 %1826
        %1828 = vrot.lane.b32.xlu0 %v1758, 64
        %v1829 = vpop.permute.xlu0 %1828
        %1830 = vrot.lane.b32.xlu0 %v1761, 64
        %v1831 = vpop.permute.xlu0 %1830
        %1832 = vrot.lane.b32.xlu0 %v1767, 64
        %v1833 = vpop.permute.xlu0 %1832
        %1834 = vrot.lane.b32.xlu0 %v1770, 64
        %v1835 = vpop.permute.xlu0 %1834
        %1836 = vrot.lane.b32.xlu0 %v1776, 64
        %v1837 = vpop.permute.xlu0 %1836
        %1838 = vrot.lane.b32.xlu0 %v1779, 64
        %v1839 = vpop.permute.xlu0 %1838
        %1870 = vst.msk [vmem:[%s1401] sm:$0xf] %vm1588, %v1781
        %vm1871 = vcmask 781824
        %vm1872 = vmand %vm1871, %vm1642
        %v1873 = vld [vmem:[%s1401 + $0xc] sm:$0xf]
        %v1874 = vsel %vm1872, %v1783, %v1873
        %1875 = vst [vmem:[%s1401 + $0xc] sm:$0xf] %v1874
        %1876 = vst.msk [vmem:[%s1401 + $0x18] sm:$0xf] %vm1588, %v1785
        %v1877 = vld [vmem:[%s1401 + $0x24] sm:$0xf]
        %v1878 = vsel %vm1872, %v1787, %v1877
        %1879 = vst [vmem:[%s1401 + $0x24] sm:$0xf] %v1878
        %1880 = vst.msk [vmem:[%s1401 + $0x30] sm:$0xf] %vm1588, %v1789
        %v1881 = vld [vmem:[%s1401 + $0x3c] sm:$0xf]
        %v1882 = vsel %vm1872, %v1791, %v1881
        %1883 = vst [vmem:[%s1401 + $0x3c] sm:$0xf] %v1882
        %1884 = vst.msk [vmem:[%s1401 + $0x48] sm:$0xf] %vm1588, %v1793
        %v1885 = vld [vmem:[%s1401 + $0x54] sm:$0xf]
        %v1886 = vsel %vm1872, %v1795, %v1885
        %1887 = vst [vmem:[%s1401 + $0x54] sm:$0xf] %v1886
        %1888 = vst.msk [vmem:[%s1401 + $0x60] sm:$0xf] %vm1588, %v1797
        %v1889 = vld [vmem:[%s1401 + $0x6c] sm:$0xf]
        %v1890 = vsel %vm1872, %v1799, %v1889
        %1891 = vst [vmem:[%s1401 + $0x6c] sm:$0xf] %v1890
        %1892 = vst.msk [vmem:[%s1401 + $0x78] sm:$0xf] %vm1588, %v1801
        %v1893 = vld [vmem:[%s1401 + $0x84] sm:$0xf]
        %v1894 = vsel %vm1872, %v1803, %v1893
        %1895 = vst [vmem:[%s1401 + $0x84] sm:$0xf] %v1894
        %1896 = vst.msk [vmem:[%s1401 + $0x90] sm:$0xf] %vm1588, %v1805
        %v1897 = vld [vmem:[%s1401 + $0x9c] sm:$0xf]
        %v1898 = vsel %vm1872, %v1807, %v1897
        %1899 = vst [vmem:[%s1401 + $0x9c] sm:$0xf] %v1898
        %1900 = vst.msk [vmem:[%s1401 + $0xa8] sm:$0xf] %vm1588, %v1809
        %v1901 = vld [vmem:[%s1401 + $0xb4] sm:$0xf]
        %v1902 = vsel %vm1872, %v1811, %v1901
        %1903 = vst [vmem:[%s1401 + $0xb4] sm:$0xf] %v1902
        %1904 = vst.msk [vmem:[%s1401 + $0xc0] sm:$0xf] %vm1588, %v1813
        %v1905 = vld [vmem:[%s1401 + $0xcc] sm:$0xf]
        %v1906 = vsel %vm1872, %v1815, %v1905
        %1907 = vst [vmem:[%s1401 + $0xcc] sm:$0xf] %v1906
        %1908 = vst.msk [vmem:[%s1401 + $0xd8] sm:$0xf] %vm1588, %v1817
        %v1909 = vld [vmem:[%s1401 + $0xe4] sm:$0xf]
        %v1910 = vsel %vm1872, %v1819, %v1909
        %1911 = vst [vmem:[%s1401 + $0xe4] sm:$0xf] %v1910
        %1912 = vst.msk [vmem:[%s1401 + $0xf0] sm:$0xf] %vm1588, %v1821
        %v1913 = vld [vmem:[%s1401 + $0xfc] sm:$0xf]
        %v1914 = vsel %vm1872, %v1823, %v1913
        %1915 = vst [vmem:[%s1401 + $0xfc] sm:$0xf] %v1914
        %1916 = vst.msk [vmem:[%s1401 + $0x108] sm:$0xf] %vm1588, %v1825
        %v1917 = vld [vmem:[%s1401 + $0x114] sm:$0xf]
        %v1918 = vsel %vm1872, %v1827, %v1917
        %1919 = vst [vmem:[%s1401 + $0x114] sm:$0xf] %v1918
        %1920 = vst.msk [vmem:[%s1401 + $0x120] sm:$0xf] %vm1588, %v1829
        %v1921 = vld [vmem:[%s1401 + $0x12c] sm:$0xf]
        %v1922 = vsel %vm1872, %v1831, %v1921
        %1923 = vst [vmem:[%s1401 + $0x12c] sm:$0xf] %v1922
        %1924 = vst.msk [vmem:[%s1401 + $0x138] sm:$0xf] %vm1588, %v1833
        %v1925 = vld [vmem:[%s1401 + $0x144] sm:$0xf]
        %v1926 = vsel %vm1872, %v1835, %v1925
        %1927 = vst [vmem:[%s1401 + $0x144] sm:$0xf] %v1926
        %1928 = vst.msk [vmem:[%s1401 + $0x150] sm:$0xf] %vm1588, %v1837
        %v1929 = vld [vmem:[%s1401 + $0x15c] sm:$0xf]
        %v1930 = vsel %vm1872, %v1839, %v1929
        %1931 = vst [vmem:[%s1401 + $0x15c] sm:$0xf] %v1930
        %vm1932 = vcmask 1041152
        %vm1933 = vmand %vm1932, %vm1004
        %v1934 = vld [vmem:[#allocation2] sm:$0x1]
        %v1935 = vsel %vm1933, 0, %v1934
        %1936 = vst [vmem:[#allocation2] sm:$0x1] %v1935
        %v1937 = vld [vmem:[#allocation2 + $0x18] sm:$0x1]
        %v1938 = vsel %vm1933, 0, %v1937
        %1939 = vst [vmem:[#allocation2 + $0x18] sm:$0x1] %v1938
        %v1940 = vld [vmem:[#allocation2 + $0x30] sm:$0x1]
        %v1941 = vsel %vm1933, 0, %v1940
        %1942 = vst [vmem:[#allocation2 + $0x30] sm:$0x1] %v1941
        %v1943 = vld [vmem:[#allocation2 + $0x48] sm:$0x1]
        %v1944 = vsel %vm1933, 0, %v1943
        %1945 = vst [vmem:[#allocation2 + $0x48] sm:$0x1] %v1944
        %v1946 = vld [vmem:[#allocation2 + $0x60] sm:$0x1]
        %v1947 = vsel %vm1933, 0, %v1946
        %1948 = vst [vmem:[#allocation2 + $0x60] sm:$0x1] %v1947
        %v1949 = vld [vmem:[#allocation2 + $0x78] sm:$0x1]
        %v1950 = vsel %vm1933, 0, %v1949
        %1951 = vst [vmem:[#allocation2 + $0x78] sm:$0x1] %v1950
        %v1952 = vld [vmem:[#allocation2 + $0x90] sm:$0x1]
        %v1953 = vsel %vm1933, 0, %v1952
        %1954 = vst [vmem:[#allocation2 + $0x90] sm:$0x1] %v1953
        %v1955 = vld [vmem:[#allocation2 + $0xa8] sm:$0x1]
        %v1956 = vsel %vm1933, 0, %v1955
        %1957 = vst [vmem:[#allocation2 + $0xa8] sm:$0x1] %v1956
        %v1958 = vld [vmem:[#allocation2 + $0xc0] sm:$0x1]
        %v1959 = vsel %vm1933, 0, %v1958
        %1960 = vst [vmem:[#allocation2 + $0xc0] sm:$0x1] %v1959
        %v1961 = vld [vmem:[#allocation2 + $0xd8] sm:$0x1]
        %v1962 = vsel %vm1933, 0, %v1961
        %1963 = vst [vmem:[#allocation2 + $0xd8] sm:$0x1] %v1962
        %v1964 = vld [vmem:[#allocation2 + $0xf0] sm:$0x1]
        %v1965 = vsel %vm1933, 0, %v1964
        %1966 = vst [vmem:[#allocation2 + $0xf0] sm:$0x1] %v1965
        %v1967 = vld [vmem:[#allocation2 + $0x108] sm:$0x1]
        %v1968 = vsel %vm1933, 0, %v1967
        %1969 = vst [vmem:[#allocation2 + $0x108] sm:$0x1] %v1968
        %v1970 = vld [vmem:[#allocation2 + $0x120] sm:$0x1]
        %v1971 = vsel %vm1933, 0, %v1970
        %1972 = vst [vmem:[#allocation2 + $0x120] sm:$0x1] %v1971
        %v1973 = vld [vmem:[#allocation2 + $0x138] sm:$0x1]
        %v1974 = vsel %vm1933, 0, %v1973
        %1975 = vst [vmem:[#allocation2 + $0x138] sm:$0x1] %v1974
        %v1976 = vld [vmem:[#allocation2 + $0x150] sm:$0x1]
        %v1977 = vsel %vm1933, 0, %v1976
        %1978 = vst [vmem:[#allocation2 + $0x150] sm:$0x1] %v1977
        %v1979 = vld [vmem:[#allocation2 + $0x168] sm:$0x1]
        %v1980 = vsel %vm1933, 0, %v1979
        %1981 = vst [vmem:[#allocation2 + $0x168] sm:$0x1] %v1980
        %v1983 = vunpack.c.l.b16 %v999
        %v1984 = vunpack.c.h.b16 %v999
        %v1985 = vpack.c.b16 %v1983, %v1983
        %v1986 = vpack.c.b16 %v1984, %v1984
        %v1988 = vshrl.u32 %v1985, 16
        %v1990 = vrot.slane %v1988, 7
        %v1991 = vshll.u32 %v1985, 16
        %v1993 = vor.u32 %v1990, %v1991
        %v1994 = vrot.slane %v1990, 4
        %v1996 = vshrl.u32 %v1986, 16
        %v1998 = vrot.slane %v1996, 7
        %v1999 = vshll.u32 %v1986, 16
        %v2001 = vor.u32 %v1998, %v1999
        %v2002 = vsel %vm1130, %v1994, %v2001
        %2003 = vrot.lane.b32.xlu0 %v1137, 96
        %v2004 = vpop.permute.xlu0 %2003
        %2005 = vrot.lane.b32.xlu0 %v1146, 96
        %v2006 = vpop.permute.xlu0 %2005
        %2007 = vrot.lane.b32.xlu0 %v1153, 96
        %v2008 = vpop.permute.xlu0 %2007
        %2009 = vrot.lane.b32.xlu0 %v1162, 96
        %v2010 = vpop.permute.xlu0 %2009
        %2011 = vrot.lane.b32.xlu0 %v1169, 96
        %v2012 = vpop.permute.xlu0 %2011
        %2013 = vrot.lane.b32.xlu0 %v1178, 96
        %v2014 = vpop.permute.xlu0 %2013
        %2015 = vrot.lane.b32.xlu0 %v1185, 96
        %v2016 = vpop.permute.xlu0 %2015
        %2017 = vrot.lane.b32.xlu0 %v1194, 96
        %v2018 = vpop.permute.xlu0 %2017
        %2019 = vrot.lane.b32.xlu0 %v1201, 96
        %v2020 = vpop.permute.xlu0 %2019
        %2021 = vrot.lane.b32.xlu0 %v1210, 96
        %v2022 = vpop.permute.xlu0 %2021
        %2023 = vrot.lane.b32.xlu0 %v1217, 96
        %v2024 = vpop.permute.xlu0 %2023
        %2025 = vrot.lane.b32.xlu0 %v1226, 96
        %v2026 = vpop.permute.xlu0 %2025
        %2027 = vrot.lane.b32.xlu0 %v1233, 96
        %v2028 = vpop.permute.xlu0 %2027
        %2029 = vrot.lane.b32.xlu0 %v1242, 96
        %v2030 = vpop.permute.xlu0 %2029
        %2031 = vrot.lane.b32.xlu0 %v1249, 96
        %v2032 = vpop.permute.xlu0 %2031
        %2033 = vrot.lane.b32.xlu0 %v1258, 96
        %v2034 = vpop.permute.xlu0 %2033
        %2035 = vrot.lane.b32.xlu0 %v1265, 96
        %v2036 = vpop.permute.xlu0 %2035
        %2037 = vrot.lane.b32.xlu0 %v1274, 96
        %v2038 = vpop.permute.xlu0 %2037
        %2039 = vrot.lane.b32.xlu0 %v1281, 96
        %v2040 = vpop.permute.xlu0 %2039
        %2041 = vrot.lane.b32.xlu0 %v1290, 96
        %v2042 = vpop.permute.xlu0 %2041
        %2043 = vrot.lane.b32.xlu0 %v1297, 96
        %v2044 = vpop.permute.xlu0 %2043
        %2045 = vrot.lane.b32.xlu0 %v1306, 96
        %v2046 = vpop.permute.xlu0 %2045
        %2047 = vrot.lane.b32.xlu0 %v1313, 96
        %v2048 = vpop.permute.xlu0 %2047
        %2049 = vrot.lane.b32.xlu0 %v1322, 96
        %v2050 = vpop.permute.xlu0 %2049
        %2051 = vrot.lane.b32.xlu0 %v1329, 96
        %v2052 = vpop.permute.xlu0 %2051
        %2053 = vrot.lane.b32.xlu0 %v1338, 96
        %v2054 = vpop.permute.xlu0 %2053
        %2055 = vrot.lane.b32.xlu0 %v1345, 96
        %v2056 = vpop.permute.xlu0 %2055
        %2057 = vrot.lane.b32.xlu0 %v1354, 96
        %v2058 = vpop.permute.xlu0 %2057
        %2059 = vrot.lane.b32.xlu0 %v1361, 96
        %v2060 = vpop.permute.xlu0 %2059
        %2061 = vrot.lane.b32.xlu0 %v1370, 96
        %v2062 = vpop.permute.xlu0 %2061
        %2063 = vrot.lane.b32.xlu0 %v1993, 96
        %v2064 = vpop.permute.xlu0 %2063
        %2065 = vrot.lane.b32.xlu0 %v2002, 96
        %v2066 = vpop.permute.xlu0 %2065
        %vm2099 = vcmask 1044224
        %vm2100 = vmand %vm2099, %vm1403
        %v2101 = vld [vmem:[#allocation2] sm:$0xf]
        %v2102 = vsel %vm2100, %v2004, %v2101
        %2103 = vst [vmem:[#allocation2] sm:$0xf] %v2102
        %vm2104 = vcmask 1044224
        %2105 = vst.msk [vmem:[#allocation2 + $0xc] sm:$0xf] %vm2104, %v2006
        %v2106 = vld [vmem:[#allocation2 + $0x18] sm:$0xf]
        %v2107 = vsel %vm2100, %v2008, %v2106
        %2108 = vst [vmem:[#allocation2 + $0x18] sm:$0xf] %v2107
        %2109 = vst.msk [vmem:[#allocation2 + $0x24] sm:$0xf] %vm2104, %v2010
        %v2110 = vld [vmem:[#allocation2 + $0x30] sm:$0xf]
        %v2111 = vsel %vm2100, %v2012, %v2110
        %2112 = vst [vmem:[#allocation2 + $0x30] sm:$0xf] %v2111
        %2113 = vst.msk [vmem:[#allocation2 + $0x3c] sm:$0xf] %vm2104, %v2014
        %v2114 = vld [vmem:[#allocation2 + $0x48] sm:$0xf]
        %v2115 = vsel %vm2100, %v2016, %v2114
        %2116 = vst [vmem:[#allocation2 + $0x48] sm:$0xf] %v2115
        %2117 = vst.msk [vmem:[#allocation2 + $0x54] sm:$0xf] %vm2104, %v2018
        %v2118 = vld [vmem:[#allocation2 + $0x60] sm:$0xf]
        %v2119 = vsel %vm2100, %v2020, %v2118
        %2120 = vst [vmem:[#allocation2 + $0x60] sm:$0xf] %v2119
        %2121 = vst.msk [vmem:[#allocation2 + $0x6c] sm:$0xf] %vm2104, %v2022
        %v2122 = vld [vmem:[#allocation2 + $0x78] sm:$0xf]
        %v2123 = vsel %vm2100, %v2024, %v2122
        %2124 = vst [vmem:[#allocation2 + $0x78] sm:$0xf] %v2123
        %2125 = vst.msk [vmem:[#allocation2 + $0x84] sm:$0xf] %vm2104, %v2026
        %v2126 = vld [vmem:[#allocation2 + $0x90] sm:$0xf]
        %v2127 = vsel %vm2100, %v2028, %v2126
        %2128 = vst [vmem:[#allocation2 + $0x90] sm:$0xf] %v2127
        %2129 = vst.msk [vmem:[#allocation2 + $0x9c] sm:$0xf] %vm2104, %v2030
        %v2130 = vld [vmem:[#allocation2 + $0xa8] sm:$0xf]
        %v2131 = vsel %vm2100, %v2032, %v2130
        %2132 = vst [vmem:[#allocation2 + $0xa8] sm:$0xf] %v2131
        %2133 = vst.msk [vmem:[#allocation2 + $0xb4] sm:$0xf] %vm2104, %v2034
        %v2134 = vld [vmem:[#allocation2 + $0xc0] sm:$0xf]
        %v2135 = vsel %vm2100, %v2036, %v2134
        %2136 = vst [vmem:[#allocation2 + $0xc0] sm:$0xf] %v2135
        %2137 = vst.msk [vmem:[#allocation2 + $0xcc] sm:$0xf] %vm2104, %v2038
        %v2138 = vld [vmem:[#allocation2 + $0xd8] sm:$0xf]
        %v2139 = vsel %vm2100, %v2040, %v2138
        %2140 = vst [vmem:[#allocation2 + $0xd8] sm:$0xf] %v2139
        %2141 = vst.msk [vmem:[#allocation2 + $0xe4] sm:$0xf] %vm2104, %v2042
        %v2142 = vld [vmem:[#allocation2 + $0xf0] sm:$0xf]
        %v2143 = vsel %vm2100, %v2044, %v2142
        %2144 = vst [vmem:[#allocation2 + $0xf0] sm:$0xf] %v2143
        %2145 = vst.msk [vmem:[#allocation2 + $0xfc] sm:$0xf] %vm2104, %v2046
        %v2146 = vld [vmem:[#allocation2 + $0x108] sm:$0xf]
        %v2147 = vsel %vm2100, %v2048, %v2146
        %2148 = vst [vmem:[#allocation2 + $0x108] sm:$0xf] %v2147
        %2149 = vst.msk [vmem:[#allocation2 + $0x114] sm:$0xf] %vm2104, %v2050
        %v2150 = vld [vmem:[#allocation2 + $0x120] sm:$0xf]
        %v2151 = vsel %vm2100, %v2052, %v2150
        %2152 = vst [vmem:[#allocation2 + $0x120] sm:$0xf] %v2151
        %2153 = vst.msk [vmem:[#allocation2 + $0x12c] sm:$0xf] %vm2104, %v2054
        %v2154 = vld [vmem:[#allocation2 + $0x138] sm:$0xf]
        %v2155 = vsel %vm2100, %v2056, %v2154
        %2156 = vst [vmem:[#allocation2 + $0x138] sm:$0xf] %v2155
        %2157 = vst.msk [vmem:[#allocation2 + $0x144] sm:$0xf] %vm2104, %v2058
        %v2158 = vld [vmem:[#allocation2 + $0x150] sm:$0xf]
        %v2159 = vsel %vm2100, %v2060, %v2158
        %2160 = vst [vmem:[#allocation2 + $0x150] sm:$0xf] %v2159
        %2161 = vst.msk [vmem:[#allocation2 + $0x15c] sm:$0xf] %vm2104, %v2062
        %v2162 = vld [vmem:[#allocation2 + $0x168] sm:$0xf]
        %v2163 = vsel %vm2100, %v2064, %v2162
        %2164 = vst [vmem:[#allocation2 + $0x168] sm:$0xf] %v2163
        %2165 = vst.msk [vmem:[#allocation2 + $0x174] sm:$0xf] %vm2104, %v2066
        %2198 = vst.msk [vmem:[#allocation2 + $0x4] sm:$0xf] %vm1000, %v1099
        %2199 = vst.msk [vmem:[#allocation2 + $0x10] sm:$0xf] %vm1000, %v1100
        %2200 = vst.msk [vmem:[#allocation2 + $0x1c] sm:$0xf] %vm1000, %v1101
        %2201 = vst.msk [vmem:[#allocation2 + $0x28] sm:$0xf] %vm1000, %v1102
        %2202 = vst.msk [vmem:[#allocation2 + $0x34] sm:$0xf] %vm1000, %v1103
        %2203 = vst.msk [vmem:[#allocation2 + $0x40] sm:$0xf] %vm1000, %v1104
        %2204 = vst.msk [vmem:[#allocation2 + $0x4c] sm:$0xf] %vm1000, %v1105
        %2205 = vst.msk [vmem:[#allocation2 + $0x58] sm:$0xf] %vm1000, %v1106
        %2206 = vst.msk [vmem:[#allocation2 + $0x64] sm:$0xf] %vm1000, %v1107
        %2207 = vst.msk [vmem:[#allocation2 + $0x70] sm:$0xf] %vm1000, %v1108
        %2208 = vst.msk [vmem:[#allocation2 + $0x7c] sm:$0xf] %vm1000, %v1109
        %2209 = vst.msk [vmem:[#allocation2 + $0x88] sm:$0xf] %vm1000, %v1110
        %2210 = vst.msk [vmem:[#allocation2 + $0x94] sm:$0xf] %vm1000, %v1111
        %2211 = vst.msk [vmem:[#allocation2 + $0xa0] sm:$0xf] %vm1000, %v1112
        %2212 = vst.msk [vmem:[#allocation2 + $0xac] sm:$0xf] %vm1000, %v1113
        %2213 = vst.msk [vmem:[#allocation2 + $0xb8] sm:$0xf] %vm1000, %v1114
        %2214 = vst.msk [vmem:[#allocation2 + $0xc4] sm:$0xf] %vm1000, %v1115
        %2215 = vst.msk [vmem:[#allocation2 + $0xd0] sm:$0xf] %vm1000, %v1116
        %2216 = vst.msk [vmem:[#allocation2 + $0xdc] sm:$0xf] %vm1000, %v1117
        %2217 = vst.msk [vmem:[#allocation2 + $0xe8] sm:$0xf] %vm1000, %v1118
        %2218 = vst.msk [vmem:[#allocation2 + $0xf4] sm:$0xf] %vm1000, %v1119
        %2219 = vst.msk [vmem:[#allocation2 + $0x100] sm:$0xf] %vm1000, %v1120
        %2220 = vst.msk [vmem:[#allocation2 + $0x10c] sm:$0xf] %vm1000, %v1121
        %2221 = vst.msk [vmem:[#allocation2 + $0x118] sm:$0xf] %vm1000, %v1122
        %2222 = vst.msk [vmem:[#allocation2 + $0x124] sm:$0xf] %vm1000, %v1123
        %2223 = vst.msk [vmem:[#allocation2 + $0x130] sm:$0xf] %vm1000, %v1124
        %2224 = vst.msk [vmem:[#allocation2 + $0x13c] sm:$0xf] %vm1000, %v1125
        %2225 = vst.msk [vmem:[#allocation2 + $0x148] sm:$0xf] %vm1000, %v1126
        %2226 = vst.msk [vmem:[#allocation2 + $0x154] sm:$0xf] %vm1000, %v1127
        %2227 = vst.msk [vmem:[#allocation2 + $0x160] sm:$0xf] %vm1000, %v1128
        %2228 = vst.msk [vmem:[#allocation2 + $0x16c] sm:$0xf] %vm1000, %v1985
        %2229 = vst.msk [vmem:[#allocation2 + $0x178] sm:$0xf] %vm1000, %v1986
        %vm2230 = vcmask 519427
        %vm2231 = vmand %vm2230, %vm1592
        %v2232 = vld [vmem:[#allocation2 + $0x10] sm:$0x8]
        %v2233 = vsel %vm2231, 0, %v2232
        %2234 = vst [vmem:[#allocation2 + $0x10] sm:$0x8] %v2233
        %v2235 = vld [vmem:[#allocation2 + $0x28] sm:$0x8]
        %v2236 = vsel %vm2231, 0, %v2235
        %2237 = vst [vmem:[#allocation2 + $0x28] sm:$0x8] %v2236
        %v2238 = vld [vmem:[#allocation2 + $0x40] sm:$0x8]
        %v2239 = vsel %vm2231, 0, %v2238
        %2240 = vst [vmem:[#allocation2 + $0x40] sm:$0x8] %v2239
        %v2241 = vld [vmem:[#allocation2 + $0x58] sm:$0x8]
        %v2242 = vsel %vm2231, 0, %v2241
        %2243 = vst [vmem:[#allocation2 + $0x58] sm:$0x8] %v2242
        %v2244 = vld [vmem:[#allocation2 + $0x70] sm:$0x8]
        %v2245 = vsel %vm2231, 0, %v2244
        %2246 = vst [vmem:[#allocation2 + $0x70] sm:$0x8] %v2245
        %v2247 = vld [vmem:[#allocation2 + $0x88] sm:$0x8]
        %v2248 = vsel %vm2231, 0, %v2247
        %2249 = vst [vmem:[#allocation2 + $0x88] sm:$0x8] %v2248
        %v2250 = vld [vmem:[#allocation2 + $0xa0] sm:$0x8]
        %v2251 = vsel %vm2231, 0, %v2250
        %2252 = vst [vmem:[#allocation2 + $0xa0] sm:$0x8] %v2251
        %v2253 = vld [vmem:[#allocation2 + $0xb8] sm:$0x8]
        %v2254 = vsel %vm2231, 0, %v2253
        %2255 = vst [vmem:[#allocation2 + $0xb8] sm:$0x8] %v2254
        %v2256 = vld [vmem:[#allocation2 + $0xd0] sm:$0x8]
        %v2257 = vsel %vm2231, 0, %v2256
        %2258 = vst [vmem:[#allocation2 + $0xd0] sm:$0x8] %v2257
        %v2259 = vld [vmem:[#allocation2 + $0xe8] sm:$0x8]
        %v2260 = vsel %vm2231, 0, %v2259
        %2261 = vst [vmem:[#allocation2 + $0xe8] sm:$0x8] %v2260
        %v2262 = vld [vmem:[#allocation2 + $0x100] sm:$0x8]
        %v2263 = vsel %vm2231, 0, %v2262
        %2264 = vst [vmem:[#allocation2 + $0x100] sm:$0x8] %v2263
        %v2265 = vld [vmem:[#allocation2 + $0x118] sm:$0x8]
        %v2266 = vsel %vm2231, 0, %v2265
        %2267 = vst [vmem:[#allocation2 + $0x118] sm:$0x8] %v2266
        %v2268 = vld [vmem:[#allocation2 + $0x130] sm:$0x8]
        %v2269 = vsel %vm2231, 0, %v2268
        %2270 = vst [vmem:[#allocation2 + $0x130] sm:$0x8] %v2269
        %v2271 = vld [vmem:[#allocation2 + $0x148] sm:$0x8]
        %v2272 = vsel %vm2231, 0, %v2271
        %2273 = vst [vmem:[#allocation2 + $0x148] sm:$0x8] %v2272
        %v2274 = vld [vmem:[#allocation2 + $0x160] sm:$0x8]
        %v2275 = vsel %vm2231, 0, %v2274
        %2276 = vst [vmem:[#allocation2 + $0x160] sm:$0x8] %v2275
        %v2277 = vld [vmem:[#allocation2 + $0x178] sm:$0x8]
        %v2278 = vsel %vm2231, 0, %v2277
        %2279 = vst [vmem:[#allocation2 + $0x178] sm:$0x8] %v2278
        %v2280 = vrot.slane %v1988, 4
        %v2281 = vrot.slane %v1991, 5
        %v2282 = vor.u32 %v2280, %v2281
        %v2283 = vrot.slane %v2282, 4
        %v2284 = vrot.slane %v1999, 5
        %v2285 = vsel %vm1644, %v2283, %v2284
        %v2286 = vrot.slane %v1996, 4
        %v2287 = vor.u32 %v2286, %v2284
        %v2288 = vrot.slane %v2287, 4
        %2289 = vrot.lane.b32.xlu0 %v1650, 32
        %v2290 = vpop.permute.xlu0 %2289
        %2291 = vrot.lane.b32.xlu0 %v1653, 32
        %v2292 = vpop.permute.xlu0 %2291
        %2293 = vrot.lane.b32.xlu0 %v1659, 32
        %v2294 = vpop.permute.xlu0 %2293
        %2295 = vrot.lane.b32.xlu0 %v1662, 32
        %v2296 = vpop.permute.xlu0 %2295
        %2297 = vrot.lane.b32.xlu0 %v1668, 32
        %v2298 = vpop.permute.xlu0 %2297
        %2299 = vrot.lane.b32.xlu0 %v1671, 32
        %v2300 = vpop.permute.xlu0 %2299
        %2301 = vrot.lane.b32.xlu0 %v1677, 32
        %v2302 = vpop.permute.xlu0 %2301
        %2303 = vrot.lane.b32.xlu0 %v1680, 32
        %v2304 = vpop.permute.xlu0 %2303
        %2305 = vrot.lane.b32.xlu0 %v1686, 32
        %v2306 = vpop.permute.xlu0 %2305
        %2307 = vrot.lane.b32.xlu0 %v1689, 32
        %v2308 = vpop.permute.xlu0 %2307
        %2309 = vrot.lane.b32.xlu0 %v1695, 32
        %v2310 = vpop.permute.xlu0 %2309
        %2311 = vrot.lane.b32.xlu0 %v1698, 32
        %v2312 = vpop.permute.xlu0 %2311
        %2313 = vrot.lane.b32.xlu0 %v1704, 32
        %v2314 = vpop.permute.xlu0 %2313
        %2315 = vrot.lane.b32.xlu0 %v1707, 32
        %v2316 = vpop.permute.xlu0 %2315
        %2317 = vrot.lane.b32.xlu0 %v1713, 32
        %v2318 = vpop.permute.xlu0 %2317
        %2319 = vrot.lane.b32.xlu0 %v1716, 32
        %v2320 = vpop.permute.xlu0 %2319
        %2321 = vrot.lane.b32.xlu0 %v1722, 32
        %v2322 = vpop.permute.xlu0 %2321
        %2323 = vrot.lane.b32.xlu0 %v1725, 32
        %v2324 = vpop.permute.xlu0 %2323
        %2325 = vrot.lane.b32.xlu0 %v1731, 32
        %v2326 = vpop.permute.xlu0 %2325
        %2327 = vrot.lane.b32.xlu0 %v1734, 32
        %v2328 = vpop.permute.xlu0 %2327
        %2329 = vrot.lane.b32.xlu0 %v1740, 32
        %v2330 = vpop.permute.xlu0 %2329
        %2331 = vrot.lane.b32.xlu0 %v1743, 32
        %v2332 = vpop.permute.xlu0 %2331
        %2333 = vrot.lane.b32.xlu0 %v1749, 32
        %v2334 = vpop.permute.xlu0 %2333
        %2335 = vrot.lane.b32.xlu0 %v1752, 32
        %v2336 = vpop.permute.xlu0 %2335
        %2337 = vrot.lane.b32.xlu0 %v1758, 32
        %v2338 = vpop.permute.xlu0 %2337
        %2339 = vrot.lane.b32.xlu0 %v1761, 32
        %v2340 = vpop.permute.xlu0 %2339
        %2341 = vrot.lane.b32.xlu0 %v1767, 32
        %v2342 = vpop.permute.xlu0 %2341
        %2343 = vrot.lane.b32.xlu0 %v1770, 32
        %v2344 = vpop.permute.xlu0 %2343
        %2345 = vrot.lane.b32.xlu0 %v1776, 32
        %v2346 = vpop.permute.xlu0 %2345
        %2347 = vrot.lane.b32.xlu0 %v1779, 32
        %v2348 = vpop.permute.xlu0 %2347
        %2349 = vrot.lane.b32.xlu0 %v2285, 32
        %v2350 = vpop.permute.xlu0 %2349
        %2351 = vrot.lane.b32.xlu0 %v2288, 32
        %v2352 = vpop.permute.xlu0 %2351
        %2385 = vst.msk [vmem:[#allocation2 + $0x4] sm:$0xf] %vm1465, %v2290
        %vm2386 = vcmask 519424
        %vm2387 = vmand %vm2386, %vm1642
        %v2388 = vld [vmem:[#allocation2 + $0x10] sm:$0xf]
        %v2389 = vsel %vm2387, %v2292, %v2388
        %2390 = vst [vmem:[#allocation2 + $0x10] sm:$0xf] %v2389
        %2391 = vst.msk [vmem:[#allocation2 + $0x1c] sm:$0xf] %vm1465, %v2294
        %v2392 = vld [vmem:[#allocation2 + $0x28] sm:$0xf]
        %v2393 = vsel %vm2387, %v2296, %v2392
        %2394 = vst [vmem:[#allocation2 + $0x28] sm:$0xf] %v2393
        %2395 = vst.msk [vmem:[#allocation2 + $0x34] sm:$0xf] %vm1465, %v2298
        %v2396 = vld [vmem:[#allocation2 + $0x40] sm:$0xf]
        %v2397 = vsel %vm2387, %v2300, %v2396
        %2398 = vst [vmem:[#allocation2 + $0x40] sm:$0xf] %v2397
        %2399 = vst.msk [vmem:[#allocation2 + $0x4c] sm:$0xf] %vm1465, %v2302
        %v2400 = vld [vmem:[#allocation2 + $0x58] sm:$0xf]
        %v2401 = vsel %vm2387, %v2304, %v2400
        %2402 = vst [vmem:[#allocation2 + $0x58] sm:$0xf] %v2401
        %2403 = vst.msk [vmem:[#allocation2 + $0x64] sm:$0xf] %vm1465, %v2306
        %v2404 = vld [vmem:[#allocation2 + $0x70] sm:$0xf]
        %v2405 = vsel %vm2387, %v2308, %v2404
        %2406 = vst [vmem:[#allocation2 + $0x70] sm:$0xf] %v2405
        %2407 = vst.msk [vmem:[#allocation2 + $0x7c] sm:$0xf] %vm1465, %v2310
        %v2408 = vld [vmem:[#allocation2 + $0x88] sm:$0xf]
        %v2409 = vsel %vm2387, %v2312, %v2408
        %2410 = vst [vmem:[#allocation2 + $0x88] sm:$0xf] %v2409
        %2411 = vst.msk [vmem:[#allocation2 + $0x94] sm:$0xf] %vm1465, %v2314
        %v2412 = vld [vmem:[#allocation2 + $0xa0] sm:$0xf]
        %v2413 = vsel %vm2387, %v2316, %v2412
        %2414 = vst [vmem:[#allocation2 + $0xa0] sm:$0xf] %v2413
        %2415 = vst.msk [vmem:[#allocation2 + $0xac] sm:$0xf] %vm1465, %v2318
        %v2416 = vld [vmem:[#allocation2 + $0xb8] sm:$0xf]
        %v2417 = vsel %vm2387, %v2320, %v2416
        %2418 = vst [vmem:[#allocation2 + $0xb8] sm:$0xf] %v2417
        %2419 = vst.msk [vmem:[#allocation2 + $0xc4] sm:$0xf] %vm1465, %v2322
        %v2420 = vld [vmem:[#allocation2 + $0xd0] sm:$0xf]
        %v2421 = vsel %vm2387, %v2324, %v2420
        %2422 = vst [vmem:[#allocation2 + $0xd0] sm:$0xf] %v2421
        %2423 = vst.msk [vmem:[#allocation2 + $0xdc] sm:$0xf] %vm1465, %v2326
        %v2424 = vld [vmem:[#allocation2 + $0xe8] sm:$0xf]
        %v2425 = vsel %vm2387, %v2328, %v2424
        %2426 = vst [vmem:[#allocation2 + $0xe8] sm:$0xf] %v2425
        %2427 = vst.msk [vmem:[#allocation2 + $0xf4] sm:$0xf] %vm1465, %v2330
        %v2428 = vld [vmem:[#allocation2 + $0x100] sm:$0xf]
        %v2429 = vsel %vm2387, %v2332, %v2428
        %2430 = vst [vmem:[#allocation2 + $0x100] sm:$0xf] %v2429
        %2431 = vst.msk [vmem:[#allocation2 + $0x10c] sm:$0xf] %vm1465, %v2334
        %v2432 = vld [vmem:[#allocation2 + $0x118] sm:$0xf]
        %v2433 = vsel %vm2387, %v2336, %v2432
        %2434 = vst [vmem:[#allocation2 + $0x118] sm:$0xf] %v2433
        %2435 = vst.msk [vmem:[#allocation2 + $0x124] sm:$0xf] %vm1465, %v2338
        %v2436 = vld [vmem:[#allocation2 + $0x130] sm:$0xf]
        %v2437 = vsel %vm2387, %v2340, %v2436
        %2438 = vst [vmem:[#allocation2 + $0x130] sm:$0xf] %v2437
        %2439 = vst.msk [vmem:[#allocation2 + $0x13c] sm:$0xf] %vm1465, %v2342
        %v2440 = vld [vmem:[#allocation2 + $0x148] sm:$0xf]
        %v2441 = vsel %vm2387, %v2344, %v2440
        %2442 = vst [vmem:[#allocation2 + $0x148] sm:$0xf] %v2441
        %2443 = vst.msk [vmem:[#allocation2 + $0x154] sm:$0xf] %vm1465, %v2346
        %v2444 = vld [vmem:[#allocation2 + $0x160] sm:$0xf]
        %v2445 = vsel %vm2387, %v2348, %v2444
        %2446 = vst [vmem:[#allocation2 + $0x160] sm:$0xf] %v2445
        %2447 = vst.msk [vmem:[#allocation2 + $0x16c] sm:$0xf] %vm1465, %v2350
        %v2448 = vld [vmem:[#allocation2 + $0x178] sm:$0xf]
        %v2449 = vsel %vm2387, %v2352, %v2448
        %2450 = vst [vmem:[#allocation2 + $0x178] sm:$0xf] %v2449
        %s2451 = scalar_lea.vmem [#allocation2], 360
        %2452 = vst.msk [vmem:[%s2451 + $0x4] sm:$0xf] %vm1588, 0
        %2453 = vst.msk [vmem:[%s2451 + $0x10] sm:$0xf] %vm1588, 0
        %vm2454 = vcmask 778752
        %vm2455 = vmand %vm2454, %vm1004
        %v2456 = vld [vmem:[#allocation2 + $0x4] sm:$0x1]
        %v2457 = vsel %vm2455, 0, %v2456
        %2458 = vst [vmem:[#allocation2 + $0x4] sm:$0x1] %v2457
        %v2459 = vld [vmem:[#allocation2 + $0x1c] sm:$0x1]
        %v2460 = vsel %vm2455, 0, %v2459
        %2461 = vst [vmem:[#allocation2 + $0x1c] sm:$0x1] %v2460
        %v2462 = vld [vmem:[#allocation2 + $0x34] sm:$0x1]
        %v2463 = vsel %vm2455, 0, %v2462
        %2464 = vst [vmem:[#allocation2 + $0x34] sm:$0x1] %v2463
        %v2465 = vld [vmem:[#allocation2 + $0x4c] sm:$0x1]
        %v2466 = vsel %vm2455, 0, %v2465
        %2467 = vst [vmem:[#allocation2 + $0x4c] sm:$0x1] %v2466
        %v2468 = vld [vmem:[#allocation2 + $0x64] sm:$0x1]
        %v2469 = vsel %vm2455, 0, %v2468
        %2470 = vst [vmem:[#allocation2 + $0x64] sm:$0x1] %v2469
        %v2471 = vld [vmem:[#allocation2 + $0x7c] sm:$0x1]
        %v2472 = vsel %vm2455, 0, %v2471
        %2473 = vst [vmem:[#allocation2 + $0x7c] sm:$0x1] %v2472
        %v2474 = vld [vmem:[#allocation2 + $0x94] sm:$0x1]
        %v2475 = vsel %vm2455, 0, %v2474
        %2476 = vst [vmem:[#allocation2 + $0x94] sm:$0x1] %v2475
        %v2477 = vld [vmem:[#allocation2 + $0xac] sm:$0x1]
        %v2478 = vsel %vm2455, 0, %v2477
        %2479 = vst [vmem:[#allocation2 + $0xac] sm:$0x1] %v2478
        %v2480 = vld [vmem:[#allocation2 + $0xc4] sm:$0x1]
        %v2481 = vsel %vm2455, 0, %v2480
        %2482 = vst [vmem:[#allocation2 + $0xc4] sm:$0x1] %v2481
        %v2483 = vld [vmem:[#allocation2 + $0xdc] sm:$0x1]
        %v2484 = vsel %vm2455, 0, %v2483
        %2485 = vst [vmem:[#allocation2 + $0xdc] sm:$0x1] %v2484
        %v2486 = vld [vmem:[#allocation2 + $0xf4] sm:$0x1]
        %v2487 = vsel %vm2455, 0, %v2486
        %2488 = vst [vmem:[#allocation2 + $0xf4] sm:$0x1] %v2487
        %v2489 = vld [vmem:[#allocation2 + $0x10c] sm:$0x1]
        %v2490 = vsel %vm2455, 0, %v2489
        %2491 = vst [vmem:[#allocation2 + $0x10c] sm:$0x1] %v2490
        %v2492 = vld [vmem:[#allocation2 + $0x124] sm:$0x1]
        %v2493 = vsel %vm2455, 0, %v2492
        %2494 = vst [vmem:[#allocation2 + $0x124] sm:$0x1] %v2493
        %v2495 = vld [vmem:[#allocation2 + $0x13c] sm:$0x1]
        %v2496 = vsel %vm2455, 0, %v2495
        %2497 = vst [vmem:[#allocation2 + $0x13c] sm:$0x1] %v2496
        %v2498 = vld [vmem:[#allocation2 + $0x154] sm:$0x1]
        %v2499 = vsel %vm2455, 0, %v2498
        %2500 = vst [vmem:[#allocation2 + $0x154] sm:$0x1] %v2499
        %v2501 = vld [vmem:[#allocation2 + $0x16c] sm:$0x1]
        %v2502 = vsel %vm2455, 0, %v2501
        %2503 = vst [vmem:[#allocation2 + $0x16c] sm:$0x1] %v2502
        %2504 = vrot.lane.b32.xlu0 %v1153, 64
        %v2505 = vpop.permute.xlu0 %2504
        %2506 = vrot.lane.b32.xlu0 %v1162, 64
        %v2507 = vpop.permute.xlu0 %2506
        %2508 = vrot.lane.b32.xlu0 %v1169, 64
        %v2509 = vpop.permute.xlu0 %2508
        %2510 = vrot.lane.b32.xlu0 %v1178, 64
        %v2511 = vpop.permute.xlu0 %2510
        %2512 = vrot.lane.b32.xlu0 %v1185, 64
        %v2513 = vpop.permute.xlu0 %2512
        %2514 = vrot.lane.b32.xlu0 %v1194, 64
        %v2515 = vpop.permute.xlu0 %2514
        %2516 = vrot.lane.b32.xlu0 %v1201, 64
        %v2517 = vpop.permute.xlu0 %2516
        %2518 = vrot.lane.b32.xlu0 %v1210, 64
        %v2519 = vpop.permute.xlu0 %2518
        %2520 = vrot.lane.b32.xlu0 %v1217, 64
        %v2521 = vpop.permute.xlu0 %2520
        %2522 = vrot.lane.b32.xlu0 %v1226, 64
        %v2523 = vpop.permute.xlu0 %2522
        %2524 = vrot.lane.b32.xlu0 %v1233, 64
        %v2525 = vpop.permute.xlu0 %2524
        %2526 = vrot.lane.b32.xlu0 %v1242, 64
        %v2527 = vpop.permute.xlu0 %2526
        %2528 = vrot.lane.b32.xlu0 %v1249, 64
        %v2529 = vpop.permute.xlu0 %2528
        %2530 = vrot.lane.b32.xlu0 %v1258, 64
        %v2531 = vpop.permute.xlu0 %2530
        %2532 = vrot.lane.b32.xlu0 %v1265, 64
        %v2533 = vpop.permute.xlu0 %2532
        %2534 = vrot.lane.b32.xlu0 %v1274, 64
        %v2535 = vpop.permute.xlu0 %2534
        %2536 = vrot.lane.b32.xlu0 %v1281, 64
        %v2537 = vpop.permute.xlu0 %2536
        %2538 = vrot.lane.b32.xlu0 %v1290, 64
        %v2539 = vpop.permute.xlu0 %2538
        %2540 = vrot.lane.b32.xlu0 %v1297, 64
        %v2541 = vpop.permute.xlu0 %2540
        %2542 = vrot.lane.b32.xlu0 %v1306, 64
        %v2543 = vpop.permute.xlu0 %2542
        %2544 = vrot.lane.b32.xlu0 %v1313, 64
        %v2545 = vpop.permute.xlu0 %2544
        %2546 = vrot.lane.b32.xlu0 %v1322, 64
        %v2547 = vpop.permute.xlu0 %2546
        %2548 = vrot.lane.b32.xlu0 %v1329, 64
        %v2549 = vpop.permute.xlu0 %2548
        %2550 = vrot.lane.b32.xlu0 %v1338, 64
        %v2551 = vpop.permute.xlu0 %2550
        %2552 = vrot.lane.b32.xlu0 %v1345, 64
        %v2553 = vpop.permute.xlu0 %2552
        %2554 = vrot.lane.b32.xlu0 %v1354, 64
        %v2555 = vpop.permute.xlu0 %2554
        %2556 = vrot.lane.b32.xlu0 %v1361, 64
        %v2557 = vpop.permute.xlu0 %2556
        %2558 = vrot.lane.b32.xlu0 %v1370, 64
        %v2559 = vpop.permute.xlu0 %2558
        %2560 = vrot.lane.b32.xlu0 %v1993, 64
        %v2561 = vpop.permute.xlu0 %2560
        %2562 = vrot.lane.b32.xlu0 %v2002, 64
        %v2563 = vpop.permute.xlu0 %2562
        %vm2594 = vmand %vm1871, %vm1403
        %v2595 = vld [vmem:[#allocation2 + $0x4] sm:$0xf]
        %v2596 = vsel %vm2594, %v2505, %v2595
        %2597 = vst [vmem:[#allocation2 + $0x4] sm:$0xf] %v2596
        %2598 = vst.msk [vmem:[#allocation2 + $0x10] sm:$0xf] %vm1588, %v2507
        %v2599 = vld [vmem:[#allocation2 + $0x1c] sm:$0xf]
        %v2600 = vsel %vm2594, %v2509, %v2599
        %2601 = vst [vmem:[#allocation2 + $0x1c] sm:$0xf] %v2600
        %2602 = vst.msk [vmem:[#allocation2 + $0x28] sm:$0xf] %vm1588, %v2511
        %v2603 = vld [vmem:[#allocation2 + $0x34] sm:$0xf]
        %v2604 = vsel %vm2594, %v2513, %v2603
        %2605 = vst [vmem:[#allocation2 + $0x34] sm:$0xf] %v2604
        %2606 = vst.msk [vmem:[#allocation2 + $0x40] sm:$0xf] %vm1588, %v2515
        %v2607 = vld [vmem:[#allocation2 + $0x4c] sm:$0xf]
        %v2608 = vsel %vm2594, %v2517, %v2607
        %2609 = vst [vmem:[#allocation2 + $0x4c] sm:$0xf] %v2608
        %2610 = vst.msk [vmem:[#allocation2 + $0x58] sm:$0xf] %vm1588, %v2519
        %v2611 = vld [vmem:[#allocation2 + $0x64] sm:$0xf]
        %v2612 = vsel %vm2594, %v2521, %v2611
        %2613 = vst [vmem:[#allocation2 + $0x64] sm:$0xf] %v2612
        %2614 = vst.msk [vmem:[#allocation2 + $0x70] sm:$0xf] %vm1588, %v2523
        %v2615 = vld [vmem:[#allocation2 + $0x7c] sm:$0xf]
        %v2616 = vsel %vm2594, %v2525, %v2615
        %2617 = vst [vmem:[#allocation2 + $0x7c] sm:$0xf] %v2616
        %2618 = vst.msk [vmem:[#allocation2 + $0x88] sm:$0xf] %vm1588, %v2527
        %v2619 = vld [vmem:[#allocation2 + $0x94] sm:$0xf]
        %v2620 = vsel %vm2594, %v2529, %v2619
        %2621 = vst [vmem:[#allocation2 + $0x94] sm:$0xf] %v2620
        %2622 = vst.msk [vmem:[#allocation2 + $0xa0] sm:$0xf] %vm1588, %v2531
        %v2623 = vld [vmem:[#allocation2 + $0xac] sm:$0xf]
        %v2624 = vsel %vm2594, %v2533, %v2623
        %2625 = vst [vmem:[#allocation2 + $0xac] sm:$0xf] %v2624
        %2626 = vst.msk [vmem:[#allocation2 + $0xb8] sm:$0xf] %vm1588, %v2535
        %v2627 = vld [vmem:[#allocation2 + $0xc4] sm:$0xf]
        %v2628 = vsel %vm2594, %v2537, %v2627
        %2629 = vst [vmem:[#allocation2 + $0xc4] sm:$0xf] %v2628
        %2630 = vst.msk [vmem:[#allocation2 + $0xd0] sm:$0xf] %vm1588, %v2539
        %v2631 = vld [vmem:[#allocation2 + $0xdc] sm:$0xf]
        %v2632 = vsel %vm2594, %v2541, %v2631
        %2633 = vst [vmem:[#allocation2 + $0xdc] sm:$0xf] %v2632
        %2634 = vst.msk [vmem:[#allocation2 + $0xe8] sm:$0xf] %vm1588, %v2543
        %v2635 = vld [vmem:[#allocation2 + $0xf4] sm:$0xf]
        %v2636 = vsel %vm2594, %v2545, %v2635
        %2637 = vst [vmem:[#allocation2 + $0xf4] sm:$0xf] %v2636
        %2638 = vst.msk [vmem:[#allocation2 + $0x100] sm:$0xf] %vm1588, %v2547
        %v2639 = vld [vmem:[#allocation2 + $0x10c] sm:$0xf]
        %v2640 = vsel %vm2594, %v2549, %v2639
        %2641 = vst [vmem:[#allocation2 + $0x10c] sm:$0xf] %v2640
        %2642 = vst.msk [vmem:[#allocation2 + $0x118] sm:$0xf] %vm1588, %v2551
        %v2643 = vld [vmem:[#allocation2 + $0x124] sm:$0xf]
        %v2644 = vsel %vm2594, %v2553, %v2643
        %2645 = vst [vmem:[#allocation2 + $0x124] sm:$0xf] %v2644
        %2646 = vst.msk [vmem:[#allocation2 + $0x130] sm:$0xf] %vm1588, %v2555
        %v2647 = vld [vmem:[#allocation2 + $0x13c] sm:$0xf]
        %v2648 = vsel %vm2594, %v2557, %v2647
        %2649 = vst [vmem:[#allocation2 + $0x13c] sm:$0xf] %v2648
        %2650 = vst.msk [vmem:[#allocation2 + $0x148] sm:$0xf] %vm1588, %v2559
        %v2651 = vld [vmem:[#allocation2 + $0x154] sm:$0xf]
        %v2652 = vsel %vm2594, %v2561, %v2651
        %2653 = vst [vmem:[#allocation2 + $0x154] sm:$0xf] %v2652
        %2654 = vst.msk [vmem:[#allocation2 + $0x160] sm:$0xf] %vm1588, %v2563
        %2655 = vst.msk [vmem:[%s2451 + $0x4] sm:$0xf] %vm2104, 0
        %2656 = vst.msk [vmem:[%s2451 + $0x10] sm:$0xf] %vm2104, 0
        %2657 = vrot.lane.b32.xlu0 %v1101, 96
        %v2658 = vpop.permute.xlu0 %2657
        %2659 = vrot.lane.b32.xlu0 %v1102, 96
        %v2660 = vpop.permute.xlu0 %2659
        %2661 = vrot.lane.b32.xlu0 %v1103, 96
        %v2662 = vpop.permute.xlu0 %2661
        %2663 = vrot.lane.b32.xlu0 %v1104, 96
        %v2664 = vpop.permute.xlu0 %2663
        %2665 = vrot.lane.b32.xlu0 %v1105, 96
        %v2666 = vpop.permute.xlu0 %2665
        %2667 = vrot.lane.b32.xlu0 %v1106, 96
        %v2668 = vpop.permute.xlu0 %2667
        %2669 = vrot.lane.b32.xlu0 %v1107, 96
        %v2670 = vpop.permute.xlu0 %2669
        %2671 = vrot.lane.b32.xlu0 %v1108, 96
        %v2672 = vpop.permute.xlu0 %2671
        %2673 = vrot.lane.b32.xlu0 %v1109, 96
        %v2674 = vpop.permute.xlu0 %2673
        %2675 = vrot.lane.b32.xlu0 %v1110, 96
        %v2676 = vpop.permute.xlu0 %2675
        %2677 = vrot.lane.b32.xlu0 %v1111, 96
        %v2678 = vpop.permute.xlu0 %2677
        %2679 = vrot.lane.b32.xlu0 %v1112, 96
        %v2680 = vpop.permute.xlu0 %2679
        %2681 = vrot.lane.b32.xlu0 %v1113, 96
        %v2682 = vpop.permute.xlu0 %2681
        %2683 = vrot.lane.b32.xlu0 %v1114, 96
        %v2684 = vpop.permute.xlu0 %2683
        %2685 = vrot.lane.b32.xlu0 %v1115, 96
        %v2686 = vpop.permute.xlu0 %2685
        %2687 = vrot.lane.b32.xlu0 %v1116, 96
        %v2688 = vpop.permute.xlu0 %2687
        %2689 = vrot.lane.b32.xlu0 %v1117, 96
        %v2690 = vpop.permute.xlu0 %2689
        %2691 = vrot.lane.b32.xlu0 %v1118, 96
        %v2692 = vpop.permute.xlu0 %2691
        %2693 = vrot.lane.b32.xlu0 %v1119, 96
        %v2694 = vpop.permute.xlu0 %2693
        %2695 = vrot.lane.b32.xlu0 %v1120, 96
        %v2696 = vpop.permute.xlu0 %2695
        %2697 = vrot.lane.b32.xlu0 %v1121, 96
        %v2698 = vpop.permute.xlu0 %2697
        %2699 = vrot.lane.b32.xlu0 %v1122, 96
        %v2700 = vpop.permute.xlu0 %2699
        %2701 = vrot.lane.b32.xlu0 %v1123, 96
        %v2702 = vpop.permute.xlu0 %2701
        %2703 = vrot.lane.b32.xlu0 %v1124, 96
        %v2704 = vpop.permute.xlu0 %2703
        %2705 = vrot.lane.b32.xlu0 %v1125, 96
        %v2706 = vpop.permute.xlu0 %2705
        %2707 = vrot.lane.b32.xlu0 %v1126, 96
        %v2708 = vpop.permute.xlu0 %2707
        %2709 = vrot.lane.b32.xlu0 %v1127, 96
        %v2710 = vpop.permute.xlu0 %2709
        %2711 = vrot.lane.b32.xlu0 %v1128, 96
        %v2712 = vpop.permute.xlu0 %2711
        %2713 = vrot.lane.b32.xlu0 %v1985, 96
        %v2714 = vpop.permute.xlu0 %2713
        %2715 = vrot.lane.b32.xlu0 %v1986, 96
        %v2716 = vpop.permute.xlu0 %2715
        %2747 = vst.msk [vmem:[#allocation2 + $0x4] sm:$0xf] %vm2104, %v2658
        %2748 = vst.msk [vmem:[#allocation2 + $0x10] sm:$0xf] %vm2104, %v2660
        %2749 = vst.msk [vmem:[#allocation2 + $0x1c] sm:$0xf] %vm2104, %v2662
        %2750 = vst.msk [vmem:[#allocation2 + $0x28] sm:$0xf] %vm2104, %v2664
        %2751 = vst.msk [vmem:[#allocation2 + $0x34] sm:$0xf] %vm2104, %v2666
        %2752 = vst.msk [vmem:[#allocation2 + $0x40] sm:$0xf] %vm2104, %v2668
        %2753 = vst.msk [vmem:[#allocation2 + $0x4c] sm:$0xf] %vm2104, %v2670
        %2754 = vst.msk [vmem:[#allocation2 + $0x58] sm:$0xf] %vm2104, %v2672
        %2755 = vst.msk [vmem:[#allocation2 + $0x64] sm:$0xf] %vm2104, %v2674
        %2756 = vst.msk [vmem:[#allocation2 + $0x70] sm:$0xf] %vm2104, %v2676
        %2757 = vst.msk [vmem:[#allocation2 + $0x7c] sm:$0xf] %vm2104, %v2678
        %2758 = vst.msk [vmem:[#allocation2 + $0x88] sm:$0xf] %vm2104, %v2680
        %2759 = vst.msk [vmem:[#allocation2 + $0x94] sm:$0xf] %vm2104, %v2682
        %2760 = vst.msk [vmem:[#allocation2 + $0xa0] sm:$0xf] %vm2104, %v2684
        %2761 = vst.msk [vmem:[#allocation2 + $0xac] sm:$0xf] %vm2104, %v2686
        %2762 = vst.msk [vmem:[#allocation2 + $0xb8] sm:$0xf] %vm2104, %v2688
        %2763 = vst.msk [vmem:[#allocation2 + $0xc4] sm:$0xf] %vm2104, %v2690
        %2764 = vst.msk [vmem:[#allocation2 + $0xd0] sm:$0xf] %vm2104, %v2692
        %2765 = vst.msk [vmem:[#allocation2 + $0xdc] sm:$0xf] %vm2104, %v2694
        %2766 = vst.msk [vmem:[#allocation2 + $0xe8] sm:$0xf] %vm2104, %v2696
        %2767 = vst.msk [vmem:[#allocation2 + $0xf4] sm:$0xf] %vm2104, %v2698
        %2768 = vst.msk [vmem:[#allocation2 + $0x100] sm:$0xf] %vm2104, %v2700
        %2769 = vst.msk [vmem:[#allocation2 + $0x10c] sm:$0xf] %vm2104, %v2702
        %2770 = vst.msk [vmem:[#allocation2 + $0x118] sm:$0xf] %vm2104, %v2704
        %2771 = vst.msk [vmem:[#allocation2 + $0x124] sm:$0xf] %vm2104, %v2706
        %2772 = vst.msk [vmem:[#allocation2 + $0x130] sm:$0xf] %vm2104, %v2708
        %2773 = vst.msk [vmem:[#allocation2 + $0x13c] sm:$0xf] %vm2104, %v2710
        %2774 = vst.msk [vmem:[#allocation2 + $0x148] sm:$0xf] %vm2104, %v2712
        %2775 = vst.msk [vmem:[#allocation2 + $0x154] sm:$0xf] %vm2104, %v2714
        %2776 = vst.msk [vmem:[#allocation2 + $0x160] sm:$0xf] %vm2104, %v2716
        %2777 = vst.msk [vmem:[%s2451 + $0x8] sm:$0xf] %vm1000, 0
        %2778 = vst.msk [vmem:[%s2451 + $0x14] sm:$0xf] %vm1000, 0
        %vm2779 = vcmask 257027
        %vm2780 = vmand %vm2779, %vm1592
        %v2781 = vld [vmem:[#allocation2 + $0x14] sm:$0x8]
        %v2782 = vsel %vm2780, 0, %v2781
        %2783 = vst [vmem:[#allocation2 + $0x14] sm:$0x8] %v2782
        %v2784 = vld [vmem:[#allocation2 + $0x2c] sm:$0x8]
        %v2785 = vsel %vm2780, 0, %v2784
        %2786 = vst [vmem:[#allocation2 + $0x2c] sm:$0x8] %v2785
        %v2787 = vld [vmem:[#allocation2 + $0x44] sm:$0x8]
        %v2788 = vsel %vm2780, 0, %v2787
        %2789 = vst [vmem:[#allocation2 + $0x44] sm:$0x8] %v2788
        %v2790 = vld [vmem:[#allocation2 + $0x5c] sm:$0x8]
        %v2791 = vsel %vm2780, 0, %v2790
        %2792 = vst [vmem:[#allocation2 + $0x5c] sm:$0x8] %v2791
        %v2793 = vld [vmem:[#allocation2 + $0x74] sm:$0x8]
        %v2794 = vsel %vm2780, 0, %v2793
        %2795 = vst [vmem:[#allocation2 + $0x74] sm:$0x8] %v2794
        %v2796 = vld [vmem:[#allocation2 + $0x8c] sm:$0x8]
        %v2797 = vsel %vm2780, 0, %v2796
        %2798 = vst [vmem:[#allocation2 + $0x8c] sm:$0x8] %v2797
        %v2799 = vld [vmem:[#allocation2 + $0xa4] sm:$0x8]
        %v2800 = vsel %vm2780, 0, %v2799
        %2801 = vst [vmem:[#allocation2 + $0xa4] sm:$0x8] %v2800
        %v2802 = vld [vmem:[#allocation2 + $0xbc] sm:$0x8]
        %v2803 = vsel %vm2780, 0, %v2802
        %2804 = vst [vmem:[#allocation2 + $0xbc] sm:$0x8] %v2803
        %v2805 = vld [vmem:[#allocation2 + $0xd4] sm:$0x8]
        %v2806 = vsel %vm2780, 0, %v2805
        %2807 = vst [vmem:[#allocation2 + $0xd4] sm:$0x8] %v2806
        %v2808 = vld [vmem:[#allocation2 + $0xec] sm:$0x8]
        %v2809 = vsel %vm2780, 0, %v2808
        %2810 = vst [vmem:[#allocation2 + $0xec] sm:$0x8] %v2809
        %v2811 = vld [vmem:[#allocation2 + $0x104] sm:$0x8]
        %v2812 = vsel %vm2780, 0, %v2811
        %2813 = vst [vmem:[#allocation2 + $0x104] sm:$0x8] %v2812
        %v2814 = vld [vmem:[#allocation2 + $0x11c] sm:$0x8]
        %v2815 = vsel %vm2780, 0, %v2814
        %2816 = vst [vmem:[#allocation2 + $0x11c] sm:$0x8] %v2815
        %v2817 = vld [vmem:[#allocation2 + $0x134] sm:$0x8]
        %v2818 = vsel %vm2780, 0, %v2817
        %2819 = vst [vmem:[#allocation2 + $0x134] sm:$0x8] %v2818
        %v2820 = vld [vmem:[#allocation2 + $0x14c] sm:$0x8]
        %v2821 = vsel %vm2780, 0, %v2820
        %2822 = vst [vmem:[#allocation2 + $0x14c] sm:$0x8] %v2821
        %v2823 = vld [vmem:[#allocation2 + $0x164] sm:$0x8]
        %v2824 = vsel %vm2780, 0, %v2823
        %2825 = vst [vmem:[#allocation2 + $0x164] sm:$0x8] %v2824
        %v2826 = vld [vmem:[#allocation2 + $0x17c] sm:$0x8]
        %v2827 = vsel %vm2780, 0, %v2826
        %2828 = vst [vmem:[#allocation2 + $0x17c] sm:$0x8] %v2827
        %2859 = vst.msk [vmem:[#allocation2 + $0x8] sm:$0xf] %vm1000, %v1659
        %vm2860 = vmand %vm1402, %vm1642
        %v2861 = vld [vmem:[#allocation2 + $0x14] sm:$0xf]
        %v2862 = vsel %vm2860, %v1662, %v2861
        %2863 = vst [vmem:[#allocation2 + $0x14] sm:$0xf] %v2862
        %2864 = vst.msk [vmem:[#allocation2 + $0x20] sm:$0xf] %vm1000, %v1668
        %v2865 = vld [vmem:[#allocation2 + $0x2c] sm:$0xf]
        %v2866 = vsel %vm2860, %v1671, %v2865
        %2867 = vst [vmem:[#allocation2 + $0x2c] sm:$0xf] %v2866
        %2868 = vst.msk [vmem:[#allocation2 + $0x38] sm:$0xf] %vm1000, %v1677
        %v2869 = vld [vmem:[#allocation2 + $0x44] sm:$0xf]
        %v2870 = vsel %vm2860, %v1680, %v2869
        %2871 = vst [vmem:[#allocation2 + $0x44] sm:$0xf] %v2870
        %2872 = vst.msk [vmem:[#allocation2 + $0x50] sm:$0xf] %vm1000, %v1686
        %v2873 = vld [vmem:[#allocation2 + $0x5c] sm:$0xf]
        %v2874 = vsel %vm2860, %v1689, %v2873
        %2875 = vst [vmem:[#allocation2 + $0x5c] sm:$0xf] %v2874
        %2876 = vst.msk [vmem:[#allocation2 + $0x68] sm:$0xf] %vm1000, %v1695
        %v2877 = vld [vmem:[#allocation2 + $0x74] sm:$0xf]
        %v2878 = vsel %vm2860, %v1698, %v2877
        %2879 = vst [vmem:[#allocation2 + $0x74] sm:$0xf] %v2878
        %2880 = vst.msk [vmem:[#allocation2 + $0x80] sm:$0xf] %vm1000, %v1704
        %v2881 = vld [vmem:[#allocation2 + $0x8c] sm:$0xf]
        %v2882 = vsel %vm2860, %v1707, %v2881
        %2883 = vst [vmem:[#allocation2 + $0x8c] sm:$0xf] %v2882
        %2884 = vst.msk [vmem:[#allocation2 + $0x98] sm:$0xf] %vm1000, %v1713
        %v2885 = vld [vmem:[#allocation2 + $0xa4] sm:$0xf]
        %v2886 = vsel %vm2860, %v1716, %v2885
        %2887 = vst [vmem:[#allocation2 + $0xa4] sm:$0xf] %v2886
        %2888 = vst.msk [vmem:[#allocation2 + $0xb0] sm:$0xf] %vm1000, %v1722
        %v2889 = vld [vmem:[#allocation2 + $0xbc] sm:$0xf]
        %v2890 = vsel %vm2860, %v1725, %v2889
        %2891 = vst [vmem:[#allocation2 + $0xbc] sm:$0xf] %v2890
        %2892 = vst.msk [vmem:[#allocation2 + $0xc8] sm:$0xf] %vm1000, %v1731
        %v2893 = vld [vmem:[#allocation2 + $0xd4] sm:$0xf]
        %v2894 = vsel %vm2860, %v1734, %v2893
        %2895 = vst [vmem:[#allocation2 + $0xd4] sm:$0xf] %v2894
        %2896 = vst.msk [vmem:[#allocation2 + $0xe0] sm:$0xf] %vm1000, %v1740
        %v2897 = vld [vmem:[#allocation2 + $0xec] sm:$0xf]
        %v2898 = vsel %vm2860, %v1743, %v2897
        %2899 = vst [vmem:[#allocation2 + $0xec] sm:$0xf] %v2898
        %2900 = vst.msk [vmem:[#allocation2 + $0xf8] sm:$0xf] %vm1000, %v1749
        %v2901 = vld [vmem:[#allocation2 + $0x104] sm:$0xf]
        %v2902 = vsel %vm2860, %v1752, %v2901
        %2903 = vst [vmem:[#allocation2 + $0x104] sm:$0xf] %v2902
        %2904 = vst.msk [vmem:[#allocation2 + $0x110] sm:$0xf] %vm1000, %v1758
        %v2905 = vld [vmem:[#allocation2 + $0x11c] sm:$0xf]
        %v2906 = vsel %vm2860, %v1761, %v2905
        %2907 = vst [vmem:[#allocation2 + $0x11c] sm:$0xf] %v2906
        %2908 = vst.msk [vmem:[#allocation2 + $0x128] sm:$0xf] %vm1000, %v1767
        %v2909 = vld [vmem:[#allocation2 + $0x134] sm:$0xf]
        %v2910 = vsel %vm2860, %v1770, %v2909
        %2911 = vst [vmem:[#allocation2 + $0x134] sm:$0xf] %v2910
        %2912 = vst.msk [vmem:[#allocation2 + $0x140] sm:$0xf] %vm1000, %v1776
        %v2913 = vld [vmem:[#allocation2 + $0x14c] sm:$0xf]
        %v2914 = vsel %vm2860, %v1779, %v2913
        %2915 = vst [vmem:[#allocation2 + $0x14c] sm:$0xf] %v2914
        %2916 = vst.msk [vmem:[#allocation2 + $0x158] sm:$0xf] %vm1000, %v2285
        %v2917 = vld [vmem:[#allocation2 + $0x164] sm:$0xf]
        %v2918 = vsel %vm2860, %v2288, %v2917
        %2919 = vst [vmem:[#allocation2 + $0x164] sm:$0xf] %v2918
        %v2920 = vld [vmem:[#allocation2] sm:$0xff]
        %v2921 = vld [vmem:[#allocation2 + $0x8] sm:$0xf]
        %v2922 = vld [vmem:[#allocation2 + $0xc] sm:$0xff]
        %v2923 = vld [vmem:[#allocation2 + $0x14] sm:$0xf]
        %v2924 = vld [vmem:[#allocation2 + $0x18] sm:$0xff]
        %v2925 = vld [vmem:[#allocation2 + $0x20] sm:$0xf]
        %v2926 = vld [vmem:[#allocation2 + $0x24] sm:$0xff]
        %v2927 = vld [vmem:[#allocation2 + $0x2c] sm:$0xf]
        %v2928 = vld [vmem:[#allocation2 + $0x30] sm:$0xff]
        %v2929 = vld [vmem:[#allocation2 + $0x38] sm:$0xf]
        %v2930 = vld [vmem:[#allocation2 + $0x3c] sm:$0xff]
        %v2931 = vld [vmem:[#allocation2 + $0x44] sm:$0xf]
        %v2932 = vld [vmem:[#allocation2 + $0x48] sm:$0xff]
        %v2933 = vld [vmem:[#allocation2 + $0x50] sm:$0xf]
        %v2934 = vld [vmem:[#allocation2 + $0x54] sm:$0xff]
        %v2935 = vld [vmem:[#allocation2 + $0x5c] sm:$0xf]
        %v2936 = vld [vmem:[#allocation2 + $0x60] sm:$0xff]
        %v2937 = vld [vmem:[#allocation2 + $0x68] sm:$0xf]
        %v2938 = vld [vmem:[#allocation2 + $0x6c] sm:$0xff]
        %v2939 = vld [vmem:[#allocation2 + $0x74] sm:$0xf]
        %v2940 = vld [vmem:[#allocation2 + $0x78] sm:$0xff]
        %v2941 = vld [vmem:[#allocation2 + $0x80] sm:$0xf]
        %v2942 = vld [vmem:[#allocation2 + $0x84] sm:$0xff]
        %v2943 = vld [vmem:[#allocation2 + $0x8c] sm:$0xf]
        %v2944 = vld [vmem:[#allocation2 + $0x90] sm:$0xff]
        %v2945 = vld [vmem:[#allocation2 + $0x98] sm:$0xf]
        %v2946 = vld [vmem:[#allocation2 + $0x9c] sm:$0xff]
        %v2947 = vld [vmem:[#allocation2 + $0xa4] sm:$0xf]
        %v2948 = vld [vmem:[#allocation2 + $0xa8] sm:$0xff]
        %v2949 = vld [vmem:[#allocation2 + $0xb0] sm:$0xf]
        %v2950 = vld [vmem:[#allocation2 + $0xb4] sm:$0xff]
        %v2951 = vld [vmem:[#allocation2 + $0xbc] sm:$0xf]
        %v2952 = vld [vmem:[#allocation2 + $0xc0] sm:$0xff]
        %v2953 = vld [vmem:[#allocation2 + $0xc8] sm:$0xf]
        %v2954 = vld [vmem:[#allocation2 + $0xcc] sm:$0xff]
        %v2955 = vld [vmem:[#allocation2 + $0xd4] sm:$0xf]
        %v2956 = vld [vmem:[#allocation2 + $0xd8] sm:$0xff]
        %v2957 = vld [vmem:[#allocation2 + $0xe0] sm:$0xf]
        %v2958 = vld [vmem:[#allocation2 + $0xe4] sm:$0xff]
        %v2959 = vld [vmem:[#allocation2 + $0xec] sm:$0xf]
        %v2960 = vld [vmem:[#allocation2 + $0xf0] sm:$0xff]
        %v2961 = vld [vmem:[#allocation2 + $0xf8] sm:$0xf]
        %v2962 = vld [vmem:[#allocation2 + $0xfc] sm:$0xff]
        %v2963 = vld [vmem:[#allocation2 + $0x104] sm:$0xf]
        %v2964 = vld [vmem:[#allocation2 + $0x108] sm:$0xff]
        %v2965 = vld [vmem:[#allocation2 + $0x110] sm:$0xf]
        %v2966 = vld [vmem:[#allocation2 + $0x114] sm:$0xff]
        %v2967 = vld [vmem:[#allocation2 + $0x11c] sm:$0xf]
        %v2968 = vld [vmem:[#allocation2 + $0x120] sm:$0xff]
        %v2969 = vld [vmem:[#allocation2 + $0x128] sm:$0xf]
        %v2970 = vld [vmem:[#allocation2 + $0x12c] sm:$0xff]
        %v2971 = vld [vmem:[#allocation2 + $0x134] sm:$0xf]
        %v2972 = vld [vmem:[#allocation2 + $0x138] sm:$0xff]
        %v2973 = vld [vmem:[#allocation2 + $0x140] sm:$0xf]
        %v2974 = vld [vmem:[#allocation2 + $0x144] sm:$0xff]
        %v2975 = vld [vmem:[#allocation2 + $0x14c] sm:$0xf]
        %v2976 = vld [vmem:[#allocation2 + $0x150] sm:$0xff]
        %v2977 = vld [vmem:[#allocation2 + $0x158] sm:$0xf]
        %v2978 = vld [vmem:[#allocation2 + $0x15c] sm:$0xff]
        %v2979 = vld [vmem:[#allocation2 + $0x164] sm:$0xf]
        %v2980 = vld [vmem:[#allocation2 + $0x168] sm:$0xff]
        %v2981 = vld [vmem:[#allocation2 + $0x170] sm:$0xf]
        %v2982 = vld [vmem:[#allocation2 + $0x174] sm:$0xff]
        %v2983 = vld [vmem:[#allocation2 + $0x17c] sm:$0xf]
        %v2984 = vld [vmem:[%s3] sm:$0xf]
        %v2985 = vld [vmem:[%s3 + $0x4] sm:$0xf]
        %v2986 = vld [vmem:[%s3 + $0x8] sm:$0xf]
        %v2987 = vld [vmem:[%s3 + $0xc] sm:$0xf]
        %v2988 = vld [vmem:[%s3 + $0x10] sm:$0xf]
        %v2989 = vld [vmem:[%s3 + $0x14] sm:$0xf]
        %v2990 = vld [vmem:[%s3 + $0x18] sm:$0xf]
        %v2991 = vld [vmem:[%s3 + $0x1c] sm:$0xf]
        %v2992 = vld [vmem:[%s3 + $0x20] sm:$0xf]
        %v2993 = vld [vmem:[%s3 + $0x24] sm:$0xf]
        %v2994 = vld [vmem:[%s3 + $0x28] sm:$0xf]
        %v2995 = vld [vmem:[%s3 + $0x2c] sm:$0xf]
        %v2996 = vld [vmem:[%s3 + $0x30] sm:$0xf]
        %v2997 = vld [vmem:[%s3 + $0x34] sm:$0xf]
        %v2998 = vld [vmem:[%s3 + $0x38] sm:$0xf]
        %v2999 = vld [vmem:[%s3 + $0x3c] sm:$0xf]
        %v3000 = vld [vmem:[%s3 + $0x40] sm:$0xf]
        %v3001 = vld [vmem:[%s3 + $0x44] sm:$0xf]
        %v3002 = vld [vmem:[%s3 + $0x48] sm:$0xf]
        %v3003 = vld [vmem:[%s3 + $0x4c] sm:$0xf]
        %v3004 = vld [vmem:[%s3 + $0x50] sm:$0xf]
        %v3005 = vld [vmem:[%s3 + $0x54] sm:$0xf]
        %v3006 = vld [vmem:[%s3 + $0x58] sm:$0xf]
        %v3007 = vld [vmem:[%s3 + $0x5c] sm:$0xf]
        %v3008 = vld [vmem:[%s3 + $0x60] sm:$0xf]
        %v3009 = vld [vmem:[%s3 + $0x64] sm:$0xf]
        %v3010 = vld [vmem:[%s3 + $0x68] sm:$0xf]
        %v3011 = vld [vmem:[%s3 + $0x6c] sm:$0xf]
        %v3012 = vld [vmem:[%s3 + $0x70] sm:$0xf]
        %v3013 = vld [vmem:[%s3 + $0x74] sm:$0xf]
        %v3014 = vld [vmem:[%s3 + $0x78] sm:$0xf]
        %v3015 = vld [vmem:[%s3 + $0x7c] sm:$0xf]
        %v3016 = vld [vmem:[%s3 + $0x80] sm:$0xf]
        %v3017 = vld [vmem:[%s3 + $0x84] sm:$0xf]
        %v3018 = vld [vmem:[%s3 + $0x88] sm:$0xf]
        %v3019 = vld [vmem:[%s3 + $0x8c] sm:$0xf]
        %v3020 = vld [vmem:[%s4] sm:$0x1]
        %v3022 = vlaneseq
        %v3023 = vshrl.u32 %v3022, 7
        %v3024 = vsub.s32 0, %v3023
        %v3025 = vrot.slane %v3020, %v3024
        %v3091 = vunpack.c.l.b16 %v2920
        %v3092 = vunpack.c.h.b16 %v2920
        %v3093 = vunpack.c.l.b16 %v2921
        %v3094 = vunpack.c.l.b16 %v2922
        %v3095 = vunpack.c.h.b16 %v2922
        %v3096 = vunpack.c.l.b16 %v2923
        %v3097 = vunpack.c.l.b16 %v2924
        %v3098 = vunpack.c.h.b16 %v2924
        %v3099 = vunpack.c.l.b16 %v2925
        %v3100 = vunpack.c.l.b16 %v2926
        %v3101 = vunpack.c.h.b16 %v2926
        %v3102 = vunpack.c.l.b16 %v2927
        %v3103 = vunpack.c.l.b16 %v2928
        %v3104 = vunpack.c.h.b16 %v2928
        %v3105 = vunpack.c.l.b16 %v2929
        %v3106 = vunpack.c.l.b16 %v2930
        %v3107 = vunpack.c.h.b16 %v2930
        %v3108 = vunpack.c.l.b16 %v2931
        %v3109 = vunpack.c.l.b16 %v2932
        %v3110 = vunpack.c.h.b16 %v2932
        %v3111 = vunpack.c.l.b16 %v2933
        %v3112 = vunpack.c.l.b16 %v2934
        %v3113 = vunpack.c.h.b16 %v2934
        %v3114 = vunpack.c.l.b16 %v2935
        %v3115 = vunpack.c.l.b16 %v2936
        %v3116 = vunpack.c.h.b16 %v2936
        %v3117 = vunpack.c.l.b16 %v2937
        %v3118 = vunpack.c.l.b16 %v2938
        %v3119 = vunpack.c.h.b16 %v2938
        %v3120 = vunpack.c.l.b16 %v2939
        %v3121 = vunpack.c.l.b16 %v2940
        %v3122 = vunpack.c.h.b16 %v2940
        %v3123 = vunpack.c.l.b16 %v2941
        %v3124 = vunpack.c.l.b16 %v2942
        %v3125 = vunpack.c.h.b16 %v2942
        %v3126 = vunpack.c.l.b16 %v2943
        %v3127 = vunpack.c.l.b16 %v2944
        %v3128 = vunpack.c.h.b16 %v2944
        %v3129 = vunpack.c.l.b16 %v2945
        %v3130 = vunpack.c.l.b16 %v2946
        %v3131 = vunpack.c.h.b16 %v2946
        %v3132 = vunpack.c.l.b16 %v2947
        %v3133 = vunpack.c.l.b16 %v2948
        %v3134 = vunpack.c.h.b16 %v2948
        %v3135 = vunpack.c.l.b16 %v2949
        %v3136 = vunpack.c.l.b16 %v2950
        %v3137 = vunpack.c.h.b16 %v2950
        %v3138 = vunpack.c.l.b16 %v2951
        %v3139 = vunpack.c.l.b16 %v2952
        %v3140 = vunpack.c.h.b16 %v2952
        %v3141 = vunpack.c.l.b16 %v2953
        %v3142 = vunpack.c.l.b16 %v2954
        %v3143 = vunpack.c.h.b16 %v2954
        %v3144 = vunpack.c.l.b16 %v2955
        %v3145 = vunpack.c.l.b16 %v2956
        %v3146 = vunpack.c.h.b16 %v2956
        %v3147 = vunpack.c.l.b16 %v2957
        %v3148 = vunpack.c.l.b16 %v2958
        %v3149 = vunpack.c.h.b16 %v2958
        %v3150 = vunpack.c.l.b16 %v2959
        %v3151 = vunpack.c.l.b16 %v2960
        %v3152 = vunpack.c.h.b16 %v2960
        %v3153 = vunpack.c.l.b16 %v2961
        %v3154 = vunpack.c.l.b16 %v2962
        %v3155 = vunpack.c.h.b16 %v2962
        %v3156 = vunpack.c.l.b16 %v2963
        %v3157 = vunpack.c.l.b16 %v2964
        %v3158 = vunpack.c.h.b16 %v2964
        %v3159 = vunpack.c.l.b16 %v2965
        %v3160 = vunpack.c.l.b16 %v2966
        %v3161 = vunpack.c.h.b16 %v2966
        %v3162 = vunpack.c.l.b16 %v2967
        %v3163 = vunpack.c.l.b16 %v2968
        %v3164 = vunpack.c.h.b16 %v2968
        %v3165 = vunpack.c.l.b16 %v2969
        %v3166 = vunpack.c.l.b16 %v2970
        %v3167 = vunpack.c.h.b16 %v2970
        %v3168 = vunpack.c.l.b16 %v2971
        %v3169 = vunpack.c.l.b16 %v2972
        %v3170 = vunpack.c.h.b16 %v2972
        %v3171 = vunpack.c.l.b16 %v2973
        %v3172 = vunpack.c.l.b16 %v2974
        %v3173 = vunpack.c.h.b16 %v2974
        %v3174 = vunpack.c.l.b16 %v2975
        %v3175 = vunpack.c.l.b16 %v2976
        %v3176 = vunpack.c.h.b16 %v2976
        %v3177 = vunpack.c.l.b16 %v2977
        %v3178 = vunpack.c.l.b16 %v2978
        %v3179 = vunpack.c.h.b16 %v2978
        %v3180 = vunpack.c.l.b16 %v2979
        %v3181 = vunpack.c.l.b16 %v2980
        %v3182 = vunpack.c.h.b16 %v2980
        %v3183 = vunpack.c.l.b16 %v2981
        %v3184 = vunpack.c.l.b16 %v2982
        %v3185 = vunpack.c.h.b16 %v2982
        %v3186 = vunpack.c.l.b16 %v2983
        %v3187 = vpack.c.b16 %v3094, %v3091
        %v3188 = vpack.c.b16 %v3095, %v3092
        %v3189 = vpack.c.b16 %v3096, %v3093
        %v3190 = vpack.c.b16 %v3100, %v3097
        %v3191 = vpack.c.b16 %v3101, %v3098
        %v3192 = vpack.c.b16 %v3102, %v3099
        %v3193 = vpack.c.b16 %v3106, %v3103
        %v3194 = vpack.c.b16 %v3107, %v3104
        %v3195 = vpack.c.b16 %v3108, %v3105
        %v3196 = vpack.c.b16 %v3112, %v3109
        %v3197 = vpack.c.b16 %v3113, %v3110
        %v3198 = vpack.c.b16 %v3114, %v3111
        %v3199 = vpack.c.b16 %v3118, %v3115
        %v3200 = vpack.c.b16 %v3119, %v3116
        %v3201 = vpack.c.b16 %v3120, %v3117
        %v3202 = vpack.c.b16 %v3124, %v3121
        %v3203 = vpack.c.b16 %v3125, %v3122
        %v3204 = vpack.c.b16 %v3126, %v3123
        %v3205 = vpack.c.b16 %v3130, %v3127
        %v3206 = vpack.c.b16 %v3131, %v3128
        %v3207 = vpack.c.b16 %v3132, %v3129
        %v3208 = vpack.c.b16 %v3136, %v3133
        %v3209 = vpack.c.b16 %v3137, %v3134
        %v3210 = vpack.c.b16 %v3138, %v3135
        %v3211 = vpack.c.b16 %v3142, %v3139
        %v3212 = vpack.c.b16 %v3143, %v3140
        %v3213 = vpack.c.b16 %v3144, %v3141
        %v3214 = vpack.c.b16 %v3148, %v3145
        %v3215 = vpack.c.b16 %v3149, %v3146
        %v3216 = vpack.c.b16 %v3150, %v3147
        %v3217 = vpack.c.b16 %v3154, %v3151
        %v3218 = vpack.c.b16 %v3155, %v3152
        %v3219 = vpack.c.b16 %v3156, %v3153
        %v3220 = vpack.c.b16 %v3160, %v3157
        %v3221 = vpack.c.b16 %v3161, %v3158
        %v3222 = vpack.c.b16 %v3162, %v3159
        %v3223 = vpack.c.b16 %v3166, %v3163
        %v3224 = vpack.c.b16 %v3167, %v3164
        %v3225 = vpack.c.b16 %v3168, %v3165
        %v3226 = vpack.c.b16 %v3172, %v3169
        %v3227 = vpack.c.b16 %v3173, %v3170
        %v3228 = vpack.c.b16 %v3174, %v3171
        %v3229 = vpack.c.b16 %v3178, %v3175
        %v3230 = vpack.c.b16 %v3179, %v3176
        %v3231 = vpack.c.b16 %v3180, %v3177
        %v3232 = vpack.c.b16 %v3184, %v3181
        %v3233 = vpack.c.b16 %v3185, %v3182
        %v3234 = vpack.c.b16 %v3186, %v3183
        %v3303 = vunpack.c.l.b16 %v2984
        %v3304 = vunpack.c.l.b16 %v2985
        %v3305 = vunpack.c.l.b16 %v2986
        %v3306 = vunpack.c.l.b16 %v2987
        %v3307 = vunpack.c.l.b16 %v2988
        %v3308 = vunpack.c.l.b16 %v2989
        %v3309 = vunpack.c.l.b16 %v2990
        %v3310 = vunpack.c.l.b16 %v2991
        %v3311 = vunpack.c.l.b16 %v2992
        %v3312 = vunpack.c.l.b16 %v2993
        %v3313 = vunpack.c.l.b16 %v2994
        %v3314 = vunpack.c.l.b16 %v2995
        %v3315 = vunpack.c.l.b16 %v2996
        %v3316 = vunpack.c.l.b16 %v2997
        %v3317 = vunpack.c.l.b16 %v2998
        %v3318 = vunpack.c.l.b16 %v2999
        %v3319 = vunpack.c.l.b16 %v3000
        %v3320 = vunpack.c.l.b16 %v3001
        %v3321 = vunpack.c.l.b16 %v3002
        %v3322 = vunpack.c.l.b16 %v3003
        %v3323 = vunpack.c.l.b16 %v3004
        %v3324 = vunpack.c.l.b16 %v3005
        %v3325 = vunpack.c.l.b16 %v3006
        %v3326 = vunpack.c.l.b16 %v3007
        %v3327 = vunpack.c.l.b16 %v3008
        %v3328 = vunpack.c.l.b16 %v3009
        %v3329 = vunpack.c.l.b16 %v3010
        %v3330 = vunpack.c.l.b16 %v3011
        %v3331 = vunpack.c.l.b16 %v3012
        %v3332 = vunpack.c.l.b16 %v3013
        %v3333 = vunpack.c.l.b16 %v3014
        %v3334 = vunpack.c.l.b16 %v3015
        %v3335 = vunpack.c.l.b16 %v3016
        %v3336 = vunpack.c.l.b16 %v3017
        %v3337 = vunpack.c.l.b16 %v3018
        %v3338 = vunpack.c.l.b16 %v3019
        %v3339 = vpack.c.b16 %v3304, %v3303
        %v3340 = vpack.c.b16 %v3306, %v3305
        %v3341 = vpack.c.b16 %v3308, %v3307
        %v3342 = vpack.c.b16 %v3310, %v3309
        %v3343 = vpack.c.b16 %v3312, %v3311
        %v3344 = vpack.c.b16 %v3314, %v3313
        %v3345 = vpack.c.b16 %v3316, %v3315
        %v3346 = vpack.c.b16 %v3318, %v3317
        %v3347 = vpack.c.b16 %v3320, %v3319
        %v3348 = vpack.c.b16 %v3322, %v3321
        %v3349 = vpack.c.b16 %v3324, %v3323
        %v3350 = vpack.c.b16 %v3326, %v3325
        %v3351 = vpack.c.b16 %v3328, %v3327
        %v3352 = vpack.c.b16 %v3330, %v3329
        %v3353 = vpack.c.b16 %v3332, %v3331
        %v3354 = vpack.c.b16 %v3334, %v3333
        %v3355 = vpack.c.b16 %v3336, %v3335
        %v3356 = vpack.c.b16 %v3338, %v3337
        %v3376 = vsel %vm502, %v3189, 0
        %v3379 = vsel %vm502, %v3192, 0
        %v3382 = vsel %vm502, %v3195, 0
        %v3385 = vsel %vm502, %v3198, 0
        %v3388 = vsel %vm502, %v3201, 0
        %v3391 = vsel %vm502, %v3204, 0
        %v3394 = vsel %vm502, %v3207, 0
        %v3397 = vsel %vm502, %v3210, 0
        %v3400 = vsel %vm502, %v3213, 0
        %v3403 = vsel %vm502, %v3216, 0
        %v3406 = vsel %vm502, %v3219, 0
        %v3409 = vsel %vm502, %v3222, 0
        %v3412 = vsel %vm502, %v3225, 0
        %v3415 = vsel %vm502, %v3228, 0
        %v3418 = vsel %vm502, %v3231, 0
        %v3421 = vsel %vm502, %v3234, 0
        %3423 = vmatprep.subr.bf16.mxu0 0
        %3424 = vmatpush1.bf16.msra.mxu0 %v3346
        %3425 = vmatprep.subr.bf16.mxu0 0
        %3426 = vmatpush1.bf16.msra.mxu0 %v3345
        %3427 = vmatprep.subr.bf16.mxu0 0
        %3428 = vmatpush1.bf16.msra.mxu0 %v3344
        %3429 = vmatprep.subr.bf16.mxu0 0
        %3430 = vmatpush1.bf16.msra.mxu0 %v3343
        %3431 = vmatprep.subr.bf16.mxu0 0
        %3432 = vmatpush1.bf16.msra.mxu0 %v3342
        %3433 = vmatprep.subr.bf16.mxu0 0
        %3434 = vmatpush1.bf16.msra.mxu0 %v3341
        %3435 = vmatprep.subr.bf16.mxu0 0
        %3436 = vmatpush1.bf16.msra.mxu0 %v3340
        %3437 = vmatprep.subr.bf16.mxu0 0
        %3438 = vmatpush1.bf16.msra.mxu0 %v3339
        %3439 = vmatprep.subr.bf16.mxu0 0
        %3440 = vmatpush2.bf16.msra.mxu0 %v3354
        %3441 = vmatprep.subr.bf16.mxu0 0
        %3442 = vmatpush2.bf16.msra.mxu0 %v3353
        %3443 = vmatprep.subr.bf16.mxu0 0
        %3444 = vmatpush2.bf16.msra.mxu0 %v3352
        %3445 = vmatprep.subr.bf16.mxu0 0
        %3446 = vmatpush2.bf16.msra.mxu0 %v3351
        %3447 = vmatprep.subr.bf16.mxu0 0
        %3448 = vmatpush2.bf16.msra.mxu0 %v3350
        %3449 = vmatprep.subr.bf16.mxu0 0
        %3450 = vmatpush2.bf16.msra.mxu0 %v3349
        %3451 = vmatprep.subr.bf16.mxu0 0
        %3452 = vmatpush2.bf16.msra.mxu0 %v3348
        %3453 = vmatprep.subr.bf16.mxu0 0
        %3454 = vmatpush2.bf16.msra.mxu0 %v3347
        %3455 = vmatprep.mubr.bf16.mxu0 %v3188
        %3456 = vmatmul.mubr.bf16.gmra.mxu0 %v3187
        %v3457 = vpop.f32.mrf.mxu0
        %v3458 = vadd.f32 %v3025, %v3457
        %v3459 = vpop.f32.mrf.mxu0
        %v3460 = vpop.f32.mrf.mxu0
        %v3461 = vadd.f32 %v3025, %v3460
        %v3462 = vpop.f32.mrf.mxu0
        %3463 = vmatprep.mubr.bf16.mxu0 %v3191
        %3464 = vmatmul.mubr.bf16.gmra.mxu0 %v3190
        %v3465 = vpop.f32.mrf.mxu0
        %v3466 = vadd.f32 %v3025, %v3465
        %v3467 = vpop.f32.mrf.mxu0
        %v3468 = vpop.f32.mrf.mxu0
        %v3469 = vadd.f32 %v3025, %v3468
        %v3470 = vpop.f32.mrf.mxu0
        %3471 = vmatprep.mubr.bf16.mxu0 %v3194
        %3472 = vmatmul.mubr.bf16.gmra.mxu0 %v3193
        %v3473 = vpop.f32.mrf.mxu0
        %v3474 = vadd.f32 %v3025, %v3473
        %v3475 = vpop.f32.mrf.mxu0
        %v3476 = vpop.f32.mrf.mxu0
        %v3477 = vadd.f32 %v3025, %v3476
        %v3478 = vpop.f32.mrf.mxu0
        %3479 = vmatprep.mubr.bf16.mxu0 %v3197
        %3480 = vmatmul.mubr.bf16.gmra.mxu0 %v3196
        %v3481 = vpop.f32.mrf.mxu0
        %v3482 = vadd.f32 %v3025, %v3481
        %v3483 = vpop.f32.mrf.mxu0
        %v3484 = vpop.f32.mrf.mxu0
        %v3485 = vadd.f32 %v3025, %v3484
        %v3486 = vpop.f32.mrf.mxu0
        %3487 = vmatprep.mubr.bf16.mxu0 %v3200
        %3488 = vmatmul.mubr.bf16.gmra.mxu0 %v3199
        %v3489 = vpop.f32.mrf.mxu0
        %v3490 = vadd.f32 %v3025, %v3489
        %v3491 = vpop.f32.mrf.mxu0
        %v3492 = vpop.f32.mrf.mxu0
        %v3493 = vadd.f32 %v3025, %v3492
        %v3494 = vpop.f32.mrf.mxu0
        %3495 = vmatprep.mubr.bf16.mxu0 %v3203
        %3496 = vmatmul.mubr.bf16.gmra.mxu0 %v3202
        %v3497 = vpop.f32.mrf.mxu0
        %v3498 = vadd.f32 %v3025, %v3497
        %v3499 = vpop.f32.mrf.mxu0
        %v3500 = vpop.f32.mrf.mxu0
        %v3501 = vadd.f32 %v3025, %v3500
        %v3502 = vpop.f32.mrf.mxu0
        %3503 = vmatprep.mubr.bf16.mxu0 %v3206
        %3504 = vmatmul.mubr.bf16.gmra.mxu0 %v3205
        %v3505 = vpop.f32.mrf.mxu0
        %v3506 = vadd.f32 %v3025, %v3505
        %v3507 = vpop.f32.mrf.mxu0
        %v3508 = vpop.f32.mrf.mxu0
        %v3509 = vadd.f32 %v3025, %v3508
        %v3510 = vpop.f32.mrf.mxu0
        %3511 = vmatprep.mubr.bf16.mxu0 %v3209
        %3512 = vmatmul.mubr.bf16.gmra.mxu0 %v3208
        %v3513 = vpop.f32.mrf.mxu0
        %v3514 = vadd.f32 %v3025, %v3513
        %v3515 = vpop.f32.mrf.mxu0
        %v3516 = vpop.f32.mrf.mxu0
        %v3517 = vadd.f32 %v3025, %v3516
        %v3518 = vpop.f32.mrf.mxu0
        %3519 = vmatprep.mubr.bf16.mxu0 %v3212
        %3520 = vmatmul.mubr.bf16.gmra.mxu0 %v3211
        %v3521 = vpop.f32.mrf.mxu0
        %v3522 = vadd.f32 %v3025, %v3521
        %v3523 = vpop.f32.mrf.mxu0
        %v3524 = vpop.f32.mrf.mxu0
        %v3525 = vadd.f32 %v3025, %v3524
        %v3526 = vpop.f32.mrf.mxu0
        %3527 = vmatprep.mubr.bf16.mxu0 %v3215
        %3528 = vmatmul.mubr.bf16.gmra.mxu0 %v3214
        %v3529 = vpop.f32.mrf.mxu0
        %v3530 = vadd.f32 %v3025, %v3529
        %v3531 = vpop.f32.mrf.mxu0
        %v3532 = vpop.f32.mrf.mxu0
        %v3533 = vadd.f32 %v3025, %v3532
        %v3534 = vpop.f32.mrf.mxu0
        %3535 = vmatprep.mubr.bf16.mxu0 %v3218
        %3536 = vmatmul.mubr.bf16.gmra.mxu0 %v3217
        %v3537 = vpop.f32.mrf.mxu0
        %v3538 = vadd.f32 %v3025, %v3537
        %v3539 = vpop.f32.mrf.mxu0
        %v3540 = vpop.f32.mrf.mxu0
        %v3541 = vadd.f32 %v3025, %v3540
        %v3542 = vpop.f32.mrf.mxu0
        %3543 = vmatprep.mubr.bf16.mxu0 %v3221
        %3544 = vmatmul.mubr.bf16.gmra.mxu0 %v3220
        %v3545 = vpop.f32.mrf.mxu0
        %v3546 = vadd.f32 %v3025, %v3545
        %v3547 = vpop.f32.mrf.mxu0
        %v3548 = vpop.f32.mrf.mxu0
        %v3549 = vadd.f32 %v3025, %v3548
        %v3550 = vpop.f32.mrf.mxu0
        %3551 = vmatprep.mubr.bf16.mxu0 %v3224
        %3552 = vmatmul.mubr.bf16.gmra.mxu0 %v3223
        %v3553 = vpop.f32.mrf.mxu0
        %v3554 = vadd.f32 %v3025, %v3553
        %v3555 = vpop.f32.mrf.mxu0
        %v3556 = vpop.f32.mrf.mxu0
        %v3557 = vadd.f32 %v3025, %v3556
        %v3558 = vpop.f32.mrf.mxu0
        %3559 = vmatprep.mubr.bf16.mxu0 %v3227
        %3560 = vmatmul.mubr.bf16.gmra.mxu0 %v3226
        %v3561 = vpop.f32.mrf.mxu0
        %v3562 = vadd.f32 %v3025, %v3561
        %v3563 = vpop.f32.mrf.mxu0
        %v3564 = vpop.f32.mrf.mxu0
        %v3565 = vadd.f32 %v3025, %v3564
        %v3566 = vpop.f32.mrf.mxu0
        %3567 = vmatprep.mubr.bf16.mxu0 %v3230
        %3568 = vmatmul.mubr.bf16.gmra.mxu0 %v3229
        %v3569 = vpop.f32.mrf.mxu0
        %v3570 = vadd.f32 %v3025, %v3569
        %v3571 = vpop.f32.mrf.mxu0
        %v3572 = vpop.f32.mrf.mxu0
        %v3573 = vadd.f32 %v3025, %v3572
        %v3574 = vpop.f32.mrf.mxu0
        %3575 = vmatprep.mubr.bf16.mxu0 %v3233
        %3576 = vmatmul.mubr.bf16.gmra.mxu0 %v3232
        %v3577 = vpop.f32.mrf.mxu0
        %v3578 = vadd.f32 %v3025, %v3577
        %v3579 = vpop.f32.mrf.mxu0
        %v3580 = vpop.f32.mrf.mxu0
        %v3581 = vadd.f32 %v3025, %v3580
        %v3582 = vpop.f32.mrf.mxu0
        %3583 = vdwg.mxu0
        %3584 = vmatprep.subr.bf16.mxu0 0
        %3585 = vmatpush1.bf16.msra.mxu0 0
        %3586 = vmatprep.subr.bf16.mxu0 0
        %3587 = vmatpush1.bf16.msra.mxu0 0
        %3588 = vmatprep.subr.bf16.mxu0 0
        %3589 = vmatpush1.bf16.msra.mxu0 0
        %3590 = vmatprep.subr.bf16.mxu0 0
        %3591 = vmatpush1.bf16.msra.mxu0 0
        %3592 = vmatprep.subr.bf16.mxu0 0
        %3593 = vmatpush1.bf16.msra.mxu0 0
        %3594 = vmatprep.subr.bf16.mxu0 0
        %3595 = vmatpush1.bf16.msra.mxu0 0
        %3596 = vmatprep.subr.bf16.mxu0 0
        %3597 = vmatpush1.bf16.msra.mxu0 %v3356
        %3598 = vmatprep.subr.bf16.mxu0 0
        %3599 = vmatpush1.bf16.msra.mxu0 %v3355
        %3600 = vmatprep.subr.bf16.mxu0 0
        %3601 = vmatpush2.bf16.msra.mxu0 0
        %3602 = vmatprep.subr.bf16.mxu0 0
        %3603 = vmatpush2.bf16.msra.mxu0 0
        %3604 = vmatprep.subr.bf16.mxu0 0
        %3605 = vmatpush2.bf16.msra.mxu0 0
        %3606 = vmatprep.subr.bf16.mxu0 0
        %3607 = vmatpush2.bf16.msra.mxu0 0
        %3608 = vmatprep.subr.bf16.mxu0 0
        %3609 = vmatpush2.bf16.msra.mxu0 0
        %3610 = vmatprep.subr.bf16.mxu0 0
        %3611 = vmatpush2.bf16.msra.mxu0 0
        %3612 = vmatprep.subr.bf16.mxu0 0
        %3613 = vmatpush2.bf16.msra.mxu0 0
        %3614 = vmatprep.subr.bf16.mxu0 0
        %3615 = vmatpush2.bf16.msra.mxu0 0
        %3616 = vmatprep.mubr.bf16.mxu0 0
        %3617 = vmatmul.mubr.bf16.gmra.mxu0 %v3376
        %v3618 = vpop.f32.mrf.mxu0
        %v3619 = vadd.f32 %v3458, %v3618
        %v3620 = vpop.f32.mrf.mxu0
        %v3621 = vpop.f32.mrf.mxu0
        %v3622 = vadd.f32 %v3461, %v3621
        %v3623 = vpop.f32.mrf.mxu0
        %3624 = vmatprep.mubr.bf16.mxu0 0
        %3625 = vmatmul.mubr.bf16.gmra.mxu0 %v3379
        %v3626 = vpop.f32.mrf.mxu0
        %v3627 = vadd.f32 %v3466, %v3626
        %v3628 = vpop.f32.mrf.mxu0
        %v3629 = vpop.f32.mrf.mxu0
        %v3630 = vadd.f32 %v3469, %v3629
        %v3631 = vpop.f32.mrf.mxu0
        %3632 = vmatprep.mubr.bf16.mxu0 0
        %3633 = vmatmul.mubr.bf16.gmra.mxu0 %v3382
        %v3634 = vpop.f32.mrf.mxu0
        %v3635 = vadd.f32 %v3474, %v3634
        %v3636 = vpop.f32.mrf.mxu0
        %v3637 = vpop.f32.mrf.mxu0
        %v3638 = vadd.f32 %v3477, %v3637
        %v3639 = vpop.f32.mrf.mxu0
        %3640 = vmatprep.mubr.bf16.mxu0 0
        %3641 = vmatmul.mubr.bf16.gmra.mxu0 %v3385
        %v3642 = vpop.f32.mrf.mxu0
        %v3643 = vadd.f32 %v3482, %v3642
        %v3644 = vpop.f32.mrf.mxu0
        %v3645 = vpop.f32.mrf.mxu0
        %v3646 = vadd.f32 %v3485, %v3645
        %v3647 = vpop.f32.mrf.mxu0
        %3648 = vmatprep.mubr.bf16.mxu0 0
        %3649 = vmatmul.mubr.bf16.gmra.mxu0 %v3388
        %v3650 = vpop.f32.mrf.mxu0
        %v3651 = vadd.f32 %v3490, %v3650
        %v3652 = vpop.f32.mrf.mxu0
        %v3653 = vpop.f32.mrf.mxu0
        %v3654 = vadd.f32 %v3493, %v3653
        %v3655 = vpop.f32.mrf.mxu0
        %3656 = vmatprep.mubr.bf16.mxu0 0
        %3657 = vmatmul.mubr.bf16.gmra.mxu0 %v3391
        %v3658 = vpop.f32.mrf.mxu0
        %v3659 = vadd.f32 %v3498, %v3658
        %v3660 = vpop.f32.mrf.mxu0
        %v3661 = vpop.f32.mrf.mxu0
        %v3662 = vadd.f32 %v3501, %v3661
        %v3663 = vpop.f32.mrf.mxu0
        %3664 = vmatprep.mubr.bf16.mxu0 0
        %3665 = vmatmul.mubr.bf16.gmra.mxu0 %v3394
        %v3666 = vpop.f32.mrf.mxu0
        %v3667 = vadd.f32 %v3506, %v3666
        %v3668 = vpop.f32.mrf.mxu0
        %v3669 = vpop.f32.mrf.mxu0
        %v3670 = vadd.f32 %v3509, %v3669
        %v3671 = vpop.f32.mrf.mxu0
        %3672 = vmatprep.mubr.bf16.mxu0 0
        %3673 = vmatmul.mubr.bf16.gmra.mxu0 %v3397
        %v3674 = vpop.f32.mrf.mxu0
        %v3675 = vadd.f32 %v3514, %v3674
        %v3676 = vpop.f32.mrf.mxu0
        %v3677 = vpop.f32.mrf.mxu0
        %v3678 = vadd.f32 %v3517, %v3677
        %v3679 = vpop.f32.mrf.mxu0
        %3680 = vmatprep.mubr.bf16.mxu0 0
        %3681 = vmatmul.mubr.bf16.gmra.mxu0 %v3400
        %v3682 = vpop.f32.mrf.mxu0
        %v3683 = vadd.f32 %v3522, %v3682
        %v3684 = vpop.f32.mrf.mxu0
        %v3685 = vpop.f32.mrf.mxu0
        %v3686 = vadd.f32 %v3525, %v3685
        %v3687 = vpop.f32.mrf.mxu0
        %3688 = vmatprep.mubr.bf16.mxu0 0
        %3689 = vmatmul.mubr.bf16.gmra.mxu0 %v3403
        %v3690 = vpop.f32.mrf.mxu0
        %v3691 = vadd.f32 %v3530, %v3690
        %v3692 = vpop.f32.mrf.mxu0
        %v3693 = vpop.f32.mrf.mxu0
        %v3694 = vadd.f32 %v3533, %v3693
        %v3695 = vpop.f32.mrf.mxu0
        %3696 = vmatprep.mubr.bf16.mxu0 0
        %3697 = vmatmul.mubr.bf16.gmra.mxu0 %v3406
        %v3698 = vpop.f32.mrf.mxu0
        %v3699 = vadd.f32 %v3538, %v3698
        %v3700 = vpop.f32.mrf.mxu0
        %v3701 = vpop.f32.mrf.mxu0
        %v3702 = vadd.f32 %v3541, %v3701
        %v3703 = vpop.f32.mrf.mxu0
        %3704 = vmatprep.mubr.bf16.mxu0 0
        %3705 = vmatmul.mubr.bf16.gmra.mxu0 %v3409
        %v3706 = vpop.f32.mrf.mxu0
        %v3707 = vadd.f32 %v3546, %v3706
        %v3708 = vpop.f32.mrf.mxu0
        %v3709 = vpop.f32.mrf.mxu0
        %v3710 = vadd.f32 %v3549, %v3709
        %v3711 = vpop.f32.mrf.mxu0
        %3712 = vmatprep.mubr.bf16.mxu0 0
        %3713 = vmatmul.mubr.bf16.gmra.mxu0 %v3412
        %v3714 = vpop.f32.mrf.mxu0
        %v3715 = vadd.f32 %v3554, %v3714
        %v3716 = vpop.f32.mrf.mxu0
        %v3717 = vpop.f32.mrf.mxu0
        %v3718 = vadd.f32 %v3557, %v3717
        %v3719 = vpop.f32.mrf.mxu0
        %3720 = vmatprep.mubr.bf16.mxu0 0
        %3721 = vmatmul.mubr.bf16.gmra.mxu0 %v3415
        %v3722 = vpop.f32.mrf.mxu0
        %v3723 = vadd.f32 %v3562, %v3722
        %v3724 = vpop.f32.mrf.mxu0
        %v3725 = vpop.f32.mrf.mxu0
        %v3726 = vadd.f32 %v3565, %v3725
        %v3727 = vpop.f32.mrf.mxu0
        %3728 = vmatprep.mubr.bf16.mxu0 0
        %3729 = vmatmul.mubr.bf16.gmra.mxu0 %v3418
        %v3730 = vpop.f32.mrf.mxu0
        %v3731 = vadd.f32 %v3570, %v3730
        %v3732 = vpop.f32.mrf.mxu0
        %v3733 = vpop.f32.mrf.mxu0
        %v3734 = vadd.f32 %v3573, %v3733
        %v3735 = vpop.f32.mrf.mxu0
        %3736 = vmatprep.mubr.bf16.mxu0 0
        %3737 = vmatmul.mubr.bf16.gmra.mxu0 %v3421
        %v3738 = vpop.f32.mrf.mxu0
        %v3739 = vadd.f32 %v3578, %v3738
        %v3740 = vpop.f32.mrf.mxu0
        %v3741 = vpop.f32.mrf.mxu0
        %v3742 = vadd.f32 %v3581, %v3741
        %v3743 = vpop.f32.mrf.mxu0
        %3744 = vdwg.mxu0
        %vm3745 = vcmask 523264
        %v3746 = vsel %vm3745, %v3619, 0.0
        %v3747 = vsel %vm3745, %v3622, 0.0
        %v3748 = vadd.f32 %v3746, %v3747
        %v3749 = vsel %vm3745, %v3627, 0.0
        %v3750 = vadd.f32 %v3748, %v3749
        %v3751 = vsel %vm3745, %v3630, 0.0
        %v3752 = vadd.f32 %v3750, %v3751
        %v3753 = vsel %vm3745, %v3635, 0.0
        %v3754 = vadd.f32 %v3752, %v3753
        %v3755 = vsel %vm3745, %v3638, 0.0
        %v3756 = vadd.f32 %v3754, %v3755
        %v3757 = vsel %vm3745, %v3643, 0.0
        %v3758 = vadd.f32 %v3756, %v3757
        %v3759 = vsel %vm3745, %v3646, 0.0
        %v3760 = vadd.f32 %v3758, %v3759
        %v3761 = vsel %vm3745, %v3651, 0.0
        %v3762 = vadd.f32 %v3760, %v3761
        %v3763 = vsel %vm3745, %v3654, 0.0
        %v3764 = vadd.f32 %v3762, %v3763
        %v3765 = vsel %vm3745, %v3659, 0.0
        %v3766 = vadd.f32 %v3764, %v3765
        %v3767 = vsel %vm3745, %v3662, 0.0
        %v3768 = vadd.f32 %v3766, %v3767
        %v3769 = vsel %vm3745, %v3667, 0.0
        %v3770 = vadd.f32 %v3768, %v3769
        %v3771 = vsel %vm3745, %v3670, 0.0
        %v3772 = vadd.f32 %v3770, %v3771
        %v3773 = vsel %vm3745, %v3675, 0.0
        %v3774 = vadd.f32 %v3772, %v3773
        %v3775 = vsel %vm3745, %v3678, 0.0
        %v3776 = vadd.f32 %v3774, %v3775
        %v3777 = vsel %vm3745, %v3683, 0.0
        %v3778 = vadd.f32 %v3776, %v3777
        %v3779 = vsel %vm3745, %v3686, 0.0
        %v3780 = vadd.f32 %v3778, %v3779
        %v3781 = vsel %vm3745, %v3691, 0.0
        %v3782 = vadd.f32 %v3780, %v3781
        %v3783 = vsel %vm3745, %v3694, 0.0
        %v3784 = vadd.f32 %v3782, %v3783
        %v3785 = vsel %vm3745, %v3699, 0.0
        %v3786 = vadd.f32 %v3784, %v3785
        %v3787 = vsel %vm3745, %v3702, 0.0
        %v3788 = vadd.f32 %v3786, %v3787
        %v3789 = vsel %vm3745, %v3707, 0.0
        %v3790 = vadd.f32 %v3788, %v3789
        %v3791 = vsel %vm3745, %v3710, 0.0
        %v3792 = vadd.f32 %v3790, %v3791
        %v3793 = vsel %vm3745, %v3715, 0.0
        %v3794 = vadd.f32 %v3792, %v3793
        %v3795 = vsel %vm3745, %v3718, 0.0
        %v3796 = vadd.f32 %v3794, %v3795
        %v3797 = vsel %vm3745, %v3723, 0.0
        %v3798 = vadd.f32 %v3796, %v3797
        %v3799 = vsel %vm3745, %v3726, 0.0
        %v3800 = vadd.f32 %v3798, %v3799
        %v3801 = vsel %vm3745, %v3731, 0.0
        %v3802 = vadd.f32 %v3800, %v3801
        %v3803 = vsel %vm3745, %v3734, 0.0
        %v3804 = vadd.f32 %v3802, %v3803
        %v3805 = vsel %vm3745, %v3739, 0.0
        %v3806 = vadd.f32 %v3804, %v3805
        %v3807 = vsel %vm3745, %v3742, 0.0
        %v3808 = vadd.f32 %v3806, %v3807
        %v3809 = vrot.slane %v3808, 4
        %v3810 = vadd.f32 %v3808, %v3809
        %v3811 = vrot.slane %v3810, 2
        %v3812 = vadd.f32 %v3810, %v3811
        %v3813 = vrot.slane %v3812, 1
        %v3814 = vadd.f32 %v3812, %v3813
        %v3815 = vmul.f32 %v3619, %v3619
        %v3816 = vmul.f32 %v3622, %v3622
        %v3817 = vmul.f32 %v3627, %v3627
        %v3818 = vmul.f32 %v3630, %v3630
        %v3819 = vmul.f32 %v3635, %v3635
        %v3820 = vmul.f32 %v3638, %v3638
        %v3821 = vmul.f32 %v3643, %v3643
        %v3822 = vmul.f32 %v3646, %v3646
        %v3823 = vmul.f32 %v3651, %v3651
        %v3824 = vmul.f32 %v3654, %v3654
        %v3825 = vmul.f32 %v3659, %v3659
        %v3826 = vmul.f32 %v3662, %v3662
        %v3827 = vmul.f32 %v3667, %v3667
        %v3828 = vmul.f32 %v3670, %v3670
        %v3829 = vmul.f32 %v3675, %v3675
        %v3830 = vmul.f32 %v3678, %v3678
        %v3831 = vmul.f32 %v3683, %v3683
        %v3832 = vmul.f32 %v3686, %v3686
        %v3833 = vmul.f32 %v3691, %v3691
        %v3834 = vmul.f32 %v3694, %v3694
        %v3835 = vmul.f32 %v3699, %v3699
        %v3836 = vmul.f32 %v3702, %v3702
        %v3837 = vmul.f32 %v3707, %v3707
        %v3838 = vmul.f32 %v3710, %v3710
        %v3839 = vmul.f32 %v3715, %v3715
        %v3840 = vmul.f32 %v3718, %v3718
        %v3841 = vmul.f32 %v3723, %v3723
        %v3842 = vmul.f32 %v3726, %v3726
        %v3843 = vmul.f32 %v3731, %v3731
        %v3844 = vmul.f32 %v3734, %v3734
        %v3845 = vmul.f32 %v3739, %v3739
        %v3846 = vmul.f32 %v3742, %v3742
        %v3847 = vsel %vm3745, %v3815, 0.0
        %v3848 = vsel %vm3745, %v3816, 0.0
        %v3849 = vadd.f32 %v3847, %v3848
        %v3850 = vsel %vm3745, %v3817, 0.0
        %v3851 = vadd.f32 %v3849, %v3850
        %v3852 = vsel %vm3745, %v3818, 0.0
        %v3853 = vadd.f32 %v3851, %v3852
        %v3854 = vsel %vm3745, %v3819, 0.0
        %v3855 = vadd.f32 %v3853, %v3854
        %v3856 = vsel %vm3745, %v3820, 0.0
        %v3857 = vadd.f32 %v3855, %v3856
        %v3858 = vsel %vm3745, %v3821, 0.0
        %v3859 = vadd.f32 %v3857, %v3858
        %v3860 = vsel %vm3745, %v3822, 0.0
        %v3861 = vadd.f32 %v3859, %v3860
        %v3862 = vsel %vm3745, %v3823, 0.0
        %v3863 = vadd.f32 %v3861, %v3862
        %v3864 = vsel %vm3745, %v3824, 0.0
        %v3865 = vadd.f32 %v3863, %v3864
        %v3866 = vsel %vm3745, %v3825, 0.0
        %v3867 = vadd.f32 %v3865, %v3866
        %v3868 = vsel %vm3745, %v3826, 0.0
        %v3869 = vadd.f32 %v3867, %v3868
        %v3870 = vsel %vm3745, %v3827, 0.0
        %v3871 = vadd.f32 %v3869, %v3870
        %v3872 = vsel %vm3745, %v3828, 0.0
        %v3873 = vadd.f32 %v3871, %v3872
        %v3874 = vsel %vm3745, %v3829, 0.0
        %v3875 = vadd.f32 %v3873, %v3874
        %v3876 = vsel %vm3745, %v3830, 0.0
        %v3877 = vadd.f32 %v3875, %v3876
        %v3878 = vsel %vm3745, %v3831, 0.0
        %v3879 = vadd.f32 %v3877, %v3878
        %v3880 = vsel %vm3745, %v3832, 0.0
        %v3881 = vadd.f32 %v3879, %v3880
        %v3882 = vsel %vm3745, %v3833, 0.0
        %v3883 = vadd.f32 %v3881, %v3882
        %v3884 = vsel %vm3745, %v3834, 0.0
        %v3885 = vadd.f32 %v3883, %v3884
        %v3886 = vsel %vm3745, %v3835, 0.0
        %v3887 = vadd.f32 %v3885, %v3886
        %v3888 = vsel %vm3745, %v3836, 0.0
        %v3889 = vadd.f32 %v3887, %v3888
        %v3890 = vsel %vm3745, %v3837, 0.0
        %v3891 = vadd.f32 %v3889, %v3890
        %v3892 = vsel %vm3745, %v3838, 0.0
        %v3893 = vadd.f32 %v3891, %v3892
        %v3894 = vsel %vm3745, %v3839, 0.0
        %v3895 = vadd.f32 %v3893, %v3894
        %v3896 = vsel %vm3745, %v3840, 0.0
        %v3897 = vadd.f32 %v3895, %v3896
        %v3898 = vsel %vm3745, %v3841, 0.0
        %v3899 = vadd.f32 %v3897, %v3898
        %v3900 = vsel %vm3745, %v3842, 0.0
        %v3901 = vadd.f32 %v3899, %v3900
        %v3902 = vsel %vm3745, %v3843, 0.0
        %v3903 = vadd.f32 %v3901, %v3902
        %v3904 = vsel %vm3745, %v3844, 0.0
        %v3905 = vadd.f32 %v3903, %v3904
        %v3906 = vsel %vm3745, %v3845, 0.0
        %v3907 = vadd.f32 %v3905, %v3906
        %v3908 = vsel %vm3745, %v3846, 0.0
        %v3909 = vadd.f32 %v3907, %v3908
        %v3910 = vrot.slane %v3909, 4
        %v3911 = vadd.f32 %v3909, %v3910
        %v3912 = vrot.slane %v3911, 2
        %v3913 = vadd.f32 %v3911, %v3912
        %v3914 = vrot.slane %v3913, 1
        %v3915 = vadd.f32 %v3913, %v3914
        %v3916 = vld [vmem:[#allocation7] sm:$0xff]
        %v3917 = vld [vmem:[#allocation7 + $0x8] sm:$0xff]
        %v3918 = vld [vmem:[#allocation7 + $0x10] sm:$0xff]
        %v3919 = vld [vmem:[#allocation7 + $0x18] sm:$0xff]
        %v3920 = vld [vmem:[#allocation7 + $0x20] sm:$0xff]
        %v3921 = vld [vmem:[#allocation7 + $0x28] sm:$0xff]
        %v3922 = vld [vmem:[#allocation7 + $0x30] sm:$0xff]
        %v3923 = vld [vmem:[#allocation7 + $0x38] sm:$0xff]
        %v3924 = vmul.f32 %v3814, %v3916
        %v3925 = vmul.f32 %v3814, %v3917
        %v3926 = vmul.f32 %v3814, %v3918
        %v3927 = vmul.f32 %v3814, %v3919
        %v3928 = vmul.f32 %v3814, %v3920
        %v3929 = vmul.f32 %v3814, %v3921
        %v3930 = vmul.f32 %v3814, %v3922
        %v3931 = vmul.f32 %v3814, %v3923
        %v3932 = vsel %vm3745, %v3924, 0.0
        %3933 = vadd.xlane.f32.xlu0 %v3932
        %v3934 = vpop.xlane.xlu0 %3933
        %v3935 = vsel %vm3745, %v3925, 0.0
        %3936 = vadd.xlane.f32.xlu0 %v3935
        %v3937 = vpop.xlane.xlu0 %3936
        %v3938 = vsel %vm3745, %v3926, 0.0
        %3939 = vadd.xlane.f32.xlu0 %v3938
        %v3940 = vpop.xlane.xlu0 %3939
        %v3941 = vsel %vm3745, %v3927, 0.0
        %3942 = vadd.xlane.f32.xlu0 %v3941
        %v3943 = vpop.xlane.xlu0 %3942
        %v3944 = vsel %vm3745, %v3928, 0.0
        %3945 = vadd.xlane.f32.xlu0 %v3944
        %v3946 = vpop.xlane.xlu0 %3945
        %v3947 = vsel %vm3745, %v3929, 0.0
        %3948 = vadd.xlane.f32.xlu0 %v3947
        %v3949 = vpop.xlane.xlu0 %3948
        %v3950 = vsel %vm3745, %v3930, 0.0
        %3951 = vadd.xlane.f32.xlu0 %v3950
        %v3952 = vpop.xlane.xlu0 %3951
        %v3953 = vsel %vm3745, %v3931, 0.0
        %3954 = vadd.xlane.f32.xlu0 %v3953
        %v3955 = vpop.xlane.xlu0 %3954
        %v3956 = vmul.f32 %v3915, %v3916
        %v3957 = vmul.f32 %v3915, %v3917
        %v3958 = vmul.f32 %v3915, %v3918
        %v3959 = vmul.f32 %v3915, %v3919
        %v3960 = vmul.f32 %v3915, %v3920
        %v3961 = vmul.f32 %v3915, %v3921
        %v3962 = vmul.f32 %v3915, %v3922
        %v3963 = vmul.f32 %v3915, %v3923
        %v3964 = vsel %vm3745, %v3956, 0.0
        %3965 = vadd.xlane.f32.xlu0 %v3964
        %v3966 = vpop.xlane.xlu0 %3965
        %v3967 = vsel %vm3745, %v3957, 0.0
        %3968 = vadd.xlane.f32.xlu0 %v3967
        %v3969 = vpop.xlane.xlu0 %3968
        %v3970 = vsel %vm3745, %v3958, 0.0
        %3971 = vadd.xlane.f32.xlu0 %v3970
        %v3972 = vpop.xlane.xlu0 %3971
        %v3973 = vsel %vm3745, %v3959, 0.0
        %3974 = vadd.xlane.f32.xlu0 %v3973
        %v3975 = vpop.xlane.xlu0 %3974
        %v3976 = vsel %vm3745, %v3960, 0.0
        %3977 = vadd.xlane.f32.xlu0 %v3976
        %v3978 = vpop.xlane.xlu0 %3977
        %v3979 = vsel %vm3745, %v3961, 0.0
        %3980 = vadd.xlane.f32.xlu0 %v3979
        %v3981 = vpop.xlane.xlu0 %3980
        %v3982 = vsel %vm3745, %v3962, 0.0
        %3983 = vadd.xlane.f32.xlu0 %v3982
        %v3984 = vpop.xlane.xlu0 %3983
        %v3985 = vsel %vm3745, %v3963, 0.0
        %3986 = vadd.xlane.f32.xlu0 %v3985
        %v3987 = vpop.xlane.xlu0 %3986
        %v3988 = vrcp.pop 512.0
        %v3989 = vmul.f32 %v3934, %v3988
        %v3990 = vmul.f32 %v3937, %v3988
        %v3991 = vmul.f32 %v3940, %v3988
        %v3992 = vmul.f32 %v3943, %v3988
        %v3993 = vmul.f32 %v3946, %v3988
        %v3994 = vmul.f32 %v3949, %v3988
        %v3995 = vmul.f32 %v3952, %v3988
        %v3996 = vmul.f32 %v3955, %v3988
        %v3997 = vmul.f32 %v3966, %v3988
        %v3998 = vmul.f32 %v3969, %v3988
        %v3999 = vmul.f32 %v3972, %v3988
        %v4000 = vmul.f32 %v3975, %v3988
        %v4001 = vmul.f32 %v3978, %v3988
        %v4002 = vmul.f32 %v3981, %v3988
        %v4003 = vmul.f32 %v3984, %v3988
        %v4004 = vmul.f32 %v3987, %v3988
        %v4005 = vmul.f32 %v3989, %v3989
        %v4006 = vmul.f32 %v3990, %v3990
        %v4007 = vmul.f32 %v3991, %v3991
        %v4008 = vmul.f32 %v3992, %v3992
        %v4009 = vmul.f32 %v3993, %v3993
        %v4010 = vmul.f32 %v3994, %v3994
        %v4011 = vmul.f32 %v3995, %v3995
        %v4012 = vmul.f32 %v3996, %v3996
        %v4013 = vsub.f32 %v3997, %v4005
        %v4014 = vsub.f32 %v3998, %v4006
        %v4015 = vsub.f32 %v3999, %v4007
        %v4016 = vsub.f32 %v4000, %v4008
        %v4017 = vsub.f32 %v4001, %v4009
        %v4018 = vsub.f32 %v4002, %v4010
        %v4019 = vsub.f32 %v4003, %v4011
        %v4020 = vsub.f32 %v4004, %v4012
        %v4021 = vmax.f32 %v4013, 0.0
        %v4022 = vmax.f32 %v4014, 0.0
        %v4023 = vmax.f32 %v4015, 0.0
        %v4024 = vmax.f32 %v4016, 0.0
        %v4025 = vmax.f32 %v4017, 0.0
        %v4026 = vmax.f32 %v4018, 0.0
        %v4027 = vmax.f32 %v4019, 0.0
        %v4028 = vmax.f32 %v4020, 0.0
        %v4029 = vadd.f32 %v4021, 1e-06
        %v4030 = vadd.f32 %v4022, 1e-06
        %v4031 = vadd.f32 %v4023, 1e-06
        %v4032 = vadd.f32 %v4024, 1e-06
        %v4033 = vadd.f32 %v4025, 1e-06
        %v4034 = vadd.f32 %v4026, 1e-06
        %v4035 = vadd.f32 %v4027, 1e-06
        %v4036 = vadd.f32 %v4028, 1e-06
        %v4037 = vrsqrt.pop %v4029
        %v4038 = vrsqrt.pop %v4030
        %v4039 = vrsqrt.pop %v4031
        %v4040 = vrsqrt.pop %v4032
        %v4041 = vrsqrt.pop %v4033
        %v4042 = vrsqrt.pop %v4034
        %v4043 = vrsqrt.pop %v4035
        %v4044 = vrsqrt.pop %v4036
        %v4045 = vld [vmem:[%s5] sm:$0x1]
        %v4047 = vlaneseq
        %v4048 = vshrl.u32 %v4047, 7
        %v4049 = vsub.s32 0, %v4048
        %v4050 = vrot.slane %v4045, %v4049
        %4052 = vbcast.lane.b32.xlu0 %v4050, 256
        %v4053 = vpop.permute.xlu0 %4052
        %s4055 = sor.u32 256, 8
        %4056 = vbcast.lane.b32.xlu0 %v4050, %s4055
        %v4057 = vpop.permute.xlu0 %4056
        %s4059 = sor.u32 256, 16
        %4060 = vbcast.lane.b32.xlu0 %v4050, %s4059
        %v4061 = vpop.permute.xlu0 %4060
        %s4063 = sor.u32 256, 24
        %4064 = vbcast.lane.b32.xlu0 %v4050, %s4063
        %v4065 = vpop.permute.xlu0 %4064
        %s4067 = sor.u32 256, 32
        %4068 = vbcast.lane.b32.xlu0 %v4050, %s4067
        %v4069 = vpop.permute.xlu0 %4068
        %s4071 = sor.u32 256, 40
        %4072 = vbcast.lane.b32.xlu0 %v4050, %s4071
        %v4073 = vpop.permute.xlu0 %4072
        %s4075 = sor.u32 256, 48
        %4076 = vbcast.lane.b32.xlu0 %v4050, %s4075
        %v4077 = vpop.permute.xlu0 %4076
        %s4079 = sor.u32 256, 56
        %4080 = vbcast.lane.b32.xlu0 %v4050, %s4079
        %v4081 = vpop.permute.xlu0 %4080
        %v4090 = vmul.f32 %v4037, %v4053
        %v4091 = vmul.f32 %v4038, %v4057
        %v4092 = vmul.f32 %v4039, %v4061
        %v4093 = vmul.f32 %v4040, %v4065
        %v4094 = vmul.f32 %v4041, %v4069
        %v4095 = vmul.f32 %v4042, %v4073
        %v4096 = vmul.f32 %v4043, %v4077
        %v4097 = vmul.f32 %v4044, %v4081
        %v4098 = vld [vmem:[%s6] sm:$0x1]
        %v4099 = vmul.f32 %v3989, %v4090
        %v4100 = vmul.f32 %v3990, %v4091
        %v4101 = vmul.f32 %v3991, %v4092
        %v4102 = vmul.f32 %v3992, %v4093
        %v4103 = vmul.f32 %v3993, %v4094
        %v4104 = vmul.f32 %v3994, %v4095
        %v4105 = vmul.f32 %v3995, %v4096
        %v4106 = vmul.f32 %v3996, %v4097
        %v4115 = vcombine.high %v4099, %v4099
        %v4117 = vunpack.c.l.s4 1966171168
        %v4118 = vunpack.c.0.s8 %v4117
        %v4119 = vlaneseq
        %v4120 = vshrl.u32 %v4119, 7
        %v4121 = vsub.s32 %v4118, %v4120
        %v4122 = vrot.slane %v4099, %v4121
        %v4124 = vunpack.c.l.s4 1966171168
        %v4125 = vunpack.c.0.s8 %v4124
        %v4126 = vlaneseq
        %v4127 = vshrl.u32 %v4126, 7
        %v4128 = vsub.s32 %v4125, %v4127
        %v4129 = vrot.slane %v4115, %v4128
        %v4130 = vcombine.high %v4122, %v4122
        %v4131 = vcombine.high %v4129, %v4129
        %v4133 = vunpack.c.l.s4 1966171168
        %v4134 = vunpack.c.0.s8 %v4133
        %v4135 = vlaneseq
        %v4136 = vshrl.u32 %v4135, 7
        %v4137 = vsub.s32 %v4134, %v4136
        %v4138 = vrot.slane %v4122, %v4137
        %v4140 = vunpack.c.l.s4 1966171168
        %v4141 = vunpack.c.0.s8 %v4140
        %v4142 = vlaneseq
        %v4143 = vshrl.u32 %v4142, 7
        %v4144 = vsub.s32 %v4141, %v4143
        %v4145 = vrot.slane %v4129, %v4144
        %v4147 = vunpack.c.l.s4 1966171168
        %v4148 = vunpack.c.0.s8 %v4147
        %v4149 = vlaneseq
        %v4150 = vshrl.u32 %v4149, 7
        %v4151 = vsub.s32 %v4148, %v4150
        %v4152 = vrot.slane %v4130, %v4151
        %v4154 = vunpack.c.l.s4 1966171168
        %v4155 = vunpack.c.0.s8 %v4154
        %v4156 = vlaneseq
        %v4157 = vshrl.u32 %v4156, 7
        %v4158 = vsub.s32 %v4155, %v4157
        %v4159 = vrot.slane %v4131, %v4158
        %v4160 = vcombine.high %v4138, %v4138
        %v4161 = vcombine.high %v4145, %v4145
        %v4162 = vcombine.high %v4152, %v4152
        %v4163 = vcombine.high %v4159, %v4159
        %v4164 = vcombine.high %v4100, %v4100
        %v4166 = vunpack.c.l.s4 1966171168
        %v4167 = vunpack.c.0.s8 %v4166
        %v4168 = vlaneseq
        %v4169 = vshrl.u32 %v4168, 7
        %v4170 = vsub.s32 %v4167, %v4169
        %v4171 = vrot.slane %v4100, %v4170
        %v4173 = vunpack.c.l.s4 1966171168
        %v4174 = vunpack.c.0.s8 %v4173
        %v4175 = vlaneseq
        %v4176 = vshrl.u32 %v4175, 7
        %v4177 = vsub.s32 %v4174, %v4176
        %v4178 = vrot.slane %v4164, %v4177
        %v4179 = vcombine.high %v4171, %v4171
        %v4180 = vcombine.high %v4178, %v4178
        %v4182 = vunpack.c.l.s4 1966171168
        %v4183 = vunpack.c.0.s8 %v4182
        %v4184 = vlaneseq
        %v4185 = vshrl.u32 %v4184, 7
        %v4186 = vsub.s32 %v4183, %v4185
        %v4187 = vrot.slane %v4171, %v4186
        %v4189 = vunpack.c.l.s4 1966171168
        %v4190 = vunpack.c.0.s8 %v4189
        %v4191 = vlaneseq
        %v4192 = vshrl.u32 %v4191, 7
        %v4193 = vsub.s32 %v4190, %v4192
        %v4194 = vrot.slane %v4178, %v4193
        %v4196 = vunpack.c.l.s4 1966171168
        %v4197 = vunpack.c.0.s8 %v4196
        %v4198 = vlaneseq
        %v4199 = vshrl.u32 %v4198, 7
        %v4200 = vsub.s32 %v4197, %v4199
        %v4201 = vrot.slane %v4179, %v4200
        %v4203 = vunpack.c.l.s4 1966171168
        %v4204 = vunpack.c.0.s8 %v4203
        %v4205 = vlaneseq
        %v4206 = vshrl.u32 %v4205, 7
        %v4207 = vsub.s32 %v4204, %v4206
        %v4208 = vrot.slane %v4180, %v4207
        %v4209 = vcombine.high %v4187, %v4187
        %v4210 = vcombine.high %v4194, %v4194
        %v4211 = vcombine.high %v4201, %v4201
        %v4212 = vcombine.high %v4208, %v4208
        %v4213 = vcombine.high %v4101, %v4101
        %v4215 = vunpack.c.l.s4 1966171168
        %v4216 = vunpack.c.0.s8 %v4215
        %v4217 = vlaneseq
        %v4218 = vshrl.u32 %v4217, 7
        %v4219 = vsub.s32 %v4216, %v4218
        %v4220 = vrot.slane %v4101, %v4219
        %v4222 = vunpack.c.l.s4 1966171168
        %v4223 = vunpack.c.0.s8 %v4222
        %v4224 = vlaneseq
        %v4225 = vshrl.u32 %v4224, 7
        %v4226 = vsub.s32 %v4223, %v4225
        %v4227 = vrot.slane %v4213, %v4226
        %v4228 = vcombine.high %v4220, %v4220
        %v4229 = vcombine.high %v4227, %v4227
        %v4231 = vunpack.c.l.s4 1966171168
        %v4232 = vunpack.c.0.s8 %v4231
        %v4233 = vlaneseq
        %v4234 = vshrl.u32 %v4233, 7
        %v4235 = vsub.s32 %v4232, %v4234
        %v4236 = vrot.slane %v4220, %v4235
        %v4238 = vunpack.c.l.s4 1966171168
        %v4239 = vunpack.c.0.s8 %v4238
        %v4240 = vlaneseq
        %v4241 = vshrl.u32 %v4240, 7
        %v4242 = vsub.s32 %v4239, %v4241
        %v4243 = vrot.slane %v4227, %v4242
        %v4245 = vunpack.c.l.s4 1966171168
        %v4246 = vunpack.c.0.s8 %v4245
        %v4247 = vlaneseq
        %v4248 = vshrl.u32 %v4247, 7
        %v4249 = vsub.s32 %v4246, %v4248
        %v4250 = vrot.slane %v4228, %v4249
        %v4252 = vunpack.c.l.s4 1966171168
        %v4253 = vunpack.c.0.s8 %v4252
        %v4254 = vlaneseq
        %v4255 = vshrl.u32 %v4254, 7
        %v4256 = vsub.s32 %v4253, %v4255
        %v4257 = vrot.slane %v4229, %v4256
        %v4258 = vcombine.high %v4236, %v4236
        %v4259 = vcombine.high %v4243, %v4243
        %v4260 = vcombine.high %v4250, %v4250
        %v4261 = vcombine.high %v4257, %v4257
        %v4262 = vcombine.high %v4102, %v4102
        %v4264 = vunpack.c.l.s4 1966171168
        %v4265 = vunpack.c.0.s8 %v4264
        %v4266 = vlaneseq
        %v4267 = vshrl.u32 %v4266, 7
        %v4268 = vsub.s32 %v4265, %v4267
        %v4269 = vrot.slane %v4102, %v4268
        %v4271 = vunpack.c.l.s4 1966171168
        %v4272 = vunpack.c.0.s8 %v4271
        %v4273 = vlaneseq
        %v4274 = vshrl.u32 %v4273, 7
        %v4275 = vsub.s32 %v4272, %v4274
        %v4276 = vrot.slane %v4262, %v4275
        %v4277 = vcombine.high %v4269, %v4269
        %v4278 = vcombine.high %v4276, %v4276
        %v4280 = vunpack.c.l.s4 1966171168
        %v4281 = vunpack.c.0.s8 %v4280
        %v4282 = vlaneseq
        %v4283 = vshrl.u32 %v4282, 7
        %v4284 = vsub.s32 %v4281, %v4283
        %v4285 = vrot.slane %v4269, %v4284
        %v4287 = vunpack.c.l.s4 1966171168
        %v4288 = vunpack.c.0.s8 %v4287
        %v4289 = vlaneseq
        %v4290 = vshrl.u32 %v4289, 7
        %v4291 = vsub.s32 %v4288, %v4290
        %v4292 = vrot.slane %v4276, %v4291
        %v4294 = vunpack.c.l.s4 1966171168
        %v4295 = vunpack.c.0.s8 %v4294
        %v4296 = vlaneseq
        %v4297 = vshrl.u32 %v4296, 7
        %v4298 = vsub.s32 %v4295, %v4297
        %v4299 = vrot.slane %v4277, %v4298
        %v4301 = vunpack.c.l.s4 1966171168
        %v4302 = vunpack.c.0.s8 %v4301
        %v4303 = vlaneseq
        %v4304 = vshrl.u32 %v4303, 7
        %v4305 = vsub.s32 %v4302, %v4304
        %v4306 = vrot.slane %v4278, %v4305
        %v4307 = vcombine.high %v4285, %v4285
        %v4308 = vcombine.high %v4292, %v4292
        %v4309 = vcombine.high %v4299, %v4299
        %v4310 = vcombine.high %v4306, %v4306
        %v4311 = vcombine.high %v4103, %v4103
        %v4313 = vunpack.c.l.s4 1966171168
        %v4314 = vunpack.c.0.s8 %v4313
        %v4315 = vlaneseq
        %v4316 = vshrl.u32 %v4315, 7
        %v4317 = vsub.s32 %v4314, %v4316
        %v4318 = vrot.slane %v4103, %v4317
        %v4320 = vunpack.c.l.s4 1966171168
        %v4321 = vunpack.c.0.s8 %v4320
        %v4322 = vlaneseq
        %v4323 = vshrl.u32 %v4322, 7
        %v4324 = vsub.s32 %v4321, %v4323
        %v4325 = vrot.slane %v4311, %v4324
        %v4326 = vcombine.high %v4318, %v4318
        %v4327 = vcombine.high %v4325, %v4325
        %v4329 = vunpack.c.l.s4 1966171168
        %v4330 = vunpack.c.0.s8 %v4329
        %v4331 = vlaneseq
        %v4332 = vshrl.u32 %v4331, 7
        %v4333 = vsub.s32 %v4330, %v4332
        %v4334 = vrot.slane %v4318, %v4333
        %v4336 = vunpack.c.l.s4 1966171168
        %v4337 = vunpack.c.0.s8 %v4336
        %v4338 = vlaneseq
        %v4339 = vshrl.u32 %v4338, 7
        %v4340 = vsub.s32 %v4337, %v4339
        %v4341 = vrot.slane %v4325, %v4340
        %v4343 = vunpack.c.l.s4 1966171168
        %v4344 = vunpack.c.0.s8 %v4343
        %v4345 = vlaneseq
        %v4346 = vshrl.u32 %v4345, 7
        %v4347 = vsub.s32 %v4344, %v4346
        %v4348 = vrot.slane %v4326, %v4347
        %v4350 = vunpack.c.l.s4 1966171168
        %v4351 = vunpack.c.0.s8 %v4350
        %v4352 = vlaneseq
        %v4353 = vshrl.u32 %v4352, 7
        %v4354 = vsub.s32 %v4351, %v4353
        %v4355 = vrot.slane %v4327, %v4354
        %v4356 = vcombine.high %v4334, %v4334
        %v4357 = vcombine.high %v4341, %v4341
        %v4358 = vcombine.high %v4348, %v4348
        %v4359 = vcombine.high %v4355, %v4355
        %v4360 = vcombine.high %v4104, %v4104
        %v4362 = vunpack.c.l.s4 1966171168
        %v4363 = vunpack.c.0.s8 %v4362
        %v4364 = vlaneseq
        %v4365 = vshrl.u32 %v4364, 7
        %v4366 = vsub.s32 %v4363, %v4365
        %v4367 = vrot.slane %v4104, %v4366
        %v4369 = vunpack.c.l.s4 1966171168
        %v4370 = vunpack.c.0.s8 %v4369
        %v4371 = vlaneseq
        %v4372 = vshrl.u32 %v4371, 7
        %v4373 = vsub.s32 %v4370, %v4372
        %v4374 = vrot.slane %v4360, %v4373
        %v4375 = vcombine.high %v4367, %v4367
        %v4376 = vcombine.high %v4374, %v4374
        %v4378 = vunpack.c.l.s4 1966171168
        %v4379 = vunpack.c.0.s8 %v4378
        %v4380 = vlaneseq
        %v4381 = vshrl.u32 %v4380, 7
        %v4382 = vsub.s32 %v4379, %v4381
        %v4383 = vrot.slane %v4367, %v4382
        %v4385 = vunpack.c.l.s4 1966171168
        %v4386 = vunpack.c.0.s8 %v4385
        %v4387 = vlaneseq
        %v4388 = vshrl.u32 %v4387, 7
        %v4389 = vsub.s32 %v4386, %v4388
        %v4390 = vrot.slane %v4374, %v4389
        %v4392 = vunpack.c.l.s4 1966171168
        %v4393 = vunpack.c.0.s8 %v4392
        %v4394 = vlaneseq
        %v4395 = vshrl.u32 %v4394, 7
        %v4396 = vsub.s32 %v4393, %v4395
        %v4397 = vrot.slane %v4375, %v4396
        %v4399 = vunpack.c.l.s4 1966171168
        %v4400 = vunpack.c.0.s8 %v4399
        %v4401 = vlaneseq
        %v4402 = vshrl.u32 %v4401, 7
        %v4403 = vsub.s32 %v4400, %v4402
        %v4404 = vrot.slane %v4376, %v4403
        %v4405 = vcombine.high %v4383, %v4383
        %v4406 = vcombine.high %v4390, %v4390
        %v4407 = vcombine.high %v4397, %v4397
        %v4408 = vcombine.high %v4404, %v4404
        %v4409 = vcombine.high %v4105, %v4105
        %v4411 = vunpack.c.l.s4 1966171168
        %v4412 = vunpack.c.0.s8 %v4411
        %v4413 = vlaneseq
        %v4414 = vshrl.u32 %v4413, 7
        %v4415 = vsub.s32 %v4412, %v4414
        %v4416 = vrot.slane %v4105, %v4415
        %v4418 = vunpack.c.l.s4 1966171168
        %v4419 = vunpack.c.0.s8 %v4418
        %v4420 = vlaneseq
        %v4421 = vshrl.u32 %v4420, 7
        %v4422 = vsub.s32 %v4419, %v4421
        %v4423 = vrot.slane %v4409, %v4422
        %v4424 = vcombine.high %v4416, %v4416
        %v4425 = vcombine.high %v4423, %v4423
        %v4427 = vunpack.c.l.s4 1966171168
        %v4428 = vunpack.c.0.s8 %v4427
        %v4429 = vlaneseq
        %v4430 = vshrl.u32 %v4429, 7
        %v4431 = vsub.s32 %v4428, %v4430
        %v4432 = vrot.slane %v4416, %v4431
        %v4434 = vunpack.c.l.s4 1966171168
        %v4435 = vunpack.c.0.s8 %v4434
        %v4436 = vlaneseq
        %v4437 = vshrl.u32 %v4436, 7
        %v4438 = vsub.s32 %v4435, %v4437
        %v4439 = vrot.slane %v4423, %v4438
        %v4441 = vunpack.c.l.s4 1966171168
        %v4442 = vunpack.c.0.s8 %v4441
        %v4443 = vlaneseq
        %v4444 = vshrl.u32 %v4443, 7
        %v4445 = vsub.s32 %v4442, %v4444
        %v4446 = vrot.slane %v4424, %v4445
        %v4448 = vunpack.c.l.s4 1966171168
        %v4449 = vunpack.c.0.s8 %v4448
        %v4450 = vlaneseq
        %v4451 = vshrl.u32 %v4450, 7
        %v4452 = vsub.s32 %v4449, %v4451
        %v4453 = vrot.slane %v4425, %v4452
        %v4454 = vcombine.high %v4432, %v4432
        %v4455 = vcombine.high %v4439, %v4439
        %v4456 = vcombine.high %v4446, %v4446
        %v4457 = vcombine.high %v4453, %v4453
        %v4458 = vcombine.high %v4106, %v4106
        %v4460 = vunpack.c.l.s4 1966171168
        %v4461 = vunpack.c.0.s8 %v4460
        %v4462 = vlaneseq
        %v4463 = vshrl.u32 %v4462, 7
        %v4464 = vsub.s32 %v4461, %v4463
        %v4465 = vrot.slane %v4106, %v4464
        %v4467 = vunpack.c.l.s4 1966171168
        %v4468 = vunpack.c.0.s8 %v4467
        %v4469 = vlaneseq
        %v4470 = vshrl.u32 %v4469, 7
        %v4471 = vsub.s32 %v4468, %v4470
        %v4472 = vrot.slane %v4458, %v4471
        %v4473 = vcombine.high %v4465, %v4465
        %v4474 = vcombine.high %v4472, %v4472
        %v4476 = vunpack.c.l.s4 1966171168
        %v4477 = vunpack.c.0.s8 %v4476
        %v4478 = vlaneseq
        %v4479 = vshrl.u32 %v4478, 7
        %v4480 = vsub.s32 %v4477, %v4479
        %v4481 = vrot.slane %v4465, %v4480
        %v4483 = vunpack.c.l.s4 1966171168
        %v4484 = vunpack.c.0.s8 %v4483
        %v4485 = vlaneseq
        %v4486 = vshrl.u32 %v4485, 7
        %v4487 = vsub.s32 %v4484, %v4486
        %v4488 = vrot.slane %v4472, %v4487
        %v4490 = vunpack.c.l.s4 1966171168
        %v4491 = vunpack.c.0.s8 %v4490
        %v4492 = vlaneseq
        %v4493 = vshrl.u32 %v4492, 7
        %v4494 = vsub.s32 %v4491, %v4493
        %v4495 = vrot.slane %v4473, %v4494
        %v4497 = vunpack.c.l.s4 1966171168
        %v4498 = vunpack.c.0.s8 %v4497
        %v4499 = vlaneseq
        %v4500 = vshrl.u32 %v4499, 7
        %v4501 = vsub.s32 %v4498, %v4500
        %v4502 = vrot.slane %v4474, %v4501
        %v4503 = vcombine.high %v4481, %v4481
        %v4504 = vcombine.high %v4488, %v4488
        %v4505 = vcombine.high %v4495, %v4495
        %v4506 = vcombine.high %v4502, %v4502
        %v4507 = vcombine.low %v4138, %v4152
        %v4508 = vcombine.low %v4160, %v4162
        %v4509 = vcombine.low %v4145, %v4159
        %v4510 = vcombine.low %v4161, %v4163
        %v4512 = vunpack.c.l.s4 1966171168
        %v4513 = vunpack.c.0.s8 %v4512
        %v4514 = vlaneseq
        %v4515 = vshrl.u32 %v4514, 7
        %v4516 = vsub.s32 %v4513, %v4515
        %v4517 = vrot.slane %v4507, %v4516
        %v4519 = vunpack.c.l.s4 1966171168
        %v4520 = vunpack.c.0.s8 %v4519
        %v4521 = vlaneseq
        %v4522 = vshrl.u32 %v4521, 7
        %v4523 = vsub.s32 %v4520, %v4522
        %v4524 = vrot.slane %v4508, %v4523
        %v4526 = vunpack.c.l.s4 1966171168
        %v4527 = vunpack.c.0.s8 %v4526
        %v4528 = vlaneseq
        %v4529 = vshrl.u32 %v4528, 7
        %v4530 = vsub.s32 %v4527, %v4529
        %v4531 = vrot.slane %v4509, %v4530
        %v4533 = vunpack.c.l.s4 1966171168
        %v4534 = vunpack.c.0.s8 %v4533
        %v4535 = vlaneseq
        %v4536 = vshrl.u32 %v4535, 7
        %v4537 = vsub.s32 %v4534, %v4536
        %v4538 = vrot.slane %v4510, %v4537
        %v4539 = vcombine.low %v4517, %v4524
        %v4540 = vcombine.low %v4531, %v4538
        %v4542 = vunpack.c.l.s4 1966171168
        %v4543 = vunpack.c.0.s8 %v4542
        %v4544 = vlaneseq
        %v4545 = vshrl.u32 %v4544, 7
        %v4546 = vsub.s32 %v4543, %v4545
        %v4547 = vrot.slane %v4539, %v4546
        %v4549 = vunpack.c.l.s4 1966171168
        %v4550 = vunpack.c.0.s8 %v4549
        %v4551 = vlaneseq
        %v4552 = vshrl.u32 %v4551, 7
        %v4553 = vsub.s32 %v4550, %v4552
        %v4554 = vrot.slane %v4540, %v4553
        %v4555 = vcombine.low %v4547, %v4554
        %v4556 = vcombine.low %v4187, %v4201
        %v4557 = vcombine.low %v4209, %v4211
        %v4558 = vcombine.low %v4194, %v4208
        %v4559 = vcombine.low %v4210, %v4212
        %v4561 = vunpack.c.l.s4 1966171168
        %v4562 = vunpack.c.0.s8 %v4561
        %v4563 = vlaneseq
        %v4564 = vshrl.u32 %v4563, 7
        %v4565 = vsub.s32 %v4562, %v4564
        %v4566 = vrot.slane %v4556, %v4565
        %v4568 = vunpack.c.l.s4 1966171168
        %v4569 = vunpack.c.0.s8 %v4568
        %v4570 = vlaneseq
        %v4571 = vshrl.u32 %v4570, 7
        %v4572 = vsub.s32 %v4569, %v4571
        %v4573 = vrot.slane %v4557, %v4572
        %v4575 = vunpack.c.l.s4 1966171168
        %v4576 = vunpack.c.0.s8 %v4575
        %v4577 = vlaneseq
        %v4578 = vshrl.u32 %v4577, 7
        %v4579 = vsub.s32 %v4576, %v4578
        %v4580 = vrot.slane %v4558, %v4579
        %v4582 = vunpack.c.l.s4 1966171168
        %v4583 = vunpack.c.0.s8 %v4582
        %v4584 = vlaneseq
        %v4585 = vshrl.u32 %v4584, 7
        %v4586 = vsub.s32 %v4583, %v4585
        %v4587 = vrot.slane %v4559, %v4586
        %v4588 = vcombine.low %v4566, %v4573
        %v4589 = vcombine.low %v4580, %v4587
        %v4591 = vunpack.c.l.s4 1966171168
        %v4592 = vunpack.c.0.s8 %v4591
        %v4593 = vlaneseq
        %v4594 = vshrl.u32 %v4593, 7
        %v4595 = vsub.s32 %v4592, %v4594
        %v4596 = vrot.slane %v4588, %v4595
        %v4598 = vunpack.c.l.s4 1966171168
        %v4599 = vunpack.c.0.s8 %v4598
        %v4600 = vlaneseq
        %v4601 = vshrl.u32 %v4600, 7
        %v4602 = vsub.s32 %v4599, %v4601
        %v4603 = vrot.slane %v4589, %v4602
        %v4604 = vcombine.low %v4596, %v4603
        %v4605 = vcombine.low %v4236, %v4250
        %v4606 = vcombine.low %v4258, %v4260
        %v4607 = vcombine.low %v4243, %v4257
        %v4608 = vcombine.low %v4259, %v4261
        %v4610 = vunpack.c.l.s4 1966171168
        %v4611 = vunpack.c.0.s8 %v4610
        %v4612 = vlaneseq
        %v4613 = vshrl.u32 %v4612, 7
        %v4614 = vsub.s32 %v4611, %v4613
        %v4615 = vrot.slane %v4605, %v4614
        %v4617 = vunpack.c.l.s4 1966171168
        %v4618 = vunpack.c.0.s8 %v4617
        %v4619 = vlaneseq
        %v4620 = vshrl.u32 %v4619, 7
        %v4621 = vsub.s32 %v4618, %v4620
        %v4622 = vrot.slane %v4606, %v4621
        %v4624 = vunpack.c.l.s4 1966171168
        %v4625 = vunpack.c.0.s8 %v4624
        %v4626 = vlaneseq
        %v4627 = vshrl.u32 %v4626, 7
        %v4628 = vsub.s32 %v4625, %v4627
        %v4629 = vrot.slane %v4607, %v4628
        %v4631 = vunpack.c.l.s4 1966171168
        %v4632 = vunpack.c.0.s8 %v4631
        %v4633 = vlaneseq
        %v4634 = vshrl.u32 %v4633, 7
        %v4635 = vsub.s32 %v4632, %v4634
        %v4636 = vrot.slane %v4608, %v4635
        %v4637 = vcombine.low %v4615, %v4622
        %v4638 = vcombine.low %v4629, %v4636
        %v4640 = vunpack.c.l.s4 1966171168
        %v4641 = vunpack.c.0.s8 %v4640
        %v4642 = vlaneseq
        %v4643 = vshrl.u32 %v4642, 7
        %v4644 = vsub.s32 %v4641, %v4643
        %v4645 = vrot.slane %v4637, %v4644
        %v4647 = vunpack.c.l.s4 1966171168
        %v4648 = vunpack.c.0.s8 %v4647
        %v4649 = vlaneseq
        %v4650 = vshrl.u32 %v4649, 7
        %v4651 = vsub.s32 %v4648, %v4650
        %v4652 = vrot.slane %v4638, %v4651
        %v4653 = vcombine.low %v4645, %v4652
        %v4654 = vcombine.low %v4285, %v4299
        %v4655 = vcombine.low %v4307, %v4309
        %v4656 = vcombine.low %v4292, %v4306
        %v4657 = vcombine.low %v4308, %v4310
        %v4659 = vunpack.c.l.s4 1966171168
        %v4660 = vunpack.c.0.s8 %v4659
        %v4661 = vlaneseq
        %v4662 = vshrl.u32 %v4661, 7
        %v4663 = vsub.s32 %v4660, %v4662
        %v4664 = vrot.slane %v4654, %v4663
        %v4666 = vunpack.c.l.s4 1966171168
        %v4667 = vunpack.c.0.s8 %v4666
        %v4668 = vlaneseq
        %v4669 = vshrl.u32 %v4668, 7
        %v4670 = vsub.s32 %v4667, %v4669
        %v4671 = vrot.slane %v4655, %v4670
        %v4673 = vunpack.c.l.s4 1966171168
        %v4674 = vunpack.c.0.s8 %v4673
        %v4675 = vlaneseq
        %v4676 = vshrl.u32 %v4675, 7
        %v4677 = vsub.s32 %v4674, %v4676
        %v4678 = vrot.slane %v4656, %v4677
        %v4680 = vunpack.c.l.s4 1966171168
        %v4681 = vunpack.c.0.s8 %v4680
        %v4682 = vlaneseq
        %v4683 = vshrl.u32 %v4682, 7
        %v4684 = vsub.s32 %v4681, %v4683
        %v4685 = vrot.slane %v4657, %v4684
        %v4686 = vcombine.low %v4664, %v4671
        %v4687 = vcombine.low %v4678, %v4685
        %v4689 = vunpack.c.l.s4 1966171168
        %v4690 = vunpack.c.0.s8 %v4689
        %v4691 = vlaneseq
        %v4692 = vshrl.u32 %v4691, 7
        %v4693 = vsub.s32 %v4690, %v4692
        %v4694 = vrot.slane %v4686, %v4693
        %v4696 = vunpack.c.l.s4 1966171168
        %v4697 = vunpack.c.0.s8 %v4696
        %v4698 = vlaneseq
        %v4699 = vshrl.u32 %v4698, 7
        %v4700 = vsub.s32 %v4697, %v4699
        %v4701 = vrot.slane %v4687, %v4700
        %v4702 = vcombine.low %v4694, %v4701
        %v4703 = vcombine.low %v4334, %v4348
        %v4704 = vcombine.low %v4356, %v4358
        %v4705 = vcombine.low %v4341, %v4355
        %v4706 = vcombine.low %v4357, %v4359
        %v4708 = vunpack.c.l.s4 1966171168
        %v4709 = vunpack.c.0.s8 %v4708
        %v4710 = vlaneseq
        %v4711 = vshrl.u32 %v4710, 7
        %v4712 = vsub.s32 %v4709, %v4711
        %v4713 = vrot.slane %v4703, %v4712
        %v4715 = vunpack.c.l.s4 1966171168
        %v4716 = vunpack.c.0.s8 %v4715
        %v4717 = vlaneseq
        %v4718 = vshrl.u32 %v4717, 7
        %v4719 = vsub.s32 %v4716, %v4718
        %v4720 = vrot.slane %v4704, %v4719
        %v4722 = vunpack.c.l.s4 1966171168
        %v4723 = vunpack.c.0.s8 %v4722
        %v4724 = vlaneseq
        %v4725 = vshrl.u32 %v4724, 7
        %v4726 = vsub.s32 %v4723, %v4725
        %v4727 = vrot.slane %v4705, %v4726
        %v4729 = vunpack.c.l.s4 1966171168
        %v4730 = vunpack.c.0.s8 %v4729
        %v4731 = vlaneseq
        %v4732 = vshrl.u32 %v4731, 7
        %v4733 = vsub.s32 %v4730, %v4732
        %v4734 = vrot.slane %v4706, %v4733
        %v4735 = vcombine.low %v4713, %v4720
        %v4736 = vcombine.low %v4727, %v4734
        %v4738 = vunpack.c.l.s4 1966171168
        %v4739 = vunpack.c.0.s8 %v4738
        %v4740 = vlaneseq
        %v4741 = vshrl.u32 %v4740, 7
        %v4742 = vsub.s32 %v4739, %v4741
        %v4743 = vrot.slane %v4735, %v4742
        %v4745 = vunpack.c.l.s4 1966171168
        %v4746 = vunpack.c.0.s8 %v4745
        %v4747 = vlaneseq
        %v4748 = vshrl.u32 %v4747, 7
        %v4749 = vsub.s32 %v4746, %v4748
        %v4750 = vrot.slane %v4736, %v4749
        %v4751 = vcombine.low %v4743, %v4750
        %v4752 = vcombine.low %v4383, %v4397
        %v4753 = vcombine.low %v4405, %v4407
        %v4754 = vcombine.low %v4390, %v4404
        %v4755 = vcombine.low %v4406, %v4408
        %v4757 = vunpack.c.l.s4 1966171168
        %v4758 = vunpack.c.0.s8 %v4757
        %v4759 = vlaneseq
        %v4760 = vshrl.u32 %v4759, 7
        %v4761 = vsub.s32 %v4758, %v4760
        %v4762 = vrot.slane %v4752, %v4761
        %v4764 = vunpack.c.l.s4 1966171168
        %v4765 = vunpack.c.0.s8 %v4764
        %v4766 = vlaneseq
        %v4767 = vshrl.u32 %v4766, 7
        %v4768 = vsub.s32 %v4765, %v4767
        %v4769 = vrot.slane %v4753, %v4768
        %v4771 = vunpack.c.l.s4 1966171168
        %v4772 = vunpack.c.0.s8 %v4771
        %v4773 = vlaneseq
        %v4774 = vshrl.u32 %v4773, 7
        %v4775 = vsub.s32 %v4772, %v4774
        %v4776 = vrot.slane %v4754, %v4775
        %v4778 = vunpack.c.l.s4 1966171168
        %v4779 = vunpack.c.0.s8 %v4778
        %v4780 = vlaneseq
        %v4781 = vshrl.u32 %v4780, 7
        %v4782 = vsub.s32 %v4779, %v4781
        %v4783 = vrot.slane %v4755, %v4782
        %v4784 = vcombine.low %v4762, %v4769
        %v4785 = vcombine.low %v4776, %v4783
        %v4787 = vunpack.c.l.s4 1966171168
        %v4788 = vunpack.c.0.s8 %v4787
        %v4789 = vlaneseq
        %v4790 = vshrl.u32 %v4789, 7
        %v4791 = vsub.s32 %v4788, %v4790
        %v4792 = vrot.slane %v4784, %v4791
        %v4794 = vunpack.c.l.s4 1966171168
        %v4795 = vunpack.c.0.s8 %v4794
        %v4796 = vlaneseq
        %v4797 = vshrl.u32 %v4796, 7
        %v4798 = vsub.s32 %v4795, %v4797
        %v4799 = vrot.slane %v4785, %v4798
        %v4800 = vcombine.low %v4792, %v4799
        %v4801 = vcombine.low %v4432, %v4446
        %v4802 = vcombine.low %v4454, %v4456
        %v4803 = vcombine.low %v4439, %v4453
        %v4804 = vcombine.low %v4455, %v4457
        %v4806 = vunpack.c.l.s4 1966171168
        %v4807 = vunpack.c.0.s8 %v4806
        %v4808 = vlaneseq
        %v4809 = vshrl.u32 %v4808, 7
        %v4810 = vsub.s32 %v4807, %v4809
        %v4811 = vrot.slane %v4801, %v4810
        %v4813 = vunpack.c.l.s4 1966171168
        %v4814 = vunpack.c.0.s8 %v4813
        %v4815 = vlaneseq
        %v4816 = vshrl.u32 %v4815, 7
        %v4817 = vsub.s32 %v4814, %v4816
        %v4818 = vrot.slane %v4802, %v4817
        %v4820 = vunpack.c.l.s4 1966171168
        %v4821 = vunpack.c.0.s8 %v4820
        %v4822 = vlaneseq
        %v4823 = vshrl.u32 %v4822, 7
        %v4824 = vsub.s32 %v4821, %v4823
        %v4825 = vrot.slane %v4803, %v4824
        %v4827 = vunpack.c.l.s4 1966171168
        %v4828 = vunpack.c.0.s8 %v4827
        %v4829 = vlaneseq
        %v4830 = vshrl.u32 %v4829, 7
        %v4831 = vsub.s32 %v4828, %v4830
        %v4832 = vrot.slane %v4804, %v4831
        %v4833 = vcombine.low %v4811, %v4818
        %v4834 = vcombine.low %v4825, %v4832
        %v4836 = vunpack.c.l.s4 1966171168
        %v4837 = vunpack.c.0.s8 %v4836
        %v4838 = vlaneseq
        %v4839 = vshrl.u32 %v4838, 7
        %v4840 = vsub.s32 %v4837, %v4839
        %v4841 = vrot.slane %v4833, %v4840
        %v4843 = vunpack.c.l.s4 1966171168
        %v4844 = vunpack.c.0.s8 %v4843
        %v4845 = vlaneseq
        %v4846 = vshrl.u32 %v4845, 7
        %v4847 = vsub.s32 %v4844, %v4846
        %v4848 = vrot.slane %v4834, %v4847
        %v4849 = vcombine.low %v4841, %v4848
        %v4850 = vcombine.low %v4481, %v4495
        %v4851 = vcombine.low %v4503, %v4505
        %v4852 = vcombine.low %v4488, %v4502
        %v4853 = vcombine.low %v4504, %v4506
        %v4855 = vunpack.c.l.s4 1966171168
        %v4856 = vunpack.c.0.s8 %v4855
        %v4857 = vlaneseq
        %v4858 = vshrl.u32 %v4857, 7
        %v4859 = vsub.s32 %v4856, %v4858
        %v4860 = vrot.slane %v4850, %v4859
        %v4862 = vunpack.c.l.s4 1966171168
        %v4863 = vunpack.c.0.s8 %v4862
        %v4864 = vlaneseq
        %v4865 = vshrl.u32 %v4864, 7
        %v4866 = vsub.s32 %v4863, %v4865
        %v4867 = vrot.slane %v4851, %v4866
        %v4869 = vunpack.c.l.s4 1966171168
        %v4870 = vunpack.c.0.s8 %v4869
        %v4871 = vlaneseq
        %v4872 = vshrl.u32 %v4871, 7
        %v4873 = vsub.s32 %v4870, %v4872
        %v4874 = vrot.slane %v4852, %v4873
        %v4876 = vunpack.c.l.s4 1966171168
        %v4877 = vunpack.c.0.s8 %v4876
        %v4878 = vlaneseq
        %v4879 = vshrl.u32 %v4878, 7
        %v4880 = vsub.s32 %v4877, %v4879
        %v4881 = vrot.slane %v4853, %v4880
        %v4882 = vcombine.low %v4860, %v4867
        %v4883 = vcombine.low %v4874, %v4881
        %v4885 = vunpack.c.l.s4 1966171168
        %v4886 = vunpack.c.0.s8 %v4885
        %v4887 = vlaneseq
        %v4888 = vshrl.u32 %v4887, 7
        %v4889 = vsub.s32 %v4886, %v4888
        %v4890 = vrot.slane %v4882, %v4889
        %v4892 = vunpack.c.l.s4 1966171168
        %v4893 = vunpack.c.0.s8 %v4892
        %v4894 = vlaneseq
        %v4895 = vshrl.u32 %v4894, 7
        %v4896 = vsub.s32 %v4893, %v4895
        %v4897 = vrot.slane %v4883, %v4896
        %v4898 = vcombine.low %v4890, %v4897
        %4899 = vset.pattern.permute.xlu0 0
        %4900 = vperm.xlu0 %4899, %v4555
        %v4901 = vpop.permute.xlu0 %4900
        %4902 = vset.pattern.permute.xlu0 0
        %4903 = vperm.xlu0 %4902, %v4604
        %v4904 = vpop.permute.xlu0 %4903
        %4905 = vset.pattern.permute.xlu0 0
        %4906 = vperm.xlu0 %4905, %v4653
        %v4907 = vpop.permute.xlu0 %4906
        %4908 = vset.pattern.permute.xlu0 0
        %4909 = vperm.xlu0 %4908, %v4702
        %v4910 = vpop.permute.xlu0 %4909
        %4911 = vset.pattern.permute.xlu0 0
        %4912 = vperm.xlu0 %4911, %v4751
        %v4913 = vpop.permute.xlu0 %4912
        %4914 = vset.pattern.permute.xlu0 0
        %4915 = vperm.xlu0 %4914, %v4800
        %v4916 = vpop.permute.xlu0 %4915
        %4917 = vset.pattern.permute.xlu0 0
        %4918 = vperm.xlu0 %4917, %v4849
        %v4919 = vpop.permute.xlu0 %4918
        %4920 = vset.pattern.permute.xlu0 0
        %4921 = vperm.xlu0 %4920, %v4898
        %v4922 = vpop.permute.xlu0 %4921
        %v4923 = vlaneseq
        %v4924 = vand.u32 %v4923, 127
        %v4925 = vlaneseq
        %v4926 = vshrl.u32 %v4925, 7
        %v4927 = vsub.s32 %v4924, %v4926
        %v4928 = vrot.slane %v4901, %v4927
        %v4929 = vadd.s32 %v4924, 4294967288
        %v4930 = vlaneseq
        %v4931 = vshrl.u32 %v4930, 7
        %v4932 = vsub.s32 %v4929, %v4931
        %v4933 = vrot.slane %v4904, %v4932
        %vm4934 = vcmask 130112
        %v4935 = vsel %vm4934, %v4933, %v4928
        %v4936 = vadd.s32 %v4924, 4294967280
        %v4937 = vlaneseq
        %v4938 = vshrl.u32 %v4937, 7
        %v4939 = vsub.s32 %v4936, %v4938
        %v4940 = vrot.slane %v4907, %v4939
        %vm4941 = vcmask 195712
        %v4942 = vsel %vm4941, %v4940, %v4935
        %v4943 = vadd.s32 %v4924, 4294967272
        %v4944 = vlaneseq
        %v4945 = vshrl.u32 %v4944, 7
        %v4946 = vsub.s32 %v4943, %v4945
        %v4947 = vrot.slane %v4910, %v4946
        %vm4948 = vcmask 261312
        %v4949 = vsel %vm4948, %v4947, %v4942
        %v4950 = vadd.s32 %v4924, 4294967264
        %v4951 = vlaneseq
        %v4952 = vshrl.u32 %v4951, 7
        %v4953 = vsub.s32 %v4950, %v4952
        %v4954 = vrot.slane %v4913, %v4953
        %vm4955 = vcmask 326912
        %v4956 = vsel %vm4955, %v4954, %v4949
        %v4957 = vadd.s32 %v4924, 4294967256
        %v4958 = vlaneseq
        %v4959 = vshrl.u32 %v4958, 7
        %v4960 = vsub.s32 %v4957, %v4959
        %v4961 = vrot.slane %v4916, %v4960
        %vm4962 = vcmask 392512
        %v4963 = vsel %vm4962, %v4961, %v4956
        %v4964 = vadd.s32 %v4924, 4294967248
        %v4965 = vlaneseq
        %v4966 = vshrl.u32 %v4965, 7
        %v4967 = vsub.s32 %v4964, %v4966
        %v4968 = vrot.slane %v4919, %v4967
        %vm4969 = vcmask 458112
        %v4970 = vsel %vm4969, %v4968, %v4963
        %v4971 = vadd.s32 %v4924, 4294967240
        %v4972 = vlaneseq
        %v4973 = vshrl.u32 %v4972, 7
        %v4974 = vsub.s32 %v4971, %v4973
        %v4975 = vrot.slane %v4922, %v4974
        %vm4976 = vcmask 523712
        %v4977 = vsel %vm4976, %v4975, %v4970
        %v4979 = vunpack.c.l.s4 1966171168
        %v4980 = vunpack.c.0.s8 %v4979
        %v4981 = vlaneseq
        %v4982 = vshrl.u32 %v4981, 7
        %v4983 = vsub.s32 %v4980, %v4982
        %v4984 = vrot.slane %v4977, %v4983
        %v4986 = vunpack.c.l.s4 1966171168
        %v4987 = vunpack.c.0.s8 %v4986
        %v4988 = vlaneseq
        %v4989 = vshrl.u32 %v4988, 7
        %v4990 = vsub.s32 %v4987, %v4989
        %v4991 = vrot.slane %v4984, %v4990
        %v4993 = vsub.f32 %v4098, %v4991
        %5002 = vset.pattern.permute.xlu0 0
        %5003 = vperm.xlu0 %5002, %v4090
        %v5004 = vpop.permute.xlu0 %5003
        %5005 = vset.pattern.permute.xlu0 0
        %5006 = vperm.xlu0 %5005, %v4091
        %v5007 = vpop.permute.xlu0 %5006
        %5008 = vset.pattern.permute.xlu0 0
        %5009 = vperm.xlu0 %5008, %v4092
        %v5010 = vpop.permute.xlu0 %5009
        %5011 = vset.pattern.permute.xlu0 0
        %5012 = vperm.xlu0 %5011, %v4093
        %v5013 = vpop.permute.xlu0 %5012
        %5014 = vset.pattern.permute.xlu0 0
        %5015 = vperm.xlu0 %5014, %v4094
        %v5016 = vpop.permute.xlu0 %5015
        %5017 = vset.pattern.permute.xlu0 0
        %5018 = vperm.xlu0 %5017, %v4095
        %v5019 = vpop.permute.xlu0 %5018
        %5020 = vset.pattern.permute.xlu0 0
        %5021 = vperm.xlu0 %5020, %v4096
        %v5022 = vpop.permute.xlu0 %5021
        %5023 = vset.pattern.permute.xlu0 0
        %5024 = vperm.xlu0 %5023, %v4097
        %v5025 = vpop.permute.xlu0 %5024
        %v5026 = vlaneseq
        %v5027 = vshrl.u32 %v5026, 7
        %v5028 = vsub.s32 %v4924, %v5027
        %v5029 = vrot.slane %v5004, %v5028
        %v5030 = vlaneseq
        %v5031 = vshrl.u32 %v5030, 7
        %v5032 = vsub.s32 %v4929, %v5031
        %v5033 = vrot.slane %v5007, %v5032
        %v5034 = vsel %vm4934, %v5033, %v5029
        %v5035 = vlaneseq
        %v5036 = vshrl.u32 %v5035, 7
        %v5037 = vsub.s32 %v4936, %v5036
        %v5038 = vrot.slane %v5010, %v5037
        %v5039 = vsel %vm4941, %v5038, %v5034
        %v5040 = vlaneseq
        %v5041 = vshrl.u32 %v5040, 7
        %v5042 = vsub.s32 %v4943, %v5041
        %v5043 = vrot.slane %v5013, %v5042
        %v5044 = vsel %vm4948, %v5043, %v5039
        %v5045 = vlaneseq
        %v5046 = vshrl.u32 %v5045, 7
        %v5047 = vsub.s32 %v4950, %v5046
        %v5048 = vrot.slane %v5016, %v5047
        %v5049 = vsel %vm4955, %v5048, %v5044
        %v5050 = vlaneseq
        %v5051 = vshrl.u32 %v5050, 7
        %v5052 = vsub.s32 %v4957, %v5051
        %v5053 = vrot.slane %v5019, %v5052
        %v5054 = vsel %vm4962, %v5053, %v5049
        %v5055 = vlaneseq
        %v5056 = vshrl.u32 %v5055, 7
        %v5057 = vsub.s32 %v4964, %v5056
        %v5058 = vrot.slane %v5022, %v5057
        %v5059 = vsel %vm4969, %v5058, %v5054
        %v5060 = vlaneseq
        %v5061 = vshrl.u32 %v5060, 7
        %v5062 = vsub.s32 %v4971, %v5061
        %v5063 = vrot.slane %v5025, %v5062
        %v5064 = vsel %vm4976, %v5063, %v5059
        %vm5065 = vcmask 1042434
        %v5066 = vsel %vm5065, %v5064, %v5064
        %vm5067 = vcmask 1043459
        %v5068 = vsel %vm5067, %v5064, %v5066
        %vm5069 = vcmask 1044484
        %v5070 = vsel %vm5069, %v5064, %v5068
        %vm5071 = vcmask 1045509
        %v5072 = vsel %vm5071, %v5064, %v5070
        %vm5073 = vcmask 1046534
        %v5074 = vsel %vm5073, %v5064, %v5072
        %vm5075 = vcmask 1047559
        %v5076 = vsel %vm5075, %v5064, %v5074
        %v5078 = vmul.f32 %v3619, %v5076
        %v5079 = vmul.f32 %v3622, %v5076
        %v5080 = vmul.f32 %v3627, %v5076
        %v5081 = vmul.f32 %v3630, %v5076
        %v5082 = vmul.f32 %v3635, %v5076
        %v5083 = vmul.f32 %v3638, %v5076
        %v5084 = vmul.f32 %v3643, %v5076
        %v5085 = vmul.f32 %v3646, %v5076
        %v5086 = vmul.f32 %v3651, %v5076
        %v5087 = vmul.f32 %v3654, %v5076
        %v5088 = vmul.f32 %v3659, %v5076
        %v5089 = vmul.f32 %v3662, %v5076
        %v5090 = vmul.f32 %v3667, %v5076
        %v5091 = vmul.f32 %v3670, %v5076
        %v5092 = vmul.f32 %v3675, %v5076
        %v5093 = vmul.f32 %v3678, %v5076
        %v5094 = vmul.f32 %v3683, %v5076
        %v5095 = vmul.f32 %v3686, %v5076
        %v5096 = vmul.f32 %v3691, %v5076
        %v5097 = vmul.f32 %v3694, %v5076
        %v5098 = vmul.f32 %v3699, %v5076
        %v5099 = vmul.f32 %v3702, %v5076
        %v5100 = vmul.f32 %v3707, %v5076
        %v5101 = vmul.f32 %v3710, %v5076
        %v5102 = vmul.f32 %v3715, %v5076
        %v5103 = vmul.f32 %v3718, %v5076
        %v5104 = vmul.f32 %v3723, %v5076
        %v5105 = vmul.f32 %v3726, %v5076
        %v5106 = vmul.f32 %v3731, %v5076
        %v5107 = vmul.f32 %v3734, %v5076
        %v5108 = vmul.f32 %v3739, %v5076
        %v5109 = vmul.f32 %v3742, %v5076
        %v5111 = vlaneseq
        %v5112 = vshrl.u32 %v5111, 7
        %v5113 = vsub.s32 0, %v5112
        %v5114 = vrot.slane %v4993, %v5113
        %v5116 = vadd.f32 %v5078, %v5114
        %v5117 = vadd.f32 %v5079, %v5114
        %v5118 = vadd.f32 %v5080, %v5114
        %v5119 = vadd.f32 %v5081, %v5114
        %v5120 = vadd.f32 %v5082, %v5114
        %v5121 = vadd.f32 %v5083, %v5114
        %v5122 = vadd.f32 %v5084, %v5114
        %v5123 = vadd.f32 %v5085, %v5114
        %v5124 = vadd.f32 %v5086, %v5114
        %v5125 = vadd.f32 %v5087, %v5114
        %v5126 = vadd.f32 %v5088, %v5114
        %v5127 = vadd.f32 %v5089, %v5114
        %v5128 = vadd.f32 %v5090, %v5114
        %v5129 = vadd.f32 %v5091, %v5114
        %v5130 = vadd.f32 %v5092, %v5114
        %v5131 = vadd.f32 %v5093, %v5114
        %v5132 = vadd.f32 %v5094, %v5114
        %v5133 = vadd.f32 %v5095, %v5114
        %v5134 = vadd.f32 %v5096, %v5114
        %v5135 = vadd.f32 %v5097, %v5114
        %v5136 = vadd.f32 %v5098, %v5114
        %v5137 = vadd.f32 %v5099, %v5114
        %v5138 = vadd.f32 %v5100, %v5114
        %v5139 = vadd.f32 %v5101, %v5114
        %v5140 = vadd.f32 %v5102, %v5114
        %v5141 = vadd.f32 %v5103, %v5114
        %v5142 = vadd.f32 %v5104, %v5114
        %v5143 = vadd.f32 %v5105, %v5114
        %v5144 = vadd.f32 %v5106, %v5114
        %v5145 = vadd.f32 %v5107, %v5114
        %v5146 = vadd.f32 %v5108, %v5114
        %v5147 = vadd.f32 %v5109, %v5114
        %v5148 = vxor.u32 %v5116, 2147483648
        %v5149 = vxor.u32 %v5117, 2147483648
        %v5150 = vxor.u32 %v5118, 2147483648
        %v5151 = vxor.u32 %v5119, 2147483648
        %v5152 = vxor.u32 %v5120, 2147483648
        %v5153 = vxor.u32 %v5121, 2147483648
        %v5154 = vxor.u32 %v5122, 2147483648
        %v5155 = vxor.u32 %v5123, 2147483648
        %v5156 = vxor.u32 %v5124, 2147483648
        %v5157 = vxor.u32 %v5125, 2147483648
        %v5158 = vxor.u32 %v5126, 2147483648
        %v5159 = vxor.u32 %v5127, 2147483648
        %v5160 = vxor.u32 %v5128, 2147483648
        %v5161 = vxor.u32 %v5129, 2147483648
        %v5162 = vxor.u32 %v5130, 2147483648
        %v5163 = vxor.u32 %v5131, 2147483648
        %v5164 = vxor.u32 %v5132, 2147483648
        %v5165 = vxor.u32 %v5133, 2147483648
        %v5166 = vxor.u32 %v5134, 2147483648
        %v5167 = vxor.u32 %v5135, 2147483648
        %v5168 = vxor.u32 %v5136, 2147483648
        %v5169 = vxor.u32 %v5137, 2147483648
        %v5170 = vxor.u32 %v5138, 2147483648
        %v5171 = vxor.u32 %v5139, 2147483648
        %v5172 = vxor.u32 %v5140, 2147483648
        %v5173 = vxor.u32 %v5141, 2147483648
        %v5174 = vxor.u32 %v5142, 2147483648
        %v5175 = vxor.u32 %v5143, 2147483648
        %v5176 = vxor.u32 %v5144, 2147483648
        %v5177 = vxor.u32 %v5145, 2147483648
        %v5178 = vxor.u32 %v5146, 2147483648
        %v5179 = vxor.u32 %v5147, 2147483648
        %v5180 = vmul.f32 %v5148, 1.442695
        %v5181 = vpow.pop %v5180
        %v5182 = vmul.f32 %v5149, 1.442695
        %v5183 = vpow.pop %v5182
        %v5184 = vmul.f32 %v5150, 1.442695
        %v5185 = vpow.pop %v5184
        %v5186 = vmul.f32 %v5151, 1.442695
        %v5187 = vpow.pop %v5186
        %v5188 = vmul.f32 %v5152, 1.442695
        %v5189 = vpow.pop %v5188
        %v5190 = vmul.f32 %v5153, 1.442695
        %v5191 = vpow.pop %v5190
        %v5192 = vmul.f32 %v5154, 1.442695
        %v5193 = vpow.pop %v5192
        %v5194 = vmul.f32 %v5155, 1.442695
        %v5195 = vpow.pop %v5194
        %v5196 = vmul.f32 %v5156, 1.442695
        %v5197 = vpow.pop %v5196
        %v5198 = vmul.f32 %v5157, 1.442695
        %v5199 = vpow.pop %v5198
        %v5200 = vmul.f32 %v5158, 1.442695
        %v5201 = vpow.pop %v5200
        %v5202 = vmul.f32 %v5159, 1.442695
        %v5203 = vpow.pop %v5202
        %v5204 = vmul.f32 %v5160, 1.442695
        %v5205 = vpow.pop %v5204
        %v5206 = vmul.f32 %v5161, 1.442695
        %v5207 = vpow.pop %v5206
        %v5208 = vmul.f32 %v5162, 1.442695
        %v5209 = vpow.pop %v5208
        %v5210 = vmul.f32 %v5163, 1.442695
        %v5211 = vpow.pop %v5210
        %v5212 = vmul.f32 %v5164, 1.442695
        %v5213 = vpow.pop %v5212
        %v5214 = vmul.f32 %v5165, 1.442695
        %v5215 = vpow.pop %v5214
        %v5216 = vmul.f32 %v5166, 1.442695
        %v5217 = vpow.pop %v5216
        %v5218 = vmul.f32 %v5167, 1.442695
        %v5219 = vpow.pop %v5218
        %v5220 = vmul.f32 %v5168, 1.442695
        %v5221 = vpow.pop %v5220
        %v5222 = vmul.f32 %v5169, 1.442695
        %v5223 = vpow.pop %v5222
        %v5224 = vmul.f32 %v5170, 1.442695
        %v5225 = vpow.pop %v5224
        %v5226 = vmul.f32 %v5171, 1.442695
        %v5227 = vpow.pop %v5226
        %v5228 = vmul.f32 %v5172, 1.442695
        %v5229 = vpow.pop %v5228
        %v5230 = vmul.f32 %v5173, 1.442695
        %v5231 = vpow.pop %v5230
        %v5232 = vmul.f32 %v5174, 1.442695
        %v5233 = vpow.pop %v5232
        %v5234 = vmul.f32 %v5175, 1.442695
        %v5235 = vpow.pop %v5234
        %v5236 = vmul.f32 %v5176, 1.442695
        %v5237 = vpow.pop %v5236
        %v5238 = vmul.f32 %v5177, 1.442695
        %v5239 = vpow.pop %v5238
        %v5240 = vmul.f32 %v5178, 1.442695
        %v5241 = vpow.pop %v5240
        %v5242 = vmul.f32 %v5179, 1.442695
        %v5243 = vpow.pop %v5242
        %v5244 = vadd.f32 %v5181, 1.0
        %v5245 = vadd.f32 %v5183, 1.0
        %v5246 = vadd.f32 %v5185, 1.0
        %v5247 = vadd.f32 %v5187, 1.0
        %v5248 = vadd.f32 %v5189, 1.0
        %v5249 = vadd.f32 %v5191, 1.0
        %v5250 = vadd.f32 %v5193, 1.0
        %v5251 = vadd.f32 %v5195, 1.0
        %v5252 = vadd.f32 %v5197, 1.0
        %v5253 = vadd.f32 %v5199, 1.0
        %v5254 = vadd.f32 %v5201, 1.0
        %v5255 = vadd.f32 %v5203, 1.0
        %v5256 = vadd.f32 %v5205, 1.0
        %v5257 = vadd.f32 %v5207, 1.0
        %v5258 = vadd.f32 %v5209, 1.0
        %v5259 = vadd.f32 %v5211, 1.0
        %v5260 = vadd.f32 %v5213, 1.0
        %v5261 = vadd.f32 %v5215, 1.0
        %v5262 = vadd.f32 %v5217, 1.0
        %v5263 = vadd.f32 %v5219, 1.0
        %v5264 = vadd.f32 %v5221, 1.0
        %v5265 = vadd.f32 %v5223, 1.0
        %v5266 = vadd.f32 %v5225, 1.0
        %v5267 = vadd.f32 %v5227, 1.0
        %v5268 = vadd.f32 %v5229, 1.0
        %v5269 = vadd.f32 %v5231, 1.0
        %v5270 = vadd.f32 %v5233, 1.0
        %v5271 = vadd.f32 %v5235, 1.0
        %v5272 = vadd.f32 %v5237, 1.0
        %v5273 = vadd.f32 %v5239, 1.0
        %v5274 = vadd.f32 %v5241, 1.0
        %v5275 = vadd.f32 %v5243, 1.0
        %v5276 = vrcp.pop %v5244
        %v5277 = vmul.f32 1.0, %v5276
        %v5278 = vrcp.pop %v5245
        %v5279 = vmul.f32 1.0, %v5278
        %v5280 = vrcp.pop %v5246
        %v5281 = vmul.f32 1.0, %v5280
        %v5282 = vrcp.pop %v5247
        %v5283 = vmul.f32 1.0, %v5282
        %v5284 = vrcp.pop %v5248
        %v5285 = vmul.f32 1.0, %v5284
        %v5286 = vrcp.pop %v5249
        %v5287 = vmul.f32 1.0, %v5286
        %v5288 = vrcp.pop %v5250
        %v5289 = vmul.f32 1.0, %v5288
        %v5290 = vrcp.pop %v5251
        %v5291 = vmul.f32 1.0, %v5290
        %v5292 = vrcp.pop %v5252
        %v5293 = vmul.f32 1.0, %v5292
        %v5294 = vrcp.pop %v5253
        %v5295 = vmul.f32 1.0, %v5294
        %v5296 = vrcp.pop %v5254
        %v5297 = vmul.f32 1.0, %v5296
        %v5298 = vrcp.pop %v5255
        %v5299 = vmul.f32 1.0, %v5298
        %v5300 = vrcp.pop %v5256
        %v5301 = vmul.f32 1.0, %v5300
        %v5302 = vrcp.pop %v5257
        %v5303 = vmul.f32 1.0, %v5302
        %v5304 = vrcp.pop %v5258
        %v5305 = vmul.f32 1.0, %v5304
        %v5306 = vrcp.pop %v5259
        %v5307 = vmul.f32 1.0, %v5306
        %v5308 = vrcp.pop %v5260
        %v5309 = vmul.f32 1.0, %v5308
        %v5310 = vrcp.pop %v5261
        %v5311 = vmul.f32 1.0, %v5310
        %v5312 = vrcp.pop %v5262
        %v5313 = vmul.f32 1.0, %v5312
        %v5314 = vrcp.pop %v5263
        %v5315 = vmul.f32 1.0, %v5314
        %v5316 = vrcp.pop %v5264
        %v5317 = vmul.f32 1.0, %v5316
        %v5318 = vrcp.pop %v5265
        %v5319 = vmul.f32 1.0, %v5318
        %v5320 = vrcp.pop %v5266
        %v5321 = vmul.f32 1.0, %v5320
        %v5322 = vrcp.pop %v5267
        %v5323 = vmul.f32 1.0, %v5322
        %v5324 = vrcp.pop %v5268
        %v5325 = vmul.f32 1.0, %v5324
        %v5326 = vrcp.pop %v5269
        %v5327 = vmul.f32 1.0, %v5326
        %v5328 = vrcp.pop %v5270
        %v5329 = vmul.f32 1.0, %v5328
        %v5330 = vrcp.pop %v5271
        %v5331 = vmul.f32 1.0, %v5330
        %v5332 = vrcp.pop %v5272
        %v5333 = vmul.f32 1.0, %v5332
        %v5334 = vrcp.pop %v5273
        %v5335 = vmul.f32 1.0, %v5334
        %v5336 = vrcp.pop %v5274
        %v5337 = vmul.f32 1.0, %v5336
        %v5338 = vrcp.pop %v5275
        %v5339 = vmul.f32 1.0, %v5338
        %v5340 = vmul.f32 %v5116, %v5277
        %v5341 = vmul.f32 %v5117, %v5279
        %v5342 = vmul.f32 %v5118, %v5281
        %v5343 = vmul.f32 %v5119, %v5283
        %v5344 = vmul.f32 %v5120, %v5285
        %v5345 = vmul.f32 %v5121, %v5287
        %v5346 = vmul.f32 %v5122, %v5289
        %v5347 = vmul.f32 %v5123, %v5291
        %v5348 = vmul.f32 %v5124, %v5293
        %v5349 = vmul.f32 %v5125, %v5295
        %v5350 = vmul.f32 %v5126, %v5297
        %v5351 = vmul.f32 %v5127, %v5299
        %v5352 = vmul.f32 %v5128, %v5301
        %v5353 = vmul.f32 %v5129, %v5303
        %v5354 = vmul.f32 %v5130, %v5305
        %v5355 = vmul.f32 %v5131, %v5307
        %v5356 = vmul.f32 %v5132, %v5309
        %v5357 = vmul.f32 %v5133, %v5311
        %v5358 = vmul.f32 %v5134, %v5313
        %v5359 = vmul.f32 %v5135, %v5315
        %v5360 = vmul.f32 %v5136, %v5317
        %v5361 = vmul.f32 %v5137, %v5319
        %v5362 = vmul.f32 %v5138, %v5321
        %v5363 = vmul.f32 %v5139, %v5323
        %v5364 = vmul.f32 %v5140, %v5325
        %v5365 = vmul.f32 %v5141, %v5327
        %v5366 = vmul.f32 %v5142, %v5329
        %v5367 = vmul.f32 %v5143, %v5331
        %v5368 = vmul.f32 %v5144, %v5333
        %v5369 = vmul.f32 %v5145, %v5335
        %v5370 = vmul.f32 %v5146, %v5337
        %v5371 = vmul.f32 %v5147, %v5339
        %v5372 = vpack.c.bf16 %v5341, %v5340
        %v5373 = vpack.c.bf16 %v5343, %v5342
        %v5374 = vpack.c.bf16 %v5345, %v5344
        %v5375 = vpack.c.bf16 %v5347, %v5346
        %v5376 = vpack.c.bf16 %v5349, %v5348
        %v5377 = vpack.c.bf16 %v5351, %v5350
        %v5378 = vpack.c.bf16 %v5353, %v5352
        %v5379 = vpack.c.bf16 %v5355, %v5354
        %v5380 = vpack.c.bf16 %v5357, %v5356
        %v5381 = vpack.c.bf16 %v5359, %v5358
        %v5382 = vpack.c.bf16 %v5361, %v5360
        %v5383 = vpack.c.bf16 %v5363, %v5362
        %v5384 = vpack.c.bf16 %v5365, %v5364
        %v5385 = vpack.c.bf16 %v5367, %v5366
        %v5386 = vpack.c.bf16 %v5369, %v5368
        %v5387 = vpack.c.bf16 %v5371, %v5370
        %vm5388 = vcmask 519168
        %5389 = vst.msk [vmem:[#allocation3] sm:$0xf] %vm5388, 0
        %5390 = vst.msk [vmem:[#allocation3 + $0x14] sm:$0xf] %vm5388, 0
        %vm5391 = vcmask 516096
        %vm5392 = vmand %vm5391, %vm1004
        %v5393 = vld [vmem:[#allocation3] sm:$0x1]
        %v5394 = vsel %vm5392, 0, %v5393
        %5395 = vst [vmem:[#allocation3] sm:$0x1] %v5394
        %v5396 = vld [vmem:[#allocation3 + $0x28] sm:$0x1]
        %v5397 = vsel %vm5392, 0, %v5396
        %5398 = vst [vmem:[#allocation3 + $0x28] sm:$0x1] %v5397
        %v5399 = vld [vmem:[#allocation3 + $0x50] sm:$0x1]
        %v5400 = vsel %vm5392, 0, %v5399
        %5401 = vst [vmem:[#allocation3 + $0x50] sm:$0x1] %v5400
        %v5402 = vld [vmem:[#allocation3 + $0x78] sm:$0x1]
        %v5403 = vsel %vm5392, 0, %v5402
        %5404 = vst [vmem:[#allocation3 + $0x78] sm:$0x1] %v5403
        %v5405 = vld [vmem:[#allocation3 + $0xa0] sm:$0x1]
        %v5406 = vsel %vm5392, 0, %v5405
        %5407 = vst [vmem:[#allocation3 + $0xa0] sm:$0x1] %v5406
        %v5408 = vld [vmem:[#allocation3 + $0xc8] sm:$0x1]
        %v5409 = vsel %vm5392, 0, %v5408
        %5410 = vst [vmem:[#allocation3 + $0xc8] sm:$0x1] %v5409
        %v5411 = vld [vmem:[#allocation3 + $0xf0] sm:$0x1]
        %v5412 = vsel %vm5392, 0, %v5411
        %5413 = vst [vmem:[#allocation3 + $0xf0] sm:$0x1] %v5412
        %v5414 = vld [vmem:[#allocation3 + $0x118] sm:$0x1]
        %v5415 = vsel %vm5392, 0, %v5414
        %5416 = vst [vmem:[#allocation3 + $0x118] sm:$0x1] %v5415
        %v5417 = vld [vmem:[#allocation3 + $0x140] sm:$0x1]
        %v5418 = vsel %vm5392, 0, %v5417
        %5419 = vst [vmem:[#allocation3 + $0x140] sm:$0x1] %v5418
        %v5420 = vld [vmem:[#allocation3 + $0x168] sm:$0x1]
        %v5421 = vsel %vm5392, 0, %v5420
        %5422 = vst [vmem:[#allocation3 + $0x168] sm:$0x1] %v5421
        %v5423 = vld [vmem:[#allocation3 + $0x190] sm:$0x1]
        %v5424 = vsel %vm5392, 0, %v5423
        %5425 = vst [vmem:[#allocation3 + $0x190] sm:$0x1] %v5424
        %v5426 = vld [vmem:[#allocation3 + $0x1b8] sm:$0x1]
        %v5427 = vsel %vm5392, 0, %v5426
        %5428 = vst [vmem:[#allocation3 + $0x1b8] sm:$0x1] %v5427
        %v5429 = vld [vmem:[#allocation3 + $0x1e0] sm:$0x1]
        %v5430 = vsel %vm5392, 0, %v5429
        %5431 = vst [vmem:[#allocation3 + $0x1e0] sm:$0x1] %v5430
        %v5432 = vld [vmem:[#allocation3 + $0x208] sm:$0x1]
        %v5433 = vsel %vm5392, 0, %v5432
        %5434 = vst [vmem:[#allocation3 + $0x208] sm:$0x1] %v5433
        %v5435 = vld [vmem:[#allocation3 + $0x230] sm:$0x1]
        %v5436 = vsel %vm5392, 0, %v5435
        %5437 = vst [vmem:[#allocation3 + $0x230] sm:$0x1] %v5436
        %v5438 = vld [vmem:[#allocation3 + $0x258] sm:$0x1]
        %v5439 = vsel %vm5392, 0, %v5438
        %5440 = vst [vmem:[#allocation3 + $0x258] sm:$0x1] %v5439
        %v5456 = vunpack.c.l.b16 %v5372
        %v5457 = vunpack.c.h.b16 %v5372
        %v5458 = vunpack.c.l.b16 %v5373
        %v5459 = vunpack.c.h.b16 %v5373
        %v5460 = vunpack.c.l.b16 %v5374
        %v5461 = vunpack.c.h.b16 %v5374
        %v5462 = vunpack.c.l.b16 %v5375
        %v5463 = vunpack.c.h.b16 %v5375
        %v5464 = vunpack.c.l.b16 %v5376
        %v5465 = vunpack.c.h.b16 %v5376
        %v5466 = vunpack.c.l.b16 %v5377
        %v5467 = vunpack.c.h.b16 %v5377
        %v5468 = vunpack.c.l.b16 %v5378
        %v5469 = vunpack.c.h.b16 %v5378
        %v5470 = vunpack.c.l.b16 %v5379
        %v5471 = vunpack.c.h.b16 %v5379
        %v5472 = vunpack.c.l.b16 %v5380
        %v5473 = vunpack.c.h.b16 %v5380
        %v5474 = vunpack.c.l.b16 %v5381
        %v5475 = vunpack.c.h.b16 %v5381
        %v5476 = vunpack.c.l.b16 %v5382
        %v5477 = vunpack.c.h.b16 %v5382
        %v5478 = vunpack.c.l.b16 %v5383
        %v5479 = vunpack.c.h.b16 %v5383
        %v5480 = vunpack.c.l.b16 %v5384
        %v5481 = vunpack.c.h.b16 %v5384
        %v5482 = vunpack.c.l.b16 %v5385
        %v5483 = vunpack.c.h.b16 %v5385
        %v5484 = vunpack.c.l.b16 %v5386
        %v5485 = vunpack.c.h.b16 %v5386
        %v5486 = vpack.c.b16 %v5456, %v5456
        %v5487 = vpack.c.b16 %v5457, %v5457
        %v5488 = vpack.c.b16 %v5458, %v5458
        %v5489 = vpack.c.b16 %v5459, %v5459
        %v5490 = vpack.c.b16 %v5460, %v5460
        %v5491 = vpack.c.b16 %v5461, %v5461
        %v5492 = vpack.c.b16 %v5462, %v5462
        %v5493 = vpack.c.b16 %v5463, %v5463
        %v5494 = vpack.c.b16 %v5464, %v5464
        %v5495 = vpack.c.b16 %v5465, %v5465
        %v5496 = vpack.c.b16 %v5466, %v5466
        %v5497 = vpack.c.b16 %v5467, %v5467
        %v5498 = vpack.c.b16 %v5468, %v5468
        %v5499 = vpack.c.b16 %v5469, %v5469
        %v5500 = vpack.c.b16 %v5470, %v5470
        %v5501 = vpack.c.b16 %v5471, %v5471
        %v5502 = vpack.c.b16 %v5472, %v5472
        %v5503 = vpack.c.b16 %v5473, %v5473
        %v5504 = vpack.c.b16 %v5474, %v5474
        %v5505 = vpack.c.b16 %v5475, %v5475
        %v5506 = vpack.c.b16 %v5476, %v5476
        %v5507 = vpack.c.b16 %v5477, %v5477
        %v5508 = vpack.c.b16 %v5478, %v5478
        %v5509 = vpack.c.b16 %v5479, %v5479
        %v5510 = vpack.c.b16 %v5480, %v5480
        %v5511 = vpack.c.b16 %v5481, %v5481
        %v5512 = vpack.c.b16 %v5482, %v5482
        %v5513 = vpack.c.b16 %v5483, %v5483
        %v5514 = vpack.c.b16 %v5484, %v5484
        %v5515 = vpack.c.b16 %v5485, %v5485
        %v5517 = vshrl.u32 %v5486, 16
        %v5519 = vrot.slane %v5517, 7
        %v5520 = vshll.u32 %v5486, 16
        %v5522 = vor.u32 %v5519, %v5520
        %v5523 = vrot.slane %v5519, 4
        %v5525 = vshrl.u32 %v5487, 16
        %v5527 = vrot.slane %v5525, 7
        %v5528 = vshll.u32 %v5487, 16
        %v5530 = vor.u32 %v5527, %v5528
        %v5531 = vsel %vm1130, %v5523, %v5530
        %v5533 = vshrl.u32 %v5488, 16
        %v5535 = vrot.slane %v5533, 7
        %v5536 = vshll.u32 %v5488, 16
        %v5538 = vor.u32 %v5535, %v5536
        %v5539 = vrot.slane %v5535, 4
        %v5541 = vshrl.u32 %v5489, 16
        %v5543 = vrot.slane %v5541, 7
        %v5544 = vshll.u32 %v5489, 16
        %v5546 = vor.u32 %v5543, %v5544
        %v5547 = vsel %vm1130, %v5539, %v5546
        %v5549 = vshrl.u32 %v5490, 16
        %v5551 = vrot.slane %v5549, 7
        %v5552 = vshll.u32 %v5490, 16
        %v5554 = vor.u32 %v5551, %v5552
        %v5555 = vrot.slane %v5551, 4
        %v5557 = vshrl.u32 %v5491, 16
        %v5559 = vrot.slane %v5557, 7
        %v5560 = vshll.u32 %v5491, 16
        %v5562 = vor.u32 %v5559, %v5560
        %v5563 = vsel %vm1130, %v5555, %v5562
        %v5565 = vshrl.u32 %v5492, 16
        %v5567 = vrot.slane %v5565, 7
        %v5568 = vshll.u32 %v5492, 16
        %v5570 = vor.u32 %v5567, %v5568
        %v5571 = vrot.slane %v5567, 4
        %v5573 = vshrl.u32 %v5493, 16
        %v5575 = vrot.slane %v5573, 7
        %v5576 = vshll.u32 %v5493, 16
        %v5578 = vor.u32 %v5575, %v5576
        %v5579 = vsel %vm1130, %v5571, %v5578
        %v5581 = vshrl.u32 %v5494, 16
        %v5583 = vrot.slane %v5581, 7
        %v5584 = vshll.u32 %v5494, 16
        %v5586 = vor.u32 %v5583, %v5584
        %v5587 = vrot.slane %v5583, 4
        %v5589 = vshrl.u32 %v5495, 16
        %v5591 = vrot.slane %v5589, 7
        %v5592 = vshll.u32 %v5495, 16
        %v5594 = vor.u32 %v5591, %v5592
        %v5595 = vsel %vm1130, %v5587, %v5594
        %v5597 = vshrl.u32 %v5496, 16
        %v5599 = vrot.slane %v5597, 7
        %v5600 = vshll.u32 %v5496, 16
        %v5602 = vor.u32 %v5599, %v5600
        %v5603 = vrot.slane %v5599, 4
        %v5605 = vshrl.u32 %v5497, 16
        %v5607 = vrot.slane %v5605, 7
        %v5608 = vshll.u32 %v5497, 16
        %v5610 = vor.u32 %v5607, %v5608
        %v5611 = vsel %vm1130, %v5603, %v5610
        %v5613 = vshrl.u32 %v5498, 16
        %v5615 = vrot.slane %v5613, 7
        %v5616 = vshll.u32 %v5498, 16
        %v5618 = vor.u32 %v5615, %v5616
        %v5619 = vrot.slane %v5615, 4
        %v5621 = vshrl.u32 %v5499, 16
        %v5623 = vrot.slane %v5621, 7
        %v5624 = vshll.u32 %v5499, 16
        %v5626 = vor.u32 %v5623, %v5624
        %v5627 = vsel %vm1130, %v5619, %v5626
        %v5629 = vshrl.u32 %v5500, 16
        %v5631 = vrot.slane %v5629, 7
        %v5632 = vshll.u32 %v5500, 16
        %v5634 = vor.u32 %v5631, %v5632
        %v5635 = vrot.slane %v5631, 4
        %v5637 = vshrl.u32 %v5501, 16
        %v5639 = vrot.slane %v5637, 7
        %v5640 = vshll.u32 %v5501, 16
        %v5642 = vor.u32 %v5639, %v5640
        %v5643 = vsel %vm1130, %v5635, %v5642
        %v5645 = vshrl.u32 %v5502, 16
        %v5647 = vrot.slane %v5645, 7
        %v5648 = vshll.u32 %v5502, 16
        %v5650 = vor.u32 %v5647, %v5648
        %v5651 = vrot.slane %v5647, 4
        %v5653 = vshrl.u32 %v5503, 16
        %v5655 = vrot.slane %v5653, 7
        %v5656 = vshll.u32 %v5503, 16
        %v5658 = vor.u32 %v5655, %v5656
        %v5659 = vsel %vm1130, %v5651, %v5658
        %v5661 = vshrl.u32 %v5504, 16
        %v5663 = vrot.slane %v5661, 7
        %v5664 = vshll.u32 %v5504, 16
        %v5666 = vor.u32 %v5663, %v5664
        %v5667 = vrot.slane %v5663, 4
        %v5669 = vshrl.u32 %v5505, 16
        %v5671 = vrot.slane %v5669, 7
        %v5672 = vshll.u32 %v5505, 16
        %v5674 = vor.u32 %v5671, %v5672
        %v5675 = vsel %vm1130, %v5667, %v5674
        %v5677 = vshrl.u32 %v5506, 16
        %v5679 = vrot.slane %v5677, 7
        %v5680 = vshll.u32 %v5506, 16
        %v5682 = vor.u32 %v5679, %v5680
        %v5683 = vrot.slane %v5679, 4
        %v5685 = vshrl.u32 %v5507, 16
        %v5687 = vrot.slane %v5685, 7
        %v5688 = vshll.u32 %v5507, 16
        %v5690 = vor.u32 %v5687, %v5688
        %v5691 = vsel %vm1130, %v5683, %v5690
        %v5693 = vshrl.u32 %v5508, 16
        %v5695 = vrot.slane %v5693, 7
        %v5696 = vshll.u32 %v5508, 16
        %v5698 = vor.u32 %v5695, %v5696
        %v5699 = vrot.slane %v5695, 4
        %v5701 = vshrl.u32 %v5509, 16
        %v5703 = vrot.slane %v5701, 7
        %v5704 = vshll.u32 %v5509, 16
        %v5706 = vor.u32 %v5703, %v5704
        %v5707 = vsel %vm1130, %v5699, %v5706
        %v5709 = vshrl.u32 %v5510, 16
        %v5711 = vrot.slane %v5709, 7
        %v5712 = vshll.u32 %v5510, 16
        %v5714 = vor.u32 %v5711, %v5712
        %v5715 = vrot.slane %v5711, 4
        %v5717 = vshrl.u32 %v5511, 16
        %v5719 = vrot.slane %v5717, 7
        %v5720 = vshll.u32 %v5511, 16
        %v5722 = vor.u32 %v5719, %v5720
        %v5723 = vsel %vm1130, %v5715, %v5722
        %v5725 = vshrl.u32 %v5512, 16
        %v5727 = vrot.slane %v5725, 7
        %v5728 = vshll.u32 %v5512, 16
        %v5730 = vor.u32 %v5727, %v5728
        %v5731 = vrot.slane %v5727, 4
        %v5733 = vshrl.u32 %v5513, 16
        %v5735 = vrot.slane %v5733, 7
        %v5736 = vshll.u32 %v5513, 16
        %v5738 = vor.u32 %v5735, %v5736
        %v5739 = vsel %vm1130, %v5731, %v5738
        %v5741 = vshrl.u32 %v5514, 16
        %v5743 = vrot.slane %v5741, 7
        %v5744 = vshll.u32 %v5514, 16
        %v5746 = vor.u32 %v5743, %v5744
        %v5747 = vrot.slane %v5743, 4
        %v5749 = vshrl.u32 %v5515, 16
        %v5751 = vrot.slane %v5749, 7
        %v5752 = vshll.u32 %v5515, 16
        %v5754 = vor.u32 %v5751, %v5752
        %v5755 = vsel %vm1130, %v5747, %v5754
        %s5786 = scalar_lea.vmem [#allocation3], 40
        %vm5787 = vcmask 519168
        %vm5788 = vmand %vm5787, %vm1403
        %v5789 = vld [vmem:[%s5786] sm:$0xf]
        %v5790 = vsel %vm5788, %v5522, %v5789
        %5791 = vst [vmem:[%s5786] sm:$0xf] %v5790
        %5792 = vst.msk [vmem:[%s5786 + $0x14] sm:$0xf] %vm5388, %v5531
        %v5793 = vld [vmem:[%s5786 + $0x28] sm:$0xf]
        %v5794 = vsel %vm5788, %v5538, %v5793
        %5795 = vst [vmem:[%s5786 + $0x28] sm:$0xf] %v5794
        %5796 = vst.msk [vmem:[%s5786 + $0x3c] sm:$0xf] %vm5388, %v5547
        %v5797 = vld [vmem:[%s5786 + $0x50] sm:$0xf]
        %v5798 = vsel %vm5788, %v5554, %v5797
        %5799 = vst [vmem:[%s5786 + $0x50] sm:$0xf] %v5798
        %5800 = vst.msk [vmem:[%s5786 + $0x64] sm:$0xf] %vm5388, %v5563
        %v5801 = vld [vmem:[%s5786 + $0x78] sm:$0xf]
        %v5802 = vsel %vm5788, %v5570, %v5801
        %5803 = vst [vmem:[%s5786 + $0x78] sm:$0xf] %v5802
        %5804 = vst.msk [vmem:[%s5786 + $0x8c] sm:$0xf] %vm5388, %v5579
        %v5805 = vld [vmem:[%s5786 + $0xa0] sm:$0xf]
        %v5806 = vsel %vm5788, %v5586, %v5805
        %5807 = vst [vmem:[%s5786 + $0xa0] sm:$0xf] %v5806
        %5808 = vst.msk [vmem:[%s5786 + $0xb4] sm:$0xf] %vm5388, %v5595
        %v5809 = vld [vmem:[%s5786 + $0xc8] sm:$0xf]
        %v5810 = vsel %vm5788, %v5602, %v5809
        %5811 = vst [vmem:[%s5786 + $0xc8] sm:$0xf] %v5810
        %5812 = vst.msk [vmem:[%s5786 + $0xdc] sm:$0xf] %vm5388, %v5611
        %v5813 = vld [vmem:[%s5786 + $0xf0] sm:$0xf]
        %v5814 = vsel %vm5788, %v5618, %v5813
        %5815 = vst [vmem:[%s5786 + $0xf0] sm:$0xf] %v5814
        %5816 = vst.msk [vmem:[%s5786 + $0x104] sm:$0xf] %vm5388, %v5627
        %v5817 = vld [vmem:[%s5786 + $0x118] sm:$0xf]
        %v5818 = vsel %vm5788, %v5634, %v5817
        %5819 = vst [vmem:[%s5786 + $0x118] sm:$0xf] %v5818
        %5820 = vst.msk [vmem:[%s5786 + $0x12c] sm:$0xf] %vm5388, %v5643
        %v5821 = vld [vmem:[%s5786 + $0x140] sm:$0xf]
        %v5822 = vsel %vm5788, %v5650, %v5821
        %5823 = vst [vmem:[%s5786 + $0x140] sm:$0xf] %v5822
        %5824 = vst.msk [vmem:[%s5786 + $0x154] sm:$0xf] %vm5388, %v5659
        %v5825 = vld [vmem:[%s5786 + $0x168] sm:$0xf]
        %v5826 = vsel %vm5788, %v5666, %v5825
        %5827 = vst [vmem:[%s5786 + $0x168] sm:$0xf] %v5826
        %5828 = vst.msk [vmem:[%s5786 + $0x17c] sm:$0xf] %vm5388, %v5675
        %v5829 = vld [vmem:[%s5786 + $0x190] sm:$0xf]
        %v5830 = vsel %vm5788, %v5682, %v5829
        %5831 = vst [vmem:[%s5786 + $0x190] sm:$0xf] %v5830
        %5832 = vst.msk [vmem:[%s5786 + $0x1a4] sm:$0xf] %vm5388, %v5691
        %v5833 = vld [vmem:[%s5786 + $0x1b8] sm:$0xf]
        %v5834 = vsel %vm5788, %v5698, %v5833
        %5835 = vst [vmem:[%s5786 + $0x1b8] sm:$0xf] %v5834
        %5836 = vst.msk [vmem:[%s5786 + $0x1cc] sm:$0xf] %vm5388, %v5707
        %v5837 = vld [vmem:[%s5786 + $0x1e0] sm:$0xf]
        %v5838 = vsel %vm5788, %v5714, %v5837
        %5839 = vst [vmem:[%s5786 + $0x1e0] sm:$0xf] %v5838
        %5840 = vst.msk [vmem:[%s5786 + $0x1f4] sm:$0xf] %vm5388, %v5723
        %v5841 = vld [vmem:[%s5786 + $0x208] sm:$0xf]
        %v5842 = vsel %vm5788, %v5730, %v5841
        %5843 = vst [vmem:[%s5786 + $0x208] sm:$0xf] %v5842
        %5844 = vst.msk [vmem:[%s5786 + $0x21c] sm:$0xf] %vm5388, %v5739
        %v5845 = vld [vmem:[%s5786 + $0x230] sm:$0xf]
        %v5846 = vsel %vm5788, %v5746, %v5845
        %5847 = vst [vmem:[%s5786 + $0x230] sm:$0xf] %v5846
        %5848 = vst.msk [vmem:[%s5786 + $0x244] sm:$0xf] %vm5388, %v5755
        %vm5849 = vcmask 1043968
        %5850 = vst.msk [vmem:[#allocation3] sm:$0xf] %vm5849, 0
        %5851 = vst.msk [vmem:[#allocation3 + $0x14] sm:$0xf] %vm5849, 0
        %5852 = vrot.lane.b32.xlu0 %v5486, 64
        %v5853 = vpop.permute.xlu0 %5852
        %5854 = vrot.lane.b32.xlu0 %v5487, 64
        %v5855 = vpop.permute.xlu0 %5854
        %5856 = vrot.lane.b32.xlu0 %v5488, 64
        %v5857 = vpop.permute.xlu0 %5856
        %5858 = vrot.lane.b32.xlu0 %v5489, 64
        %v5859 = vpop.permute.xlu0 %5858
        %5860 = vrot.lane.b32.xlu0 %v5490, 64
        %v5861 = vpop.permute.xlu0 %5860
        %5862 = vrot.lane.b32.xlu0 %v5491, 64
        %v5863 = vpop.permute.xlu0 %5862
        %5864 = vrot.lane.b32.xlu0 %v5492, 64
        %v5865 = vpop.permute.xlu0 %5864
        %5866 = vrot.lane.b32.xlu0 %v5493, 64
        %v5867 = vpop.permute.xlu0 %5866
        %5868 = vrot.lane.b32.xlu0 %v5494, 64
        %v5869 = vpop.permute.xlu0 %5868
        %5870 = vrot.lane.b32.xlu0 %v5495, 64
        %v5871 = vpop.permute.xlu0 %5870
        %5872 = vrot.lane.b32.xlu0 %v5496, 64
        %v5873 = vpop.permute.xlu0 %5872
        %5874 = vrot.lane.b32.xlu0 %v5497, 64
        %v5875 = vpop.permute.xlu0 %5874
        %5876 = vrot.lane.b32.xlu0 %v5498, 64
        %v5877 = vpop.permute.xlu0 %5876
        %5878 = vrot.lane.b32.xlu0 %v5499, 64
        %v5879 = vpop.permute.xlu0 %5878
        %5880 = vrot.lane.b32.xlu0 %v5500, 64
        %v5881 = vpop.permute.xlu0 %5880
        %5882 = vrot.lane.b32.xlu0 %v5501, 64
        %v5883 = vpop.permute.xlu0 %5882
        %5884 = vrot.lane.b32.xlu0 %v5502, 64
        %v5885 = vpop.permute.xlu0 %5884
        %5886 = vrot.lane.b32.xlu0 %v5503, 64
        %v5887 = vpop.permute.xlu0 %5886
        %5888 = vrot.lane.b32.xlu0 %v5504, 64
        %v5889 = vpop.permute.xlu0 %5888
        %5890 = vrot.lane.b32.xlu0 %v5505, 64
        %v5891 = vpop.permute.xlu0 %5890
        %5892 = vrot.lane.b32.xlu0 %v5506, 64
        %v5893 = vpop.permute.xlu0 %5892
        %5894 = vrot.lane.b32.xlu0 %v5507, 64
        %v5895 = vpop.permute.xlu0 %5894
        %5896 = vrot.lane.b32.xlu0 %v5508, 64
        %v5897 = vpop.permute.xlu0 %5896
        %5898 = vrot.lane.b32.xlu0 %v5509, 64
        %v5899 = vpop.permute.xlu0 %5898
        %5900 = vrot.lane.b32.xlu0 %v5510, 64
        %v5901 = vpop.permute.xlu0 %5900
        %5902 = vrot.lane.b32.xlu0 %v5511, 64
        %v5903 = vpop.permute.xlu0 %5902
        %5904 = vrot.lane.b32.xlu0 %v5512, 64
        %v5905 = vpop.permute.xlu0 %5904
        %5906 = vrot.lane.b32.xlu0 %v5513, 64
        %v5907 = vpop.permute.xlu0 %5906
        %5908 = vrot.lane.b32.xlu0 %v5514, 64
        %v5909 = vpop.permute.xlu0 %5908
        %5910 = vrot.lane.b32.xlu0 %v5515, 64
        %v5911 = vpop.permute.xlu0 %5910
        %5942 = vst.msk [vmem:[%s5786] sm:$0xf] %vm5849, %v5853
        %5943 = vst.msk [vmem:[%s5786 + $0x14] sm:$0xf] %vm5849, %v5855
        %5944 = vst.msk [vmem:[%s5786 + $0x28] sm:$0xf] %vm5849, %v5857
        %5945 = vst.msk [vmem:[%s5786 + $0x3c] sm:$0xf] %vm5849, %v5859
        %5946 = vst.msk [vmem:[%s5786 + $0x50] sm:$0xf] %vm5849, %v5861
        %5947 = vst.msk [vmem:[%s5786 + $0x64] sm:$0xf] %vm5849, %v5863
        %5948 = vst.msk [vmem:[%s5786 + $0x78] sm:$0xf] %vm5849, %v5865
        %5949 = vst.msk [vmem:[%s5786 + $0x8c] sm:$0xf] %vm5849, %v5867
        %5950 = vst.msk [vmem:[%s5786 + $0xa0] sm:$0xf] %vm5849, %v5869
        %5951 = vst.msk [vmem:[%s5786 + $0xb4] sm:$0xf] %vm5849, %v5871
        %5952 = vst.msk [vmem:[%s5786 + $0xc8] sm:$0xf] %vm5849, %v5873
        %5953 = vst.msk [vmem:[%s5786 + $0xdc] sm:$0xf] %vm5849, %v5875
        %5954 = vst.msk [vmem:[%s5786 + $0xf0] sm:$0xf] %vm5849, %v5877
        %5955 = vst.msk [vmem:[%s5786 + $0x104] sm:$0xf] %vm5849, %v5879
        %5956 = vst.msk [vmem:[%s5786 + $0x118] sm:$0xf] %vm5849, %v5881
        %5957 = vst.msk [vmem:[%s5786 + $0x12c] sm:$0xf] %vm5849, %v5883
        %5958 = vst.msk [vmem:[%s5786 + $0x140] sm:$0xf] %vm5849, %v5885
        %5959 = vst.msk [vmem:[%s5786 + $0x154] sm:$0xf] %vm5849, %v5887
        %5960 = vst.msk [vmem:[%s5786 + $0x168] sm:$0xf] %vm5849, %v5889
        %5961 = vst.msk [vmem:[%s5786 + $0x17c] sm:$0xf] %vm5849, %v5891
        %5962 = vst.msk [vmem:[%s5786 + $0x190] sm:$0xf] %vm5849, %v5893
        %5963 = vst.msk [vmem:[%s5786 + $0x1a4] sm:$0xf] %vm5849, %v5895
        %5964 = vst.msk [vmem:[%s5786 + $0x1b8] sm:$0xf] %vm5849, %v5897
        %5965 = vst.msk [vmem:[%s5786 + $0x1cc] sm:$0xf] %vm5849, %v5899
        %5966 = vst.msk [vmem:[%s5786 + $0x1e0] sm:$0xf] %vm5849, %v5901
        %5967 = vst.msk [vmem:[%s5786 + $0x1f4] sm:$0xf] %vm5849, %v5903
        %5968 = vst.msk [vmem:[%s5786 + $0x208] sm:$0xf] %vm5849, %v5905
        %5969 = vst.msk [vmem:[%s5786 + $0x21c] sm:$0xf] %vm5849, %v5907
        %5970 = vst.msk [vmem:[%s5786 + $0x230] sm:$0xf] %vm5849, %v5909
        %5971 = vst.msk [vmem:[%s5786 + $0x244] sm:$0xf] %vm5849, %v5911
        %5972 = vst.msk [vmem:[#allocation3 + $0x4] sm:$0xf] %vm5388, 0
        %5973 = vst.msk [vmem:[#allocation3 + $0x18] sm:$0xf] %vm5388, 0
        %vm5974 = vcmask 519171
        %vm5975 = vmand %vm5974, %vm1592
        %v5976 = vld [vmem:[#allocation3 + $0x18] sm:$0x8]
        %v5977 = vsel %vm5975, 0, %v5976
        %5978 = vst [vmem:[#allocation3 + $0x18] sm:$0x8] %v5977
        %v5979 = vld [vmem:[#allocation3 + $0x40] sm:$0x8]
        %v5980 = vsel %vm5975, 0, %v5979
        %5981 = vst [vmem:[#allocation3 + $0x40] sm:$0x8] %v5980
        %v5982 = vld [vmem:[#allocation3 + $0x68] sm:$0x8]
        %v5983 = vsel %vm5975, 0, %v5982
        %5984 = vst [vmem:[#allocation3 + $0x68] sm:$0x8] %v5983
        %v5985 = vld [vmem:[#allocation3 + $0x90] sm:$0x8]
        %v5986 = vsel %vm5975, 0, %v5985
        %5987 = vst [vmem:[#allocation3 + $0x90] sm:$0x8] %v5986
        %v5988 = vld [vmem:[#allocation3 + $0xb8] sm:$0x8]
        %v5989 = vsel %vm5975, 0, %v5988
        %5990 = vst [vmem:[#allocation3 + $0xb8] sm:$0x8] %v5989
        %v5991 = vld [vmem:[#allocation3 + $0xe0] sm:$0x8]
        %v5992 = vsel %vm5975, 0, %v5991
        %5993 = vst [vmem:[#allocation3 + $0xe0] sm:$0x8] %v5992
        %v5994 = vld [vmem:[#allocation3 + $0x108] sm:$0x8]
        %v5995 = vsel %vm5975, 0, %v5994
        %5996 = vst [vmem:[#allocation3 + $0x108] sm:$0x8] %v5995
        %v5997 = vld [vmem:[#allocation3 + $0x130] sm:$0x8]
        %v5998 = vsel %vm5975, 0, %v5997
        %5999 = vst [vmem:[#allocation3 + $0x130] sm:$0x8] %v5998
        %v6000 = vld [vmem:[#allocation3 + $0x158] sm:$0x8]
        %v6001 = vsel %vm5975, 0, %v6000
        %6002 = vst [vmem:[#allocation3 + $0x158] sm:$0x8] %v6001
        %v6003 = vld [vmem:[#allocation3 + $0x180] sm:$0x8]
        %v6004 = vsel %vm5975, 0, %v6003
        %6005 = vst [vmem:[#allocation3 + $0x180] sm:$0x8] %v6004
        %v6006 = vld [vmem:[#allocation3 + $0x1a8] sm:$0x8]
        %v6007 = vsel %vm5975, 0, %v6006
        %6008 = vst [vmem:[#allocation3 + $0x1a8] sm:$0x8] %v6007
        %v6009 = vld [vmem:[#allocation3 + $0x1d0] sm:$0x8]
        %v6010 = vsel %vm5975, 0, %v6009
        %6011 = vst [vmem:[#allocation3 + $0x1d0] sm:$0x8] %v6010
        %v6012 = vld [vmem:[#allocation3 + $0x1f8] sm:$0x8]
        %v6013 = vsel %vm5975, 0, %v6012
        %6014 = vst [vmem:[#allocation3 + $0x1f8] sm:$0x8] %v6013
        %v6015 = vld [vmem:[#allocation3 + $0x220] sm:$0x8]
        %v6016 = vsel %vm5975, 0, %v6015
        %6017 = vst [vmem:[#allocation3 + $0x220] sm:$0x8] %v6016
        %v6018 = vld [vmem:[#allocation3 + $0x248] sm:$0x8]
        %v6019 = vsel %vm5975, 0, %v6018
        %6020 = vst [vmem:[#allocation3 + $0x248] sm:$0x8] %v6019
        %v6021 = vld [vmem:[#allocation3 + $0x270] sm:$0x8]
        %v6022 = vsel %vm5975, 0, %v6021
        %6023 = vst [vmem:[#allocation3 + $0x270] sm:$0x8] %v6022
        %v6024 = vrot.slane %v5517, 4
        %v6025 = vrot.slane %v5520, 5
        %v6026 = vor.u32 %v6024, %v6025
        %v6027 = vrot.slane %v6026, 4
        %v6028 = vrot.slane %v5528, 5
        %v6029 = vsel %vm1644, %v6027, %v6028
        %v6030 = vrot.slane %v5525, 4
        %v6031 = vor.u32 %v6030, %v6028
        %v6032 = vrot.slane %v6031, 4
        %v6033 = vrot.slane %v5533, 4
        %v6034 = vrot.slane %v5536, 5
        %v6035 = vor.u32 %v6033, %v6034
        %v6036 = vrot.slane %v6035, 4
        %v6037 = vrot.slane %v5544, 5
        %v6038 = vsel %vm1644, %v6036, %v6037
        %v6039 = vrot.slane %v5541, 4
        %v6040 = vor.u32 %v6039, %v6037
        %v6041 = vrot.slane %v6040, 4
        %v6042 = vrot.slane %v5549, 4
        %v6043 = vrot.slane %v5552, 5
        %v6044 = vor.u32 %v6042, %v6043
        %v6045 = vrot.slane %v6044, 4
        %v6046 = vrot.slane %v5560, 5
        %v6047 = vsel %vm1644, %v6045, %v6046
        %v6048 = vrot.slane %v5557, 4
        %v6049 = vor.u32 %v6048, %v6046
        %v6050 = vrot.slane %v6049, 4
        %v6051 = vrot.slane %v5565, 4
        %v6052 = vrot.slane %v5568, 5
        %v6053 = vor.u32 %v6051, %v6052
        %v6054 = vrot.slane %v6053, 4
        %v6055 = vrot.slane %v5576, 5
        %v6056 = vsel %vm1644, %v6054, %v6055
        %v6057 = vrot.slane %v5573, 4
        %v6058 = vor.u32 %v6057, %v6055
        %v6059 = vrot.slane %v6058, 4
        %v6060 = vrot.slane %v5581, 4
        %v6061 = vrot.slane %v5584, 5
        %v6062 = vor.u32 %v6060, %v6061
        %v6063 = vrot.slane %v6062, 4
        %v6064 = vrot.slane %v5592, 5
        %v6065 = vsel %vm1644, %v6063, %v6064
        %v6066 = vrot.slane %v5589, 4
        %v6067 = vor.u32 %v6066, %v6064
        %v6068 = vrot.slane %v6067, 4
        %v6069 = vrot.slane %v5597, 4
        %v6070 = vrot.slane %v5600, 5
        %v6071 = vor.u32 %v6069, %v6070
        %v6072 = vrot.slane %v6071, 4
        %v6073 = vrot.slane %v5608, 5
        %v6074 = vsel %vm1644, %v6072, %v6073
        %v6075 = vrot.slane %v5605, 4
        %v6076 = vor.u32 %v6075, %v6073
        %v6077 = vrot.slane %v6076, 4
        %v6078 = vrot.slane %v5613, 4
        %v6079 = vrot.slane %v5616, 5
        %v6080 = vor.u32 %v6078, %v6079
        %v6081 = vrot.slane %v6080, 4
        %v6082 = vrot.slane %v5624, 5
        %v6083 = vsel %vm1644, %v6081, %v6082
        %v6084 = vrot.slane %v5621, 4
        %v6085 = vor.u32 %v6084, %v6082
        %v6086 = vrot.slane %v6085, 4
        %v6087 = vrot.slane %v5629, 4
        %v6088 = vrot.slane %v5632, 5
        %v6089 = vor.u32 %v6087, %v6088
        %v6090 = vrot.slane %v6089, 4
        %v6091 = vrot.slane %v5640, 5
        %v6092 = vsel %vm1644, %v6090, %v6091
        %v6093 = vrot.slane %v5637, 4
        %v6094 = vor.u32 %v6093, %v6091
        %v6095 = vrot.slane %v6094, 4
        %v6096 = vrot.slane %v5645, 4
        %v6097 = vrot.slane %v5648, 5
        %v6098 = vor.u32 %v6096, %v6097
        %v6099 = vrot.slane %v6098, 4
        %v6100 = vrot.slane %v5656, 5
        %v6101 = vsel %vm1644, %v6099, %v6100
        %v6102 = vrot.slane %v5653, 4
        %v6103 = vor.u32 %v6102, %v6100
        %v6104 = vrot.slane %v6103, 4
        %v6105 = vrot.slane %v5661, 4
        %v6106 = vrot.slane %v5664, 5
        %v6107 = vor.u32 %v6105, %v6106
        %v6108 = vrot.slane %v6107, 4
        %v6109 = vrot.slane %v5672, 5
        %v6110 = vsel %vm1644, %v6108, %v6109
        %v6111 = vrot.slane %v5669, 4
        %v6112 = vor.u32 %v6111, %v6109
        %v6113 = vrot.slane %v6112, 4
        %v6114 = vrot.slane %v5677, 4
        %v6115 = vrot.slane %v5680, 5
        %v6116 = vor.u32 %v6114, %v6115
        %v6117 = vrot.slane %v6116, 4
        %v6118 = vrot.slane %v5688, 5
        %v6119 = vsel %vm1644, %v6117, %v6118
        %v6120 = vrot.slane %v5685, 4
        %v6121 = vor.u32 %v6120, %v6118
        %v6122 = vrot.slane %v6121, 4
        %v6123 = vrot.slane %v5693, 4
        %v6124 = vrot.slane %v5696, 5
        %v6125 = vor.u32 %v6123, %v6124
        %v6126 = vrot.slane %v6125, 4
        %v6127 = vrot.slane %v5704, 5
        %v6128 = vsel %vm1644, %v6126, %v6127
        %v6129 = vrot.slane %v5701, 4
        %v6130 = vor.u32 %v6129, %v6127
        %v6131 = vrot.slane %v6130, 4
        %v6132 = vrot.slane %v5709, 4
        %v6133 = vrot.slane %v5712, 5
        %v6134 = vor.u32 %v6132, %v6133
        %v6135 = vrot.slane %v6134, 4
        %v6136 = vrot.slane %v5720, 5
        %v6137 = vsel %vm1644, %v6135, %v6136
        %v6138 = vrot.slane %v5717, 4
        %v6139 = vor.u32 %v6138, %v6136
        %v6140 = vrot.slane %v6139, 4
        %v6141 = vrot.slane %v5725, 4
        %v6142 = vrot.slane %v5728, 5
        %v6143 = vor.u32 %v6141, %v6142
        %v6144 = vrot.slane %v6143, 4
        %v6145 = vrot.slane %v5736, 5
        %v6146 = vsel %vm1644, %v6144, %v6145
        %v6147 = vrot.slane %v5733, 4
        %v6148 = vor.u32 %v6147, %v6145
        %v6149 = vrot.slane %v6148, 4
        %v6150 = vrot.slane %v5741, 4
        %v6151 = vrot.slane %v5744, 5
        %v6152 = vor.u32 %v6150, %v6151
        %v6153 = vrot.slane %v6152, 4
        %v6154 = vrot.slane %v5752, 5
        %v6155 = vsel %vm1644, %v6153, %v6154
        %v6156 = vrot.slane %v5749, 4
        %v6157 = vor.u32 %v6156, %v6154
        %v6158 = vrot.slane %v6157, 4
        %6189 = vst.msk [vmem:[%s5786 + $0x4] sm:$0xf] %vm5388, %v6029
        %vm6190 = vmand %vm5787, %vm1642
        %v6191 = vld [vmem:[%s5786 + $0x18] sm:$0xf]
        %v6192 = vsel %vm6190, %v6032, %v6191
        %6193 = vst [vmem:[%s5786 + $0x18] sm:$0xf] %v6192
        %6194 = vst.msk [vmem:[%s5786 + $0x2c] sm:$0xf] %vm5388, %v6038
        %v6195 = vld [vmem:[%s5786 + $0x40] sm:$0xf]
        %v6196 = vsel %vm6190, %v6041, %v6195
        %6197 = vst [vmem:[%s5786 + $0x40] sm:$0xf] %v6196
        %6198 = vst.msk [vmem:[%s5786 + $0x54] sm:$0xf] %vm5388, %v6047
        %v6199 = vld [vmem:[%s5786 + $0x68] sm:$0xf]
        %v6200 = vsel %vm6190, %v6050, %v6199
        %6201 = vst [vmem:[%s5786 + $0x68] sm:$0xf] %v6200
        %6202 = vst.msk [vmem:[%s5786 + $0x7c] sm:$0xf] %vm5388, %v6056
        %v6203 = vld [vmem:[%s5786 + $0x90] sm:$0xf]
        %v6204 = vsel %vm6190, %v6059, %v6203
        %6205 = vst [vmem:[%s5786 + $0x90] sm:$0xf] %v6204
        %6206 = vst.msk [vmem:[%s5786 + $0xa4] sm:$0xf] %vm5388, %v6065
        %v6207 = vld [vmem:[%s5786 + $0xb8] sm:$0xf]
        %v6208 = vsel %vm6190, %v6068, %v6207
        %6209 = vst [vmem:[%s5786 + $0xb8] sm:$0xf] %v6208
        %6210 = vst.msk [vmem:[%s5786 + $0xcc] sm:$0xf] %vm5388, %v6074
        %v6211 = vld [vmem:[%s5786 + $0xe0] sm:$0xf]
        %v6212 = vsel %vm6190, %v6077, %v6211
        %6213 = vst [vmem:[%s5786 + $0xe0] sm:$0xf] %v6212
        %6214 = vst.msk [vmem:[%s5786 + $0xf4] sm:$0xf] %vm5388, %v6083
        %v6215 = vld [vmem:[%s5786 + $0x108] sm:$0xf]
        %v6216 = vsel %vm6190, %v6086, %v6215
        %6217 = vst [vmem:[%s5786 + $0x108] sm:$0xf] %v6216
        %6218 = vst.msk [vmem:[%s5786 + $0x11c] sm:$0xf] %vm5388, %v6092
        %v6219 = vld [vmem:[%s5786 + $0x130] sm:$0xf]
        %v6220 = vsel %vm6190, %v6095, %v6219
        %6221 = vst [vmem:[%s5786 + $0x130] sm:$0xf] %v6220
        %6222 = vst.msk [vmem:[%s5786 + $0x144] sm:$0xf] %vm5388, %v6101
        %v6223 = vld [vmem:[%s5786 + $0x158] sm:$0xf]
        %v6224 = vsel %vm6190, %v6104, %v6223
        %6225 = vst [vmem:[%s5786 + $0x158] sm:$0xf] %v6224
        %6226 = vst.msk [vmem:[%s5786 + $0x16c] sm:$0xf] %vm5388, %v6110
        %v6227 = vld [vmem:[%s5786 + $0x180] sm:$0xf]
        %v6228 = vsel %vm6190, %v6113, %v6227
        %6229 = vst [vmem:[%s5786 + $0x180] sm:$0xf] %v6228
        %6230 = vst.msk [vmem:[%s5786 + $0x194] sm:$0xf] %vm5388, %v6119
        %v6231 = vld [vmem:[%s5786 + $0x1a8] sm:$0xf]
        %v6232 = vsel %vm6190, %v6122, %v6231
        %6233 = vst [vmem:[%s5786 + $0x1a8] sm:$0xf] %v6232
        %6234 = vst.msk [vmem:[%s5786 + $0x1bc] sm:$0xf] %vm5388, %v6128
        %v6235 = vld [vmem:[%s5786 + $0x1d0] sm:$0xf]
        %v6236 = vsel %vm6190, %v6131, %v6235
        %6237 = vst [vmem:[%s5786 + $0x1d0] sm:$0xf] %v6236
        %6238 = vst.msk [vmem:[%s5786 + $0x1e4] sm:$0xf] %vm5388, %v6137
        %v6239 = vld [vmem:[%s5786 + $0x1f8] sm:$0xf]
        %v6240 = vsel %vm6190, %v6140, %v6239
        %6241 = vst [vmem:[%s5786 + $0x1f8] sm:$0xf] %v6240
        %6242 = vst.msk [vmem:[%s5786 + $0x20c] sm:$0xf] %vm5388, %v6146
        %v6243 = vld [vmem:[%s5786 + $0x220] sm:$0xf]
        %v6244 = vsel %vm6190, %v6149, %v6243
        %6245 = vst [vmem:[%s5786 + $0x220] sm:$0xf] %v6244
        %6246 = vst.msk [vmem:[%s5786 + $0x234] sm:$0xf] %vm5388, %v6155
        %v6247 = vld [vmem:[%s5786 + $0x248] sm:$0xf]
        %v6248 = vsel %vm6190, %v6158, %v6247
        %6249 = vst [vmem:[%s5786 + $0x248] sm:$0xf] %v6248
        %vm6250 = vcmask 1040896
        %vm6251 = vmand %vm6250, %vm1004
        %v6252 = vld [vmem:[#allocation3 + $0x4] sm:$0x1]
        %v6253 = vsel %vm6251, 0, %v6252
        %6254 = vst [vmem:[#allocation3 + $0x4] sm:$0x1] %v6253
        %v6255 = vld [vmem:[#allocation3 + $0x2c] sm:$0x1]
        %v6256 = vsel %vm6251, 0, %v6255
        %6257 = vst [vmem:[#allocation3 + $0x2c] sm:$0x1] %v6256
        %v6258 = vld [vmem:[#allocation3 + $0x54] sm:$0x1]
        %v6259 = vsel %vm6251, 0, %v6258
        %6260 = vst [vmem:[#allocation3 + $0x54] sm:$0x1] %v6259
        %v6261 = vld [vmem:[#allocation3 + $0x7c] sm:$0x1]
        %v6262 = vsel %vm6251, 0, %v6261
        %6263 = vst [vmem:[#allocation3 + $0x7c] sm:$0x1] %v6262
        %v6264 = vld [vmem:[#allocation3 + $0xa4] sm:$0x1]
        %v6265 = vsel %vm6251, 0, %v6264
        %6266 = vst [vmem:[#allocation3 + $0xa4] sm:$0x1] %v6265
        %v6267 = vld [vmem:[#allocation3 + $0xcc] sm:$0x1]
        %v6268 = vsel %vm6251, 0, %v6267
        %6269 = vst [vmem:[#allocation3 + $0xcc] sm:$0x1] %v6268
        %v6270 = vld [vmem:[#allocation3 + $0xf4] sm:$0x1]
        %v6271 = vsel %vm6251, 0, %v6270
        %6272 = vst [vmem:[#allocation3 + $0xf4] sm:$0x1] %v6271
        %v6273 = vld [vmem:[#allocation3 + $0x11c] sm:$0x1]
        %v6274 = vsel %vm6251, 0, %v6273
        %6275 = vst [vmem:[#allocation3 + $0x11c] sm:$0x1] %v6274
        %v6276 = vld [vmem:[#allocation3 + $0x144] sm:$0x1]
        %v6277 = vsel %vm6251, 0, %v6276
        %6278 = vst [vmem:[#allocation3 + $0x144] sm:$0x1] %v6277
        %v6279 = vld [vmem:[#allocation3 + $0x16c] sm:$0x1]
        %v6280 = vsel %vm6251, 0, %v6279
        %6281 = vst [vmem:[#allocation3 + $0x16c] sm:$0x1] %v6280
        %v6282 = vld [vmem:[#allocation3 + $0x194] sm:$0x1]
        %v6283 = vsel %vm6251, 0, %v6282
        %6284 = vst [vmem:[#allocation3 + $0x194] sm:$0x1] %v6283
        %v6285 = vld [vmem:[#allocation3 + $0x1bc] sm:$0x1]
        %v6286 = vsel %vm6251, 0, %v6285
        %6287 = vst [vmem:[#allocation3 + $0x1bc] sm:$0x1] %v6286
        %v6288 = vld [vmem:[#allocation3 + $0x1e4] sm:$0x1]
        %v6289 = vsel %vm6251, 0, %v6288
        %6290 = vst [vmem:[#allocation3 + $0x1e4] sm:$0x1] %v6289
        %v6291 = vld [vmem:[#allocation3 + $0x20c] sm:$0x1]
        %v6292 = vsel %vm6251, 0, %v6291
        %6293 = vst [vmem:[#allocation3 + $0x20c] sm:$0x1] %v6292
        %v6294 = vld [vmem:[#allocation3 + $0x234] sm:$0x1]
        %v6295 = vsel %vm6251, 0, %v6294
        %6296 = vst [vmem:[#allocation3 + $0x234] sm:$0x1] %v6295
        %v6297 = vld [vmem:[#allocation3 + $0x25c] sm:$0x1]
        %v6298 = vsel %vm6251, 0, %v6297
        %6299 = vst [vmem:[#allocation3 + $0x25c] sm:$0x1] %v6298
        %v6301 = vunpack.c.l.b16 %v5387
        %v6302 = vunpack.c.h.b16 %v5387
        %v6303 = vpack.c.b16 %v6301, %v6301
        %v6304 = vpack.c.b16 %v6302, %v6302
        %v6306 = vshrl.u32 %v6303, 16
        %v6308 = vrot.slane %v6306, 7
        %v6309 = vshll.u32 %v6303, 16
        %v6311 = vor.u32 %v6308, %v6309
        %v6312 = vrot.slane %v6308, 4
        %v6314 = vshrl.u32 %v6304, 16
        %v6316 = vrot.slane %v6314, 7
        %v6317 = vshll.u32 %v6304, 16
        %v6319 = vor.u32 %v6316, %v6317
        %v6320 = vsel %vm1130, %v6312, %v6319
        %6321 = vrot.lane.b32.xlu0 %v5522, 64
        %v6322 = vpop.permute.xlu0 %6321
        %6323 = vrot.lane.b32.xlu0 %v5531, 64
        %v6324 = vpop.permute.xlu0 %6323
        %6325 = vrot.lane.b32.xlu0 %v5538, 64
        %v6326 = vpop.permute.xlu0 %6325
        %6327 = vrot.lane.b32.xlu0 %v5547, 64
        %v6328 = vpop.permute.xlu0 %6327
        %6329 = vrot.lane.b32.xlu0 %v5554, 64
        %v6330 = vpop.permute.xlu0 %6329
        %6331 = vrot.lane.b32.xlu0 %v5563, 64
        %v6332 = vpop.permute.xlu0 %6331
        %6333 = vrot.lane.b32.xlu0 %v5570, 64
        %v6334 = vpop.permute.xlu0 %6333
        %6335 = vrot.lane.b32.xlu0 %v5579, 64
        %v6336 = vpop.permute.xlu0 %6335
        %6337 = vrot.lane.b32.xlu0 %v5586, 64
        %v6338 = vpop.permute.xlu0 %6337
        %6339 = vrot.lane.b32.xlu0 %v5595, 64
        %v6340 = vpop.permute.xlu0 %6339
        %6341 = vrot.lane.b32.xlu0 %v5602, 64
        %v6342 = vpop.permute.xlu0 %6341
        %6343 = vrot.lane.b32.xlu0 %v5611, 64
        %v6344 = vpop.permute.xlu0 %6343
        %6345 = vrot.lane.b32.xlu0 %v5618, 64
        %v6346 = vpop.permute.xlu0 %6345
        %6347 = vrot.lane.b32.xlu0 %v5627, 64
        %v6348 = vpop.permute.xlu0 %6347
        %6349 = vrot.lane.b32.xlu0 %v5634, 64
        %v6350 = vpop.permute.xlu0 %6349
        %6351 = vrot.lane.b32.xlu0 %v5643, 64
        %v6352 = vpop.permute.xlu0 %6351
        %6353 = vrot.lane.b32.xlu0 %v5650, 64
        %v6354 = vpop.permute.xlu0 %6353
        %6355 = vrot.lane.b32.xlu0 %v5659, 64
        %v6356 = vpop.permute.xlu0 %6355
        %6357 = vrot.lane.b32.xlu0 %v5666, 64
        %v6358 = vpop.permute.xlu0 %6357
        %6359 = vrot.lane.b32.xlu0 %v5675, 64
        %v6360 = vpop.permute.xlu0 %6359
        %6361 = vrot.lane.b32.xlu0 %v5682, 64
        %v6362 = vpop.permute.xlu0 %6361
        %6363 = vrot.lane.b32.xlu0 %v5691, 64
        %v6364 = vpop.permute.xlu0 %6363
        %6365 = vrot.lane.b32.xlu0 %v5698, 64
        %v6366 = vpop.permute.xlu0 %6365
        %6367 = vrot.lane.b32.xlu0 %v5707, 64
        %v6368 = vpop.permute.xlu0 %6367
        %6369 = vrot.lane.b32.xlu0 %v5714, 64
        %v6370 = vpop.permute.xlu0 %6369
        %6371 = vrot.lane.b32.xlu0 %v5723, 64
        %v6372 = vpop.permute.xlu0 %6371
        %6373 = vrot.lane.b32.xlu0 %v5730, 64
        %v6374 = vpop.permute.xlu0 %6373
        %6375 = vrot.lane.b32.xlu0 %v5739, 64
        %v6376 = vpop.permute.xlu0 %6375
        %6377 = vrot.lane.b32.xlu0 %v5746, 64
        %v6378 = vpop.permute.xlu0 %6377
        %6379 = vrot.lane.b32.xlu0 %v5755, 64
        %v6380 = vpop.permute.xlu0 %6379
        %6381 = vrot.lane.b32.xlu0 %v6311, 64
        %v6382 = vpop.permute.xlu0 %6381
        %6383 = vrot.lane.b32.xlu0 %v6320, 64
        %v6384 = vpop.permute.xlu0 %6383
        %vm6417 = vcmask 1043968
        %vm6418 = vmand %vm6417, %vm1403
        %v6419 = vld [vmem:[#allocation3 + $0x4] sm:$0xf]
        %v6420 = vsel %vm6418, %v6322, %v6419
        %6421 = vst [vmem:[#allocation3 + $0x4] sm:$0xf] %v6420
        %6422 = vst.msk [vmem:[#allocation3 + $0x18] sm:$0xf] %vm5849, %v6324
        %v6423 = vld [vmem:[#allocation3 + $0x2c] sm:$0xf]
        %v6424 = vsel %vm6418, %v6326, %v6423
        %6425 = vst [vmem:[#allocation3 + $0x2c] sm:$0xf] %v6424
        %6426 = vst.msk [vmem:[#allocation3 + $0x40] sm:$0xf] %vm5849, %v6328
        %v6427 = vld [vmem:[#allocation3 + $0x54] sm:$0xf]
        %v6428 = vsel %vm6418, %v6330, %v6427
        %6429 = vst [vmem:[#allocation3 + $0x54] sm:$0xf] %v6428
        %6430 = vst.msk [vmem:[#allocation3 + $0x68] sm:$0xf] %vm5849, %v6332
        %v6431 = vld [vmem:[#allocation3 + $0x7c] sm:$0xf]
        %v6432 = vsel %vm6418, %v6334, %v6431
        %6433 = vst [vmem:[#allocation3 + $0x7c] sm:$0xf] %v6432
        %6434 = vst.msk [vmem:[#allocation3 + $0x90] sm:$0xf] %vm5849, %v6336
        %v6435 = vld [vmem:[#allocation3 + $0xa4] sm:$0xf]
        %v6436 = vsel %vm6418, %v6338, %v6435
        %6437 = vst [vmem:[#allocation3 + $0xa4] sm:$0xf] %v6436
        %6438 = vst.msk [vmem:[#allocation3 + $0xb8] sm:$0xf] %vm5849, %v6340
        %v6439 = vld [vmem:[#allocation3 + $0xcc] sm:$0xf]
        %v6440 = vsel %vm6418, %v6342, %v6439
        %6441 = vst [vmem:[#allocation3 + $0xcc] sm:$0xf] %v6440
        %6442 = vst.msk [vmem:[#allocation3 + $0xe0] sm:$0xf] %vm5849, %v6344
        %v6443 = vld [vmem:[#allocation3 + $0xf4] sm:$0xf]
        %v6444 = vsel %vm6418, %v6346, %v6443
        %6445 = vst [vmem:[#allocation3 + $0xf4] sm:$0xf] %v6444
        %6446 = vst.msk [vmem:[#allocation3 + $0x108] sm:$0xf] %vm5849, %v6348
        %v6447 = vld [vmem:[#allocation3 + $0x11c] sm:$0xf]
        %v6448 = vsel %vm6418, %v6350, %v6447
        %6449 = vst [vmem:[#allocation3 + $0x11c] sm:$0xf] %v6448
        %6450 = vst.msk [vmem:[#allocation3 + $0x130] sm:$0xf] %vm5849, %v6352
        %v6451 = vld [vmem:[#allocation3 + $0x144] sm:$0xf]
        %v6452 = vsel %vm6418, %v6354, %v6451
        %6453 = vst [vmem:[#allocation3 + $0x144] sm:$0xf] %v6452
        %6454 = vst.msk [vmem:[#allocation3 + $0x158] sm:$0xf] %vm5849, %v6356
        %v6455 = vld [vmem:[#allocation3 + $0x16c] sm:$0xf]
        %v6456 = vsel %vm6418, %v6358, %v6455
        %6457 = vst [vmem:[#allocation3 + $0x16c] sm:$0xf] %v6456
        %6458 = vst.msk [vmem:[#allocation3 + $0x180] sm:$0xf] %vm5849, %v6360
        %v6459 = vld [vmem:[#allocation3 + $0x194] sm:$0xf]
        %v6460 = vsel %vm6418, %v6362, %v6459
        %6461 = vst [vmem:[#allocation3 + $0x194] sm:$0xf] %v6460
        %6462 = vst.msk [vmem:[#allocation3 + $0x1a8] sm:$0xf] %vm5849, %v6364
        %v6463 = vld [vmem:[#allocation3 + $0x1bc] sm:$0xf]
        %v6464 = vsel %vm6418, %v6366, %v6463
        %6465 = vst [vmem:[#allocation3 + $0x1bc] sm:$0xf] %v6464
        %6466 = vst.msk [vmem:[#allocation3 + $0x1d0] sm:$0xf] %vm5849, %v6368
        %v6467 = vld [vmem:[#allocation3 + $0x1e4] sm:$0xf]
        %v6468 = vsel %vm6418, %v6370, %v6467
        %6469 = vst [vmem:[#allocation3 + $0x1e4] sm:$0xf] %v6468
        %6470 = vst.msk [vmem:[#allocation3 + $0x1f8] sm:$0xf] %vm5849, %v6372
        %v6471 = vld [vmem:[#allocation3 + $0x20c] sm:$0xf]
        %v6472 = vsel %vm6418, %v6374, %v6471
        %6473 = vst [vmem:[#allocation3 + $0x20c] sm:$0xf] %v6472
        %6474 = vst.msk [vmem:[#allocation3 + $0x220] sm:$0xf] %vm5849, %v6376
        %v6475 = vld [vmem:[#allocation3 + $0x234] sm:$0xf]
        %v6476 = vsel %vm6418, %v6378, %v6475
        %6477 = vst [vmem:[#allocation3 + $0x234] sm:$0xf] %v6476
        %6478 = vst.msk [vmem:[#allocation3 + $0x248] sm:$0xf] %vm5849, %v6380
        %v6479 = vld [vmem:[#allocation3 + $0x25c] sm:$0xf]
        %v6480 = vsel %vm6418, %v6382, %v6479
        %6481 = vst [vmem:[#allocation3 + $0x25c] sm:$0xf] %v6480
        %6482 = vst.msk [vmem:[#allocation3 + $0x270] sm:$0xf] %vm5849, %v6384
        %6515 = vst.msk [vmem:[#allocation3 + $0x8] sm:$0xf] %vm5388, %v5486
        %6516 = vst.msk [vmem:[#allocation3 + $0x1c] sm:$0xf] %vm5388, %v5487
        %6517 = vst.msk [vmem:[#allocation3 + $0x30] sm:$0xf] %vm5388, %v5488
        %6518 = vst.msk [vmem:[#allocation3 + $0x44] sm:$0xf] %vm5388, %v5489
        %6519 = vst.msk [vmem:[#allocation3 + $0x58] sm:$0xf] %vm5388, %v5490
        %6520 = vst.msk [vmem:[#allocation3 + $0x6c] sm:$0xf] %vm5388, %v5491
        %6521 = vst.msk [vmem:[#allocation3 + $0x80] sm:$0xf] %vm5388, %v5492
        %6522 = vst.msk [vmem:[#allocation3 + $0x94] sm:$0xf] %vm5388, %v5493
        %6523 = vst.msk [vmem:[#allocation3 + $0xa8] sm:$0xf] %vm5388, %v5494
        %6524 = vst.msk [vmem:[#allocation3 + $0xbc] sm:$0xf] %vm5388, %v5495
        %6525 = vst.msk [vmem:[#allocation3 + $0xd0] sm:$0xf] %vm5388, %v5496
        %6526 = vst.msk [vmem:[#allocation3 + $0xe4] sm:$0xf] %vm5388, %v5497
        %6527 = vst.msk [vmem:[#allocation3 + $0xf8] sm:$0xf] %vm5388, %v5498
        %6528 = vst.msk [vmem:[#allocation3 + $0x10c] sm:$0xf] %vm5388, %v5499
        %6529 = vst.msk [vmem:[#allocation3 + $0x120] sm:$0xf] %vm5388, %v5500
        %6530 = vst.msk [vmem:[#allocation3 + $0x134] sm:$0xf] %vm5388, %v5501
        %6531 = vst.msk [vmem:[#allocation3 + $0x148] sm:$0xf] %vm5388, %v5502
        %6532 = vst.msk [vmem:[#allocation3 + $0x15c] sm:$0xf] %vm5388, %v5503
        %6533 = vst.msk [vmem:[#allocation3 + $0x170] sm:$0xf] %vm5388, %v5504
        %6534 = vst.msk [vmem:[#allocation3 + $0x184] sm:$0xf] %vm5388, %v5505
        %6535 = vst.msk [vmem:[#allocation3 + $0x198] sm:$0xf] %vm5388, %v5506
        %6536 = vst.msk [vmem:[#allocation3 + $0x1ac] sm:$0xf] %vm5388, %v5507
        %6537 = vst.msk [vmem:[#allocation3 + $0x1c0] sm:$0xf] %vm5388, %v5508
        %6538 = vst.msk [vmem:[#allocation3 + $0x1d4] sm:$0xf] %vm5388, %v5509
        %6539 = vst.msk [vmem:[#allocation3 + $0x1e8] sm:$0xf] %vm5388, %v5510
        %6540 = vst.msk [vmem:[#allocation3 + $0x1fc] sm:$0xf] %vm5388, %v5511
        %6541 = vst.msk [vmem:[#allocation3 + $0x210] sm:$0xf] %vm5388, %v5512
        %6542 = vst.msk [vmem:[#allocation3 + $0x224] sm:$0xf] %vm5388, %v5513
        %6543 = vst.msk [vmem:[#allocation3 + $0x238] sm:$0xf] %vm5388, %v5514
        %6544 = vst.msk [vmem:[#allocation3 + $0x24c] sm:$0xf] %vm5388, %v5515
        %6545 = vst.msk [vmem:[#allocation3 + $0x260] sm:$0xf] %vm5388, %v6303
        %6546 = vst.msk [vmem:[#allocation3 + $0x274] sm:$0xf] %vm5388, %v6304
        %vm6547 = vcmask 1043971
        %vm6548 = vmand %vm6547, %vm1592
        %v6549 = vld [vmem:[#allocation3 + $0x1c] sm:$0x8]
        %v6550 = vsel %vm6548, 0, %v6549
        %6551 = vst [vmem:[#allocation3 + $0x1c] sm:$0x8] %v6550
        %v6552 = vld [vmem:[#allocation3 + $0x44] sm:$0x8]
        %v6553 = vsel %vm6548, 0, %v6552
        %6554 = vst [vmem:[#allocation3 + $0x44] sm:$0x8] %v6553
        %v6555 = vld [vmem:[#allocation3 + $0x6c] sm:$0x8]
        %v6556 = vsel %vm6548, 0, %v6555
        %6557 = vst [vmem:[#allocation3 + $0x6c] sm:$0x8] %v6556
        %v6558 = vld [vmem:[#allocation3 + $0x94] sm:$0x8]
        %v6559 = vsel %vm6548, 0, %v6558
        %6560 = vst [vmem:[#allocation3 + $0x94] sm:$0x8] %v6559
        %v6561 = vld [vmem:[#allocation3 + $0xbc] sm:$0x8]
        %v6562 = vsel %vm6548, 0, %v6561
        %6563 = vst [vmem:[#allocation3 + $0xbc] sm:$0x8] %v6562
        %v6564 = vld [vmem:[#allocation3 + $0xe4] sm:$0x8]
        %v6565 = vsel %vm6548, 0, %v6564
        %6566 = vst [vmem:[#allocation3 + $0xe4] sm:$0x8] %v6565
        %v6567 = vld [vmem:[#allocation3 + $0x10c] sm:$0x8]
        %v6568 = vsel %vm6548, 0, %v6567
        %6569 = vst [vmem:[#allocation3 + $0x10c] sm:$0x8] %v6568
        %v6570 = vld [vmem:[#allocation3 + $0x134] sm:$0x8]
        %v6571 = vsel %vm6548, 0, %v6570
        %6572 = vst [vmem:[#allocation3 + $0x134] sm:$0x8] %v6571
        %v6573 = vld [vmem:[#allocation3 + $0x15c] sm:$0x8]
        %v6574 = vsel %vm6548, 0, %v6573
        %6575 = vst [vmem:[#allocation3 + $0x15c] sm:$0x8] %v6574
        %v6576 = vld [vmem:[#allocation3 + $0x184] sm:$0x8]
        %v6577 = vsel %vm6548, 0, %v6576
        %6578 = vst [vmem:[#allocation3 + $0x184] sm:$0x8] %v6577
        %v6579 = vld [vmem:[#allocation3 + $0x1ac] sm:$0x8]
        %v6580 = vsel %vm6548, 0, %v6579
        %6581 = vst [vmem:[#allocation3 + $0x1ac] sm:$0x8] %v6580
        %v6582 = vld [vmem:[#allocation3 + $0x1d4] sm:$0x8]
        %v6583 = vsel %vm6548, 0, %v6582
        %6584 = vst [vmem:[#allocation3 + $0x1d4] sm:$0x8] %v6583
        %v6585 = vld [vmem:[#allocation3 + $0x1fc] sm:$0x8]
        %v6586 = vsel %vm6548, 0, %v6585
        %6587 = vst [vmem:[#allocation3 + $0x1fc] sm:$0x8] %v6586
        %v6588 = vld [vmem:[#allocation3 + $0x224] sm:$0x8]
        %v6589 = vsel %vm6548, 0, %v6588
        %6590 = vst [vmem:[#allocation3 + $0x224] sm:$0x8] %v6589
        %v6591 = vld [vmem:[#allocation3 + $0x24c] sm:$0x8]
        %v6592 = vsel %vm6548, 0, %v6591
        %6593 = vst [vmem:[#allocation3 + $0x24c] sm:$0x8] %v6592
        %v6594 = vld [vmem:[#allocation3 + $0x274] sm:$0x8]
        %v6595 = vsel %vm6548, 0, %v6594
        %6596 = vst [vmem:[#allocation3 + $0x274] sm:$0x8] %v6595
        %v6597 = vrot.slane %v6306, 4
        %v6598 = vrot.slane %v6309, 5
        %v6599 = vor.u32 %v6597, %v6598
        %v6600 = vrot.slane %v6599, 4
        %v6601 = vrot.slane %v6317, 5
        %v6602 = vsel %vm1644, %v6600, %v6601
        %v6603 = vrot.slane %v6314, 4
        %v6604 = vor.u32 %v6603, %v6601
        %v6605 = vrot.slane %v6604, 4
        %6606 = vrot.lane.b32.xlu0 %v6029, 64
        %v6607 = vpop.permute.xlu0 %6606
        %6608 = vrot.lane.b32.xlu0 %v6032, 64
        %v6609 = vpop.permute.xlu0 %6608
        %6610 = vrot.lane.b32.xlu0 %v6038, 64
        %v6611 = vpop.permute.xlu0 %6610
        %6612 = vrot.lane.b32.xlu0 %v6041, 64
        %v6613 = vpop.permute.xlu0 %6612
        %6614 = vrot.lane.b32.xlu0 %v6047, 64
        %v6615 = vpop.permute.xlu0 %6614
        %6616 = vrot.lane.b32.xlu0 %v6050, 64
        %v6617 = vpop.permute.xlu0 %6616
        %6618 = vrot.lane.b32.xlu0 %v6056, 64
        %v6619 = vpop.permute.xlu0 %6618
        %6620 = vrot.lane.b32.xlu0 %v6059, 64
        %v6621 = vpop.permute.xlu0 %6620
        %6622 = vrot.lane.b32.xlu0 %v6065, 64
        %v6623 = vpop.permute.xlu0 %6622
        %6624 = vrot.lane.b32.xlu0 %v6068, 64
        %v6625 = vpop.permute.xlu0 %6624
        %6626 = vrot.lane.b32.xlu0 %v6074, 64
        %v6627 = vpop.permute.xlu0 %6626
        %6628 = vrot.lane.b32.xlu0 %v6077, 64
        %v6629 = vpop.permute.xlu0 %6628
        %6630 = vrot.lane.b32.xlu0 %v6083, 64
        %v6631 = vpop.permute.xlu0 %6630
        %6632 = vrot.lane.b32.xlu0 %v6086, 64
        %v6633 = vpop.permute.xlu0 %6632
        %6634 = vrot.lane.b32.xlu0 %v6092, 64
        %v6635 = vpop.permute.xlu0 %6634
        %6636 = vrot.lane.b32.xlu0 %v6095, 64
        %v6637 = vpop.permute.xlu0 %6636
        %6638 = vrot.lane.b32.xlu0 %v6101, 64
        %v6639 = vpop.permute.xlu0 %6638
        %6640 = vrot.lane.b32.xlu0 %v6104, 64
        %v6641 = vpop.permute.xlu0 %6640
        %6642 = vrot.lane.b32.xlu0 %v6110, 64
        %v6643 = vpop.permute.xlu0 %6642
        %6644 = vrot.lane.b32.xlu0 %v6113, 64
        %v6645 = vpop.permute.xlu0 %6644
        %6646 = vrot.lane.b32.xlu0 %v6119, 64
        %v6647 = vpop.permute.xlu0 %6646
        %6648 = vrot.lane.b32.xlu0 %v6122, 64
        %v6649 = vpop.permute.xlu0 %6648
        %6650 = vrot.lane.b32.xlu0 %v6128, 64
        %v6651 = vpop.permute.xlu0 %6650
        %6652 = vrot.lane.b32.xlu0 %v6131, 64
        %v6653 = vpop.permute.xlu0 %6652
        %6654 = vrot.lane.b32.xlu0 %v6137, 64
        %v6655 = vpop.permute.xlu0 %6654
        %6656 = vrot.lane.b32.xlu0 %v6140, 64
        %v6657 = vpop.permute.xlu0 %6656
        %6658 = vrot.lane.b32.xlu0 %v6146, 64
        %v6659 = vpop.permute.xlu0 %6658
        %6660 = vrot.lane.b32.xlu0 %v6149, 64
        %v6661 = vpop.permute.xlu0 %6660
        %6662 = vrot.lane.b32.xlu0 %v6155, 64
        %v6663 = vpop.permute.xlu0 %6662
        %6664 = vrot.lane.b32.xlu0 %v6158, 64
        %v6665 = vpop.permute.xlu0 %6664
        %6666 = vrot.lane.b32.xlu0 %v6602, 64
        %v6667 = vpop.permute.xlu0 %6666
        %6668 = vrot.lane.b32.xlu0 %v6605, 64
        %v6669 = vpop.permute.xlu0 %6668
        %6702 = vst.msk [vmem:[#allocation3 + $0x8] sm:$0xf] %vm5849, %v6607
        %vm6703 = vmand %vm6417, %vm1642
        %v6704 = vld [vmem:[#allocation3 + $0x1c] sm:$0xf]
        %v6705 = vsel %vm6703, %v6609, %v6704
        %6706 = vst [vmem:[#allocation3 + $0x1c] sm:$0xf] %v6705
        %6707 = vst.msk [vmem:[#allocation3 + $0x30] sm:$0xf] %vm5849, %v6611
        %v6708 = vld [vmem:[#allocation3 + $0x44] sm:$0xf]
        %v6709 = vsel %vm6703, %v6613, %v6708
        %6710 = vst [vmem:[#allocation3 + $0x44] sm:$0xf] %v6709
        %6711 = vst.msk [vmem:[#allocation3 + $0x58] sm:$0xf] %vm5849, %v6615
        %v6712 = vld [vmem:[#allocation3 + $0x6c] sm:$0xf]
        %v6713 = vsel %vm6703, %v6617, %v6712
        %6714 = vst [vmem:[#allocation3 + $0x6c] sm:$0xf] %v6713
        %6715 = vst.msk [vmem:[#allocation3 + $0x80] sm:$0xf] %vm5849, %v6619
        %v6716 = vld [vmem:[#allocation3 + $0x94] sm:$0xf]
        %v6717 = vsel %vm6703, %v6621, %v6716
        %6718 = vst [vmem:[#allocation3 + $0x94] sm:$0xf] %v6717
        %6719 = vst.msk [vmem:[#allocation3 + $0xa8] sm:$0xf] %vm5849, %v6623
        %v6720 = vld [vmem:[#allocation3 + $0xbc] sm:$0xf]
        %v6721 = vsel %vm6703, %v6625, %v6720
        %6722 = vst [vmem:[#allocation3 + $0xbc] sm:$0xf] %v6721
        %6723 = vst.msk [vmem:[#allocation3 + $0xd0] sm:$0xf] %vm5849, %v6627
        %v6724 = vld [vmem:[#allocation3 + $0xe4] sm:$0xf]
        %v6725 = vsel %vm6703, %v6629, %v6724
        %6726 = vst [vmem:[#allocation3 + $0xe4] sm:$0xf] %v6725
        %6727 = vst.msk [vmem:[#allocation3 + $0xf8] sm:$0xf] %vm5849, %v6631
        %v6728 = vld [vmem:[#allocation3 + $0x10c] sm:$0xf]
        %v6729 = vsel %vm6703, %v6633, %v6728
        %6730 = vst [vmem:[#allocation3 + $0x10c] sm:$0xf] %v6729
        %6731 = vst.msk [vmem:[#allocation3 + $0x120] sm:$0xf] %vm5849, %v6635
        %v6732 = vld [vmem:[#allocation3 + $0x134] sm:$0xf]
        %v6733 = vsel %vm6703, %v6637, %v6732
        %6734 = vst [vmem:[#allocation3 + $0x134] sm:$0xf] %v6733
        %6735 = vst.msk [vmem:[#allocation3 + $0x148] sm:$0xf] %vm5849, %v6639
        %v6736 = vld [vmem:[#allocation3 + $0x15c] sm:$0xf]
        %v6737 = vsel %vm6703, %v6641, %v6736
        %6738 = vst [vmem:[#allocation3 + $0x15c] sm:$0xf] %v6737
        %6739 = vst.msk [vmem:[#allocation3 + $0x170] sm:$0xf] %vm5849, %v6643
        %v6740 = vld [vmem:[#allocation3 + $0x184] sm:$0xf]
        %v6741 = vsel %vm6703, %v6645, %v6740
        %6742 = vst [vmem:[#allocation3 + $0x184] sm:$0xf] %v6741
        %6743 = vst.msk [vmem:[#allocation3 + $0x198] sm:$0xf] %vm5849, %v6647
        %v6744 = vld [vmem:[#allocation3 + $0x1ac] sm:$0xf]
        %v6745 = vsel %vm6703, %v6649, %v6744
        %6746 = vst [vmem:[#allocation3 + $0x1ac] sm:$0xf] %v6745
        %6747 = vst.msk [vmem:[#allocation3 + $0x1c0] sm:$0xf] %vm5849, %v6651
        %v6748 = vld [vmem:[#allocation3 + $0x1d4] sm:$0xf]
        %v6749 = vsel %vm6703, %v6653, %v6748
        %6750 = vst [vmem:[#allocation3 + $0x1d4] sm:$0xf] %v6749
        %6751 = vst.msk [vmem:[#allocation3 + $0x1e8] sm:$0xf] %vm5849, %v6655
        %v6752 = vld [vmem:[#allocation3 + $0x1fc] sm:$0xf]
        %v6753 = vsel %vm6703, %v6657, %v6752
        %6754 = vst [vmem:[#allocation3 + $0x1fc] sm:$0xf] %v6753
        %6755 = vst.msk [vmem:[#allocation3 + $0x210] sm:$0xf] %vm5849, %v6659
        %v6756 = vld [vmem:[#allocation3 + $0x224] sm:$0xf]
        %v6757 = vsel %vm6703, %v6661, %v6756
        %6758 = vst [vmem:[#allocation3 + $0x224] sm:$0xf] %v6757
        %6759 = vst.msk [vmem:[#allocation3 + $0x238] sm:$0xf] %vm5849, %v6663
        %v6760 = vld [vmem:[#allocation3 + $0x24c] sm:$0xf]
        %v6761 = vsel %vm6703, %v6665, %v6760
        %6762 = vst [vmem:[#allocation3 + $0x24c] sm:$0xf] %v6761
        %6763 = vst.msk [vmem:[#allocation3 + $0x260] sm:$0xf] %vm5849, %v6667
        %v6764 = vld [vmem:[#allocation3 + $0x274] sm:$0xf]
        %v6765 = vsel %vm6703, %v6669, %v6764
        %6766 = vst [vmem:[#allocation3 + $0x274] sm:$0xf] %v6765
        %s6767 = scalar_lea.vmem [#allocation3], 600
        %6768 = vst.msk [vmem:[%s6767 + $0xc] sm:$0xf] %vm5388, 0
        %6769 = vst.msk [vmem:[%s6767 + $0x20] sm:$0xf] %vm5388, 0
        %v6770 = vld [vmem:[#allocation3 + $0xc] sm:$0x1]
        %v6771 = vsel %vm5392, 0, %v6770
        %6772 = vst [vmem:[#allocation3 + $0xc] sm:$0x1] %v6771
        %v6773 = vld [vmem:[#allocation3 + $0x34] sm:$0x1]
        %v6774 = vsel %vm5392, 0, %v6773
        %6775 = vst [vmem:[#allocation3 + $0x34] sm:$0x1] %v6774
        %v6776 = vld [vmem:[#allocation3 + $0x5c] sm:$0x1]
        %v6777 = vsel %vm5392, 0, %v6776
        %6778 = vst [vmem:[#allocation3 + $0x5c] sm:$0x1] %v6777
        %v6779 = vld [vmem:[#allocation3 + $0x84] sm:$0x1]
        %v6780 = vsel %vm5392, 0, %v6779
        %6781 = vst [vmem:[#allocation3 + $0x84] sm:$0x1] %v6780
        %v6782 = vld [vmem:[#allocation3 + $0xac] sm:$0x1]
        %v6783 = vsel %vm5392, 0, %v6782
        %6784 = vst [vmem:[#allocation3 + $0xac] sm:$0x1] %v6783
        %v6785 = vld [vmem:[#allocation3 + $0xd4] sm:$0x1]
        %v6786 = vsel %vm5392, 0, %v6785
        %6787 = vst [vmem:[#allocation3 + $0xd4] sm:$0x1] %v6786
        %v6788 = vld [vmem:[#allocation3 + $0xfc] sm:$0x1]
        %v6789 = vsel %vm5392, 0, %v6788
        %6790 = vst [vmem:[#allocation3 + $0xfc] sm:$0x1] %v6789
        %v6791 = vld [vmem:[#allocation3 + $0x124] sm:$0x1]
        %v6792 = vsel %vm5392, 0, %v6791
        %6793 = vst [vmem:[#allocation3 + $0x124] sm:$0x1] %v6792
        %v6794 = vld [vmem:[#allocation3 + $0x14c] sm:$0x1]
        %v6795 = vsel %vm5392, 0, %v6794
        %6796 = vst [vmem:[#allocation3 + $0x14c] sm:$0x1] %v6795
        %v6797 = vld [vmem:[#allocation3 + $0x174] sm:$0x1]
        %v6798 = vsel %vm5392, 0, %v6797
        %6799 = vst [vmem:[#allocation3 + $0x174] sm:$0x1] %v6798
        %v6800 = vld [vmem:[#allocation3 + $0x19c] sm:$0x1]
        %v6801 = vsel %vm5392, 0, %v6800
        %6802 = vst [vmem:[#allocation3 + $0x19c] sm:$0x1] %v6801
        %v6803 = vld [vmem:[#allocation3 + $0x1c4] sm:$0x1]
        %v6804 = vsel %vm5392, 0, %v6803
        %6805 = vst [vmem:[#allocation3 + $0x1c4] sm:$0x1] %v6804
        %v6806 = vld [vmem:[#allocation3 + $0x1ec] sm:$0x1]
        %v6807 = vsel %vm5392, 0, %v6806
        %6808 = vst [vmem:[#allocation3 + $0x1ec] sm:$0x1] %v6807
        %v6809 = vld [vmem:[#allocation3 + $0x214] sm:$0x1]
        %v6810 = vsel %vm5392, 0, %v6809
        %6811 = vst [vmem:[#allocation3 + $0x214] sm:$0x1] %v6810
        %v6812 = vld [vmem:[#allocation3 + $0x23c] sm:$0x1]
        %v6813 = vsel %vm5392, 0, %v6812
        %6814 = vst [vmem:[#allocation3 + $0x23c] sm:$0x1] %v6813
        %v6815 = vld [vmem:[#allocation3 + $0x264] sm:$0x1]
        %v6816 = vsel %vm5392, 0, %v6815
        %6817 = vst [vmem:[#allocation3 + $0x264] sm:$0x1] %v6816
        %v6820 = vld [vmem:[#allocation3 + $0xc] sm:$0xf]
        %v6821 = vsel %vm5788, %v5538, %v6820
        %6822 = vst [vmem:[#allocation3 + $0xc] sm:$0xf] %v6821
        %6823 = vst.msk [vmem:[#allocation3 + $0x20] sm:$0xf] %vm5388, %v5547
        %v6824 = vld [vmem:[#allocation3 + $0x34] sm:$0xf]
        %v6825 = vsel %vm5788, %v5554, %v6824
        %6826 = vst [vmem:[#allocation3 + $0x34] sm:$0xf] %v6825
        %6827 = vst.msk [vmem:[#allocation3 + $0x48] sm:$0xf] %vm5388, %v5563
        %v6828 = vld [vmem:[#allocation3 + $0x5c] sm:$0xf]
        %v6829 = vsel %vm5788, %v5570, %v6828
        %6830 = vst [vmem:[#allocation3 + $0x5c] sm:$0xf] %v6829
        %6831 = vst.msk [vmem:[#allocation3 + $0x70] sm:$0xf] %vm5388, %v5579
        %v6832 = vld [vmem:[#allocation3 + $0x84] sm:$0xf]
        %v6833 = vsel %vm5788, %v5586, %v6832
        %6834 = vst [vmem:[#allocation3 + $0x84] sm:$0xf] %v6833
        %6835 = vst.msk [vmem:[#allocation3 + $0x98] sm:$0xf] %vm5388, %v5595
        %v6836 = vld [vmem:[#allocation3 + $0xac] sm:$0xf]
        %v6837 = vsel %vm5788, %v5602, %v6836
        %6838 = vst [vmem:[#allocation3 + $0xac] sm:$0xf] %v6837
        %6839 = vst.msk [vmem:[#allocation3 + $0xc0] sm:$0xf] %vm5388, %v5611
        %v6840 = vld [vmem:[#allocation3 + $0xd4] sm:$0xf]
        %v6841 = vsel %vm5788, %v5618, %v6840
        %6842 = vst [vmem:[#allocation3 + $0xd4] sm:$0xf] %v6841
        %6843 = vst.msk [vmem:[#allocation3 + $0xe8] sm:$0xf] %vm5388, %v5627
        %v6844 = vld [vmem:[#allocation3 + $0xfc] sm:$0xf]
        %v6845 = vsel %vm5788, %v5634, %v6844
        %6846 = vst [vmem:[#allocation3 + $0xfc] sm:$0xf] %v6845
        %6847 = vst.msk [vmem:[#allocation3 + $0x110] sm:$0xf] %vm5388, %v5643
        %v6848 = vld [vmem:[#allocation3 + $0x124] sm:$0xf]
        %v6849 = vsel %vm5788, %v5650, %v6848
        %6850 = vst [vmem:[#allocation3 + $0x124] sm:$0xf] %v6849
        %6851 = vst.msk [vmem:[#allocation3 + $0x138] sm:$0xf] %vm5388, %v5659
        %v6852 = vld [vmem:[#allocation3 + $0x14c] sm:$0xf]
        %v6853 = vsel %vm5788, %v5666, %v6852
        %6854 = vst [vmem:[#allocation3 + $0x14c] sm:$0xf] %v6853
        %6855 = vst.msk [vmem:[#allocation3 + $0x160] sm:$0xf] %vm5388, %v5675
        %v6856 = vld [vmem:[#allocation3 + $0x174] sm:$0xf]
        %v6857 = vsel %vm5788, %v5682, %v6856
        %6858 = vst [vmem:[#allocation3 + $0x174] sm:$0xf] %v6857
        %6859 = vst.msk [vmem:[#allocation3 + $0x188] sm:$0xf] %vm5388, %v5691
        %v6860 = vld [vmem:[#allocation3 + $0x19c] sm:$0xf]
        %v6861 = vsel %vm5788, %v5698, %v6860
        %6862 = vst [vmem:[#allocation3 + $0x19c] sm:$0xf] %v6861
        %6863 = vst.msk [vmem:[#allocation3 + $0x1b0] sm:$0xf] %vm5388, %v5707
        %v6864 = vld [vmem:[#allocation3 + $0x1c4] sm:$0xf]
        %v6865 = vsel %vm5788, %v5714, %v6864
        %6866 = vst [vmem:[#allocation3 + $0x1c4] sm:$0xf] %v6865
        %6867 = vst.msk [vmem:[#allocation3 + $0x1d8] sm:$0xf] %vm5388, %v5723
        %v6868 = vld [vmem:[#allocation3 + $0x1ec] sm:$0xf]
        %v6869 = vsel %vm5788, %v5730, %v6868
        %6870 = vst [vmem:[#allocation3 + $0x1ec] sm:$0xf] %v6869
        %6871 = vst.msk [vmem:[#allocation3 + $0x200] sm:$0xf] %vm5388, %v5739
        %v6872 = vld [vmem:[#allocation3 + $0x214] sm:$0xf]
        %v6873 = vsel %vm5788, %v5746, %v6872
        %6874 = vst [vmem:[#allocation3 + $0x214] sm:$0xf] %v6873
        %6875 = vst.msk [vmem:[#allocation3 + $0x228] sm:$0xf] %vm5388, %v5755
        %v6876 = vld [vmem:[#allocation3 + $0x23c] sm:$0xf]
        %v6877 = vsel %vm5788, %v6311, %v6876
        %6878 = vst [vmem:[#allocation3 + $0x23c] sm:$0xf] %v6877
        %6879 = vst.msk [vmem:[#allocation3 + $0x250] sm:$0xf] %vm5388, %v6320
        %6880 = vst.msk [vmem:[%s6767 + $0xc] sm:$0xf] %vm5849, 0
        %6881 = vst.msk [vmem:[%s6767 + $0x20] sm:$0xf] %vm5849, 0
        %6882 = vrot.lane.b32.xlu0 %v6303, 64
        %v6883 = vpop.permute.xlu0 %6882
        %6884 = vrot.lane.b32.xlu0 %v6304, 64
        %v6885 = vpop.permute.xlu0 %6884
        %6888 = vst.msk [vmem:[#allocation3 + $0xc] sm:$0xf] %vm5849, %v5857
        %6889 = vst.msk [vmem:[#allocation3 + $0x20] sm:$0xf] %vm5849, %v5859
        %6890 = vst.msk [vmem:[#allocation3 + $0x34] sm:$0xf] %vm5849, %v5861
        %6891 = vst.msk [vmem:[#allocation3 + $0x48] sm:$0xf] %vm5849, %v5863
        %6892 = vst.msk [vmem:[#allocation3 + $0x5c] sm:$0xf] %vm5849, %v5865
        %6893 = vst.msk [vmem:[#allocation3 + $0x70] sm:$0xf] %vm5849, %v5867
        %6894 = vst.msk [vmem:[#allocation3 + $0x84] sm:$0xf] %vm5849, %v5869
        %6895 = vst.msk [vmem:[#allocation3 + $0x98] sm:$0xf] %vm5849, %v5871
        %6896 = vst.msk [vmem:[#allocation3 + $0xac] sm:$0xf] %vm5849, %v5873
        %6897 = vst.msk [vmem:[#allocation3 + $0xc0] sm:$0xf] %vm5849, %v5875
        %6898 = vst.msk [vmem:[#allocation3 + $0xd4] sm:$0xf] %vm5849, %v5877
        %6899 = vst.msk [vmem:[#allocation3 + $0xe8] sm:$0xf] %vm5849, %v5879
        %6900 = vst.msk [vmem:[#allocation3 + $0xfc] sm:$0xf] %vm5849, %v5881
        %6901 = vst.msk [vmem:[#allocation3 + $0x110] sm:$0xf] %vm5849, %v5883
        %6902 = vst.msk [vmem:[#allocation3 + $0x124] sm:$0xf] %vm5849, %v5885
        %6903 = vst.msk [vmem:[#allocation3 + $0x138] sm:$0xf] %vm5849, %v5887
        %6904 = vst.msk [vmem:[#allocation3 + $0x14c] sm:$0xf] %vm5849, %v5889
        %6905 = vst.msk [vmem:[#allocation3 + $0x160] sm:$0xf] %vm5849, %v5891
        %6906 = vst.msk [vmem:[#allocation3 + $0x174] sm:$0xf] %vm5849, %v5893
        %6907 = vst.msk [vmem:[#allocation3 + $0x188] sm:$0xf] %vm5849, %v5895
        %6908 = vst.msk [vmem:[#allocation3 + $0x19c] sm:$0xf] %vm5849, %v5897
        %6909 = vst.msk [vmem:[#allocation3 + $0x1b0] sm:$0xf] %vm5849, %v5899
        %6910 = vst.msk [vmem:[#allocation3 + $0x1c4] sm:$0xf] %vm5849, %v5901
        %6911 = vst.msk [vmem:[#allocation3 + $0x1d8] sm:$0xf] %vm5849, %v5903
        %6912 = vst.msk [vmem:[#allocation3 + $0x1ec] sm:$0xf] %vm5849, %v5905
        %6913 = vst.msk [vmem:[#allocation3 + $0x200] sm:$0xf] %vm5849, %v5907
        %6914 = vst.msk [vmem:[#allocation3 + $0x214] sm:$0xf] %vm5849, %v5909
        %6915 = vst.msk [vmem:[#allocation3 + $0x228] sm:$0xf] %vm5849, %v5911
        %6916 = vst.msk [vmem:[#allocation3 + $0x23c] sm:$0xf] %vm5849, %v6883
        %6917 = vst.msk [vmem:[#allocation3 + $0x250] sm:$0xf] %vm5849, %v6885
        %6918 = vst.msk [vmem:[%s6767 + $0x10] sm:$0xf] %vm5388, 0
        %6919 = vst.msk [vmem:[%s6767 + $0x24] sm:$0xf] %vm5388, 0
        %v6920 = vld [vmem:[#allocation3 + $0x24] sm:$0x8]
        %v6921 = vsel %vm5975, 0, %v6920
        %6922 = vst [vmem:[#allocation3 + $0x24] sm:$0x8] %v6921
        %v6923 = vld [vmem:[#allocation3 + $0x4c] sm:$0x8]
        %v6924 = vsel %vm5975, 0, %v6923
        %6925 = vst [vmem:[#allocation3 + $0x4c] sm:$0x8] %v6924
        %v6926 = vld [vmem:[#allocation3 + $0x74] sm:$0x8]
        %v6927 = vsel %vm5975, 0, %v6926
        %6928 = vst [vmem:[#allocation3 + $0x74] sm:$0x8] %v6927
        %v6929 = vld [vmem:[#allocation3 + $0x9c] sm:$0x8]
        %v6930 = vsel %vm5975, 0, %v6929
        %6931 = vst [vmem:[#allocation3 + $0x9c] sm:$0x8] %v6930
        %v6932 = vld [vmem:[#allocation3 + $0xc4] sm:$0x8]
        %v6933 = vsel %vm5975, 0, %v6932
        %6934 = vst [vmem:[#allocation3 + $0xc4] sm:$0x8] %v6933
        %v6935 = vld [vmem:[#allocation3 + $0xec] sm:$0x8]
        %v6936 = vsel %vm5975, 0, %v6935
        %6937 = vst [vmem:[#allocation3 + $0xec] sm:$0x8] %v6936
        %v6938 = vld [vmem:[#allocation3 + $0x114] sm:$0x8]
        %v6939 = vsel %vm5975, 0, %v6938
        %6940 = vst [vmem:[#allocation3 + $0x114] sm:$0x8] %v6939
        %v6941 = vld [vmem:[#allocation3 + $0x13c] sm:$0x8]
        %v6942 = vsel %vm5975, 0, %v6941
        %6943 = vst [vmem:[#allocation3 + $0x13c] sm:$0x8] %v6942
        %v6944 = vld [vmem:[#allocation3 + $0x164] sm:$0x8]
        %v6945 = vsel %vm5975, 0, %v6944
        %6946 = vst [vmem:[#allocation3 + $0x164] sm:$0x8] %v6945
        %v6947 = vld [vmem:[#allocation3 + $0x18c] sm:$0x8]
        %v6948 = vsel %vm5975, 0, %v6947
        %6949 = vst [vmem:[#allocation3 + $0x18c] sm:$0x8] %v6948
        %v6950 = vld [vmem:[#allocation3 + $0x1b4] sm:$0x8]
        %v6951 = vsel %vm5975, 0, %v6950
        %6952 = vst [vmem:[#allocation3 + $0x1b4] sm:$0x8] %v6951
        %v6953 = vld [vmem:[#allocation3 + $0x1dc] sm:$0x8]
        %v6954 = vsel %vm5975, 0, %v6953
        %6955 = vst [vmem:[#allocation3 + $0x1dc] sm:$0x8] %v6954
        %v6956 = vld [vmem:[#allocation3 + $0x204] sm:$0x8]
        %v6957 = vsel %vm5975, 0, %v6956
        %6958 = vst [vmem:[#allocation3 + $0x204] sm:$0x8] %v6957
        %v6959 = vld [vmem:[#allocation3 + $0x22c] sm:$0x8]
        %v6960 = vsel %vm5975, 0, %v6959
        %6961 = vst [vmem:[#allocation3 + $0x22c] sm:$0x8] %v6960
        %v6962 = vld [vmem:[#allocation3 + $0x254] sm:$0x8]
        %v6963 = vsel %vm5975, 0, %v6962
        %6964 = vst [vmem:[#allocation3 + $0x254] sm:$0x8] %v6963
        %v6965 = vld [vmem:[#allocation3 + $0x27c] sm:$0x8]
        %v6966 = vsel %vm5975, 0, %v6965
        %6967 = vst [vmem:[#allocation3 + $0x27c] sm:$0x8] %v6966
        %6970 = vst.msk [vmem:[#allocation3 + $0x10] sm:$0xf] %vm5388, %v6038
        %v6971 = vld [vmem:[#allocation3 + $0x24] sm:$0xf]
        %v6972 = vsel %vm6190, %v6041, %v6971
        %6973 = vst [vmem:[#allocation3 + $0x24] sm:$0xf] %v6972
        %6974 = vst.msk [vmem:[#allocation3 + $0x38] sm:$0xf] %vm5388, %v6047
        %v6975 = vld [vmem:[#allocation3 + $0x4c] sm:$0xf]
        %v6976 = vsel %vm6190, %v6050, %v6975
        %6977 = vst [vmem:[#allocation3 + $0x4c] sm:$0xf] %v6976
        %6978 = vst.msk [vmem:[#allocation3 + $0x60] sm:$0xf] %vm5388, %v6056
        %v6979 = vld [vmem:[#allocation3 + $0x74] sm:$0xf]
        %v6980 = vsel %vm6190, %v6059, %v6979
        %6981 = vst [vmem:[#allocation3 + $0x74] sm:$0xf] %v6980
        %6982 = vst.msk [vmem:[#allocation3 + $0x88] sm:$0xf] %vm5388, %v6065
        %v6983 = vld [vmem:[#allocation3 + $0x9c] sm:$0xf]
        %v6984 = vsel %vm6190, %v6068, %v6983
        %6985 = vst [vmem:[#allocation3 + $0x9c] sm:$0xf] %v6984
        %6986 = vst.msk [vmem:[#allocation3 + $0xb0] sm:$0xf] %vm5388, %v6074
        %v6987 = vld [vmem:[#allocation3 + $0xc4] sm:$0xf]
        %v6988 = vsel %vm6190, %v6077, %v6987
        %6989 = vst [vmem:[#allocation3 + $0xc4] sm:$0xf] %v6988
        %6990 = vst.msk [vmem:[#allocation3 + $0xd8] sm:$0xf] %vm5388, %v6083
        %v6991 = vld [vmem:[#allocation3 + $0xec] sm:$0xf]
        %v6992 = vsel %vm6190, %v6086, %v6991
        %6993 = vst [vmem:[#allocation3 + $0xec] sm:$0xf] %v6992
        %6994 = vst.msk [vmem:[#allocation3 + $0x100] sm:$0xf] %vm5388, %v6092
        %v6995 = vld [vmem:[#allocation3 + $0x114] sm:$0xf]
        %v6996 = vsel %vm6190, %v6095, %v6995
        %6997 = vst [vmem:[#allocation3 + $0x114] sm:$0xf] %v6996
        %6998 = vst.msk [vmem:[#allocation3 + $0x128] sm:$0xf] %vm5388, %v6101
        %v6999 = vld [vmem:[#allocation3 + $0x13c] sm:$0xf]
        %v7000 = vsel %vm6190, %v6104, %v6999
        %7001 = vst [vmem:[#allocation3 + $0x13c] sm:$0xf] %v7000
        %7002 = vst.msk [vmem:[#allocation3 + $0x150] sm:$0xf] %vm5388, %v6110
        %v7003 = vld [vmem:[#allocation3 + $0x164] sm:$0xf]
        %v7004 = vsel %vm6190, %v6113, %v7003
        %7005 = vst [vmem:[#allocation3 + $0x164] sm:$0xf] %v7004
        %7006 = vst.msk [vmem:[#allocation3 + $0x178] sm:$0xf] %vm5388, %v6119
        %v7007 = vld [vmem:[#allocation3 + $0x18c] sm:$0xf]
        %v7008 = vsel %vm6190, %v6122, %v7007
        %7009 = vst [vmem:[#allocation3 + $0x18c] sm:$0xf] %v7008
        %7010 = vst.msk [vmem:[#allocation3 + $0x1a0] sm:$0xf] %vm5388, %v6128
        %v7011 = vld [vmem:[#allocation3 + $0x1b4] sm:$0xf]
        %v7012 = vsel %vm6190, %v6131, %v7011
        %7013 = vst [vmem:[#allocation3 + $0x1b4] sm:$0xf] %v7012
        %7014 = vst.msk [vmem:[#allocation3 + $0x1c8] sm:$0xf] %vm5388, %v6137
        %v7015 = vld [vmem:[#allocation3 + $0x1dc] sm:$0xf]
        %v7016 = vsel %vm6190, %v6140, %v7015
        %7017 = vst [vmem:[#allocation3 + $0x1dc] sm:$0xf] %v7016
        %7018 = vst.msk [vmem:[#allocation3 + $0x1f0] sm:$0xf] %vm5388, %v6146
        %v7019 = vld [vmem:[#allocation3 + $0x204] sm:$0xf]
        %v7020 = vsel %vm6190, %v6149, %v7019
        %7021 = vst [vmem:[#allocation3 + $0x204] sm:$0xf] %v7020
        %7022 = vst.msk [vmem:[#allocation3 + $0x218] sm:$0xf] %vm5388, %v6155
        %v7023 = vld [vmem:[#allocation3 + $0x22c] sm:$0xf]
        %v7024 = vsel %vm6190, %v6158, %v7023
        %7025 = vst [vmem:[#allocation3 + $0x22c] sm:$0xf] %v7024
        %7026 = vst.msk [vmem:[#allocation3 + $0x240] sm:$0xf] %vm5388, %v6602
        %v7027 = vld [vmem:[#allocation3 + $0x254] sm:$0xf]
        %v7028 = vsel %vm6190, %v6605, %v7027
        %7029 = vst [vmem:[#allocation3 + $0x254] sm:$0xf] %v7028
        %v7030 = vld [vmem:[#allocation3] sm:$0xff]
        %v7031 = vld [vmem:[#allocation3 + $0x8] sm:$0xff]
        %v7032 = vld [vmem:[#allocation3 + $0x10] sm:$0xf]
        %v7033 = vld [vmem:[#allocation3 + $0x14] sm:$0xff]
        %v7034 = vld [vmem:[#allocation3 + $0x1c] sm:$0xff]
        %v7035 = vld [vmem:[#allocation3 + $0x24] sm:$0xf]
        %v7036 = vld [vmem:[#allocation3 + $0x28] sm:$0xff]
        %v7037 = vld [vmem:[#allocation3 + $0x30] sm:$0xff]
        %v7038 = vld [vmem:[#allocation3 + $0x38] sm:$0xf]
        %v7039 = vld [vmem:[#allocation3 + $0x3c] sm:$0xff]
        %v7040 = vld [vmem:[#allocation3 + $0x44] sm:$0xff]
        %v7041 = vld [vmem:[#allocation3 + $0x4c] sm:$0xf]
        %v7042 = vld [vmem:[#allocation3 + $0x50] sm:$0xff]
        %v7043 = vld [vmem:[#allocation3 + $0x58] sm:$0xff]
        %v7044 = vld [vmem:[#allocation3 + $0x60] sm:$0xf]
        %v7045 = vld [vmem:[#allocation3 + $0x64] sm:$0xff]
        %v7046 = vld [vmem:[#allocation3 + $0x6c] sm:$0xff]
        %v7047 = vld [vmem:[#allocation3 + $0x74] sm:$0xf]
        %v7048 = vld [vmem:[#allocation3 + $0x78] sm:$0xff]
        %v7049 = vld [vmem:[#allocation3 + $0x80] sm:$0xff]
        %v7050 = vld [vmem:[#allocation3 + $0x88] sm:$0xf]
        %v7051 = vld [vmem:[#allocation3 + $0x8c] sm:$0xff]
        %v7052 = vld [vmem:[#allocation3 + $0x94] sm:$0xff]
        %v7053 = vld [vmem:[#allocation3 + $0x9c] sm:$0xf]
        %v7054 = vld [vmem:[#allocation3 + $0xa0] sm:$0xff]
        %v7055 = vld [vmem:[#allocation3 + $0xa8] sm:$0xff]
        %v7056 = vld [vmem:[#allocation3 + $0xb0] sm:$0xf]
        %v7057 = vld [vmem:[#allocation3 + $0xb4] sm:$0xff]
        %v7058 = vld [vmem:[#allocation3 + $0xbc] sm:$0xff]
        %v7059 = vld [vmem:[#allocation3 + $0xc4] sm:$0xf]
        %v7060 = vld [vmem:[#allocation3 + $0xc8] sm:$0xff]
        %v7061 = vld [vmem:[#allocation3 + $0xd0] sm:$0xff]
        %v7062 = vld [vmem:[#allocation3 + $0xd8] sm:$0xf]
        %v7063 = vld [vmem:[#allocation3 + $0xdc] sm:$0xff]
        %v7064 = vld [vmem:[#allocation3 + $0xe4] sm:$0xff]
        %v7065 = vld [vmem:[#allocation3 + $0xec] sm:$0xf]
        %v7066 = vld [vmem:[#allocation3 + $0xf0] sm:$0xff]
        %v7067 = vld [vmem:[#allocation3 + $0xf8] sm:$0xff]
        %v7068 = vld [vmem:[#allocation3 + $0x100] sm:$0xf]
        %v7069 = vld [vmem:[#allocation3 + $0x104] sm:$0xff]
        %v7070 = vld [vmem:[#allocation3 + $0x10c] sm:$0xff]
        %v7071 = vld [vmem:[#allocation3 + $0x114] sm:$0xf]
        %v7072 = vld [vmem:[#allocation3 + $0x118] sm:$0xff]
        %v7073 = vld [vmem:[#allocation3 + $0x120] sm:$0xff]
        %v7074 = vld [vmem:[#allocation3 + $0x128] sm:$0xf]
        %v7075 = vld [vmem:[#allocation3 + $0x12c] sm:$0xff]
        %v7076 = vld [vmem:[#allocation3 + $0x134] sm:$0xff]
        %v7077 = vld [vmem:[#allocation3 + $0x13c] sm:$0xf]
        %v7078 = vld [vmem:[#allocation3 + $0x140] sm:$0xff]
        %v7079 = vld [vmem:[#allocation3 + $0x148] sm:$0xff]
        %v7080 = vld [vmem:[#allocation3 + $0x150] sm:$0xf]
        %v7081 = vld [vmem:[#allocation3 + $0x154] sm:$0xff]
        %v7082 = vld [vmem:[#allocation3 + $0x15c] sm:$0xff]
        %v7083 = vld [vmem:[#allocation3 + $0x164] sm:$0xf]
        %v7084 = vld [vmem:[#allocation3 + $0x168] sm:$0xff]
        %v7085 = vld [vmem:[#allocation3 + $0x170] sm:$0xff]
        %v7086 = vld [vmem:[#allocation3 + $0x178] sm:$0xf]
        %v7087 = vld [vmem:[#allocation3 + $0x17c] sm:$0xff]
        %v7088 = vld [vmem:[#allocation3 + $0x184] sm:$0xff]
        %v7089 = vld [vmem:[#allocation3 + $0x18c] sm:$0xf]
        %v7090 = vld [vmem:[#allocation3 + $0x190] sm:$0xff]
        %v7091 = vld [vmem:[#allocation3 + $0x198] sm:$0xff]
        %v7092 = vld [vmem:[#allocation3 + $0x1a0] sm:$0xf]
        %v7093 = vld [vmem:[#allocation3 + $0x1a4] sm:$0xff]
        %v7094 = vld [vmem:[#allocation3 + $0x1ac] sm:$0xff]
        %v7095 = vld [vmem:[#allocation3 + $0x1b4] sm:$0xf]
        %v7096 = vld [vmem:[#allocation3 + $0x1b8] sm:$0xff]
        %v7097 = vld [vmem:[#allocation3 + $0x1c0] sm:$0xff]
        %v7098 = vld [vmem:[#allocation3 + $0x1c8] sm:$0xf]
        %v7099 = vld [vmem:[#allocation3 + $0x1cc] sm:$0xff]
        %v7100 = vld [vmem:[#allocation3 + $0x1d4] sm:$0xff]
        %v7101 = vld [vmem:[#allocation3 + $0x1dc] sm:$0xf]
        %v7102 = vld [vmem:[#allocation3 + $0x1e0] sm:$0xff]
        %v7103 = vld [vmem:[#allocation3 + $0x1e8] sm:$0xff]
        %v7104 = vld [vmem:[#allocation3 + $0x1f0] sm:$0xf]
        %v7105 = vld [vmem:[#allocation3 + $0x1f4] sm:$0xff]
        %v7106 = vld [vmem:[#allocation3 + $0x1fc] sm:$0xff]
        %v7107 = vld [vmem:[#allocation3 + $0x204] sm:$0xf]
        %v7108 = vld [vmem:[#allocation3 + $0x208] sm:$0xff]
        %v7109 = vld [vmem:[#allocation3 + $0x210] sm:$0xff]
        %v7110 = vld [vmem:[#allocation3 + $0x218] sm:$0xf]
        %v7111 = vld [vmem:[#allocation3 + $0x21c] sm:$0xff]
        %v7112 = vld [vmem:[#allocation3 + $0x224] sm:$0xff]
        %v7113 = vld [vmem:[#allocation3 + $0x22c] sm:$0xf]
        %v7114 = vld [vmem:[#allocation3 + $0x230] sm:$0xff]
        %v7115 = vld [vmem:[#allocation3 + $0x238] sm:$0xff]
        %v7116 = vld [vmem:[#allocation3 + $0x240] sm:$0xf]
        %v7117 = vld [vmem:[#allocation3 + $0x244] sm:$0xff]
        %v7118 = vld [vmem:[#allocation3 + $0x24c] sm:$0xff]
        %v7119 = vld [vmem:[#allocation3 + $0x254] sm:$0xf]
        %v7120 = vld [vmem:[#allocation3 + $0x258] sm:$0xff]
        %v7121 = vld [vmem:[#allocation3 + $0x260] sm:$0xff]
        %v7122 = vld [vmem:[#allocation3 + $0x268] sm:$0xf]
        %v7123 = vld [vmem:[#allocation3 + $0x26c] sm:$0xff]
        %v7124 = vld [vmem:[#allocation3 + $0x274] sm:$0xff]
        %v7125 = vld [vmem:[#allocation3 + $0x27c] sm:$0xf]
        %v7126 = vld [vmem:[%s7] sm:$0xf]
        %v7127 = vld [vmem:[%s7 + $0x4] sm:$0xf]
        %v7128 = vld [vmem:[%s7 + $0x8] sm:$0xf]
        %v7129 = vld [vmem:[%s7 + $0xc] sm:$0xf]
        %v7130 = vld [vmem:[%s7 + $0x10] sm:$0xf]
        %v7131 = vld [vmem:[%s7 + $0x14] sm:$0xf]
        %v7132 = vld [vmem:[%s7 + $0x18] sm:$0xf]
        %v7133 = vld [vmem:[%s7 + $0x1c] sm:$0xf]
        %v7134 = vld [vmem:[%s7 + $0x20] sm:$0xf]
        %v7135 = vld [vmem:[%s7 + $0x24] sm:$0xf]
        %v7136 = vld [vmem:[%s7 + $0x28] sm:$0xf]
        %v7137 = vld [vmem:[%s7 + $0x2c] sm:$0xf]
        %v7138 = vld [vmem:[%s7 + $0x30] sm:$0xf]
        %v7139 = vld [vmem:[%s7 + $0x34] sm:$0xf]
        %v7140 = vld [vmem:[%s7 + $0x38] sm:$0xf]
        %v7141 = vld [vmem:[%s7 + $0x3c] sm:$0xf]
        %v7142 = vld [vmem:[%s7 + $0x40] sm:$0xf]
        %v7143 = vld [vmem:[%s7 + $0x44] sm:$0xf]
        %v7144 = vld [vmem:[%s7 + $0x48] sm:$0xf]
        %v7145 = vld [vmem:[%s7 + $0x4c] sm:$0xf]
        %v7146 = vld [vmem:[%s7 + $0x50] sm:$0xf]
        %v7147 = vld [vmem:[%s7 + $0x54] sm:$0xf]
        %v7148 = vld [vmem:[%s7 + $0x58] sm:$0xf]
        %v7149 = vld [vmem:[%s7 + $0x5c] sm:$0xf]
        %v7150 = vld [vmem:[%s7 + $0x60] sm:$0xf]
        %v7151 = vld [vmem:[%s7 + $0x64] sm:$0xf]
        %v7152 = vld [vmem:[%s7 + $0x68] sm:$0xf]
        %v7153 = vld [vmem:[%s7 + $0x6c] sm:$0xf]
        %v7154 = vld [vmem:[%s7 + $0x70] sm:$0xf]
        %v7155 = vld [vmem:[%s7 + $0x74] sm:$0xf]
        %v7156 = vld [vmem:[%s7 + $0x78] sm:$0xf]
        %v7157 = vld [vmem:[%s7 + $0x7c] sm:$0xf]
        %v7158 = vld [vmem:[%s7 + $0x80] sm:$0xf]
        %v7159 = vld [vmem:[%s7 + $0x84] sm:$0xf]
        %v7160 = vld [vmem:[%s7 + $0x88] sm:$0xf]
        %v7161 = vld [vmem:[%s7 + $0x8c] sm:$0xf]
        %v7162 = vld [vmem:[%s7 + $0x90] sm:$0xf]
        %v7163 = vld [vmem:[%s7 + $0x94] sm:$0xf]
        %v7164 = vld [vmem:[%s7 + $0x98] sm:$0xf]
        %v7165 = vld [vmem:[%s7 + $0x9c] sm:$0xf]
        %v7166 = vld [vmem:[%s7 + $0xa0] sm:$0xf]
        %v7167 = vld [vmem:[%s7 + $0xa4] sm:$0xf]
        %v7168 = vld [vmem:[%s7 + $0xa8] sm:$0xf]
        %v7169 = vld [vmem:[%s7 + $0xac] sm:$0xf]
        %v7170 = vld [vmem:[%s7 + $0xb0] sm:$0xf]
        %v7171 = vld [vmem:[%s7 + $0xb4] sm:$0xf]
        %v7172 = vld [vmem:[%s7 + $0xb8] sm:$0xf]
        %v7173 = vld [vmem:[%s7 + $0xbc] sm:$0xf]
        %v7174 = vld [vmem:[%s7 + $0xc0] sm:$0xf]
        %v7175 = vld [vmem:[%s7 + $0xc4] sm:$0xf]
        %v7176 = vld [vmem:[%s7 + $0xc8] sm:$0xf]
        %v7177 = vld [vmem:[%s7 + $0xcc] sm:$0xf]
        %v7178 = vld [vmem:[%s7 + $0xd0] sm:$0xf]
        %v7179 = vld [vmem:[%s7 + $0xd4] sm:$0xf]
        %v7180 = vld [vmem:[%s7 + $0xd8] sm:$0xf]
        %v7181 = vld [vmem:[%s7 + $0xdc] sm:$0xf]
        %v7182 = vld [vmem:[%s7 + $0xe0] sm:$0xf]
        %v7183 = vld [vmem:[%s7 + $0xe4] sm:$0xf]
        %v7184 = vld [vmem:[%s7 + $0xe8] sm:$0xf]
        %v7185 = vld [vmem:[%s7 + $0xec] sm:$0xf]
        %v7186 = vld [vmem:[%s7 + $0xf0] sm:$0xf]
        %v7187 = vld [vmem:[%s7 + $0xf4] sm:$0xf]
        %v7188 = vld [vmem:[%s7 + $0xf8] sm:$0xf]
        %v7189 = vld [vmem:[%s7 + $0xfc] sm:$0xf]
        %v7190 = vld [vmem:[%s7 + $0x100] sm:$0xf]
        %v7191 = vld [vmem:[%s7 + $0x104] sm:$0xf]
        %v7192 = vld [vmem:[%s7 + $0x108] sm:$0xf]
        %v7193 = vld [vmem:[%s7 + $0x10c] sm:$0xf]
        %v7194 = vld [vmem:[%s7 + $0x110] sm:$0xf]
        %v7195 = vld [vmem:[%s7 + $0x114] sm:$0xf]
        %v7196 = vld [vmem:[%s7 + $0x118] sm:$0xf]
        %v7197 = vld [vmem:[%s7 + $0x11c] sm:$0xf]
        %v7198 = vld [vmem:[%s8] sm:$0x1]
        %v7200 = vlaneseq
        %v7201 = vshrl.u32 %v7200, 7
        %v7202 = vsub.s32 0, %v7201
        %v7203 = vrot.slane %v7198, %v7202
        %v7301 = vunpack.c.l.b16 %v7030
        %v7302 = vunpack.c.h.b16 %v7030
        %v7303 = vunpack.c.l.b16 %v7031
        %v7304 = vunpack.c.h.b16 %v7031
        %v7305 = vunpack.c.l.b16 %v7032
        %v7306 = vunpack.c.l.b16 %v7033
        %v7307 = vunpack.c.h.b16 %v7033
        %v7308 = vunpack.c.l.b16 %v7034
        %v7309 = vunpack.c.h.b16 %v7034
        %v7310 = vunpack.c.l.b16 %v7035
        %v7311 = vunpack.c.l.b16 %v7036
        %v7312 = vunpack.c.h.b16 %v7036
        %v7313 = vunpack.c.l.b16 %v7037
        %v7314 = vunpack.c.h.b16 %v7037
        %v7315 = vunpack.c.l.b16 %v7038
        %v7316 = vunpack.c.l.b16 %v7039
        %v7317 = vunpack.c.h.b16 %v7039
        %v7318 = vunpack.c.l.b16 %v7040
        %v7319 = vunpack.c.h.b16 %v7040
        %v7320 = vunpack.c.l.b16 %v7041
        %v7321 = vunpack.c.l.b16 %v7042
        %v7322 = vunpack.c.h.b16 %v7042
        %v7323 = vunpack.c.l.b16 %v7043
        %v7324 = vunpack.c.h.b16 %v7043
        %v7325 = vunpack.c.l.b16 %v7044
        %v7326 = vunpack.c.l.b16 %v7045
        %v7327 = vunpack.c.h.b16 %v7045
        %v7328 = vunpack.c.l.b16 %v7046
        %v7329 = vunpack.c.h.b16 %v7046
        %v7330 = vunpack.c.l.b16 %v7047
        %v7331 = vunpack.c.l.b16 %v7048
        %v7332 = vunpack.c.h.b16 %v7048
        %v7333 = vunpack.c.l.b16 %v7049
        %v7334 = vunpack.c.h.b16 %v7049
        %v7335 = vunpack.c.l.b16 %v7050
        %v7336 = vunpack.c.l.b16 %v7051
        %v7337 = vunpack.c.h.b16 %v7051
        %v7338 = vunpack.c.l.b16 %v7052
        %v7339 = vunpack.c.h.b16 %v7052
        %v7340 = vunpack.c.l.b16 %v7053
        %v7341 = vunpack.c.l.b16 %v7054
        %v7342 = vunpack.c.h.b16 %v7054
        %v7343 = vunpack.c.l.b16 %v7055
        %v7344 = vunpack.c.h.b16 %v7055
        %v7345 = vunpack.c.l.b16 %v7056
        %v7346 = vunpack.c.l.b16 %v7057
        %v7347 = vunpack.c.h.b16 %v7057
        %v7348 = vunpack.c.l.b16 %v7058
        %v7349 = vunpack.c.h.b16 %v7058
        %v7350 = vunpack.c.l.b16 %v7059
        %v7351 = vunpack.c.l.b16 %v7060
        %v7352 = vunpack.c.h.b16 %v7060
        %v7353 = vunpack.c.l.b16 %v7061
        %v7354 = vunpack.c.h.b16 %v7061
        %v7355 = vunpack.c.l.b16 %v7062
        %v7356 = vunpack.c.l.b16 %v7063
        %v7357 = vunpack.c.h.b16 %v7063
        %v7358 = vunpack.c.l.b16 %v7064
        %v7359 = vunpack.c.h.b16 %v7064
        %v7360 = vunpack.c.l.b16 %v7065
        %v7361 = vunpack.c.l.b16 %v7066
        %v7362 = vunpack.c.h.b16 %v7066
        %v7363 = vunpack.c.l.b16 %v7067
        %v7364 = vunpack.c.h.b16 %v7067
        %v7365 = vunpack.c.l.b16 %v7068
        %v7366 = vunpack.c.l.b16 %v7069
        %v7367 = vunpack.c.h.b16 %v7069
        %v7368 = vunpack.c.l.b16 %v7070
        %v7369 = vunpack.c.h.b16 %v7070
        %v7370 = vunpack.c.l.b16 %v7071
        %v7371 = vunpack.c.l.b16 %v7072
        %v7372 = vunpack.c.h.b16 %v7072
        %v7373 = vunpack.c.l.b16 %v7073
        %v7374 = vunpack.c.h.b16 %v7073
        %v7375 = vunpack.c.l.b16 %v7074
        %v7376 = vunpack.c.l.b16 %v7075
        %v7377 = vunpack.c.h.b16 %v7075
        %v7378 = vunpack.c.l.b16 %v7076
        %v7379 = vunpack.c.h.b16 %v7076
        %v7380 = vunpack.c.l.b16 %v7077
        %v7381 = vunpack.c.l.b16 %v7078
        %v7382 = vunpack.c.h.b16 %v7078
        %v7383 = vunpack.c.l.b16 %v7079
        %v7384 = vunpack.c.h.b16 %v7079
        %v7385 = vunpack.c.l.b16 %v7080
        %v7386 = vunpack.c.l.b16 %v7081
        %v7387 = vunpack.c.h.b16 %v7081
        %v7388 = vunpack.c.l.b16 %v7082
        %v7389 = vunpack.c.h.b16 %v7082
        %v7390 = vunpack.c.l.b16 %v7083
        %v7391 = vunpack.c.l.b16 %v7084
        %v7392 = vunpack.c.h.b16 %v7084
        %v7393 = vunpack.c.l.b16 %v7085
        %v7394 = vunpack.c.h.b16 %v7085
        %v7395 = vunpack.c.l.b16 %v7086
        %v7396 = vunpack.c.l.b16 %v7087
        %v7397 = vunpack.c.h.b16 %v7087
        %v7398 = vunpack.c.l.b16 %v7088
        %v7399 = vunpack.c.h.b16 %v7088
        %v7400 = vunpack.c.l.b16 %v7089
        %v7401 = vunpack.c.l.b16 %v7090
        %v7402 = vunpack.c.h.b16 %v7090
        %v7403 = vunpack.c.l.b16 %v7091
        %v7404 = vunpack.c.h.b16 %v7091
        %v7405 = vunpack.c.l.b16 %v7092
        %v7406 = vunpack.c.l.b16 %v7093
        %v7407 = vunpack.c.h.b16 %v7093
        %v7408 = vunpack.c.l.b16 %v7094
        %v7409 = vunpack.c.h.b16 %v7094
        %v7410 = vunpack.c.l.b16 %v7095
        %v7411 = vunpack.c.l.b16 %v7096
        %v7412 = vunpack.c.h.b16 %v7096
        %v7413 = vunpack.c.l.b16 %v7097
        %v7414 = vunpack.c.h.b16 %v7097
        %v7415 = vunpack.c.l.b16 %v7098
        %v7416 = vunpack.c.l.b16 %v7099
        %v7417 = vunpack.c.h.b16 %v7099
        %v7418 = vunpack.c.l.b16 %v7100
        %v7419 = vunpack.c.h.b16 %v7100
        %v7420 = vunpack.c.l.b16 %v7101
        %v7421 = vunpack.c.l.b16 %v7102
        %v7422 = vunpack.c.h.b16 %v7102
        %v7423 = vunpack.c.l.b16 %v7103
        %v7424 = vunpack.c.h.b16 %v7103
        %v7425 = vunpack.c.l.b16 %v7104
        %v7426 = vunpack.c.l.b16 %v7105
        %v7427 = vunpack.c.h.b16 %v7105
        %v7428 = vunpack.c.l.b16 %v7106
        %v7429 = vunpack.c.h.b16 %v7106
        %v7430 = vunpack.c.l.b16 %v7107
        %v7431 = vunpack.c.l.b16 %v7108
        %v7432 = vunpack.c.h.b16 %v7108
        %v7433 = vunpack.c.l.b16 %v7109
        %v7434 = vunpack.c.h.b16 %v7109
        %v7435 = vunpack.c.l.b16 %v7110
        %v7436 = vunpack.c.l.b16 %v7111
        %v7437 = vunpack.c.h.b16 %v7111
        %v7438 = vunpack.c.l.b16 %v7112
        %v7439 = vunpack.c.h.b16 %v7112
        %v7440 = vunpack.c.l.b16 %v7113
        %v7441 = vunpack.c.l.b16 %v7114
        %v7442 = vunpack.c.h.b16 %v7114
        %v7443 = vunpack.c.l.b16 %v7115
        %v7444 = vunpack.c.h.b16 %v7115
        %v7445 = vunpack.c.l.b16 %v7116
        %v7446 = vunpack.c.l.b16 %v7117
        %v7447 = vunpack.c.h.b16 %v7117
        %v7448 = vunpack.c.l.b16 %v7118
        %v7449 = vunpack.c.h.b16 %v7118
        %v7450 = vunpack.c.l.b16 %v7119
        %v7451 = vunpack.c.l.b16 %v7120
        %v7452 = vunpack.c.h.b16 %v7120
        %v7453 = vunpack.c.l.b16 %v7121
        %v7454 = vunpack.c.h.b16 %v7121
        %v7455 = vunpack.c.l.b16 %v7122
        %v7456 = vunpack.c.l.b16 %v7123
        %v7457 = vunpack.c.h.b16 %v7123
        %v7458 = vunpack.c.l.b16 %v7124
        %v7459 = vunpack.c.h.b16 %v7124
        %v7460 = vunpack.c.l.b16 %v7125
        %v7461 = vpack.c.b16 %v7306, %v7301
        %v7462 = vpack.c.b16 %v7307, %v7302
        %v7463 = vpack.c.b16 %v7308, %v7303
        %v7464 = vpack.c.b16 %v7309, %v7304
        %v7465 = vpack.c.b16 %v7310, %v7305
        %v7466 = vpack.c.b16 %v7316, %v7311
        %v7467 = vpack.c.b16 %v7317, %v7312
        %v7468 = vpack.c.b16 %v7318, %v7313
        %v7469 = vpack.c.b16 %v7319, %v7314
        %v7470 = vpack.c.b16 %v7320, %v7315
        %v7471 = vpack.c.b16 %v7326, %v7321
        %v7472 = vpack.c.b16 %v7327, %v7322
        %v7473 = vpack.c.b16 %v7328, %v7323
        %v7474 = vpack.c.b16 %v7329, %v7324
        %v7475 = vpack.c.b16 %v7330, %v7325
        %v7476 = vpack.c.b16 %v7336, %v7331
        %v7477 = vpack.c.b16 %v7337, %v7332
        %v7478 = vpack.c.b16 %v7338, %v7333
        %v7479 = vpack.c.b16 %v7339, %v7334
        %v7480 = vpack.c.b16 %v7340, %v7335
        %v7481 = vpack.c.b16 %v7346, %v7341
        %v7482 = vpack.c.b16 %v7347, %v7342
        %v7483 = vpack.c.b16 %v7348, %v7343
        %v7484 = vpack.c.b16 %v7349, %v7344
        %v7485 = vpack.c.b16 %v7350, %v7345
        %v7486 = vpack.c.b16 %v7356, %v7351
        %v7487 = vpack.c.b16 %v7357, %v7352
        %v7488 = vpack.c.b16 %v7358, %v7353
        %v7489 = vpack.c.b16 %v7359, %v7354
        %v7490 = vpack.c.b16 %v7360, %v7355
        %v7491 = vpack.c.b16 %v7366, %v7361
        %v7492 = vpack.c.b16 %v7367, %v7362
        %v7493 = vpack.c.b16 %v7368, %v7363
        %v7494 = vpack.c.b16 %v7369, %v7364
        %v7495 = vpack.c.b16 %v7370, %v7365
        %v7496 = vpack.c.b16 %v7376, %v7371
        %v7497 = vpack.c.b16 %v7377, %v7372
        %v7498 = vpack.c.b16 %v7378, %v7373
        %v7499 = vpack.c.b16 %v7379, %v7374
        %v7500 = vpack.c.b16 %v7380, %v7375
        %v7501 = vpack.c.b16 %v7386, %v7381
        %v7502 = vpack.c.b16 %v7387, %v7382
        %v7503 = vpack.c.b16 %v7388, %v7383
        %v7504 = vpack.c.b16 %v7389, %v7384
        %v7505 = vpack.c.b16 %v7390, %v7385
        %v7506 = vpack.c.b16 %v7396, %v7391
        %v7507 = vpack.c.b16 %v7397, %v7392
        %v7508 = vpack.c.b16 %v7398, %v7393
        %v7509 = vpack.c.b16 %v7399, %v7394
        %v7510 = vpack.c.b16 %v7400, %v7395
        %v7511 = vpack.c.b16 %v7406, %v7401
        %v7512 = vpack.c.b16 %v7407, %v7402
        %v7513 = vpack.c.b16 %v7408, %v7403
        %v7514 = vpack.c.b16 %v7409, %v7404
        %v7515 = vpack.c.b16 %v7410, %v7405
        %v7516 = vpack.c.b16 %v7416, %v7411
        %v7517 = vpack.c.b16 %v7417, %v7412
        %v7518 = vpack.c.b16 %v7418, %v7413
        %v7519 = vpack.c.b16 %v7419, %v7414
        %v7520 = vpack.c.b16 %v7420, %v7415
        %v7521 = vpack.c.b16 %v7426, %v7421
        %v7522 = vpack.c.b16 %v7427, %v7422
        %v7523 = vpack.c.b16 %v7428, %v7423
        %v7524 = vpack.c.b16 %v7429, %v7424
        %v7525 = vpack.c.b16 %v7430, %v7425
        %v7526 = vpack.c.b16 %v7436, %v7431
        %v7527 = vpack.c.b16 %v7437, %v7432
        %v7528 = vpack.c.b16 %v7438, %v7433
        %v7529 = vpack.c.b16 %v7439, %v7434
        %v7530 = vpack.c.b16 %v7440, %v7435
        %v7531 = vpack.c.b16 %v7446, %v7441
        %v7532 = vpack.c.b16 %v7447, %v7442
        %v7533 = vpack.c.b16 %v7448, %v7443
        %v7534 = vpack.c.b16 %v7449, %v7444
        %v7535 = vpack.c.b16 %v7450, %v7445
        %v7536 = vpack.c.b16 %v7456, %v7451
        %v7537 = vpack.c.b16 %v7457, %v7452
        %v7538 = vpack.c.b16 %v7458, %v7453
        %v7539 = vpack.c.b16 %v7459, %v7454
        %v7540 = vpack.c.b16 %v7460, %v7455
        %v7677 = vunpack.c.l.b16 %v7126
        %v7678 = vunpack.c.l.b16 %v7127
        %v7679 = vunpack.c.l.b16 %v7128
        %v7680 = vunpack.c.l.b16 %v7129
        %v7681 = vunpack.c.l.b16 %v7130
        %v7682 = vunpack.c.l.b16 %v7131
        %v7683 = vunpack.c.l.b16 %v7132
        %v7684 = vunpack.c.l.b16 %v7133
        %v7685 = vunpack.c.l.b16 %v7134
        %v7686 = vunpack.c.l.b16 %v7135
        %v7687 = vunpack.c.l.b16 %v7136
        %v7688 = vunpack.c.l.b16 %v7137
        %v7689 = vunpack.c.l.b16 %v7138
        %v7690 = vunpack.c.l.b16 %v7139
        %v7691 = vunpack.c.l.b16 %v7140
        %v7692 = vunpack.c.l.b16 %v7141
        %v7693 = vunpack.c.l.b16 %v7142
        %v7694 = vunpack.c.l.b16 %v7143
        %v7695 = vunpack.c.l.b16 %v7144
        %v7696 = vunpack.c.l.b16 %v7145
        %v7697 = vunpack.c.l.b16 %v7146
        %v7698 = vunpack.c.l.b16 %v7147
        %v7699 = vunpack.c.l.b16 %v7148
        %v7700 = vunpack.c.l.b16 %v7149
        %v7701 = vunpack.c.l.b16 %v7150
        %v7702 = vunpack.c.l.b16 %v7151
        %v7703 = vunpack.c.l.b16 %v7152
        %v7704 = vunpack.c.l.b16 %v7153
        %v7705 = vunpack.c.l.b16 %v7154
        %v7706 = vunpack.c.l.b16 %v7155
        %v7707 = vunpack.c.l.b16 %v7156
        %v7708 = vunpack.c.l.b16 %v7157
        %v7709 = vunpack.c.l.b16 %v7158
        %v7710 = vunpack.c.l.b16 %v7159
        %v7711 = vunpack.c.l.b16 %v7160
        %v7712 = vunpack.c.l.b16 %v7161
        %v7713 = vunpack.c.l.b16 %v7162
        %v7714 = vunpack.c.l.b16 %v7163
        %v7715 = vunpack.c.l.b16 %v7164
        %v7716 = vunpack.c.l.b16 %v7165
        %v7717 = vunpack.c.l.b16 %v7166
        %v7718 = vunpack.c.l.b16 %v7167
        %v7719 = vunpack.c.l.b16 %v7168
        %v7720 = vunpack.c.l.b16 %v7169
        %v7721 = vunpack.c.l.b16 %v7170
        %v7722 = vunpack.c.l.b16 %v7171
        %v7723 = vunpack.c.l.b16 %v7172
        %v7724 = vunpack.c.l.b16 %v7173
        %v7725 = vunpack.c.l.b16 %v7174
        %v7726 = vunpack.c.l.b16 %v7175
        %v7727 = vunpack.c.l.b16 %v7176
        %v7728 = vunpack.c.l.b16 %v7177
        %v7729 = vunpack.c.l.b16 %v7178
        %v7730 = vunpack.c.l.b16 %v7179
        %v7731 = vunpack.c.l.b16 %v7180
        %v7732 = vunpack.c.l.b16 %v7181
        %v7733 = vunpack.c.l.b16 %v7182
        %v7734 = vunpack.c.l.b16 %v7183
        %v7735 = vunpack.c.l.b16 %v7184
        %v7736 = vunpack.c.l.b16 %v7185
        %v7737 = vunpack.c.l.b16 %v7186
        %v7738 = vunpack.c.l.b16 %v7187
        %v7739 = vunpack.c.l.b16 %v7188
        %v7740 = vunpack.c.l.b16 %v7189
        %v7741 = vunpack.c.l.b16 %v7190
        %v7742 = vunpack.c.l.b16 %v7191
        %v7743 = vunpack.c.l.b16 %v7192
        %v7744 = vunpack.c.l.b16 %v7193
        %v7745 = vunpack.c.l.b16 %v7194
        %v7746 = vunpack.c.l.b16 %v7195
        %v7747 = vunpack.c.l.b16 %v7196
        %v7748 = vunpack.c.l.b16 %v7197
        %v7749 = vpack.c.b16 %v7678, %v7677
        %v7750 = vpack.c.b16 %v7680, %v7679
        %v7751 = vpack.c.b16 %v7682, %v7681
        %v7752 = vpack.c.b16 %v7684, %v7683
        %v7753 = vpack.c.b16 %v7686, %v7685
        %v7754 = vpack.c.b16 %v7688, %v7687
        %v7755 = vpack.c.b16 %v7690, %v7689
        %v7756 = vpack.c.b16 %v7692, %v7691
        %v7757 = vpack.c.b16 %v7694, %v7693
        %v7758 = vpack.c.b16 %v7696, %v7695
        %v7759 = vpack.c.b16 %v7698, %v7697
        %v7760 = vpack.c.b16 %v7700, %v7699
        %v7761 = vpack.c.b16 %v7702, %v7701
        %v7762 = vpack.c.b16 %v7704, %v7703
        %v7763 = vpack.c.b16 %v7706, %v7705
        %v7764 = vpack.c.b16 %v7708, %v7707
        %v7765 = vpack.c.b16 %v7710, %v7709
        %v7766 = vpack.c.b16 %v7712, %v7711
        %v7767 = vpack.c.b16 %v7714, %v7713
        %v7768 = vpack.c.b16 %v7716, %v7715
        %v7769 = vpack.c.b16 %v7718, %v7717
        %v7770 = vpack.c.b16 %v7720, %v7719
        %v7771 = vpack.c.b16 %v7722, %v7721
        %v7772 = vpack.c.b16 %v7724, %v7723
        %v7773 = vpack.c.b16 %v7726, %v7725
        %v7774 = vpack.c.b16 %v7728, %v7727
        %v7775 = vpack.c.b16 %v7730, %v7729
        %v7776 = vpack.c.b16 %v7732, %v7731
        %v7777 = vpack.c.b16 %v7734, %v7733
        %v7778 = vpack.c.b16 %v7736, %v7735
        %v7779 = vpack.c.b16 %v7738, %v7737
        %v7780 = vpack.c.b16 %v7740, %v7739
        %v7781 = vpack.c.b16 %v7742, %v7741
        %v7782 = vpack.c.b16 %v7744, %v7743
        %v7783 = vpack.c.b16 %v7746, %v7745
        %v7784 = vpack.c.b16 %v7748, %v7747
        %v7822 = vsel %vm3745, %v7465, 0
        %v7825 = vsel %vm3745, %v7470, 0
        %v7828 = vsel %vm3745, %v7475, 0
        %v7831 = vsel %vm3745, %v7480, 0
        %v7834 = vsel %vm3745, %v7485, 0
        %v7837 = vsel %vm3745, %v7490, 0
        %v7840 = vsel %vm3745, %v7495, 0
        %v7843 = vsel %vm3745, %v7500, 0
        %v7846 = vsel %vm3745, %v7505, 0
        %v7849 = vsel %vm3745, %v7510, 0
        %v7852 = vsel %vm3745, %v7515, 0
        %v7855 = vsel %vm3745, %v7520, 0
        %v7858 = vsel %vm3745, %v7525, 0
        %v7861 = vsel %vm3745, %v7530, 0
        %v7864 = vsel %vm3745, %v7535, 0
        %v7867 = vsel %vm3745, %v7540, 0
        %7869 = vmatprep.subr.bf16.mxu0 0
        %7870 = vmatpush1.bf16.msra.mxu0 %v7756
        %7871 = vmatprep.subr.bf16.mxu0 0
        %7872 = vmatpush1.bf16.msra.mxu0 %v7755
        %7873 = vmatprep.subr.bf16.mxu0 0
        %7874 = vmatpush1.bf16.msra.mxu0 %v7754
        %7875 = vmatprep.subr.bf16.mxu0 0
        %7876 = vmatpush1.bf16.msra.mxu0 %v7753
        %7877 = vmatprep.subr.bf16.mxu0 0
        %7878 = vmatpush1.bf16.msra.mxu0 %v7752
        %7879 = vmatprep.subr.bf16.mxu0 0
        %7880 = vmatpush1.bf16.msra.mxu0 %v7751
        %7881 = vmatprep.subr.bf16.mxu0 0
        %7882 = vmatpush1.bf16.msra.mxu0 %v7750
        %7883 = vmatprep.subr.bf16.mxu0 0
        %7884 = vmatpush1.bf16.msra.mxu0 %v7749
        %7885 = vmatprep.subr.bf16.mxu0 0
        %7886 = vmatpush2.bf16.msra.mxu0 %v7764
        %7887 = vmatprep.subr.bf16.mxu0 0
        %7888 = vmatpush2.bf16.msra.mxu0 %v7763
        %7889 = vmatprep.subr.bf16.mxu0 0
        %7890 = vmatpush2.bf16.msra.mxu0 %v7762
        %7891 = vmatprep.subr.bf16.mxu0 0
        %7892 = vmatpush2.bf16.msra.mxu0 %v7761
        %7893 = vmatprep.subr.bf16.mxu0 0
        %7894 = vmatpush2.bf16.msra.mxu0 %v7760
        %7895 = vmatprep.subr.bf16.mxu0 0
        %7896 = vmatpush2.bf16.msra.mxu0 %v7759
        %7897 = vmatprep.subr.bf16.mxu0 0
        %7898 = vmatpush2.bf16.msra.mxu0 %v7758
        %7899 = vmatprep.subr.bf16.mxu0 0
        %7900 = vmatpush2.bf16.msra.mxu0 %v7757
        %7901 = vmatprep.mubr.bf16.mxu0 %v7462
        %7902 = vmatmul.mubr.bf16.gmra.mxu0 %v7461
        %v7903 = vpop.f32.mrf.mxu0
        %v7904 = vadd.f32 %v7203, %v7903
        %v7905 = vpop.f32.mrf.mxu0
        %v7906 = vpop.f32.mrf.mxu0
        %v7907 = vadd.f32 %v7203, %v7906
        %v7908 = vpop.f32.mrf.mxu0
        %7909 = vmatprep.mubr.bf16.mxu0 %v7467
        %7910 = vmatmul.mubr.bf16.gmra.mxu0 %v7466
        %v7911 = vpop.f32.mrf.mxu0
        %v7912 = vadd.f32 %v7203, %v7911
        %v7913 = vpop.f32.mrf.mxu0
        %v7914 = vpop.f32.mrf.mxu0
        %v7915 = vadd.f32 %v7203, %v7914
        %v7916 = vpop.f32.mrf.mxu0
        %7917 = vmatprep.mubr.bf16.mxu0 %v7472
        %7918 = vmatmul.mubr.bf16.gmra.mxu0 %v7471
        %v7919 = vpop.f32.mrf.mxu0
        %v7920 = vadd.f32 %v7203, %v7919
        %v7921 = vpop.f32.mrf.mxu0
        %v7922 = vpop.f32.mrf.mxu0
        %v7923 = vadd.f32 %v7203, %v7922
        %v7924 = vpop.f32.mrf.mxu0
        %7925 = vmatprep.mubr.bf16.mxu0 %v7477
        %7926 = vmatmul.mubr.bf16.gmra.mxu0 %v7476
        %v7927 = vpop.f32.mrf.mxu0
        %v7928 = vadd.f32 %v7203, %v7927
        %v7929 = vpop.f32.mrf.mxu0
        %v7930 = vpop.f32.mrf.mxu0
        %v7931 = vadd.f32 %v7203, %v7930
        %v7932 = vpop.f32.mrf.mxu0
        %7933 = vmatprep.mubr.bf16.mxu0 %v7482
        %7934 = vmatmul.mubr.bf16.gmra.mxu0 %v7481
        %v7935 = vpop.f32.mrf.mxu0
        %v7936 = vadd.f32 %v7203, %v7935
        %v7937 = vpop.f32.mrf.mxu0
        %v7938 = vpop.f32.mrf.mxu0
        %v7939 = vadd.f32 %v7203, %v7938
        %v7940 = vpop.f32.mrf.mxu0
        %7941 = vmatprep.mubr.bf16.mxu0 %v7487
        %7942 = vmatmul.mubr.bf16.gmra.mxu0 %v7486
        %v7943 = vpop.f32.mrf.mxu0
        %v7944 = vadd.f32 %v7203, %v7943
        %v7945 = vpop.f32.mrf.mxu0
        %v7946 = vpop.f32.mrf.mxu0
        %v7947 = vadd.f32 %v7203, %v7946
        %v7948 = vpop.f32.mrf.mxu0
        %7949 = vmatprep.mubr.bf16.mxu0 %v7492
        %7950 = vmatmul.mubr.bf16.gmra.mxu0 %v7491
        %v7951 = vpop.f32.mrf.mxu0
        %v7952 = vadd.f32 %v7203, %v7951
        %v7953 = vpop.f32.mrf.mxu0
        %v7954 = vpop.f32.mrf.mxu0
        %v7955 = vadd.f32 %v7203, %v7954
        %v7956 = vpop.f32.mrf.mxu0
        %7957 = vmatprep.mubr.bf16.mxu0 %v7497
        %7958 = vmatmul.mubr.bf16.gmra.mxu0 %v7496
        %v7959 = vpop.f32.mrf.mxu0
        %v7960 = vadd.f32 %v7203, %v7959
        %v7961 = vpop.f32.mrf.mxu0
        %v7962 = vpop.f32.mrf.mxu0
        %v7963 = vadd.f32 %v7203, %v7962
        %v7964 = vpop.f32.mrf.mxu0
        %7965 = vmatprep.mubr.bf16.mxu0 %v7502
        %7966 = vmatmul.mubr.bf16.gmra.mxu0 %v7501
        %v7967 = vpop.f32.mrf.mxu0
        %v7968 = vadd.f32 %v7203, %v7967
        %v7969 = vpop.f32.mrf.mxu0
        %v7970 = vpop.f32.mrf.mxu0
        %v7971 = vadd.f32 %v7203, %v7970
        %v7972 = vpop.f32.mrf.mxu0
        %7973 = vmatprep.mubr.bf16.mxu0 %v7507
        %7974 = vmatmul.mubr.bf16.gmra.mxu0 %v7506
        %v7975 = vpop.f32.mrf.mxu0
        %v7976 = vadd.f32 %v7203, %v7975
        %v7977 = vpop.f32.mrf.mxu0
        %v7978 = vpop.f32.mrf.mxu0
        %v7979 = vadd.f32 %v7203, %v7978
        %v7980 = vpop.f32.mrf.mxu0
        %7981 = vmatprep.mubr.bf16.mxu0 %v7512
        %7982 = vmatmul.mubr.bf16.gmra.mxu0 %v7511
        %v7983 = vpop.f32.mrf.mxu0
        %v7984 = vadd.f32 %v7203, %v7983
        %v7985 = vpop.f32.mrf.mxu0
        %v7986 = vpop.f32.mrf.mxu0
        %v7987 = vadd.f32 %v7203, %v7986
        %v7988 = vpop.f32.mrf.mxu0
        %7989 = vmatprep.mubr.bf16.mxu0 %v7517
        %7990 = vmatmul.mubr.bf16.gmra.mxu0 %v7516
        %v7991 = vpop.f32.mrf.mxu0
        %v7992 = vadd.f32 %v7203, %v7991
        %v7993 = vpop.f32.mrf.mxu0
        %v7994 = vpop.f32.mrf.mxu0
        %v7995 = vadd.f32 %v7203, %v7994
        %v7996 = vpop.f32.mrf.mxu0
        %7997 = vmatprep.mubr.bf16.mxu0 %v7522
        %7998 = vmatmul.mubr.bf16.gmra.mxu0 %v7521
        %v7999 = vpop.f32.mrf.mxu0
        %v8000 = vadd.f32 %v7203, %v7999
        %v8001 = vpop.f32.mrf.mxu0
        %v8002 = vpop.f32.mrf.mxu0
        %v8003 = vadd.f32 %v7203, %v8002
        %v8004 = vpop.f32.mrf.mxu0
        %8005 = vmatprep.mubr.bf16.mxu0 %v7527
        %8006 = vmatmul.mubr.bf16.gmra.mxu0 %v7526
        %v8007 = vpop.f32.mrf.mxu0
        %v8008 = vadd.f32 %v7203, %v8007
        %v8009 = vpop.f32.mrf.mxu0
        %v8010 = vpop.f32.mrf.mxu0
        %v8011 = vadd.f32 %v7203, %v8010
        %v8012 = vpop.f32.mrf.mxu0
        %8013 = vmatprep.mubr.bf16.mxu0 %v7532
        %8014 = vmatmul.mubr.bf16.gmra.mxu0 %v7531
        %v8015 = vpop.f32.mrf.mxu0
        %v8016 = vadd.f32 %v7203, %v8015
        %v8017 = vpop.f32.mrf.mxu0
        %v8018 = vpop.f32.mrf.mxu0
        %v8019 = vadd.f32 %v7203, %v8018
        %v8020 = vpop.f32.mrf.mxu0
        %8021 = vmatprep.mubr.bf16.mxu0 %v7537
        %8022 = vmatmul.mubr.bf16.gmra.mxu0 %v7536
        %v8023 = vpop.f32.mrf.mxu0
        %v8024 = vadd.f32 %v7203, %v8023
        %v8025 = vpop.f32.mrf.mxu0
        %v8026 = vpop.f32.mrf.mxu0
        %v8027 = vadd.f32 %v7203, %v8026
        %v8028 = vpop.f32.mrf.mxu0
        %8029 = vdwg.mxu0
        %8030 = vmatprep.subr.bf16.mxu0 0
        %8031 = vmatpush1.bf16.msra.mxu0 %v7772
        %8032 = vmatprep.subr.bf16.mxu0 0
        %8033 = vmatpush1.bf16.msra.mxu0 %v7771
        %8034 = vmatprep.subr.bf16.mxu0 0
        %8035 = vmatpush1.bf16.msra.mxu0 %v7770
        %8036 = vmatprep.subr.bf16.mxu0 0
        %8037 = vmatpush1.bf16.msra.mxu0 %v7769
        %8038 = vmatprep.subr.bf16.mxu0 0
        %8039 = vmatpush1.bf16.msra.mxu0 %v7768
        %8040 = vmatprep.subr.bf16.mxu0 0
        %8041 = vmatpush1.bf16.msra.mxu0 %v7767
        %8042 = vmatprep.subr.bf16.mxu0 0
        %8043 = vmatpush1.bf16.msra.mxu0 %v7766
        %8044 = vmatprep.subr.bf16.mxu0 0
        %8045 = vmatpush1.bf16.msra.mxu0 %v7765
        %8046 = vmatprep.subr.bf16.mxu0 0
        %8047 = vmatpush2.bf16.msra.mxu0 %v7780
        %8048 = vmatprep.subr.bf16.mxu0 0
        %8049 = vmatpush2.bf16.msra.mxu0 %v7779
        %8050 = vmatprep.subr.bf16.mxu0 0
        %8051 = vmatpush2.bf16.msra.mxu0 %v7778
        %8052 = vmatprep.subr.bf16.mxu0 0
        %8053 = vmatpush2.bf16.msra.mxu0 %v7777
        %8054 = vmatprep.subr.bf16.mxu0 0
        %8055 = vmatpush2.bf16.msra.mxu0 %v7776
        %8056 = vmatprep.subr.bf16.mxu0 0
        %8057 = vmatpush2.bf16.msra.mxu0 %v7775
        %8058 = vmatprep.subr.bf16.mxu0 0
        %8059 = vmatpush2.bf16.msra.mxu0 %v7774
        %8060 = vmatprep.subr.bf16.mxu0 0
        %8061 = vmatpush2.bf16.msra.mxu0 %v7773
        %8062 = vmatprep.mubr.bf16.mxu0 %v7464
        %8063 = vmatmul.mubr.bf16.gmra.mxu0 %v7463
        %v8064 = vpop.f32.mrf.mxu0
        %v8065 = vadd.f32 %v7904, %v8064
        %v8066 = vpop.f32.mrf.mxu0
        %v8067 = vpop.f32.mrf.mxu0
        %v8068 = vadd.f32 %v7907, %v8067
        %v8069 = vpop.f32.mrf.mxu0
        %8070 = vmatprep.mubr.bf16.mxu0 %v7469
        %8071 = vmatmul.mubr.bf16.gmra.mxu0 %v7468
        %v8072 = vpop.f32.mrf.mxu0
        %v8073 = vadd.f32 %v7912, %v8072
        %v8074 = vpop.f32.mrf.mxu0
        %v8075 = vpop.f32.mrf.mxu0
        %v8076 = vadd.f32 %v7915, %v8075
        %v8077 = vpop.f32.mrf.mxu0
        %8078 = vmatprep.mubr.bf16.mxu0 %v7474
        %8079 = vmatmul.mubr.bf16.gmra.mxu0 %v7473
        %v8080 = vpop.f32.mrf.mxu0
        %v8081 = vadd.f32 %v7920, %v8080
        %v8082 = vpop.f32.mrf.mxu0
        %v8083 = vpop.f32.mrf.mxu0
        %v8084 = vadd.f32 %v7923, %v8083
        %v8085 = vpop.f32.mrf.mxu0
        %8086 = vmatprep.mubr.bf16.mxu0 %v7479
        %8087 = vmatmul.mubr.bf16.gmra.mxu0 %v7478
        %v8088 = vpop.f32.mrf.mxu0
        %v8089 = vadd.f32 %v7928, %v8088
        %v8090 = vpop.f32.mrf.mxu0
        %v8091 = vpop.f32.mrf.mxu0
        %v8092 = vadd.f32 %v7931, %v8091
        %v8093 = vpop.f32.mrf.mxu0
        %8094 = vmatprep.mubr.bf16.mxu0 %v7484
        %8095 = vmatmul.mubr.bf16.gmra.mxu0 %v7483
        %v8096 = vpop.f32.mrf.mxu0
        %v8097 = vadd.f32 %v7936, %v8096
        %v8098 = vpop.f32.mrf.mxu0
        %v8099 = vpop.f32.mrf.mxu0
        %v8100 = vadd.f32 %v7939, %v8099
        %v8101 = vpop.f32.mrf.mxu0
        %8102 = vmatprep.mubr.bf16.mxu0 %v7489
        %8103 = vmatmul.mubr.bf16.gmra.mxu0 %v7488
        %v8104 = vpop.f32.mrf.mxu0
        %v8105 = vadd.f32 %v7944, %v8104
        %v8106 = vpop.f32.mrf.mxu0
        %v8107 = vpop.f32.mrf.mxu0
        %v8108 = vadd.f32 %v7947, %v8107
        %v8109 = vpop.f32.mrf.mxu0
        %8110 = vmatprep.mubr.bf16.mxu0 %v7494
        %8111 = vmatmul.mubr.bf16.gmra.mxu0 %v7493
        %v8112 = vpop.f32.mrf.mxu0
        %v8113 = vadd.f32 %v7952, %v8112
        %v8114 = vpop.f32.mrf.mxu0
        %v8115 = vpop.f32.mrf.mxu0
        %v8116 = vadd.f32 %v7955, %v8115
        %v8117 = vpop.f32.mrf.mxu0
        %8118 = vmatprep.mubr.bf16.mxu0 %v7499
        %8119 = vmatmul.mubr.bf16.gmra.mxu0 %v7498
        %v8120 = vpop.f32.mrf.mxu0
        %v8121 = vadd.f32 %v7960, %v8120
        %v8122 = vpop.f32.mrf.mxu0
        %v8123 = vpop.f32.mrf.mxu0
        %v8124 = vadd.f32 %v7963, %v8123
        %v8125 = vpop.f32.mrf.mxu0
        %8126 = vmatprep.mubr.bf16.mxu0 %v7504
        %8127 = vmatmul.mubr.bf16.gmra.mxu0 %v7503
        %v8128 = vpop.f32.mrf.mxu0
        %v8129 = vadd.f32 %v7968, %v8128
        %v8130 = vpop.f32.mrf.mxu0
        %v8131 = vpop.f32.mrf.mxu0
        %v8132 = vadd.f32 %v7971, %v8131
        %v8133 = vpop.f32.mrf.mxu0
        %8134 = vmatprep.mubr.bf16.mxu0 %v7509
        %8135 = vmatmul.mubr.bf16.gmra.mxu0 %v7508
        %v8136 = vpop.f32.mrf.mxu0
        %v8137 = vadd.f32 %v7976, %v8136
        %v8138 = vpop.f32.mrf.mxu0
        %v8139 = vpop.f32.mrf.mxu0
        %v8140 = vadd.f32 %v7979, %v8139
        %v8141 = vpop.f32.mrf.mxu0
        %8142 = vmatprep.mubr.bf16.mxu0 %v7514
        %8143 = vmatmul.mubr.bf16.gmra.mxu0 %v7513
        %v8144 = vpop.f32.mrf.mxu0
        %v8145 = vadd.f32 %v7984, %v8144
        %v8146 = vpop.f32.mrf.mxu0
        %v8147 = vpop.f32.mrf.mxu0
        %v8148 = vadd.f32 %v7987, %v8147
        %v8149 = vpop.f32.mrf.mxu0
        %8150 = vmatprep.mubr.bf16.mxu0 %v7519
        %8151 = vmatmul.mubr.bf16.gmra.mxu0 %v7518
        %v8152 = vpop.f32.mrf.mxu0
        %v8153 = vadd.f32 %v7992, %v8152
        %v8154 = vpop.f32.mrf.mxu0
        %v8155 = vpop.f32.mrf.mxu0
        %v8156 = vadd.f32 %v7995, %v8155
        %v8157 = vpop.f32.mrf.mxu0
        %8158 = vmatprep.mubr.bf16.mxu0 %v7524
        %8159 = vmatmul.mubr.bf16.gmra.mxu0 %v7523
        %v8160 = vpop.f32.mrf.mxu0
        %v8161 = vadd.f32 %v8000, %v8160
        %v8162 = vpop.f32.mrf.mxu0
        %v8163 = vpop.f32.mrf.mxu0
        %v8164 = vadd.f32 %v8003, %v8163
        %v8165 = vpop.f32.mrf.mxu0
        %8166 = vmatprep.mubr.bf16.mxu0 %v7529
        %8167 = vmatmul.mubr.bf16.gmra.mxu0 %v7528
        %v8168 = vpop.f32.mrf.mxu0
        %v8169 = vadd.f32 %v8008, %v8168
        %v8170 = vpop.f32.mrf.mxu0
        %v8171 = vpop.f32.mrf.mxu0
        %v8172 = vadd.f32 %v8011, %v8171
        %v8173 = vpop.f32.mrf.mxu0
        %8174 = vmatprep.mubr.bf16.mxu0 %v7534
        %8175 = vmatmul.mubr.bf16.gmra.mxu0 %v7533
        %v8176 = vpop.f32.mrf.mxu0
        %v8177 = vadd.f32 %v8016, %v8176
        %v8178 = vpop.f32.mrf.mxu0
        %v8179 = vpop.f32.mrf.mxu0
        %v8180 = vadd.f32 %v8019, %v8179
        %v8181 = vpop.f32.mrf.mxu0
        %8182 = vmatprep.mubr.bf16.mxu0 %v7539
        %8183 = vmatmul.mubr.bf16.gmra.mxu0 %v7538
        %v8184 = vpop.f32.mrf.mxu0
        %v8185 = vadd.f32 %v8024, %v8184
        %v8186 = vpop.f32.mrf.mxu0
        %v8187 = vpop.f32.mrf.mxu0
        %v8188 = vadd.f32 %v8027, %v8187
        %v8189 = vpop.f32.mrf.mxu0
        %8190 = vdwg.mxu0
        %8191 = vmatprep.subr.bf16.mxu0 0
        %8192 = vmatpush1.bf16.msra.mxu0 0
        %8193 = vmatprep.subr.bf16.mxu0 0
        %8194 = vmatpush1.bf16.msra.mxu0 0
        %8195 = vmatprep.subr.bf16.mxu0 0
        %8196 = vmatpush1.bf16.msra.mxu0 0
        %8197 = vmatprep.subr.bf16.mxu0 0
        %8198 = vmatpush1.bf16.msra.mxu0 0
        %8199 = vmatprep.subr.bf16.mxu0 0
        %8200 = vmatpush1.bf16.msra.mxu0 %v7784
        %8201 = vmatprep.subr.bf16.mxu0 0
        %8202 = vmatpush1.bf16.msra.mxu0 %v7783
        %8203 = vmatprep.subr.bf16.mxu0 0
        %8204 = vmatpush1.bf16.msra.mxu0 %v7782
        %8205 = vmatprep.subr.bf16.mxu0 0
        %8206 = vmatpush1.bf16.msra.mxu0 %v7781
        %8207 = vmatprep.subr.bf16.mxu0 0
        %8208 = vmatpush2.bf16.msra.mxu0 0
        %8209 = vmatprep.subr.bf16.mxu0 0
        %8210 = vmatpush2.bf16.msra.mxu0 0
        %8211 = vmatprep.subr.bf16.mxu0 0
        %8212 = vmatpush2.bf16.msra.mxu0 0
        %8213 = vmatprep.subr.bf16.mxu0 0
        %8214 = vmatpush2.bf16.msra.mxu0 0
        %8215 = vmatprep.subr.bf16.mxu0 0
        %8216 = vmatpush2.bf16.msra.mxu0 0
        %8217 = vmatprep.subr.bf16.mxu0 0
        %8218 = vmatpush2.bf16.msra.mxu0 0
        %8219 = vmatprep.subr.bf16.mxu0 0
        %8220 = vmatpush2.bf16.msra.mxu0 0
        %8221 = vmatprep.subr.bf16.mxu0 0
        %8222 = vmatpush2.bf16.msra.mxu0 0
        %8223 = vmatprep.mubr.bf16.mxu0 0
        %8224 = vmatmul.mubr.bf16.gmra.mxu0 %v7822
        %v8225 = vpop.f32.mrf.mxu0
        %v8226 = vadd.f32 %v8065, %v8225
        %v8227 = vpop.f32.mrf.mxu0
        %v8228 = vpop.f32.mrf.mxu0
        %v8229 = vadd.f32 %v8068, %v8228
        %v8230 = vpop.f32.mrf.mxu0
        %8231 = vmatprep.mubr.bf16.mxu0 0
        %8232 = vmatmul.mubr.bf16.gmra.mxu0 %v7825
        %v8233 = vpop.f32.mrf.mxu0
        %v8234 = vadd.f32 %v8073, %v8233
        %v8235 = vpop.f32.mrf.mxu0
        %v8236 = vpop.f32.mrf.mxu0
        %v8237 = vadd.f32 %v8076, %v8236
        %v8238 = vpop.f32.mrf.mxu0
        %8239 = vmatprep.mubr.bf16.mxu0 0
        %8240 = vmatmul.mubr.bf16.gmra.mxu0 %v7828
        %v8241 = vpop.f32.mrf.mxu0
        %v8242 = vadd.f32 %v8081, %v8241
        %v8243 = vpop.f32.mrf.mxu0
        %v8244 = vpop.f32.mrf.mxu0
        %v8245 = vadd.f32 %v8084, %v8244
        %v8246 = vpop.f32.mrf.mxu0
        %8247 = vmatprep.mubr.bf16.mxu0 0
        %8248 = vmatmul.mubr.bf16.gmra.mxu0 %v7831
        %v8249 = vpop.f32.mrf.mxu0
        %v8250 = vadd.f32 %v8089, %v8249
        %v8251 = vpop.f32.mrf.mxu0
        %v8252 = vpop.f32.mrf.mxu0
        %v8253 = vadd.f32 %v8092, %v8252
        %v8254 = vpop.f32.mrf.mxu0
        %8255 = vmatprep.mubr.bf16.mxu0 0
        %8256 = vmatmul.mubr.bf16.gmra.mxu0 %v7834
        %v8257 = vpop.f32.mrf.mxu0
        %v8258 = vadd.f32 %v8097, %v8257
        %v8259 = vpop.f32.mrf.mxu0
        %v8260 = vpop.f32.mrf.mxu0
        %v8261 = vadd.f32 %v8100, %v8260
        %v8262 = vpop.f32.mrf.mxu0
        %8263 = vmatprep.mubr.bf16.mxu0 0
        %8264 = vmatmul.mubr.bf16.gmra.mxu0 %v7837
        %v8265 = vpop.f32.mrf.mxu0
        %v8266 = vadd.f32 %v8105, %v8265
        %v8267 = vpop.f32.mrf.mxu0
        %v8268 = vpop.f32.mrf.mxu0
        %v8269 = vadd.f32 %v8108, %v8268
        %v8270 = vpop.f32.mrf.mxu0
        %8271 = vmatprep.mubr.bf16.mxu0 0
        %8272 = vmatmul.mubr.bf16.gmra.mxu0 %v7840
        %v8273 = vpop.f32.mrf.mxu0
        %v8274 = vadd.f32 %v8113, %v8273
        %v8275 = vpop.f32.mrf.mxu0
        %v8276 = vpop.f32.mrf.mxu0
        %v8277 = vadd.f32 %v8116, %v8276
        %v8278 = vpop.f32.mrf.mxu0
        %8279 = vmatprep.mubr.bf16.mxu0 0
        %8280 = vmatmul.mubr.bf16.gmra.mxu0 %v7843
        %v8281 = vpop.f32.mrf.mxu0
        %v8282 = vadd.f32 %v8121, %v8281
        %v8283 = vpop.f32.mrf.mxu0
        %v8284 = vpop.f32.mrf.mxu0
        %v8285 = vadd.f32 %v8124, %v8284
        %v8286 = vpop.f32.mrf.mxu0
        %8287 = vmatprep.mubr.bf16.mxu0 0
        %8288 = vmatmul.mubr.bf16.gmra.mxu0 %v7846
        %v8289 = vpop.f32.mrf.mxu0
        %v8290 = vadd.f32 %v8129, %v8289
        %v8291 = vpop.f32.mrf.mxu0
        %v8292 = vpop.f32.mrf.mxu0
        %v8293 = vadd.f32 %v8132, %v8292
        %v8294 = vpop.f32.mrf.mxu0
        %8295 = vmatprep.mubr.bf16.mxu0 0
        %8296 = vmatmul.mubr.bf16.gmra.mxu0 %v7849
        %v8297 = vpop.f32.mrf.mxu0
        %v8298 = vadd.f32 %v8137, %v8297
        %v8299 = vpop.f32.mrf.mxu0
        %v8300 = vpop.f32.mrf.mxu0
        %v8301 = vadd.f32 %v8140, %v8300
        %v8302 = vpop.f32.mrf.mxu0
        %8303 = vmatprep.mubr.bf16.mxu0 0
        %8304 = vmatmul.mubr.bf16.gmra.mxu0 %v7852
        %v8305 = vpop.f32.mrf.mxu0
        %v8306 = vadd.f32 %v8145, %v8305
        %v8307 = vpop.f32.mrf.mxu0
        %v8308 = vpop.f32.mrf.mxu0
        %v8309 = vadd.f32 %v8148, %v8308
        %v8310 = vpop.f32.mrf.mxu0
        %8311 = vmatprep.mubr.bf16.mxu0 0
        %8312 = vmatmul.mubr.bf16.gmra.mxu0 %v7855
        %v8313 = vpop.f32.mrf.mxu0
        %v8314 = vadd.f32 %v8153, %v8313
        %v8315 = vpop.f32.mrf.mxu0
        %v8316 = vpop.f32.mrf.mxu0
        %v8317 = vadd.f32 %v8156, %v8316
        %v8318 = vpop.f32.mrf.mxu0
        %8319 = vmatprep.mubr.bf16.mxu0 0
        %8320 = vmatmul.mubr.bf16.gmra.mxu0 %v7858
        %v8321 = vpop.f32.mrf.mxu0
        %v8322 = vadd.f32 %v8161, %v8321
        %v8323 = vpop.f32.mrf.mxu0
        %v8324 = vpop.f32.mrf.mxu0
        %v8325 = vadd.f32 %v8164, %v8324
        %v8326 = vpop.f32.mrf.mxu0
        %8327 = vmatprep.mubr.bf16.mxu0 0
        %8328 = vmatmul.mubr.bf16.gmra.mxu0 %v7861
        %v8329 = vpop.f32.mrf.mxu0
        %v8330 = vadd.f32 %v8169, %v8329
        %v8331 = vpop.f32.mrf.mxu0
        %v8332 = vpop.f32.mrf.mxu0
        %v8333 = vadd.f32 %v8172, %v8332
        %v8334 = vpop.f32.mrf.mxu0
        %8335 = vmatprep.mubr.bf16.mxu0 0
        %8336 = vmatmul.mubr.bf16.gmra.mxu0 %v7864
        %v8337 = vpop.f32.mrf.mxu0
        %v8338 = vadd.f32 %v8177, %v8337
        %v8339 = vpop.f32.mrf.mxu0
        %v8340 = vpop.f32.mrf.mxu0
        %v8341 = vadd.f32 %v8180, %v8340
        %v8342 = vpop.f32.mrf.mxu0
        %8343 = vmatprep.mubr.bf16.mxu0 0
        %8344 = vmatmul.mubr.bf16.gmra.mxu0 %v7867
        %v8345 = vpop.f32.mrf.mxu0
        %v8346 = vadd.f32 %v8185, %v8345
        %v8347 = vpop.f32.mrf.mxu0
        %v8348 = vpop.f32.mrf.mxu0
        %v8349 = vadd.f32 %v8188, %v8348
        %v8350 = vpop.f32.mrf.mxu0
        %8351 = vdwg.mxu0
        %v8352 = vpack.c.bf16 %v471, %v470
        %v8353 = vpack.c.bf16 %v473, %v472
        %v8354 = vpack.c.bf16 %v475, %v474
        %v8355 = vpack.c.bf16 %v477, %v476
        %v8356 = vpack.c.bf16 %v479, %v478
        %v8357 = vpack.c.bf16 %v481, %v480
        %v8358 = vpack.c.bf16 %v483, %v482
        %v8359 = vpack.c.bf16 %v485, %v484
        %v8360 = vpack.c.bf16 %v487, %v486
        %v8361 = vpack.c.bf16 %v489, %v488
        %v8362 = vpack.c.bf16 %v491, %v490
        %v8363 = vpack.c.bf16 %v493, %v492
        %v8364 = vpack.c.bf16 %v495, %v494
        %v8365 = vpack.c.bf16 %v497, %v496
        %v8366 = vpack.c.bf16 %v499, %v498
        %v8367 = vpack.c.bf16 %v501, %v500
        %v8368 = vld [vmem:[%s11] sm:$0xf]
        %v8369 = vld [vmem:[%s11 + $0x4] sm:$0xf]
        %v8370 = vld [vmem:[%s11 + $0x8] sm:$0xf]
        %v8371 = vld [vmem:[%s11 + $0xc] sm:$0xf]
        %v8372 = vld [vmem:[%s12] sm:$0x1]
        %v8374 = vlaneseq
        %v8375 = vshrl.u32 %v8374, 7
        %v8376 = vsub.s32 0, %v8375
        %v8377 = vrot.slane %v8372, %v8376
        %v8383 = vunpack.c.l.b16 %v8368
        %v8384 = vunpack.c.l.b16 %v8369
        %v8385 = vunpack.c.l.b16 %v8370
        %v8386 = vunpack.c.l.b16 %v8371
        %v8387 = vpack.c.b16 %v8384, %v8383
        %v8388 = vpack.c.b16 %v8386, %v8385
        %v8392 = vsel %vm502, %v8352, 0
        %v8395 = vsel %vm502, %v8353, 0
        %v8398 = vsel %vm502, %v8354, 0
        %v8401 = vsel %vm502, %v8355, 0
        %v8404 = vsel %vm502, %v8356, 0
        %v8407 = vsel %vm502, %v8357, 0
        %v8410 = vsel %vm502, %v8358, 0
        %v8413 = vsel %vm502, %v8359, 0
        %v8416 = vsel %vm502, %v8360, 0
        %v8419 = vsel %vm502, %v8361, 0
        %v8422 = vsel %vm502, %v8362, 0
        %v8425 = vsel %vm502, %v8363, 0
        %v8428 = vsel %vm502, %v8364, 0
        %v8431 = vsel %vm502, %v8365, 0
        %v8434 = vsel %vm502, %v8366, 0
        %v8437 = vsel %vm502, %v8367, 0
        %8439 = vmatprep.subr.bf16.mxu0 0
        %8440 = vmatpush1.bf16.msra.mxu0 0
        %8441 = vmatprep.subr.bf16.mxu0 0
        %8442 = vmatpush1.bf16.msra.mxu0 0
        %8443 = vmatprep.subr.bf16.mxu0 0
        %8444 = vmatpush1.bf16.msra.mxu0 0
        %8445 = vmatprep.subr.bf16.mxu0 0
        %8446 = vmatpush1.bf16.msra.mxu0 0
        %8447 = vmatprep.subr.bf16.mxu0 0
        %8448 = vmatpush1.bf16.msra.mxu0 0
        %8449 = vmatprep.subr.bf16.mxu0 0
        %8450 = vmatpush1.bf16.msra.mxu0 0
        %8451 = vmatprep.subr.bf16.mxu0 0
        %8452 = vmatpush1.bf16.msra.mxu0 %v8388
        %8453 = vmatprep.subr.bf16.mxu0 0
        %8454 = vmatpush1.bf16.msra.mxu0 %v8387
        %8455 = vmatprep.subr.bf16.mxu0 0
        %8456 = vmatpush2.bf16.msra.mxu0 0
        %8457 = vmatprep.subr.bf16.mxu0 0
        %8458 = vmatpush2.bf16.msra.mxu0 0
        %8459 = vmatprep.subr.bf16.mxu0 0
        %8460 = vmatpush2.bf16.msra.mxu0 0
        %8461 = vmatprep.subr.bf16.mxu0 0
        %8462 = vmatpush2.bf16.msra.mxu0 0
        %8463 = vmatprep.subr.bf16.mxu0 0
        %8464 = vmatpush2.bf16.msra.mxu0 0
        %8465 = vmatprep.subr.bf16.mxu0 0
        %8466 = vmatpush2.bf16.msra.mxu0 0
        %8467 = vmatprep.subr.bf16.mxu0 0
        %8468 = vmatpush2.bf16.msra.mxu0 0
        %8469 = vmatprep.subr.bf16.mxu0 0
        %8470 = vmatpush2.bf16.msra.mxu0 0
        %8471 = vmatprep.mubr.bf16.mxu0 0
        %8472 = vmatmul.mubr.bf16.gmra.mxu0 %v8392
        %v8473 = vpop.f32.mrf.mxu0
        %v8474 = vadd.f32 %v8377, %v8473
        %v8475 = vpop.f32.mrf.mxu0
        %v8476 = vpop.f32.mrf.mxu0
        %v8477 = vadd.f32 %v8377, %v8476
        %v8478 = vpop.f32.mrf.mxu0
        %8479 = vmatprep.mubr.bf16.mxu0 0
        %8480 = vmatmul.mubr.bf16.gmra.mxu0 %v8395
        %v8481 = vpop.f32.mrf.mxu0
        %v8482 = vadd.f32 %v8377, %v8481
        %v8483 = vpop.f32.mrf.mxu0
        %v8484 = vpop.f32.mrf.mxu0
        %v8485 = vadd.f32 %v8377, %v8484
        %v8486 = vpop.f32.mrf.mxu0
        %8487 = vmatprep.mubr.bf16.mxu0 0
        %8488 = vmatmul.mubr.bf16.gmra.mxu0 %v8398
        %v8489 = vpop.f32.mrf.mxu0
        %v8490 = vadd.f32 %v8377, %v8489
        %v8491 = vpop.f32.mrf.mxu0
        %v8492 = vpop.f32.mrf.mxu0
        %v8493 = vadd.f32 %v8377, %v8492
        %v8494 = vpop.f32.mrf.mxu0
        %8495 = vmatprep.mubr.bf16.mxu0 0
        %8496 = vmatmul.mubr.bf16.gmra.mxu0 %v8401
        %v8497 = vpop.f32.mrf.mxu0
        %v8498 = vadd.f32 %v8377, %v8497
        %v8499 = vpop.f32.mrf.mxu0
        %v8500 = vpop.f32.mrf.mxu0
        %v8501 = vadd.f32 %v8377, %v8500
        %v8502 = vpop.f32.mrf.mxu0
        %8503 = vmatprep.mubr.bf16.mxu0 0
        %8504 = vmatmul.mubr.bf16.gmra.mxu0 %v8404
        %v8505 = vpop.f32.mrf.mxu0
        %v8506 = vadd.f32 %v8377, %v8505
        %v8507 = vpop.f32.mrf.mxu0
        %v8508 = vpop.f32.mrf.mxu0
        %v8509 = vadd.f32 %v8377, %v8508
        %v8510 = vpop.f32.mrf.mxu0
        %8511 = vmatprep.mubr.bf16.mxu0 0
        %8512 = vmatmul.mubr.bf16.gmra.mxu0 %v8407
        %v8513 = vpop.f32.mrf.mxu0
        %v8514 = vadd.f32 %v8377, %v8513
        %v8515 = vpop.f32.mrf.mxu0
        %v8516 = vpop.f32.mrf.mxu0
        %v8517 = vadd.f32 %v8377, %v8516
        %v8518 = vpop.f32.mrf.mxu0
        %8519 = vmatprep.mubr.bf16.mxu0 0
        %8520 = vmatmul.mubr.bf16.gmra.mxu0 %v8410
        %v8521 = vpop.f32.mrf.mxu0
        %v8522 = vadd.f32 %v8377, %v8521
        %v8523 = vpop.f32.mrf.mxu0
        %v8524 = vpop.f32.mrf.mxu0
        %v8525 = vadd.f32 %v8377, %v8524
        %v8526 = vpop.f32.mrf.mxu0
        %8527 = vmatprep.mubr.bf16.mxu0 0
        %8528 = vmatmul.mubr.bf16.gmra.mxu0 %v8413
        %v8529 = vpop.f32.mrf.mxu0
        %v8530 = vadd.f32 %v8377, %v8529
        %v8531 = vpop.f32.mrf.mxu0
        %v8532 = vpop.f32.mrf.mxu0
        %v8533 = vadd.f32 %v8377, %v8532
        %v8534 = vpop.f32.mrf.mxu0
        %8535 = vmatprep.mubr.bf16.mxu0 0
        %8536 = vmatmul.mubr.bf16.gmra.mxu0 %v8416
        %v8537 = vpop.f32.mrf.mxu0
        %v8538 = vadd.f32 %v8377, %v8537
        %v8539 = vpop.f32.mrf.mxu0
        %v8540 = vpop.f32.mrf.mxu0
        %v8541 = vadd.f32 %v8377, %v8540
        %v8542 = vpop.f32.mrf.mxu0
        %8543 = vmatprep.mubr.bf16.mxu0 0
        %8544 = vmatmul.mubr.bf16.gmra.mxu0 %v8419
        %v8545 = vpop.f32.mrf.mxu0
        %v8546 = vadd.f32 %v8377, %v8545
        %v8547 = vpop.f32.mrf.mxu0
        %v8548 = vpop.f32.mrf.mxu0
        %v8549 = vadd.f32 %v8377, %v8548
        %v8550 = vpop.f32.mrf.mxu0
        %8551 = vmatprep.mubr.bf16.mxu0 0
        %8552 = vmatmul.mubr.bf16.gmra.mxu0 %v8422
        %v8553 = vpop.f32.mrf.mxu0
        %v8554 = vadd.f32 %v8377, %v8553
        %v8555 = vpop.f32.mrf.mxu0
        %v8556 = vpop.f32.mrf.mxu0
        %v8557 = vadd.f32 %v8377, %v8556
        %v8558 = vpop.f32.mrf.mxu0
        %8559 = vmatprep.mubr.bf16.mxu0 0
        %8560 = vmatmul.mubr.bf16.gmra.mxu0 %v8425
        %v8561 = vpop.f32.mrf.mxu0
        %v8562 = vadd.f32 %v8377, %v8561
        %v8563 = vpop.f32.mrf.mxu0
        %v8564 = vpop.f32.mrf.mxu0
        %v8565 = vadd.f32 %v8377, %v8564
        %v8566 = vpop.f32.mrf.mxu0
        %8567 = vmatprep.mubr.bf16.mxu0 0
        %8568 = vmatmul.mubr.bf16.gmra.mxu0 %v8428
        %v8569 = vpop.f32.mrf.mxu0
        %v8570 = vadd.f32 %v8377, %v8569
        %v8571 = vpop.f32.mrf.mxu0
        %v8572 = vpop.f32.mrf.mxu0
        %v8573 = vadd.f32 %v8377, %v8572
        %v8574 = vpop.f32.mrf.mxu0
        %8575 = vmatprep.mubr.bf16.mxu0 0
        %8576 = vmatmul.mubr.bf16.gmra.mxu0 %v8431
        %v8577 = vpop.f32.mrf.mxu0
        %v8578 = vadd.f32 %v8377, %v8577
        %v8579 = vpop.f32.mrf.mxu0
        %v8580 = vpop.f32.mrf.mxu0
        %v8581 = vadd.f32 %v8377, %v8580
        %v8582 = vpop.f32.mrf.mxu0
        %8583 = vmatprep.mubr.bf16.mxu0 0
        %8584 = vmatmul.mubr.bf16.gmra.mxu0 %v8434
        %v8585 = vpop.f32.mrf.mxu0
        %v8586 = vadd.f32 %v8377, %v8585
        %v8587 = vpop.f32.mrf.mxu0
        %v8588 = vpop.f32.mrf.mxu0
        %v8589 = vadd.f32 %v8377, %v8588
        %v8590 = vpop.f32.mrf.mxu0
        %8591 = vmatprep.mubr.bf16.mxu0 0
        %8592 = vmatmul.mubr.bf16.gmra.mxu0 %v8437
        %v8593 = vpop.f32.mrf.mxu0
        %v8594 = vadd.f32 %v8377, %v8593
        %v8595 = vpop.f32.mrf.mxu0
        %v8596 = vpop.f32.mrf.mxu0
        %v8597 = vadd.f32 %v8377, %v8596
        %v8598 = vpop.f32.mrf.mxu0
        %8599 = vdwg.mxu0
        %v8600 = vadd.f32 %v8474, %v8226
        %v8601 = vadd.f32 %v8477, %v8229
        %v8602 = vadd.f32 %v8482, %v8234
        %v8603 = vadd.f32 %v8485, %v8237
        %v8604 = vadd.f32 %v8490, %v8242
        %v8605 = vadd.f32 %v8493, %v8245
        %v8606 = vadd.f32 %v8498, %v8250
        %v8607 = vadd.f32 %v8501, %v8253
        %v8608 = vadd.f32 %v8506, %v8258
        %v8609 = vadd.f32 %v8509, %v8261
        %v8610 = vadd.f32 %v8514, %v8266
        %v8611 = vadd.f32 %v8517, %v8269
        %v8612 = vadd.f32 %v8522, %v8274
        %v8613 = vadd.f32 %v8525, %v8277
        %v8614 = vadd.f32 %v8530, %v8282
        %v8615 = vadd.f32 %v8533, %v8285
        %v8616 = vadd.f32 %v8538, %v8290
        %v8617 = vadd.f32 %v8541, %v8293
        %v8618 = vadd.f32 %v8546, %v8298
        %v8619 = vadd.f32 %v8549, %v8301
        %v8620 = vadd.f32 %v8554, %v8306
        %v8621 = vadd.f32 %v8557, %v8309
        %v8622 = vadd.f32 %v8562, %v8314
        %v8623 = vadd.f32 %v8565, %v8317
        %v8624 = vadd.f32 %v8570, %v8322
        %v8625 = vadd.f32 %v8573, %v8325
        %v8626 = vadd.f32 %v8578, %v8330
        %v8627 = vadd.f32 %v8581, %v8333
        %v8628 = vadd.f32 %v8586, %v8338
        %v8629 = vadd.f32 %v8589, %v8341
        %v8630 = vadd.f32 %v8594, %v8346
        %v8631 = vadd.f32 %v8597, %v8349
        %8632 = vst.msk [vmem:[%s463] sm:$0xff] %vm3745, %v8600
        %8633 = vst.msk [vmem:[%s463 + $0x8] sm:$0xff] %vm3745, %v8601
        %8634 = vst.msk [vmem:[%s463 + $0x10] sm:$0xff] %vm3745, %v8602
        %8635 = vst.msk [vmem:[%s463 + $0x18] sm:$0xff] %vm3745, %v8603
        %8636 = vst.msk [vmem:[%s463 + $0x20] sm:$0xff] %vm3745, %v8604
        %8637 = vst.msk [vmem:[%s463 + $0x28] sm:$0xff] %vm3745, %v8605
        %8638 = vst.msk [vmem:[%s463 + $0x30] sm:$0xff] %vm3745, %v8606
        %8639 = vst.msk [vmem:[%s463 + $0x38] sm:$0xff] %vm3745, %v8607
        %8640 = vst.msk [vmem:[%s463 + $0x40] sm:$0xff] %vm3745, %v8608
        %8641 = vst.msk [vmem:[%s463 + $0x48] sm:$0xff] %vm3745, %v8609
        %8642 = vst.msk [vmem:[%s463 + $0x50] sm:$0xff] %vm3745, %v8610
        %8643 = vst.msk [vmem:[%s463 + $0x58] sm:$0xff] %vm3745, %v8611
        %8644 = vst.msk [vmem:[%s463 + $0x60] sm:$0xff] %vm3745, %v8612
        %8645 = vst.msk [vmem:[%s463 + $0x68] sm:$0xff] %vm3745, %v8613
        %8646 = vst.msk [vmem:[%s463 + $0x70] sm:$0xff] %vm3745, %v8614
        %8647 = vst.msk [vmem:[%s463 + $0x78] sm:$0xff] %vm3745, %v8615
        %8648 = vst.msk [vmem:[%s463 + $0x80] sm:$0xff] %vm3745, %v8616
        %8649 = vst.msk [vmem:[%s463 + $0x88] sm:$0xff] %vm3745, %v8617
        %8650 = vst.msk [vmem:[%s463 + $0x90] sm:$0xff] %vm3745, %v8618
        %8651 = vst.msk [vmem:[%s463 + $0x98] sm:$0xff] %vm3745, %v8619
        %8652 = vst.msk [vmem:[%s463 + $0xa0] sm:$0xff] %vm3745, %v8620
        %8653 = vst.msk [vmem:[%s463 + $0xa8] sm:$0xff] %vm3745, %v8621
        %8654 = vst.msk [vmem:[%s463 + $0xb0] sm:$0xff] %vm3745, %v8622
        %8655 = vst.msk [vmem:[%s463 + $0xb8] sm:$0xff] %vm3745, %v8623
        %8656 = vst.msk [vmem:[%s463 + $0xc0] sm:$0xff] %vm3745, %v8624
        %8657 = vst.msk [vmem:[%s463 + $0xc8] sm:$0xff] %vm3745, %v8625
        %8658 = vst.msk [vmem:[%s463 + $0xd0] sm:$0xff] %vm3745, %v8626
        %8659 = vst.msk [vmem:[%s463 + $0xd8] sm:$0xff] %vm3745, %v8627
        %8660 = vst.msk [vmem:[%s463 + $0xe0] sm:$0xff] %vm3745, %v8628
        %8661 = vst.msk [vmem:[%s463 + $0xe8] sm:$0xff] %vm3745, %v8629
        %8662 = vst.msk [vmem:[%s463 + $0xf0] sm:$0xff] %vm3745, %v8630
        %8663 = vst.msk [vmem:[%s463 + $0xf8] sm:$0xff] %vm3745, %v8631
        %s8664 = sand.u32 %s315, 1
        %s8665 = scalar_lea.sflag [#allocation6], %s8664
        %s8666 = sand.u32 %s315, 1
        %s8667 = smul.addr %s8666, 256
        %s8668 = scalar_lea.vmem [#allocation9], %s8667
        // Predicated region
        $region81: #{tpu_custom_call.1} parent=71 // pred_check
          %p8669 = pneg %p325
        $region82: #{tpu_custom_call.1} parent=71 // pred_check_branch
          %8671 = sbr.rel (%p8669) target = $region84
        $region83: #{tpu_custom_call.1} parent=71 // pred_region
          %s8673 = ssub.s32 4096, 4096
          %8674 = vsyncadd %s8665, %s8673
          %s8675 = smul.addr %s29, 32
          %s8676 = smul.addr %s8675, 128
          %s8677 = scalar_lea.hbm %s13, %s8676
          %s8678 = sshll.u32 %s8668, 4
          %s8679 = int_to_ptr.vmem [resolvable:$true] %s8678
          %8684 = dma.vmem_to_hbm [thread:$0]  %s8679, 4096, %s8677, %s8665, 128, 128, 8
        $region84: #{tpu_custom_call.1} parent=71 // pred_fallthru
          _
      $region72: #{tpu_custom_call.1} parent=5 // pred_fallthru
        _
      %p8685 = scmp.le.s32.totalorder 2, %s24
      // Predicated region
      $region85: #{tpu_custom_call.1} parent=5 // pred_check
        %p8686 = pneg %p8685
      $region86: #{tpu_custom_call.1} parent=5 // pred_check_branch
        %8688 = sbr.rel (%p8686) target = $region88
      $region87: #{tpu_custom_call.1} parent=5 // pred_region
        %s8689 = ssub.s32 %s24, 2
        // Predicated region
        $region89: #{tpu_custom_call.1} parent=87 // pred_check
          %p8690 = pneg %p331
        $region90: #{tpu_custom_call.1} parent=87 // pred_check_branch
          %8692 = sbr.rel (%p8690) target = $region92
        $region91: #{tpu_custom_call.1} parent=87 // pred_region
          %s8693 = sand.u32 %s316, 1
          %s8694 = scalar_lea.sflag [#allocation6], %s8693
          %s8695 = sand.u32 %s316, 1
          %s8696 = smul.addr %s8695, 256
          %s8697 = scalar_lea.vmem [#allocation9], %s8696
          %8698 = dma.done %s8694, 4096
        $region92: #{tpu_custom_call.1} parent=87 // pred_fallthru
          _
      $region88: #{tpu_custom_call.1} parent=5 // pred_fallthru
        _
    $region6: #{tpu_custom_call.1} parent=1 // loop_footer
      %s28 = sadd.s32 1, %s24
    $region7: #{tpu_custom_call.1} parent=1 // loop_footer_branch
      %23 = sbr.rel target = $region3
    $region8: #{tpu_custom_call.1} parent=1 // loop_exit
      _
    %8699 = vsyncpa [#allocation5], 1
    %s8700 = scalar_lea.sflag [#allocation5], 1
    %8701 = vsyncpa %s8700, 1
    %8702 = vsyncpa [#allocation8], 1
    %8703 = vsyncpa [#allocation6], 1
    %s8704 = scalar_lea.sflag [#allocation6], 1
    %8705 = vsyncpa %s8704, 1

</llo_original>
